<compile_context>
chip_gen: v7x
topology: tpu7x:2x2x1
jax: 0.10.0
libtpu: 0.0.40
codegen_flags: <defaults>
</compile_context>

<pallas_src>
import math
import numpy as np
import jax
import jax.numpy as jnp
from jax.experimental import pallas as pl
from jax.experimental.pallas import tpu as pltpu


# ----------------------------------------------------------------------------- constants

def _triplet_bf16(m):
    """Pack a complex constant matrix M = Mr + i*Mi as the Gauss triplet
    [Mr, Mi - Mr, Mr + Mi], cast to bf16 for single-pass MXU matmuls."""
    mr = np.real(m)
    mi = np.imag(m)
    stack = np.stack([mr, mi - mr, mr + mi], axis=0).astype(np.float32)
    return jnp.asarray(stack).astype(jnp.bfloat16)


def _dft_consts(H, W):
    """Dense rectangular DFT matrices with zero-pad (forward) / crop + 1/N (inverse)
    folded in.  No block-diagonal coil expansion."""
    n2h, n2w = 2 * H, 2 * W
    kh = np.arange(n2h)
    kw = np.arange(n2w)
    Fh_full = np.exp(-2j * np.pi * np.outer(kh, kh) / n2h)
    Gh_full = np.exp(+2j * np.pi * np.outer(kh, kh) / n2h) / n2h
    Fw_full = np.exp(-2j * np.pi * np.outer(kw, kw) / n2w)
    Gw_full = np.exp(+2j * np.pi * np.outer(kw, kw) / n2w) / n2w

    Fh = Fh_full[:, :H]        # (2H, H)   left-multiply, zero-pad folded
    Gh = Gh_full[:H, :]        # (H, 2H)   left-multiply, crop folded
    FwT = Fw_full[:W, :]       # (W, 2W)   right-multiply, zero-pad folded
    GwT = Gw_full[:, :W]       # (2W, W)   right-multiply, crop folded
    return _triplet_bf16(Fh), _triplet_bf16(FwT), _triplet_bf16(Gh), _triplet_bf16(GwT)


# ------------------------------------------------------------------------------- kernel

def _make_kernel(C, H, W, Tb):
    H2, W2 = 2 * H, 2 * W
    TbW = Tb * W
    NB = C * Tb                                    # fused (coil, frame) block count

    def dotf(a, b):
        return jnp.dot(a, b, preferred_element_type=jnp.float32)

    def bf(x):
        return x.astype(jnp.bfloat16)

    def cmul_left(cref, xr, xi):
        # (cr + i*ci) @ (xr + i*xi), constant triplet [cr, ci-cr, cr+ci] (bf16).
        t1 = dotf(cref[0], bf(xr + xi))
        t2 = dotf(cref[1], bf(xr))
        t3 = dotf(cref[2], bf(xi))
        return t1 - t3, t1 + t2

    def cmul_right(xr, xi, cref):
        # (xr + i*xi) @ (cr + i*ci), constant triplet [cr, ci-cr, cr+ci] (bf16).
        t1 = dotf(bf(xr + xi), cref[0])
        t2 = dotf(bf(xr), cref[1])
        t3 = dotf(bf(xi), cref[2])
        return t1 - t3, t1 + t2

    def kernel(x_ref, k_ref, smt_ref, fh_ref, fw_ref, gh_ref, gw_ref, o_ref):
        # frames fused along lanes: x block (2, H, Tb*W), kernel block (2, Tb*2H, 2W) bf16,
        # smaps pre-tiled over frames: (2, H, C*Tb*W) with lane order [coil, frame, w].
        xr = x_ref[0]                               # (H, Tb*W) f32
        xi = x_ref[1]
        smr = smt_ref[0]                            # (H, C*Tb*W) f32
        smi = smt_ref[1]

        # coil expansion: replicate the frame slab across coils (128-aligned lane chunks)
        xrr = jnp.concatenate([xr] * C, axis=-1)    # (H, C*Tb*W)
        xir = jnp.concatenate([xi] * C, axis=-1)
        yr = smr * xrr - smi * xir
        yi = smr * xir + smi * xrr

        # forward row DFT: one left matmul, coils+frames fused into N
        ar, ai = cmul_left(fh_ref, yr, yi)          # (2H, C*Tb*W)

        # relayout lanes -> sublanes: per-(coil,frame) (2H, W) blocks stacked along M
        amr = jnp.concatenate([ar[:, j * W:(j + 1) * W] for j in range(NB)], axis=0)
        ami = jnp.concatenate([ai[:, j * W:(j + 1) * W] for j in range(NB)], axis=0)

        # forward column DFT: one dense (W, 2W) right matmul over all blocks
        br, bi = cmul_right(amr, ami, fw_ref)       # (C*Tb*2H, 2W)

        # frequency-domain Toeplitz filter; kernel plane replicated across coils along
        # sublanes (aligned full-row copies), multiply kept in f32
        kr = jnp.concatenate([k_ref[0]] * C, axis=0).astype(jnp.float32)
        ki = jnp.concatenate([k_ref[1]] * C, axis=0).astype(jnp.float32)
        zr = br * kr - bi * ki
        zi = br * ki + bi * kr

        # inverse column DFT: dense (2W, W) right matmul
        er, ei = cmul_right(zr, zi, gw_ref)         # (C*Tb*2H, W)

        # relayout sublanes -> lanes
        elr = jnp.concatenate([er[j * H2:(j + 1) * H2, :] for j in range(NB)], axis=1)
        eli = jnp.concatenate([ei[j * H2:(j + 1) * H2, :] for j in range(NB)], axis=1)

        # inverse row DFT: one left matmul
        wr, wi = cmul_left(gh_ref, elr, eli)        # (H, C*Tb*W)

        # coil combine with conj(smaps), summed over lane-aligned Tb*W coil chunks (f32)
        pr = smr * wr + smi * wi
        pi_ = smr * wi - smi * wr
        acc_r = pr[:, 0:TbW]
        acc_i = pi_[:, 0:TbW]
        for c in range(1, C):
            acc_r = acc_r + pr[:, c * TbW:(c + 1) * TbW]
            acc_i = acc_i + pi_[:, c * TbW:(c + 1) * TbW]

        # lane-dense output store: (H, Tb*W) per real/imag plane
        o_ref[0] = acc_r
        o_ref[1] = acc_i

    return kernel


# ---------------------------------------------------------------- tiling / VMEM helpers

def _round_up(a, b):
    return -(-a // b) * b


def _chip_vmem_bytes():
    try:
        return int(pltpu.get_tpu_info().vmem_capacity_bytes)
    except Exception:
        # TODO(synk): hardware query unavailable on this backend; assume the smallest
        # current per-core VMEM (64 MiB) so the clamp below stays conservative.
        return 64 << 20


def _choose_tb(T, H, W, C, tb_cap, inter_budget):
    """Frames per grid step.  Tb*W must be a multiple of 128 so every streamed block and
    the output block are lane-dense; Tb*2H must be 16-aligned for the bf16 kernel block.
    Prefer >= 2 grid steps (megacore split) whenever the alignment quantum allows it."""
    q = 128 // math.gcd(W, 128)
    while (q * 2 * H) % 16:
        q *= 2
    per_frame = 14 * C * (2 * H) * (2 * W) * 4          # ~live f32 intermediates per frame
    tb_mem = max(q, (max(1, inter_budget // per_frame) // q) * q)
    tb_cap_q = max(q, (max(1, tb_cap) // q) * q)
    tb_par = _round_up(_round_up(T, 2) // 2, q)
    tb = max(q, min(tb_mem, tb_cap_q, tb_par))
    nblk = _round_up(T, tb) // tb
    return tb, nblk, nblk * tb


def _vmem_limit_bytes(tb, H, W, C, chip_vmem):
    f32, b16 = 4, 2
    xblk = 2 * H * tb * W * f32                       # image block (re+im)
    kblk = 2 * (tb * 2 * H) * (2 * W) * b16           # bf16 Toeplitz kernel block
    oblk = 2 * H * tb * W * f32                       # output block
    smt = 2 * H * C * tb * W * f32                    # frame-tiled smaps
    tri = 3 * b16 * (2 * H * H + W * 2 * W + H * 2 * H + 2 * W * W)
    inter = 14 * C * tb * (2 * H) * (2 * W) * f32     # live f32 intermediates (estimate)
    total = 2 * (xblk + kblk + oblk) + 2 * (smt + tri) + inter + (4 << 20)
    return int(min(max(total, 16 << 20), int(0.75 * chip_vmem)))


# ------------------------------------------------------------------------------ wrapper

def mctoep_forward(data, toep_kernel_all, smaps, *, tb_cap=32):
    """data: complex64 (H, W, T); toep_kernel_all: float32 (2H, 2W, T, 2);
    smaps: complex64 (C, H, W).  Returns complex64 (H, W, T)."""
    H, W, T = data.shape
    C = smaps.shape[0]

    chip_vmem = _chip_vmem_bytes()
    tb, nblk, Tpad = _choose_tb(T, H, W, C, tb_cap, int(0.35 * chip_vmem))
    fh, fw, gh, gw = _dft_consts(H, W)
    kernel = _make_kernel(C, H, W, tb)
    vmem_limit = _vmem_limit_bytes(tb, H, W, C, chip_vmem)

    @jax.jit
    def _run(data, toep_kernel_all, smaps):
        f32 = jnp.float32
        # ---- layout prep: one fused transpose/pad/cast pass per array (frame-major,
        # frames fused along lanes).  TODO(synk): callers that already hold these
        # frame-major real/imag layouts can skip this prolog entirely.
        d = jnp.stack([jnp.real(data), jnp.imag(data)]).astype(f32)   # (2, H, W, T)
        d = jnp.moveaxis(d, -1, 2)                                    # (2, H, T, W)
        d = jnp.pad(d, ((0, 0), (0, 0), (0, Tpad - T), (0, 0)))
        ximg = d.reshape(2, H, Tpad * W)                              # lane-dense stream

        k = jnp.transpose(toep_kernel_all.astype(f32), (3, 2, 0, 1))  # (2, T, 2H, 2W)
        k = jnp.pad(k, ((0, 0), (0, Tpad - T), (0, 0), (0, 0)))
        kin = k.reshape(2, Tpad * 2 * H, 2 * W).astype(jnp.bfloat16)  # bf16 stream

        sm = jnp.stack([jnp.real(smaps), jnp.imag(smaps)]).astype(f32)  # (2, C, H, W)
        sm = jnp.transpose(sm, (0, 2, 1, 3))                            # (2, H, C, W)
        smt = jnp.broadcast_to(sm[:, :, :, None, :],
                               (2, H, C, tb, W)).reshape(2, H, C * tb * W)

        out = pl.pallas_call(
            kernel,
            out_shape=jax.ShapeDtypeStruct((2, H, Tpad * W), f32),
            grid_spec=pltpu.PrefetchScalarGridSpec(
                num_scalar_prefetch=0,
                grid=(nblk,),
                in_specs=[
                    pl.BlockSpec((2, H, tb * W), lambda i: (0, 0, i)),          # image
                    pl.BlockSpec((2, tb * 2 * H, 2 * W), lambda i: (0, i, 0)),  # toeplitz
                    pl.BlockSpec((2, H, C * tb * W), lambda i: (0, 0, 0)),      # smaps
                    pl.BlockSpec(fh.shape, lambda i: (0, 0, 0)),                # fwd row DFT
                    pl.BlockSpec(fw.shape, lambda i: (0, 0, 0)),                # fwd col DFT
                    pl.BlockSpec(gh.shape, lambda i: (0, 0, 0)),                # inv row DFT
                    pl.BlockSpec(gw.shape, lambda i: (0, 0, 0)),                # inv col DFT
                ],
                out_specs=pl.BlockSpec((2, H, tb * W), lambda i: (0, 0, i)),
            ),
            compiler_params=pltpu.CompilerParams(
                dimension_semantics=("parallel",),
                vmem_limit_bytes=vmem_limit),
        )(ximg, kin, smt, fh, fw, gh, gw)

        o = out.reshape(2, H, Tpad, W)[:, :, :T, :]                   # drop frame padding
        x = (o[0] + 1j * o[1]).astype(jnp.complex64)                  # (H, T, W)
        return jnp.transpose(x, (0, 2, 1))                            # (H, W, T)

    return _run(data, toep_kernel_all, smaps)


# ---------------------------------------------------------------------------- reference

def _reference(data, toep_kernel_all, smaps):
    """Pure-JAX (FFT-based) reference of the same forward pass."""
    H, W, T = data.shape
    outs = []
    for t in range(T):
        img = data[:, :, t]
        K = (toep_kernel_all[:, :, t, 0] + 1j * toep_kernel_all[:, :, t, 1]).astype(jnp.complex64)
        y = smaps * img[None]                                   # (C, H, W)
        yp = jnp.zeros((smaps.shape[0], 2 * H, 2 * W), jnp.complex64).at[:, :H, :W].set(y)
        f = jnp.fft.fft2(yp) * K[None]
        g = jnp.fft.ifft2(f)[:, :H, :W]
        outs.append(jnp.sum(jnp.conj(smaps) * g, axis=0))
    return jnp.stack(outs, axis=-1).astype(jnp.complex64)


if __name__ == "__main__":
    H = W = 16
    T = 8
    C = 4

    key = jax.random.PRNGKey(0)
    k1, k2, k3, k4, k5 = jax.random.split(key, 5)
    data = (jax.random.normal(k1, (H, W, T)) +
            1j * jax.random.normal(k2, (H, W, T))).astype(jnp.complex64)
    toep_kernel_all = jax.random.normal(k3, (2 * H, 2 * W, T, 2), dtype=jnp.float32)
    smaps = (jax.random.normal(k4, (C, H, W)) +
             1j * jax.random.normal(k5, (C, H, W))).astype(jnp.complex64)

    out = mctoep_forward(data, toep_kernel_all, smaps)
    out = jax.block_until_ready(out)

    assert out.shape == (H, W, T) and out.dtype == jnp.complex64

    ref = _reference(data, toep_kernel_all, smaps)
    rel_err = float(jnp.max(jnp.abs(out - ref)) / (jnp.max(jnp.abs(ref)) + 1e-8))
    # bf16 MXU inputs + Gauss 3-mult complex matmuls bound accuracy to ~1e-2 relative at
    # this size; an algorithmic bug would show up as O(1) error.
    assert rel_err < 5e-2, f"relative error too large: {rel_err}"

    print("KERNEL_OK")
</pallas_src>

<mosaic_0001>
module attributes {stable_mosaic.version = 11 : i64} {
  func.func @kernel(%arg0: i32, %arg1: memref<2x16x128xf32, #tpu.memory_space<vmem>>, %arg2: memref<2x256x32xbf16, #tpu.memory_space<vmem>>, %arg3: memref<2x16x512xf32, #tpu.memory_space<vmem>>, %arg4: memref<3x32x16xbf16, #tpu.memory_space<vmem>>, %arg5: memref<3x16x32xbf16, #tpu.memory_space<vmem>>, %arg6: memref<3x16x32xbf16, #tpu.memory_space<vmem>>, %arg7: memref<3x32x16xbf16, #tpu.memory_space<vmem>>, %arg8: memref<2x16x128xf32, #tpu.memory_space<vmem>>) attributes {dimension_semantics = [#tpu.dimension_semantics<parallel>], iteration_bounds = array<i64: 1>, scalar_prefetch = 0 : i64, scratch_operands = 0 : i64, tpu.core_type = #tpu.core_type<tc>, window_params = [{transform_indices = @transform_0, window_bounds = array<i64: 2, 16, 128>}, {transform_indices = @transform_1, window_bounds = array<i64: 2, 256, 32>}, {pipeline_mode = #tpu.pipeline_mode<synchronous>, transform_indices = @transform_2, window_bounds = array<i64: 2, 16, 512>}, {pipeline_mode = #tpu.pipeline_mode<synchronous>, transform_indices = @transform_3, window_bounds = array<i64: 3, 32, 16>}, {pipeline_mode = #tpu.pipeline_mode<synchronous>, transform_indices = @transform_4, window_bounds = array<i64: 3, 16, 32>}, {pipeline_mode = #tpu.pipeline_mode<synchronous>, transform_indices = @transform_5, window_bounds = array<i64: 3, 16, 32>}, {pipeline_mode = #tpu.pipeline_mode<synchronous>, transform_indices = @transform_6, window_bounds = array<i64: 3, 32, 16>}, {transform_indices = @transform_7, window_bounds = array<i64: 2, 16, 128>}]} {
    %c0 = arith.constant 0 : index
    %c0_0 = arith.constant 0 : index
    %c0_1 = arith.constant 0 : index
    %0 = vector.load %arg1[%c0, %c0_0, %c0_1] : memref<2x16x128xf32, #tpu.memory_space<vmem>>, vector<1x16x128xf32>
    %1 = vector.shape_cast %0 : vector<1x16x128xf32> to vector<16x128xf32>
    %c1 = arith.constant 1 : index
    %c0_2 = arith.constant 0 : index
    %c0_3 = arith.constant 0 : index
    %2 = vector.load %arg1[%c1, %c0_2, %c0_3] : memref<2x16x128xf32, #tpu.memory_space<vmem>>, vector<1x16x128xf32>
    %3 = vector.shape_cast %2 : vector<1x16x128xf32> to vector<16x128xf32>
    %c0_4 = arith.constant 0 : index
    %c0_5 = arith.constant 0 : index
    %c0_6 = arith.constant 0 : index
    %4 = vector.load %arg3[%c0_4, %c0_5, %c0_6] : memref<2x16x512xf32, #tpu.memory_space<vmem>>, vector<1x16x512xf32>
    %5 = vector.shape_cast %4 : vector<1x16x512xf32> to vector<16x512xf32>
    %c1_7 = arith.constant 1 : index
    %c0_8 = arith.constant 0 : index
    %c0_9 = arith.constant 0 : index
    %6 = vector.load %arg3[%c1_7, %c0_8, %c0_9] : memref<2x16x512xf32, #tpu.memory_space<vmem>>, vector<1x16x512xf32>
    %7 = vector.shape_cast %6 : vector<1x16x512xf32> to vector<16x512xf32>
    %8 = tpu.concatenate %1, %1, %1, %1 in 1 : vector<16x128xf32>, vector<16x128xf32>, vector<16x128xf32>, vector<16x128xf32> -> vector<16x512xf32>
    %9 = tpu.concatenate %3, %3, %3, %3 in 1 : vector<16x128xf32>, vector<16x128xf32>, vector<16x128xf32>, vector<16x128xf32> -> vector<16x512xf32>
    %10 = arith.mulf %5, %8 : vector<16x512xf32>
    %11 = arith.mulf %7, %9 : vector<16x512xf32>
    %12 = arith.subf %10, %11 : vector<16x512xf32>
    %13 = arith.mulf %5, %9 : vector<16x512xf32>
    %14 = arith.mulf %7, %8 : vector<16x512xf32>
    %15 = arith.addf %13, %14 : vector<16x512xf32>
    %c0_10 = arith.constant 0 : index
    %c0_11 = arith.constant 0 : index
    %c0_12 = arith.constant 0 : index
    %16 = vector.load %arg4[%c0_10, %c0_11, %c0_12] : memref<3x32x16xbf16, #tpu.memory_space<vmem>>, vector<1x32x16xbf16>
    %17 = vector.shape_cast %16 : vector<1x32x16xbf16> to vector<32x16xbf16>
    %18 = arith.addf %12, %15 : vector<16x512xf32>
    %19 = arith.truncf %18 : vector<16x512xf32> to vector<16x512xbf16>
    %cst = arith.constant dense<0.000000e+00> : vector<32x512xf32>
    %20 = tpu.matmul %17, %19, %cst {dimension_numbers = #tpu.dot_dimension_numbers<[1], [0], [0], [1], [0, 0, 1, 1], [], []>} : vector<32x16xbf16>, vector<16x512xbf16>, vector<32x512xf32> -> vector<32x512xf32>
    %c1_13 = arith.constant 1 : index
    %c0_14 = arith.constant 0 : index
    %c0_15 = arith.constant 0 : index
    %21 = vector.load %arg4[%c1_13, %c0_14, %c0_15] : memref<3x32x16xbf16, #tpu.memory_space<vmem>>, vector<1x32x16xbf16>
    %22 = vector.shape_cast %21 : vector<1x32x16xbf16> to vector<32x16xbf16>
    %23 = arith.truncf %12 : vector<16x512xf32> to vector<16x512xbf16>
    %cst_16 = arith.constant dense<0.000000e+00> : vector<32x512xf32>
    %24 = tpu.matmul %22, %23, %cst_16 {dimension_numbers = #tpu.dot_dimension_numbers<[1], [0], [0], [1], [0, 0, 1, 1], [], []>} : vector<32x16xbf16>, vector<16x512xbf16>, vector<32x512xf32> -> vector<32x512xf32>
    %c2 = arith.constant 2 : index
    %c0_17 = arith.constant 0 : index
    %c0_18 = arith.constant 0 : index
    %25 = vector.load %arg4[%c2, %c0_17, %c0_18] : memref<3x32x16xbf16, #tpu.memory_space<vmem>>, vector<1x32x16xbf16>
    %26 = vector.shape_cast %25 : vector<1x32x16xbf16> to vector<32x16xbf16>
    %27 = arith.truncf %15 : vector<16x512xf32> to vector<16x512xbf16>
    %cst_19 = arith.constant dense<0.000000e+00> : vector<32x512xf32>
    %28 = tpu.matmul %26, %27, %cst_19 {dimension_numbers = #tpu.dot_dimension_numbers<[1], [0], [0], [1], [0, 0, 1, 1], [], []>} : vector<32x16xbf16>, vector<16x512xbf16>, vector<32x512xf32> -> vector<32x512xf32>
    %29 = arith.subf %20, %28 : vector<32x512xf32>
    %30 = arith.addf %20, %24 : vector<32x512xf32>
    %31 = vector.extract_strided_slice %29 {offsets = [0, 0], sizes = [32, 16], strides = [1, 1]} : vector<32x512xf32> to vector<32x16xf32>
    %32 = vector.extract_strided_slice %29 {offsets = [0, 16], sizes = [32, 16], strides = [1, 1]} : vector<32x512xf32> to vector<32x16xf32>
    %33 = vector.extract_strided_slice %29 {offsets = [0, 32], sizes = [32, 16], strides = [1, 1]} : vector<32x512xf32> to vector<32x16xf32>
    %34 = vector.extract_strided_slice %29 {offsets = [0, 48], sizes = [32, 16], strides = [1, 1]} : vector<32x512xf32> to vector<32x16xf32>
    %35 = vector.extract_strided_slice %29 {offsets = [0, 64], sizes = [32, 16], strides = [1, 1]} : vector<32x512xf32> to vector<32x16xf32>
    %36 = vector.extract_strided_slice %29 {offsets = [0, 80], sizes = [32, 16], strides = [1, 1]} : vector<32x512xf32> to vector<32x16xf32>
    %37 = vector.extract_strided_slice %29 {offsets = [0, 96], sizes = [32, 16], strides = [1, 1]} : vector<32x512xf32> to vector<32x16xf32>
    %38 = vector.extract_strided_slice %29 {offsets = [0, 112], sizes = [32, 16], strides = [1, 1]} : vector<32x512xf32> to vector<32x16xf32>
    %39 = vector.extract_strided_slice %29 {offsets = [0, 128], sizes = [32, 16], strides = [1, 1]} : vector<32x512xf32> to vector<32x16xf32>
    %40 = vector.extract_strided_slice %29 {offsets = [0, 144], sizes = [32, 16], strides = [1, 1]} : vector<32x512xf32> to vector<32x16xf32>
    %41 = vector.extract_strided_slice %29 {offsets = [0, 160], sizes = [32, 16], strides = [1, 1]} : vector<32x512xf32> to vector<32x16xf32>
    %42 = vector.extract_strided_slice %29 {offsets = [0, 176], sizes = [32, 16], strides = [1, 1]} : vector<32x512xf32> to vector<32x16xf32>
    %43 = vector.extract_strided_slice %29 {offsets = [0, 192], sizes = [32, 16], strides = [1, 1]} : vector<32x512xf32> to vector<32x16xf32>
    %44 = vector.extract_strided_slice %29 {offsets = [0, 208], sizes = [32, 16], strides = [1, 1]} : vector<32x512xf32> to vector<32x16xf32>
    %45 = vector.extract_strided_slice %29 {offsets = [0, 224], sizes = [32, 16], strides = [1, 1]} : vector<32x512xf32> to vector<32x16xf32>
    %46 = vector.extract_strided_slice %29 {offsets = [0, 240], sizes = [32, 16], strides = [1, 1]} : vector<32x512xf32> to vector<32x16xf32>
    %47 = vector.extract_strided_slice %29 {offsets = [0, 256], sizes = [32, 16], strides = [1, 1]} : vector<32x512xf32> to vector<32x16xf32>
    %48 = vector.extract_strided_slice %29 {offsets = [0, 272], sizes = [32, 16], strides = [1, 1]} : vector<32x512xf32> to vector<32x16xf32>
    %49 = vector.extract_strided_slice %29 {offsets = [0, 288], sizes = [32, 16], strides = [1, 1]} : vector<32x512xf32> to vector<32x16xf32>
    %50 = vector.extract_strided_slice %29 {offsets = [0, 304], sizes = [32, 16], strides = [1, 1]} : vector<32x512xf32> to vector<32x16xf32>
    %51 = vector.extract_strided_slice %29 {offsets = [0, 320], sizes = [32, 16], strides = [1, 1]} : vector<32x512xf32> to vector<32x16xf32>
    %52 = vector.extract_strided_slice %29 {offsets = [0, 336], sizes = [32, 16], strides = [1, 1]} : vector<32x512xf32> to vector<32x16xf32>
    %53 = vector.extract_strided_slice %29 {offsets = [0, 352], sizes = [32, 16], strides = [1, 1]} : vector<32x512xf32> to vector<32x16xf32>
    %54 = vector.extract_strided_slice %29 {offsets = [0, 368], sizes = [32, 16], strides = [1, 1]} : vector<32x512xf32> to vector<32x16xf32>
    %55 = vector.extract_strided_slice %29 {offsets = [0, 384], sizes = [32, 16], strides = [1, 1]} : vector<32x512xf32> to vector<32x16xf32>
    %56 = vector.extract_strided_slice %29 {offsets = [0, 400], sizes = [32, 16], strides = [1, 1]} : vector<32x512xf32> to vector<32x16xf32>
    %57 = vector.extract_strided_slice %29 {offsets = [0, 416], sizes = [32, 16], strides = [1, 1]} : vector<32x512xf32> to vector<32x16xf32>
    %58 = vector.extract_strided_slice %29 {offsets = [0, 432], sizes = [32, 16], strides = [1, 1]} : vector<32x512xf32> to vector<32x16xf32>
    %59 = vector.extract_strided_slice %29 {offsets = [0, 448], sizes = [32, 16], strides = [1, 1]} : vector<32x512xf32> to vector<32x16xf32>
    %60 = vector.extract_strided_slice %29 {offsets = [0, 464], sizes = [32, 16], strides = [1, 1]} : vector<32x512xf32> to vector<32x16xf32>
    %61 = vector.extract_strided_slice %29 {offsets = [0, 480], sizes = [32, 16], strides = [1, 1]} : vector<32x512xf32> to vector<32x16xf32>
    %62 = vector.extract_strided_slice %29 {offsets = [0, 496], sizes = [32, 16], strides = [1, 1]} : vector<32x512xf32> to vector<32x16xf32>
    %63 = tpu.concatenate %31, %32, %33, %34, %35, %36, %37, %38, %39, %40, %41, %42, %43, %44, %45, %46 in 0 : vector<32x16xf32>, vector<32x16xf32>, vector<32x16xf32>, vector<32x16xf32>, vector<32x16xf32>, vector<32x16xf32>, vector<32x16xf32>, vector<32x16xf32>, vector<32x16xf32>, vector<32x16xf32>, vector<32x16xf32>, vector<32x16xf32>, vector<32x16xf32>, vector<32x16xf32>, vector<32x16xf32>, vector<32x16xf32> -> vector<512x16xf32>
    %64 = tpu.concatenate %47, %48, %49, %50, %51, %52, %53, %54, %55, %56, %57, %58, %59, %60, %61, %62 in 0 : vector<32x16xf32>, vector<32x16xf32>, vector<32x16xf32>, vector<32x16xf32>, vector<32x16xf32>, vector<32x16xf32>, vector<32x16xf32>, vector<32x16xf32>, vector<32x16xf32>, vector<32x16xf32>, vector<32x16xf32>, vector<32x16xf32>, vector<32x16xf32>, vector<32x16xf32>, vector<32x16xf32>, vector<32x16xf32> -> vector<512x16xf32>
    %65 = tpu.concatenate %63, %64 in 0 : vector<512x16xf32>, vector<512x16xf32> -> vector<1024x16xf32>
    %66 = vector.extract_strided_slice %30 {offsets = [0, 0], sizes = [32, 16], strides = [1, 1]} : vector<32x512xf32> to vector<32x16xf32>
    %67 = vector.extract_strided_slice %30 {offsets = [0, 16], sizes = [32, 16], strides = [1, 1]} : vector<32x512xf32> to vector<32x16xf32>
    %68 = vector.extract_strided_slice %30 {offsets = [0, 32], sizes = [32, 16], strides = [1, 1]} : vector<32x512xf32> to vector<32x16xf32>
    %69 = vector.extract_strided_slice %30 {offsets = [0, 48], sizes = [32, 16], strides = [1, 1]} : vector<32x512xf32> to vector<32x16xf32>
    %70 = vector.extract_strided_slice %30 {offsets = [0, 64], sizes = [32, 16], strides = [1, 1]} : vector<32x512xf32> to vector<32x16xf32>
    %71 = vector.extract_strided_slice %30 {offsets = [0, 80], sizes = [32, 16], strides = [1, 1]} : vector<32x512xf32> to vector<32x16xf32>
    %72 = vector.extract_strided_slice %30 {offsets = [0, 96], sizes = [32, 16], strides = [1, 1]} : vector<32x512xf32> to vector<32x16xf32>
    %73 = vector.extract_strided_slice %30 {offsets = [0, 112], sizes = [32, 16], strides = [1, 1]} : vector<32x512xf32> to vector<32x16xf32>
    %74 = vector.extract_strided_slice %30 {offsets = [0, 128], sizes = [32, 16], strides = [1, 1]} : vector<32x512xf32> to vector<32x16xf32>
    %75 = vector.extract_strided_slice %30 {offsets = [0, 144], sizes = [32, 16], strides = [1, 1]} : vector<32x512xf32> to vector<32x16xf32>
    %76 = vector.extract_strided_slice %30 {offsets = [0, 160], sizes = [32, 16], strides = [1, 1]} : vector<32x512xf32> to vector<32x16xf32>
    %77 = vector.extract_strided_slice %30 {offsets = [0, 176], sizes = [32, 16], strides = [1, 1]} : vector<32x512xf32> to vector<32x16xf32>
    %78 = vector.extract_strided_slice %30 {offsets = [0, 192], sizes = [32, 16], strides = [1, 1]} : vector<32x512xf32> to vector<32x16xf32>
    %79 = vector.extract_strided_slice %30 {offsets = [0, 208], sizes = [32, 16], strides = [1, 1]} : vector<32x512xf32> to vector<32x16xf32>
    %80 = vector.extract_strided_slice %30 {offsets = [0, 224], sizes = [32, 16], strides = [1, 1]} : vector<32x512xf32> to vector<32x16xf32>
    %81 = vector.extract_strided_slice %30 {offsets = [0, 240], sizes = [32, 16], strides = [1, 1]} : vector<32x512xf32> to vector<32x16xf32>
    %82 = vector.extract_strided_slice %30 {offsets = [0, 256], sizes = [32, 16], strides = [1, 1]} : vector<32x512xf32> to vector<32x16xf32>
    %83 = vector.extract_strided_slice %30 {offsets = [0, 272], sizes = [32, 16], strides = [1, 1]} : vector<32x512xf32> to vector<32x16xf32>
    %84 = vector.extract_strided_slice %30 {offsets = [0, 288], sizes = [32, 16], strides = [1, 1]} : vector<32x512xf32> to vector<32x16xf32>
    %85 = vector.extract_strided_slice %30 {offsets = [0, 304], sizes = [32, 16], strides = [1, 1]} : vector<32x512xf32> to vector<32x16xf32>
    %86 = vector.extract_strided_slice %30 {offsets = [0, 320], sizes = [32, 16], strides = [1, 1]} : vector<32x512xf32> to vector<32x16xf32>
    %87 = vector.extract_strided_slice %30 {offsets = [0, 336], sizes = [32, 16], strides = [1, 1]} : vector<32x512xf32> to vector<32x16xf32>
    %88 = vector.extract_strided_slice %30 {offsets = [0, 352], sizes = [32, 16], strides = [1, 1]} : vector<32x512xf32> to vector<32x16xf32>
    %89 = vector.extract_strided_slice %30 {offsets = [0, 368], sizes = [32, 16], strides = [1, 1]} : vector<32x512xf32> to vector<32x16xf32>
    %90 = vector.extract_strided_slice %30 {offsets = [0, 384], sizes = [32, 16], strides = [1, 1]} : vector<32x512xf32> to vector<32x16xf32>
    %91 = vector.extract_strided_slice %30 {offsets = [0, 400], sizes = [32, 16], strides = [1, 1]} : vector<32x512xf32> to vector<32x16xf32>
    %92 = vector.extract_strided_slice %30 {offsets = [0, 416], sizes = [32, 16], strides = [1, 1]} : vector<32x512xf32> to vector<32x16xf32>
    %93 = vector.extract_strided_slice %30 {offsets = [0, 432], sizes = [32, 16], strides = [1, 1]} : vector<32x512xf32> to vector<32x16xf32>
    %94 = vector.extract_strided_slice %30 {offsets = [0, 448], sizes = [32, 16], strides = [1, 1]} : vector<32x512xf32> to vector<32x16xf32>
    %95 = vector.extract_strided_slice %30 {offsets = [0, 464], sizes = [32, 16], strides = [1, 1]} : vector<32x512xf32> to vector<32x16xf32>
    %96 = vector.extract_strided_slice %30 {offsets = [0, 480], sizes = [32, 16], strides = [1, 1]} : vector<32x512xf32> to vector<32x16xf32>
    %97 = vector.extract_strided_slice %30 {offsets = [0, 496], sizes = [32, 16], strides = [1, 1]} : vector<32x512xf32> to vector<32x16xf32>
    %98 = tpu.concatenate %66, %67, %68, %69, %70, %71, %72, %73, %74, %75, %76, %77, %78, %79, %80, %81 in 0 : vector<32x16xf32>, vector<32x16xf32>, vector<32x16xf32>, vector<32x16xf32>, vector<32x16xf32>, vector<32x16xf32>, vector<32x16xf32>, vector<32x16xf32>, vector<32x16xf32>, vector<32x16xf32>, vector<32x16xf32>, vector<32x16xf32>, vector<32x16xf32>, vector<32x16xf32>, vector<32x16xf32>, vector<32x16xf32> -> vector<512x16xf32>
    %99 = tpu.concatenate %82, %83, %84, %85, %86, %87, %88, %89, %90, %91, %92, %93, %94, %95, %96, %97 in 0 : vector<32x16xf32>, vector<32x16xf32>, vector<32x16xf32>, vector<32x16xf32>, vector<32x16xf32>, vector<32x16xf32>, vector<32x16xf32>, vector<32x16xf32>, vector<32x16xf32>, vector<32x16xf32>, vector<32x16xf32>, vector<32x16xf32>, vector<32x16xf32>, vector<32x16xf32>, vector<32x16xf32>, vector<32x16xf32> -> vector<512x16xf32>
    %100 = tpu.concatenate %98, %99 in 0 : vector<512x16xf32>, vector<512x16xf32> -> vector<1024x16xf32>
    %101 = arith.addf %65, %100 : vector<1024x16xf32>
    %102 = arith.truncf %101 : vector<1024x16xf32> to vector<1024x16xbf16>
    %c0_20 = arith.constant 0 : index
    %c0_21 = arith.constant 0 : index
    %c0_22 = arith.constant 0 : index
    %103 = vector.load %arg5[%c0_20, %c0_21, %c0_22] : memref<3x16x32xbf16, #tpu.memory_space<vmem>>, vector<1x16x32xbf16>
    %104 = vector.shape_cast %103 : vector<1x16x32xbf16> to vector<16x32xbf16>
    %cst_23 = arith.constant dense<0.000000e+00> : vector<1024x32xf32>
    %105 = tpu.matmul %102, %104, %cst_23 {dimension_numbers = #tpu.dot_dimension_numbers<[1], [0], [0], [1], [0, 0, 1, 1], [], []>} : vector<1024x16xbf16>, vector<16x32xbf16>, vector<1024x32xf32> -> vector<1024x32xf32>
    %106 = arith.truncf %65 : vector<1024x16xf32> to vector<1024x16xbf16>
    %c1_24 = arith.constant 1 : index
    %c0_25 = arith.constant 0 : index
    %c0_26 = arith.constant 0 : index
    %107 = vector.load %arg5[%c1_24, %c0_25, %c0_26] : memref<3x16x32xbf16, #tpu.memory_space<vmem>>, vector<1x16x32xbf16>
    %108 = vector.shape_cast %107 : vector<1x16x32xbf16> to vector<16x32xbf16>
    %cst_27 = arith.constant dense<0.000000e+00> : vector<1024x32xf32>
    %109 = tpu.matmul %106, %108, %cst_27 {dimension_numbers = #tpu.dot_dimension_numbers<[1], [0], [0], [1], [0, 0, 1, 1], [], []>} : vector<1024x16xbf16>, vector<16x32xbf16>, vector<1024x32xf32> -> vector<1024x32xf32>
    %110 = arith.truncf %100 : vector<1024x16xf32> to vector<1024x16xbf16>
    %c2_28 = arith.constant 2 : index
    %c0_29 = arith.constant 0 : index
    %c0_30 = arith.constant 0 : index
    %111 = vector.load %arg5[%c2_28, %c0_29, %c0_30] : memref<3x16x32xbf16, #tpu.memory_space<vmem>>, vector<1x16x32xbf16>
    %112 = vector.shape_cast %111 : vector<1x16x32xbf16> to vector<16x32xbf16>
    %cst_31 = arith.constant dense<0.000000e+00> : vector<1024x32xf32>
    %113 = tpu.matmul %110, %112, %cst_31 {dimension_numbers = #tpu.dot_dimension_numbers<[1], [0], [0], [1], [0, 0, 1, 1], [], []>} : vector<1024x16xbf16>, vector<16x32xbf16>, vector<1024x32xf32> -> vector<1024x32xf32>
    %114 = arith.subf %105, %113 : vector<1024x32xf32>
    %115 = arith.addf %105, %109 : vector<1024x32xf32>
    %c0_32 = arith.constant 0 : index
    %c0_33 = arith.constant 0 : index
    %c0_34 = arith.constant 0 : index
    %116 = vector.load %arg2[%c0_32, %c0_33, %c0_34] : memref<2x256x32xbf16, #tpu.memory_space<vmem>>, vector<1x256x32xbf16>
    %117 = vector.shape_cast %116 : vector<1x256x32xbf16> to vector<256x32xbf16>
    %118 = tpu.concatenate %117, %117, %117, %117 in 0 : vector<256x32xbf16>, vector<256x32xbf16>, vector<256x32xbf16>, vector<256x32xbf16> -> vector<1024x32xbf16>
    %119 = arith.extf %118 : vector<1024x32xbf16> to vector<1024x32xf32>
    %c1_35 = arith.constant 1 : index
    %c0_36 = arith.constant 0 : index
    %c0_37 = arith.constant 0 : index
    %120 = vector.load %arg2[%c1_35, %c0_36, %c0_37] : memref<2x256x32xbf16, #tpu.memory_space<vmem>>, vector<1x256x32xbf16>
    %121 = vector.shape_cast %120 : vector<1x256x32xbf16> to vector<256x32xbf16>
    %122 = tpu.concatenate %121, %121, %121, %121 in 0 : vector<256x32xbf16>, vector<256x32xbf16>, vector<256x32xbf16>, vector<256x32xbf16> -> vector<1024x32xbf16>
    %123 = arith.extf %122 : vector<1024x32xbf16> to vector<1024x32xf32>
    %124 = arith.mulf %114, %119 : vector<1024x32xf32>
    %125 = arith.mulf %115, %123 : vector<1024x32xf32>
    %126 = arith.subf %124, %125 : vector<1024x32xf32>
    %127 = arith.mulf %114, %123 : vector<1024x32xf32>
    %128 = arith.mulf %115, %119 : vector<1024x32xf32>
    %129 = arith.addf %127, %128 : vector<1024x32xf32>
    %130 = arith.addf %126, %129 : vector<1024x32xf32>
    %131 = arith.truncf %130 : vector<1024x32xf32> to vector<1024x32xbf16>
    %c0_38 = arith.constant 0 : index
    %c0_39 = arith.constant 0 : index
    %c0_40 = arith.constant 0 : index
    %132 = vector.load %arg7[%c0_38, %c0_39, %c0_40] : memref<3x32x16xbf16, #tpu.memory_space<vmem>>, vector<1x32x16xbf16>
    %133 = vector.shape_cast %132 : vector<1x32x16xbf16> to vector<32x16xbf16>
    %cst_41 = arith.constant dense<0.000000e+00> : vector<1024x16xf32>
    %134 = tpu.matmul %131, %133, %cst_41 {dimension_numbers = #tpu.dot_dimension_numbers<[1], [0], [0], [1], [0, 0, 1, 1], [], []>} : vector<1024x32xbf16>, vector<32x16xbf16>, vector<1024x16xf32> -> vector<1024x16xf32>
    %135 = arith.truncf %126 : vector<1024x32xf32> to vector<1024x32xbf16>
    %c1_42 = arith.constant 1 : index
    %c0_43 = arith.constant 0 : index
    %c0_44 = arith.constant 0 : index
    %136 = vector.load %arg7[%c1_42, %c0_43, %c0_44] : memref<3x32x16xbf16, #tpu.memory_space<vmem>>, vector<1x32x16xbf16>
    %137 = vector.shape_cast %136 : vector<1x32x16xbf16> to vector<32x16xbf16>
    %cst_45 = arith.constant dense<0.000000e+00> : vector<1024x16xf32>
    %138 = tpu.matmul %135, %137, %cst_45 {dimension_numbers = #tpu.dot_dimension_numbers<[1], [0], [0], [1], [0, 0, 1, 1], [], []>} : vector<1024x32xbf16>, vector<32x16xbf16>, vector<1024x16xf32> -> vector<1024x16xf32>
    %139 = arith.truncf %129 : vector<1024x32xf32> to vector<1024x32xbf16>
    %c2_46 = arith.constant 2 : index
    %c0_47 = arith.constant 0 : index
    %c0_48 = arith.constant 0 : index
    %140 = vector.load %arg7[%c2_46, %c0_47, %c0_48] : memref<3x32x16xbf16, #tpu.memory_space<vmem>>, vector<1x32x16xbf16>
    %141 = vector.shape_cast %140 : vector<1x32x16xbf16> to vector<32x16xbf16>
    %cst_49 = arith.constant dense<0.000000e+00> : vector<1024x16xf32>
    %142 = tpu.matmul %139, %141, %cst_49 {dimension_numbers = #tpu.dot_dimension_numbers<[1], [0], [0], [1], [0, 0, 1, 1], [], []>} : vector<1024x32xbf16>, vector<32x16xbf16>, vector<1024x16xf32> -> vector<1024x16xf32>
    %143 = arith.subf %134, %142 : vector<1024x16xf32>
    %144 = arith.addf %134, %138 : vector<1024x16xf32>
    %145 = vector.extract_strided_slice %143 {offsets = [0, 0], sizes = [32, 16], strides = [1, 1]} : vector<1024x16xf32> to vector<32x16xf32>
    %146 = vector.extract_strided_slice %143 {offsets = [32, 0], sizes = [32, 16], strides = [1, 1]} : vector<1024x16xf32> to vector<32x16xf32>
    %147 = vector.extract_strided_slice %143 {offsets = [64, 0], sizes = [32, 16], strides = [1, 1]} : vector<1024x16xf32> to vector<32x16xf32>
    %148 = vector.extract_strided_slice %143 {offsets = [96, 0], sizes = [32, 16], strides = [1, 1]} : vector<1024x16xf32> to vector<32x16xf32>
    %149 = vector.extract_strided_slice %143 {offsets = [128, 0], sizes = [32, 16], strides = [1, 1]} : vector<1024x16xf32> to vector<32x16xf32>
    %150 = vector.extract_strided_slice %143 {offsets = [160, 0], sizes = [32, 16], strides = [1, 1]} : vector<1024x16xf32> to vector<32x16xf32>
    %151 = vector.extract_strided_slice %143 {offsets = [192, 0], sizes = [32, 16], strides = [1, 1]} : vector<1024x16xf32> to vector<32x16xf32>
    %152 = vector.extract_strided_slice %143 {offsets = [224, 0], sizes = [32, 16], strides = [1, 1]} : vector<1024x16xf32> to vector<32x16xf32>
    %153 = vector.extract_strided_slice %143 {offsets = [256, 0], sizes = [32, 16], strides = [1, 1]} : vector<1024x16xf32> to vector<32x16xf32>
    %154 = vector.extract_strided_slice %143 {offsets = [288, 0], sizes = [32, 16], strides = [1, 1]} : vector<1024x16xf32> to vector<32x16xf32>
    %155 = vector.extract_strided_slice %143 {offsets = [320, 0], sizes = [32, 16], strides = [1, 1]} : vector<1024x16xf32> to vector<32x16xf32>
    %156 = vector.extract_strided_slice %143 {offsets = [352, 0], sizes = [32, 16], strides = [1, 1]} : vector<1024x16xf32> to vector<32x16xf32>
    %157 = vector.extract_strided_slice %143 {offsets = [384, 0], sizes = [32, 16], strides = [1, 1]} : vector<1024x16xf32> to vector<32x16xf32>
    %158 = vector.extract_strided_slice %143 {offsets = [416, 0], sizes = [32, 16], strides = [1, 1]} : vector<1024x16xf32> to vector<32x16xf32>
    %159 = vector.extract_strided_slice %143 {offsets = [448, 0], sizes = [32, 16], strides = [1, 1]} : vector<1024x16xf32> to vector<32x16xf32>
    %160 = vector.extract_strided_slice %143 {offsets = [480, 0], sizes = [32, 16], strides = [1, 1]} : vector<1024x16xf32> to vector<32x16xf32>
    %161 = vector.extract_strided_slice %143 {offsets = [512, 0], sizes = [32, 16], strides = [1, 1]} : vector<1024x16xf32> to vector<32x16xf32>
    %162 = vector.extract_strided_slice %143 {offsets = [544, 0], sizes = [32, 16], strides = [1, 1]} : vector<1024x16xf32> to vector<32x16xf32>
    %163 = vector.extract_strided_slice %143 {offsets = [576, 0], sizes = [32, 16], strides = [1, 1]} : vector<1024x16xf32> to vector<32x16xf32>
    %164 = vector.extract_strided_slice %143 {offsets = [608, 0], sizes = [32, 16], strides = [1, 1]} : vector<1024x16xf32> to vector<32x16xf32>
    %165 = vector.extract_strided_slice %143 {offsets = [640, 0], sizes = [32, 16], strides = [1, 1]} : vector<1024x16xf32> to vector<32x16xf32>
    %166 = vector.extract_strided_slice %143 {offsets = [672, 0], sizes = [32, 16], strides = [1, 1]} : vector<1024x16xf32> to vector<32x16xf32>
    %167 = vector.extract_strided_slice %143 {offsets = [704, 0], sizes = [32, 16], strides = [1, 1]} : vector<1024x16xf32> to vector<32x16xf32>
    %168 = vector.extract_strided_slice %143 {offsets = [736, 0], sizes = [32, 16], strides = [1, 1]} : vector<1024x16xf32> to vector<32x16xf32>
    %169 = vector.extract_strided_slice %143 {offsets = [768, 0], sizes = [32, 16], strides = [1, 1]} : vector<1024x16xf32> to vector<32x16xf32>
    %170 = vector.extract_strided_slice %143 {offsets = [800, 0], sizes = [32, 16], strides = [1, 1]} : vector<1024x16xf32> to vector<32x16xf32>
    %171 = vector.extract_strided_slice %143 {offsets = [832, 0], sizes = [32, 16], strides = [1, 1]} : vector<1024x16xf32> to vector<32x16xf32>
    %172 = vector.extract_strided_slice %143 {offsets = [864, 0], sizes = [32, 16], strides = [1, 1]} : vector<1024x16xf32> to vector<32x16xf32>
    %173 = vector.extract_strided_slice %143 {offsets = [896, 0], sizes = [32, 16], strides = [1, 1]} : vector<1024x16xf32> to vector<32x16xf32>
    %174 = vector.extract_strided_slice %143 {offsets = [928, 0], sizes = [32, 16], strides = [1, 1]} : vector<1024x16xf32> to vector<32x16xf32>
    %175 = vector.extract_strided_slice %143 {offsets = [960, 0], sizes = [32, 16], strides = [1, 1]} : vector<1024x16xf32> to vector<32x16xf32>
    %176 = vector.extract_strided_slice %143 {offsets = [992, 0], sizes = [32, 16], strides = [1, 1]} : vector<1024x16xf32> to vector<32x16xf32>
    %177 = tpu.concatenate %145, %146, %147, %148, %149, %150, %151, %152, %153, %154, %155, %156, %157, %158, %159, %160 in 1 : vector<32x16xf32>, vector<32x16xf32>, vector<32x16xf32>, vector<32x16xf32>, vector<32x16xf32>, vector<32x16xf32>, vector<32x16xf32>, vector<32x16xf32>, vector<32x16xf32>, vector<32x16xf32>, vector<32x16xf32>, vector<32x16xf32>, vector<32x16xf32>, vector<32x16xf32>, vector<32x16xf32>, vector<32x16xf32> -> vector<32x256xf32>
    %178 = tpu.concatenate %161, %162, %163, %164, %165, %166, %167, %168, %169, %170, %171, %172, %173, %174, %175, %176 in 1 : vector<32x16xf32>, vector<32x16xf32>, vector<32x16xf32>, vector<32x16xf32>, vector<32x16xf32>, vector<32x16xf32>, vector<32x16xf32>, vector<32x16xf32>, vector<32x16xf32>, vector<32x16xf32>, vector<32x16xf32>, vector<32x16xf32>, vector<32x16xf32>, vector<32x16xf32>, vector<32x16xf32>, vector<32x16xf32> -> vector<32x256xf32>
    %179 = tpu.concatenate %177, %178 in 1 : vector<32x256xf32>, vector<32x256xf32> -> vector<32x512xf32>
    %180 = vector.extract_strided_slice %144 {offsets = [0, 0], sizes = [32, 16], strides = [1, 1]} : vector<1024x16xf32> to vector<32x16xf32>
    %181 = vector.extract_strided_slice %144 {offsets = [32, 0], sizes = [32, 16], strides = [1, 1]} : vector<1024x16xf32> to vector<32x16xf32>
    %182 = vector.extract_strided_slice %144 {offsets = [64, 0], sizes = [32, 16], strides = [1, 1]} : vector<1024x16xf32> to vector<32x16xf32>
    %183 = vector.extract_strided_slice %144 {offsets = [96, 0], sizes = [32, 16], strides = [1, 1]} : vector<1024x16xf32> to vector<32x16xf32>
    %184 = vector.extract_strided_slice %144 {offsets = [128, 0], sizes = [32, 16], strides = [1, 1]} : vector<1024x16xf32> to vector<32x16xf32>
    %185 = vector.extract_strided_slice %144 {offsets = [160, 0], sizes = [32, 16], strides = [1, 1]} : vector<1024x16xf32> to vector<32x16xf32>
    %186 = vector.extract_strided_slice %144 {offsets = [192, 0], sizes = [32, 16], strides = [1, 1]} : vector<1024x16xf32> to vector<32x16xf32>
    %187 = vector.extract_strided_slice %144 {offsets = [224, 0], sizes = [32, 16], strides = [1, 1]} : vector<1024x16xf32> to vector<32x16xf32>
    %188 = vector.extract_strided_slice %144 {offsets = [256, 0], sizes = [32, 16], strides = [1, 1]} : vector<1024x16xf32> to vector<32x16xf32>
    %189 = vector.extract_strided_slice %144 {offsets = [288, 0], sizes = [32, 16], strides = [1, 1]} : vector<1024x16xf32> to vector<32x16xf32>
    %190 = vector.extract_strided_slice %144 {offsets = [320, 0], sizes = [32, 16], strides = [1, 1]} : vector<1024x16xf32> to vector<32x16xf32>
    %191 = vector.extract_strided_slice %144 {offsets = [352, 0], sizes = [32, 16], strides = [1, 1]} : vector<1024x16xf32> to vector<32x16xf32>
    %192 = vector.extract_strided_slice %144 {offsets = [384, 0], sizes = [32, 16], strides = [1, 1]} : vector<1024x16xf32> to vector<32x16xf32>
    %193 = vector.extract_strided_slice %144 {offsets = [416, 0], sizes = [32, 16], strides = [1, 1]} : vector<1024x16xf32> to vector<32x16xf32>
    %194 = vector.extract_strided_slice %144 {offsets = [448, 0], sizes = [32, 16], strides = [1, 1]} : vector<1024x16xf32> to vector<32x16xf32>
    %195 = vector.extract_strided_slice %144 {offsets = [480, 0], sizes = [32, 16], strides = [1, 1]} : vector<1024x16xf32> to vector<32x16xf32>
    %196 = vector.extract_strided_slice %144 {offsets = [512, 0], sizes = [32, 16], strides = [1, 1]} : vector<1024x16xf32> to vector<32x16xf32>
    %197 = vector.extract_strided_slice %144 {offsets = [544, 0], sizes = [32, 16], strides = [1, 1]} : vector<1024x16xf32> to vector<32x16xf32>
    %198 = vector.extract_strided_slice %144 {offsets = [576, 0], sizes = [32, 16], strides = [1, 1]} : vector<1024x16xf32> to vector<32x16xf32>
    %199 = vector.extract_strided_slice %144 {offsets = [608, 0], sizes = [32, 16], strides = [1, 1]} : vector<1024x16xf32> to vector<32x16xf32>
    %200 = vector.extract_strided_slice %144 {offsets = [640, 0], sizes = [32, 16], strides = [1, 1]} : vector<1024x16xf32> to vector<32x16xf32>
    %201 = vector.extract_strided_slice %144 {offsets = [672, 0], sizes = [32, 16], strides = [1, 1]} : vector<1024x16xf32> to vector<32x16xf32>
    %202 = vector.extract_strided_slice %144 {offsets = [704, 0], sizes = [32, 16], strides = [1, 1]} : vector<1024x16xf32> to vector<32x16xf32>
    %203 = vector.extract_strided_slice %144 {offsets = [736, 0], sizes = [32, 16], strides = [1, 1]} : vector<1024x16xf32> to vector<32x16xf32>
    %204 = vector.extract_strided_slice %144 {offsets = [768, 0], sizes = [32, 16], strides = [1, 1]} : vector<1024x16xf32> to vector<32x16xf32>
    %205 = vector.extract_strided_slice %144 {offsets = [800, 0], sizes = [32, 16], strides = [1, 1]} : vector<1024x16xf32> to vector<32x16xf32>
    %206 = vector.extract_strided_slice %144 {offsets = [832, 0], sizes = [32, 16], strides = [1, 1]} : vector<1024x16xf32> to vector<32x16xf32>
    %207 = vector.extract_strided_slice %144 {offsets = [864, 0], sizes = [32, 16], strides = [1, 1]} : vector<1024x16xf32> to vector<32x16xf32>
    %208 = vector.extract_strided_slice %144 {offsets = [896, 0], sizes = [32, 16], strides = [1, 1]} : vector<1024x16xf32> to vector<32x16xf32>
    %209 = vector.extract_strided_slice %144 {offsets = [928, 0], sizes = [32, 16], strides = [1, 1]} : vector<1024x16xf32> to vector<32x16xf32>
    %210 = vector.extract_strided_slice %144 {offsets = [960, 0], sizes = [32, 16], strides = [1, 1]} : vector<1024x16xf32> to vector<32x16xf32>
    %211 = vector.extract_strided_slice %144 {offsets = [992, 0], sizes = [32, 16], strides = [1, 1]} : vector<1024x16xf32> to vector<32x16xf32>
    %212 = tpu.concatenate %180, %181, %182, %183, %184, %185, %186, %187, %188, %189, %190, %191, %192, %193, %194, %195 in 1 : vector<32x16xf32>, vector<32x16xf32>, vector<32x16xf32>, vector<32x16xf32>, vector<32x16xf32>, vector<32x16xf32>, vector<32x16xf32>, vector<32x16xf32>, vector<32x16xf32>, vector<32x16xf32>, vector<32x16xf32>, vector<32x16xf32>, vector<32x16xf32>, vector<32x16xf32>, vector<32x16xf32>, vector<32x16xf32> -> vector<32x256xf32>
    %213 = tpu.concatenate %196, %197, %198, %199, %200, %201, %202, %203, %204, %205, %206, %207, %208, %209, %210, %211 in 1 : vector<32x16xf32>, vector<32x16xf32>, vector<32x16xf32>, vector<32x16xf32>, vector<32x16xf32>, vector<32x16xf32>, vector<32x16xf32>, vector<32x16xf32>, vector<32x16xf32>, vector<32x16xf32>, vector<32x16xf32>, vector<32x16xf32>, vector<32x16xf32>, vector<32x16xf32>, vector<32x16xf32>, vector<32x16xf32> -> vector<32x256xf32>
    %214 = tpu.concatenate %212, %213 in 1 : vector<32x256xf32>, vector<32x256xf32> -> vector<32x512xf32>
    %c0_50 = arith.constant 0 : index
    %c0_51 = arith.constant 0 : index
    %c0_52 = arith.constant 0 : index
    %215 = vector.load %arg6[%c0_50, %c0_51, %c0_52] : memref<3x16x32xbf16, #tpu.memory_space<vmem>>, vector<1x16x32xbf16>
    %216 = vector.shape_cast %215 : vector<1x16x32xbf16> to vector<16x32xbf16>
    %217 = arith.addf %179, %214 : vector<32x512xf32>
    %218 = arith.truncf %217 : vector<32x512xf32> to vector<32x512xbf16>
    %cst_53 = arith.constant dense<0.000000e+00> : vector<16x512xf32>
    %219 = tpu.matmul %216, %218, %cst_53 {dimension_numbers = #tpu.dot_dimension_numbers<[1], [0], [0], [1], [0, 0, 1, 1], [], []>} : vector<16x32xbf16>, vector<32x512xbf16>, vector<16x512xf32> -> vector<16x512xf32>
    %c1_54 = arith.constant 1 : index
    %c0_55 = arith.constant 0 : index
    %c0_56 = arith.constant 0 : index
    %220 = vector.load %arg6[%c1_54, %c0_55, %c0_56] : memref<3x16x32xbf16, #tpu.memory_space<vmem>>, vector<1x16x32xbf16>
    %221 = vector.shape_cast %220 : vector<1x16x32xbf16> to vector<16x32xbf16>
    %222 = arith.truncf %179 : vector<32x512xf32> to vector<32x512xbf16>
    %cst_57 = arith.constant dense<0.000000e+00> : vector<16x512xf32>
    %223 = tpu.matmul %221, %222, %cst_57 {dimension_numbers = #tpu.dot_dimension_numbers<[1], [0], [0], [1], [0, 0, 1, 1], [], []>} : vector<16x32xbf16>, vector<32x512xbf16>, vector<16x512xf32> -> vector<16x512xf32>
    %c2_58 = arith.constant 2 : index
    %c0_59 = arith.constant 0 : index
    %c0_60 = arith.constant 0 : index
    %224 = vector.load %arg6[%c2_58, %c0_59, %c0_60] : memref<3x16x32xbf16, #tpu.memory_space<vmem>>, vector<1x16x32xbf16>
    %225 = vector.shape_cast %224 : vector<1x16x32xbf16> to vector<16x32xbf16>
    %226 = arith.truncf %214 : vector<32x512xf32> to vector<32x512xbf16>
    %cst_61 = arith.constant dense<0.000000e+00> : vector<16x512xf32>
    %227 = tpu.matmul %225, %226, %cst_61 {dimension_numbers = #tpu.dot_dimension_numbers<[1], [0], [0], [1], [0, 0, 1, 1], [], []>} : vector<16x32xbf16>, vector<32x512xbf16>, vector<16x512xf32> -> vector<16x512xf32>
    %228 = arith.subf %219, %227 : vector<16x512xf32>
    %229 = arith.addf %219, %223 : vector<16x512xf32>
    %230 = arith.mulf %5, %228 : vector<16x512xf32>
    %231 = arith.mulf %7, %229 : vector<16x512xf32>
    %232 = arith.addf %230, %231 : vector<16x512xf32>
    %233 = arith.mulf %5, %229 : vector<16x512xf32>
    %234 = arith.mulf %7, %228 : vector<16x512xf32>
    %235 = arith.subf %233, %234 : vector<16x512xf32>
    %236 = vector.extract_strided_slice %232 {offsets = [0, 0], sizes = [16, 128], strides = [1, 1]} : vector<16x512xf32> to vector<16x128xf32>
    %237 = vector.extract_strided_slice %235 {offsets = [0, 0], sizes = [16, 128], strides = [1, 1]} : vector<16x512xf32> to vector<16x128xf32>
    %238 = vector.extract_strided_slice %232 {offsets = [0, 128], sizes = [16, 128], strides = [1, 1]} : vector<16x512xf32> to vector<16x128xf32>
    %239 = arith.addf %236, %238 : vector<16x128xf32>
    %240 = vector.extract_strided_slice %235 {offsets = [0, 128], sizes = [16, 128], strides = [1, 1]} : vector<16x512xf32> to vector<16x128xf32>
    %241 = arith.addf %237, %240 : vector<16x128xf32>
    %242 = vector.extract_strided_slice %232 {offsets = [0, 256], sizes = [16, 128], strides = [1, 1]} : vector<16x512xf32> to vector<16x128xf32>
    %243 = arith.addf %239, %242 : vector<16x128xf32>
    %244 = vector.extract_strided_slice %235 {offsets = [0, 256], sizes = [16, 128], strides = [1, 1]} : vector<16x512xf32> to vector<16x128xf32>
    %245 = arith.addf %241, %244 : vector<16x128xf32>
    %246 = vector.extract_strided_slice %232 {offsets = [0, 384], sizes = [16, 128], strides = [1, 1]} : vector<16x512xf32> to vector<16x128xf32>
    %247 = arith.addf %243, %246 : vector<16x128xf32>
    %248 = vector.extract_strided_slice %235 {offsets = [0, 384], sizes = [16, 128], strides = [1, 1]} : vector<16x512xf32> to vector<16x128xf32>
    %249 = arith.addf %245, %248 : vector<16x128xf32>
    %c0_62 = arith.constant 0 : index
    %c0_63 = arith.constant 0 : index
    %c0_64 = arith.constant 0 : index
    %250 = vector.load %arg8[%c0_62, %c0_63, %c0_64] : memref<2x16x128xf32, #tpu.memory_space<vmem>>, vector<1x16x128xf32>
    %251 = vector.shape_cast %250 : vector<1x16x128xf32> to vector<16x128xf32>
    %252 = vector.shape_cast %247 : vector<16x128xf32> to vector<1x16x128xf32>
    tpu.vector_store %arg8[%c0_62, %c0_63, %c0_64], %252 {strides = array<i32>} : memref<2x16x128xf32, #tpu.memory_space<vmem>>, vector<1x16x128xf32>,
    %c1_65 = arith.constant 1 : index
    %c0_66 = arith.constant 0 : index
    %c0_67 = arith.constant 0 : index
    %253 = vector.load %arg8[%c1_65, %c0_66, %c0_67] : memref<2x16x128xf32, #tpu.memory_space<vmem>>, vector<1x16x128xf32>
    %254 = vector.shape_cast %253 : vector<1x16x128xf32> to vector<16x128xf32>
    %255 = vector.shape_cast %249 : vector<16x128xf32> to vector<1x16x128xf32>
    tpu.vector_store %arg8[%c1_65, %c0_66, %c0_67], %255 {strides = array<i32>} : memref<2x16x128xf32, #tpu.memory_space<vmem>>, vector<1x16x128xf32>,
    return
  }
  func.func @transform_0(%arg0: i32) -> (i32, i32, i32) {
    %c0_i32 = arith.constant 0 : i32
    %c0_i32_0 = arith.constant 0 : i32
    %c0_i32_1 = arith.constant 0 : i32
    return %c0_i32, %c0_i32_0, %arg0 : i32, i32, i32
  }
  func.func @transform_1(%arg0: i32) -> (i32, i32, i32) {
    %c0_i32 = arith.constant 0 : i32
    %c0_i32_0 = arith.constant 0 : i32
    %c0_i32_1 = arith.constant 0 : i32
    return %c0_i32, %arg0, %c0_i32_0 : i32, i32, i32
  }
  func.func @transform_2(%arg0: i32) -> (i32, i32, i32) {
    %c0_i32 = arith.constant 0 : i32
    %c0_i32_0 = arith.constant 0 : i32
    %c0_i32_1 = arith.constant 0 : i32
    %c0_i32_2 = arith.constant 0 : i32
    return %c0_i32, %c0_i32_0, %c0_i32_1 : i32, i32, i32
  }
  func.func @transform_3(%arg0: i32) -> (i32, i32, i32) {
    %c0_i32 = arith.constant 0 : i32
    %c0_i32_0 = arith.constant 0 : i32
    %c0_i32_1 = arith.constant 0 : i32
    %c0_i32_2 = arith.constant 0 : i32
    return %c0_i32, %c0_i32_0, %c0_i32_1 : i32, i32, i32
  }
  func.func @transform_4(%arg0: i32) -> (i32, i32, i32) {
    %c0_i32 = arith.constant 0 : i32
    %c0_i32_0 = arith.constant 0 : i32
    %c0_i32_1 = arith.constant 0 : i32
    %c0_i32_2 = arith.constant 0 : i32
    return %c0_i32, %c0_i32_0, %c0_i32_1 : i32, i32, i32
  }
  func.func @transform_5(%arg0: i32) -> (i32, i32, i32) {
    %c0_i32 = arith.constant 0 : i32
    %c0_i32_0 = arith.constant 0 : i32
    %c0_i32_1 = arith.constant 0 : i32
    %c0_i32_2 = arith.constant 0 : i32
    return %c0_i32, %c0_i32_0, %c0_i32_1 : i32, i32, i32
  }
  func.func @transform_6(%arg0: i32) -> (i32, i32, i32) {
    %c0_i32 = arith.constant 0 : i32
    %c0_i32_0 = arith.constant 0 : i32
    %c0_i32_1 = arith.constant 0 : i32
    %c0_i32_2 = arith.constant 0 : i32
    return %c0_i32, %c0_i32_0, %c0_i32_1 : i32, i32, i32
  }
  func.func @transform_7(%arg0: i32) -> (i32, i32, i32) {
    %c0_i32 = arith.constant 0 : i32
    %c0_i32_0 = arith.constant 0 : i32
    %c0_i32_1 = arith.constant 0 : i32
    return %c0_i32, %c0_i32_0, %arg0 : i32, i32, i32
  }
}

</mosaic_0001>

<llo_original>
// kernel: custom-call.3
$region0: #{custom-call.3}
  %s0 = inlined_call_operand.hbm [shape: c64[4,16,16], index: 0, kind: input, shape index: {}]
  %s1 = inlined_call_operand.vmem [shape: f32[4,16,16], index: 1, kind: output, shape index: {}]
  %s2 = scalar_lea.hbm %s0, 1024
  $region1: #{custom-call.3} parent=0
    #allocation0 [shape = 's32[1]{0}', space=sflag, size = 0x4, scoped, tag = 'scoped memory for custom-call.3']
    %3 = vsyncpa [#allocation0], 0
    %s4 = sshll.u32 %s1, 4
    %s5 = int_to_ptr.vmem [resolvable:$true] %s4
    %7 = dma.hbm_to_vmem [thread:$0]  %s2, 1024, %s5, [#allocation0]
    %8 = dma.done [#allocation0], 1024
    %9 = vsyncpa [#allocation0], 1

// kernel: custom-call.2
$region0: #{custom-call.2}
  %s0 = inlined_call_operand.hbm [shape: c64[4,16,16], index: 0, kind: input, shape index: {}]
  %s1 = inlined_call_operand.vmem [shape: f32[4,16,16], index: 1, kind: output, shape index: {}]
  $region1: #{custom-call.2} parent=0
    #allocation0 [shape = 's32[1]{0}', space=sflag, size = 0x4, scoped, tag = 'scoped memory for custom-call.2']
    %2 = vsyncpa [#allocation0], 0
    %s3 = sshll.u32 %s1, 4
    %s4 = int_to_ptr.vmem [resolvable:$true] %s3
    %6 = dma.hbm_to_vmem [thread:$0]  %s0, 1024, %s4, [#allocation0]
    %7 = dma.done [#allocation0], 1024
    %8 = vsyncpa [#allocation0], 1

// kernel: custom-call
$region0: #{custom-call}
  %s0 = inlined_call_operand.hbm [shape: c64[16,16,8], index: 0, kind: input, shape index: {}]
  %s1 = inlined_call_operand.vmem [shape: f32[16,16,8], index: 1, kind: output, shape index: {}]
  $region1: #{custom-call} parent=0
    #allocation0 [shape = 's32[1]{0}', space=sflag, size = 0x4, scoped, tag = 'scoped memory for custom-call']
    %2 = vsyncpa [#allocation0], 0
    %s3 = sshll.u32 %s1, 4
    %s4 = int_to_ptr.vmem [resolvable:$true] %s3
    %6 = dma.hbm_to_vmem [thread:$0]  %s0, 2048, %s4, [#allocation0]
    %7 = dma.done [#allocation0], 2048
    %8 = vsyncpa [#allocation0], 1

// kernel: custom-call.1
$region0: #{custom-call.1}
  %s0 = inlined_call_operand.hbm [shape: c64[16,16,8], index: 0, kind: input, shape index: {}]
  %s1 = inlined_call_operand.vmem [shape: f32[16,16,8], index: 1, kind: output, shape index: {}]
  %s2 = scalar_lea.hbm %s0, 2048
  $region1: #{custom-call.1} parent=0
    #allocation0 [shape = 's32[1]{0}', space=sflag, size = 0x4, scoped, tag = 'scoped memory for custom-call.1']
    %3 = vsyncpa [#allocation0], 0
    %s4 = sshll.u32 %s1, 4
    %s5 = int_to_ptr.vmem [resolvable:$true] %s4
    %7 = dma.hbm_to_vmem [thread:$0]  %s2, 2048, %s5, [#allocation0]
    %8 = dma.done [#allocation0], 2048
    %9 = vsyncpa [#allocation0], 1

// kernel: squeeze.2
$region0: #{squeeze.2}
  %s0 = inlined_call_operand.vmem [shape: f32[1,16,128], index: 0, kind: input, shape index: {}]
  %s1 = inlined_call_operand.vmem [shape: f32[16,8,16], index: 1, kind: output, shape index: {}]
  %v2 = vld [vmem:[%s0] sm:$0xff]
  %vm3 = vcmask 130048
  %4 = vst.msk [vmem:[%s1] ss:$8 sm:$0xf] %vm3, %v2
  %5 = vst.msk [vmem:[%s1] ss:$8 sm:$0xf0] %vm3, %v2
  %s6 = scalar_lea.vmem %s0, 8
  %v7 = vld [vmem:[%s6] sm:$0xff]
  %vm8 = vcmask 130048
  %s9 = scalar_lea.vmem %s1, 64
  %10 = vst.msk [vmem:[%s9] ss:$8 sm:$0xf] %vm8, %v7
  %s11 = scalar_lea.vmem %s1, 64
  %12 = vst.msk [vmem:[%s11] ss:$8 sm:$0xf0] %vm8, %v7
  %v13 = vld [vmem:[%s0] sm:$0xff]
  %14 = vrot.lane.b32.xlu0 %v13, 112
  %v15 = vpop.permute.xlu0 %14
  %vm16 = vcmask 130048
  %s17 = scalar_lea.vmem %s1, 1
  %18 = vst.msk [vmem:[%s17] ss:$8 sm:$0xf] %vm16, %v15
  %s19 = scalar_lea.vmem %s1, 1
  %20 = vst.msk [vmem:[%s19] ss:$8 sm:$0xf0] %vm16, %v15
  %s21 = scalar_lea.vmem %s0, 8
  %v22 = vld [vmem:[%s21] sm:$0xff]
  %23 = vrot.lane.b32.xlu0 %v22, 112
  %v24 = vpop.permute.xlu0 %23
  %vm25 = vcmask 130048
  %s26 = scalar_lea.vmem %s1, 65
  %27 = vst.msk [vmem:[%s26] ss:$8 sm:$0xf] %vm25, %v24
  %s28 = scalar_lea.vmem %s1, 65
  %29 = vst.msk [vmem:[%s28] ss:$8 sm:$0xf0] %vm25, %v24
  %v30 = vld [vmem:[%s0] sm:$0xff]
  %31 = vrot.lane.b32.xlu0 %v30, 96
  %v32 = vpop.permute.xlu0 %31
  %vm33 = vcmask 130048
  %s34 = scalar_lea.vmem %s1, 2
  %35 = vst.msk [vmem:[%s34] ss:$8 sm:$0xf] %vm33, %v32
  %s36 = scalar_lea.vmem %s1, 2
  %37 = vst.msk [vmem:[%s36] ss:$8 sm:$0xf0] %vm33, %v32
  %s38 = scalar_lea.vmem %s0, 8
  %v39 = vld [vmem:[%s38] sm:$0xff]
  %40 = vrot.lane.b32.xlu0 %v39, 96
  %v41 = vpop.permute.xlu0 %40
  %vm42 = vcmask 130048
  %s43 = scalar_lea.vmem %s1, 66
  %44 = vst.msk [vmem:[%s43] ss:$8 sm:$0xf] %vm42, %v41
  %s45 = scalar_lea.vmem %s1, 66
  %46 = vst.msk [vmem:[%s45] ss:$8 sm:$0xf0] %vm42, %v41
  %v47 = vld [vmem:[%s0] sm:$0xff]
  %48 = vrot.lane.b32.xlu0 %v47, 80
  %v49 = vpop.permute.xlu0 %48
  %vm50 = vcmask 130048
  %s51 = scalar_lea.vmem %s1, 3
  %52 = vst.msk [vmem:[%s51] ss:$8 sm:$0xf] %vm50, %v49
  %s53 = scalar_lea.vmem %s1, 3
  %54 = vst.msk [vmem:[%s53] ss:$8 sm:$0xf0] %vm50, %v49
  %s55 = scalar_lea.vmem %s0, 8
  %v56 = vld [vmem:[%s55] sm:$0xff]
  %57 = vrot.lane.b32.xlu0 %v56, 80
  %v58 = vpop.permute.xlu0 %57
  %vm59 = vcmask 130048
  %s60 = scalar_lea.vmem %s1, 67
  %61 = vst.msk [vmem:[%s60] ss:$8 sm:$0xf] %vm59, %v58
  %s62 = scalar_lea.vmem %s1, 67
  %63 = vst.msk [vmem:[%s62] ss:$8 sm:$0xf0] %vm59, %v58
  %v64 = vld [vmem:[%s0] sm:$0xff]
  %65 = vrot.lane.b32.xlu0 %v64, 64
  %v66 = vpop.permute.xlu0 %65
  %vm67 = vcmask 130048
  %s68 = scalar_lea.vmem %s1, 4
  %69 = vst.msk [vmem:[%s68] ss:$8 sm:$0xf] %vm67, %v66
  %s70 = scalar_lea.vmem %s1, 4
  %71 = vst.msk [vmem:[%s70] ss:$8 sm:$0xf0] %vm67, %v66
  %s72 = scalar_lea.vmem %s0, 8
  %v73 = vld [vmem:[%s72] sm:$0xff]
  %74 = vrot.lane.b32.xlu0 %v73, 64
  %v75 = vpop.permute.xlu0 %74
  %vm76 = vcmask 130048
  %s77 = scalar_lea.vmem %s1, 68
  %78 = vst.msk [vmem:[%s77] ss:$8 sm:$0xf] %vm76, %v75
  %s79 = scalar_lea.vmem %s1, 68
  %80 = vst.msk [vmem:[%s79] ss:$8 sm:$0xf0] %vm76, %v75
  %v81 = vld [vmem:[%s0] sm:$0xff]
  %82 = vrot.lane.b32.xlu0 %v81, 48
  %v83 = vpop.permute.xlu0 %82
  %vm84 = vcmask 130048
  %s85 = scalar_lea.vmem %s1, 5
  %86 = vst.msk [vmem:[%s85] ss:$8 sm:$0xf] %vm84, %v83
  %s87 = scalar_lea.vmem %s1, 5
  %88 = vst.msk [vmem:[%s87] ss:$8 sm:$0xf0] %vm84, %v83
  %s89 = scalar_lea.vmem %s0, 8
  %v90 = vld [vmem:[%s89] sm:$0xff]
  %91 = vrot.lane.b32.xlu0 %v90, 48
  %v92 = vpop.permute.xlu0 %91
  %vm93 = vcmask 130048
  %s94 = scalar_lea.vmem %s1, 69
  %95 = vst.msk [vmem:[%s94] ss:$8 sm:$0xf] %vm93, %v92
  %s96 = scalar_lea.vmem %s1, 69
  %97 = vst.msk [vmem:[%s96] ss:$8 sm:$0xf0] %vm93, %v92
  %v98 = vld [vmem:[%s0] sm:$0xff]
  %99 = vrot.lane.b32.xlu0 %v98, 32
  %v100 = vpop.permute.xlu0 %99
  %vm101 = vcmask 130048
  %s102 = scalar_lea.vmem %s1, 6
  %103 = vst.msk [vmem:[%s102] ss:$8 sm:$0xf] %vm101, %v100
  %s104 = scalar_lea.vmem %s1, 6
  %105 = vst.msk [vmem:[%s104] ss:$8 sm:$0xf0] %vm101, %v100
  %s106 = scalar_lea.vmem %s0, 8
  %v107 = vld [vmem:[%s106] sm:$0xff]
  %108 = vrot.lane.b32.xlu0 %v107, 32
  %v109 = vpop.permute.xlu0 %108
  %vm110 = vcmask 130048
  %s111 = scalar_lea.vmem %s1, 70
  %112 = vst.msk [vmem:[%s111] ss:$8 sm:$0xf] %vm110, %v109
  %s113 = scalar_lea.vmem %s1, 70
  %114 = vst.msk [vmem:[%s113] ss:$8 sm:$0xf0] %vm110, %v109
  %v115 = vld [vmem:[%s0] sm:$0xff]
  %116 = vrot.lane.b32.xlu0 %v115, 16
  %v117 = vpop.permute.xlu0 %116
  %vm118 = vcmask 130048
  %s119 = scalar_lea.vmem %s1, 7
  %120 = vst.msk [vmem:[%s119] ss:$8 sm:$0xf] %vm118, %v117
  %s121 = scalar_lea.vmem %s1, 7
  %122 = vst.msk [vmem:[%s121] ss:$8 sm:$0xf0] %vm118, %v117
  %s123 = scalar_lea.vmem %s0, 8
  %v124 = vld [vmem:[%s123] sm:$0xff]
  %125 = vrot.lane.b32.xlu0 %v124, 16
  %v126 = vpop.permute.xlu0 %125
  %vm127 = vcmask 130048
  %s128 = scalar_lea.vmem %s1, 71
  %129 = vst.msk [vmem:[%s128] ss:$8 sm:$0xf] %vm127, %v126
  %s130 = scalar_lea.vmem %s1, 71
  %131 = vst.msk [vmem:[%s130] ss:$8 sm:$0xf0] %vm127, %v126

// kernel: custom-call.4
$region0: #{custom-call.4}
  %s0 = inlined_call_operand.vmem [shape: f32[16,16,8], index: 0, kind: input, shape index: {}]
  %s1 = inlined_call_operand.vmem [shape: f32[16,16,8], index: 1, kind: input, shape index: {}]
  %s2 = inlined_call_operand.hbm [shape: c64[16,16,8], index: 2, kind: output, shape index: {}]
  %s3 = scalar_lea.hbm %s2, 2048
  $region1: #{custom-call.4} parent=0
    #allocation0 [shape = 's32[1]{0}', space=sflag, size = 0x4, scoped, tag = 'scoped memory for custom-call.4']
    %4 = vsyncpa [#allocation0], 0
    %s5 = sshll.u32 %s0, 4
    %s6 = int_to_ptr.vmem [resolvable:$true] %s5
    %8 = dma.vmem_to_hbm [thread:$0]  %s6, 2048, %s2, [#allocation0]
    %9 = dma.done [#allocation0], 2048
    %10 = vsyncpa [#allocation0], 1
  $region2: #{custom-call.4} parent=0
    #allocation1 [shape = 's32[1]{0}', space=sflag, size = 0x4, scoped, tag = 'scoped memory for custom-call.4']
    %11 = vsyncpa [#allocation1], 0
    %s12 = sshll.u32 %s1, 4
    %s13 = int_to_ptr.vmem [resolvable:$true] %s12
    %15 = dma.vmem_to_hbm [thread:$0]  %s13, 2048, %s3, [#allocation1]
    %16 = dma.done [#allocation1], 2048
    %17 = vsyncpa [#allocation1], 1

// kernel: _run.1
$region0: #{_run.1}
  #allocation0 [shape = 'u32[]', space=smem, size = 0x4, offset = 0x4, fixed_abs, tag = 'smem constant byte address 0x4 - core index']
  #allocation1 [shape = 'u32[144,128]{1,0:T(1,128)}', space=vmem, size = 0x12000, scoped, tag = 'internal scratch']
  %s0 = inlined_call_operand.vmem [shape: f32[2,16,128], index: 0, kind: input, shape index: {}]
  %s1 = inlined_call_operand.vmem [shape: bf16[2,256,32], index: 1, kind: input, shape index: {}]
  %s2 = inlined_call_operand.vmem [shape: f32[2,16,512], index: 2, kind: input, shape index: {}]
  %s3 = inlined_call_operand.vmem [shape: bf16[3,32,16], index: 3, kind: input, shape index: {}]
  %s4 = inlined_call_operand.vmem [shape: bf16[3,16,32], index: 4, kind: input, shape index: {}]
  %s5 = inlined_call_operand.vmem [shape: bf16[3,16,32], index: 5, kind: input, shape index: {}]
  %s6 = inlined_call_operand.vmem [shape: bf16[3,32,16], index: 6, kind: input, shape index: {}]
  %s7 = inlined_call_operand.vmem [shape: f32[2,16,128], index: 7, kind: output, shape index: {}]
  %s8 = sld [smem:[#allocation0]]
  $region38: #{_run.1} parent=0
    _
  %s10 = ssub.s32 1, %s8
  %s11 = scalar_select 0, %s10, %s8
  // Predicated region
  $region2: #{_run.1} parent=0 // pred_check
    _
  $region3: #{_run.1} parent=0 // pred_check_branch
    %13 = sbr.rel (0) target = $region5
  $region4: #{_run.1} parent=0 // pred_region
    _
  $region5: #{_run.1} parent=0 // pred_fallthru
    _
  // Predicated region
  $region6: #{_run.1} parent=0 // pred_check
    _
  $region7: #{_run.1} parent=0 // pred_check_branch
    %15 = sbr.rel (0) target = $region9
  $region8: #{_run.1} parent=0 // pred_region
    _
  $region9: #{_run.1} parent=0 // pred_fallthru
    _
  // Predicated region
  $region10: #{_run.1} parent=0 // pred_check
    _
  $region11: #{_run.1} parent=0 // pred_check_branch
    %17 = sbr.rel (0) target = $region13
  $region12: #{_run.1} parent=0 // pred_region
    _
  $region13: #{_run.1} parent=0 // pred_fallthru
    _
  // Predicated region
  $region14: #{_run.1} parent=0 // pred_check
    _
  $region15: #{_run.1} parent=0 // pred_check_branch
    %19 = sbr.rel (0) target = $region17
  $region16: #{_run.1} parent=0 // pred_region
    _
  $region17: #{_run.1} parent=0 // pred_fallthru
    _
  // Predicated region
  $region18: #{_run.1} parent=0 // pred_check
    _
  $region19: #{_run.1} parent=0 // pred_check_branch
    %21 = sbr.rel (0) target = $region21
  $region20: #{_run.1} parent=0 // pred_region
    _
  $region21: #{_run.1} parent=0 // pred_fallthru
    _
  // Predicated region
  $region22: #{_run.1} parent=0 // pred_check
    _
  $region23: #{_run.1} parent=0 // pred_check_branch
    %23 = sbr.rel (0) target = $region25
  $region24: #{_run.1} parent=0 // pred_region
    _
  $region25: #{_run.1} parent=0 // pred_fallthru
    _
  // Predicated region
  $region26: #{_run.1} parent=0 // pred_check
    _
  $region27: #{_run.1} parent=0 // pred_check_branch
    %25 = sbr.rel (0) target = $region29
  $region28: #{_run.1} parent=0 // pred_region
    _
  $region29: #{_run.1} parent=0 // pred_fallthru
    _
  %v27 = vld [vmem:[%s0] sm:$0xff]
  %v28 = vld [vmem:[%s0 + $0x8] sm:$0xff]
  %s29 = scalar_lea.vmem %s0, 16
  %v30 = vld [vmem:[%s29] sm:$0xff]
  %v31 = vld [vmem:[%s29 + $0x8] sm:$0xff]
  %v32 = vld [vmem:[%s2] sm:$0xff]
  %v33 = vld [vmem:[%s2 + $0x8] sm:$0xff]
  %v34 = vld [vmem:[%s2 + $0x10] sm:$0xff]
  %v35 = vld [vmem:[%s2 + $0x18] sm:$0xff]
  %v36 = vld [vmem:[%s2 + $0x20] sm:$0xff]
  %v37 = vld [vmem:[%s2 + $0x28] sm:$0xff]
  %v38 = vld [vmem:[%s2 + $0x30] sm:$0xff]
  %v39 = vld [vmem:[%s2 + $0x38] sm:$0xff]
  %s40 = scalar_lea.vmem %s2, 64
  %v41 = vld [vmem:[%s40] sm:$0xff]
  %v42 = vld [vmem:[%s40 + $0x8] sm:$0xff]
  %v43 = vld [vmem:[%s40 + $0x10] sm:$0xff]
  %v44 = vld [vmem:[%s40 + $0x18] sm:$0xff]
  %v45 = vld [vmem:[%s40 + $0x20] sm:$0xff]
  %v46 = vld [vmem:[%s40 + $0x28] sm:$0xff]
  %v47 = vld [vmem:[%s40 + $0x30] sm:$0xff]
  %v48 = vld [vmem:[%s40 + $0x38] sm:$0xff]
  %v49 = vmul.f32 %v32, %v27
  %v50 = vmul.f32 %v33, %v27
  %v51 = vmul.f32 %v34, %v27
  %v52 = vmul.f32 %v35, %v27
  %v53 = vmul.f32 %v36, %v28
  %v54 = vmul.f32 %v37, %v28
  %v55 = vmul.f32 %v38, %v28
  %v56 = vmul.f32 %v39, %v28
  %v57 = vmul.f32 %v41, %v30
  %v58 = vmul.f32 %v42, %v30
  %v59 = vmul.f32 %v43, %v30
  %v60 = vmul.f32 %v44, %v30
  %v61 = vmul.f32 %v45, %v31
  %v62 = vmul.f32 %v46, %v31
  %v63 = vmul.f32 %v47, %v31
  %v64 = vmul.f32 %v48, %v31
  %v65 = vsub.f32 %v49, %v57
  %v66 = vsub.f32 %v50, %v58
  %v67 = vsub.f32 %v51, %v59
  %v68 = vsub.f32 %v52, %v60
  %v69 = vsub.f32 %v53, %v61
  %v70 = vsub.f32 %v54, %v62
  %v71 = vsub.f32 %v55, %v63
  %v72 = vsub.f32 %v56, %v64
  %v73 = vmul.f32 %v32, %v30
  %v74 = vmul.f32 %v33, %v30
  %v75 = vmul.f32 %v34, %v30
  %v76 = vmul.f32 %v35, %v30
  %v77 = vmul.f32 %v36, %v31
  %v78 = vmul.f32 %v37, %v31
  %v79 = vmul.f32 %v38, %v31
  %v80 = vmul.f32 %v39, %v31
  %v81 = vmul.f32 %v41, %v27
  %v82 = vmul.f32 %v42, %v27
  %v83 = vmul.f32 %v43, %v27
  %v84 = vmul.f32 %v44, %v27
  %v85 = vmul.f32 %v45, %v28
  %v86 = vmul.f32 %v46, %v28
  %v87 = vmul.f32 %v47, %v28
  %v88 = vmul.f32 %v48, %v28
  %v89 = vadd.f32 %v73, %v81
  %v90 = vadd.f32 %v74, %v82
  %v91 = vadd.f32 %v75, %v83
  %v92 = vadd.f32 %v76, %v84
  %v93 = vadd.f32 %v77, %v85
  %v94 = vadd.f32 %v78, %v86
  %v95 = vadd.f32 %v79, %v87
  %v96 = vadd.f32 %v80, %v88
  %v97 = vld [vmem:[%s3] sm:$0xf]
  %v98 = vld [vmem:[%s3 + $0x4] sm:$0xf]
  %v99 = vld [vmem:[%s3 + $0x8] sm:$0xf]
  %v100 = vld [vmem:[%s3 + $0xc] sm:$0xf]
  %v101 = vadd.f32 %v65, %v89
  %v102 = vadd.f32 %v66, %v90
  %v103 = vadd.f32 %v67, %v91
  %v104 = vadd.f32 %v68, %v92
  %v105 = vadd.f32 %v69, %v93
  %v106 = vadd.f32 %v70, %v94
  %v107 = vadd.f32 %v71, %v95
  %v108 = vadd.f32 %v72, %v96
  %v109 = vpack.c.bf16 %v105, %v101
  %v110 = vpack.c.bf16 %v106, %v102
  %v111 = vpack.c.bf16 %v107, %v103
  %v112 = vpack.c.bf16 %v108, %v104
  %v117 = vunpack.c.l.b16 %v97
  %v118 = vunpack.c.l.b16 %v98
  %v119 = vunpack.c.l.b16 %v99
  %v120 = vunpack.c.l.b16 %v100
  %v121 = vpack.c.b16 %v118, %v117
  %v122 = vpack.c.b16 %v120, %v119
  %vm123 = vcmask 130048
  %v125 = vsel %vm123, %v121, 0
  %v128 = vsel %vm123, %v122, 0
  %130 = vmatprep.subr.bf16.mxu0 %v110
  %131 = vmatpush1.bf16.msra.mxu0 %v109
  %132 = vmatprep.subr.bf16.mxu0 0
  %133 = vmatpush1.bf16.msra.mxu0 0
  %134 = vmatprep.subr.bf16.mxu0 0
  %135 = vmatpush1.bf16.msra.mxu0 0
  %136 = vmatprep.subr.bf16.mxu0 0
  %137 = vmatpush1.bf16.msra.mxu0 0
  %138 = vmatprep.subr.bf16.mxu0 0
  %139 = vmatpush1.bf16.msra.mxu0 0
  %140 = vmatprep.subr.bf16.mxu0 0
  %141 = vmatpush1.bf16.msra.mxu0 0
  %142 = vmatprep.subr.bf16.mxu0 0
  %143 = vmatpush1.bf16.msra.mxu0 0
  %144 = vmatprep.subr.bf16.mxu0 0
  %145 = vmatpush1.bf16.msra.mxu0 0
  %146 = vmatprep.subr.bf16.mxu0 0
  %147 = vmatpush1.bf16.msra.mxu0 0
  %148 = vmatprep.subr.bf16.mxu0 0
  %149 = vmatpush1.bf16.msra.mxu0 0
  %150 = vmatprep.subr.bf16.mxu0 0
  %151 = vmatpush1.bf16.msra.mxu0 0
  %152 = vmatprep.subr.bf16.mxu0 0
  %153 = vmatpush1.bf16.msra.mxu0 0
  %154 = vmatprep.subr.bf16.mxu0 0
  %155 = vmatpush1.bf16.msra.mxu0 0
  %156 = vmatprep.subr.bf16.mxu0 0
  %157 = vmatpush1.bf16.msra.mxu0 0
  %158 = vmatprep.subr.bf16.mxu0 0
  %159 = vmatpush1.bf16.msra.mxu0 0
  %160 = vmatprep.subr.bf16.mxu0 0
  %161 = vmatpush1.bf16.msra.mxu0 0
  %162 = vmatprep.mubr.bf16.mxu0 0
  %163 = vmatmul.mubr.bf16.gmra.mrb[0].mxu0 %v125
  %v164 = vpop.f32.mrb[0].mxu0
  %v165 = vadd.f32 0.0, %v164
  %v166 = vpop.f32.mrb[0].mxu0
  %v167 = vadd.f32 0.0, %v166
  %v168 = vpop.f32.mrb[0].mxu0
  %v169 = vadd.f32 0.0, %v168
  %v170 = vpop.f32.mrb[0].mxu0
  %v171 = vadd.f32 0.0, %v170
  %172 = vmatprep.mubr.bf16.mxu0 0
  %173 = vmatmul.mubr.bf16.gmra.mrb[0].mxu0 %v128
  %v174 = vpop.f32.mrb[0].mxu0
  %v175 = vadd.f32 0.0, %v174
  %v176 = vpop.f32.mrb[0].mxu0
  %v177 = vadd.f32 0.0, %v176
  %v178 = vpop.f32.mrb[0].mxu0
  %v179 = vadd.f32 0.0, %v178
  %v180 = vpop.f32.mrb[0].mxu0
  %v181 = vadd.f32 0.0, %v180
  %182 = vdwg.mxu0
  %183 = vmatprep.subr.bf16.mxu0 %v112
  %184 = vmatpush1.bf16.msra.mxu0 %v111
  %185 = vmatprep.subr.bf16.mxu0 0
  %186 = vmatpush1.bf16.msra.mxu0 0
  %187 = vmatprep.subr.bf16.mxu0 0
  %188 = vmatpush1.bf16.msra.mxu0 0
  %189 = vmatprep.subr.bf16.mxu0 0
  %190 = vmatpush1.bf16.msra.mxu0 0
  %191 = vmatprep.subr.bf16.mxu0 0
  %192 = vmatpush1.bf16.msra.mxu0 0
  %193 = vmatprep.subr.bf16.mxu0 0
  %194 = vmatpush1.bf16.msra.mxu0 0
  %195 = vmatprep.subr.bf16.mxu0 0
  %196 = vmatpush1.bf16.msra.mxu0 0
  %197 = vmatprep.subr.bf16.mxu0 0
  %198 = vmatpush1.bf16.msra.mxu0 0
  %199 = vmatprep.subr.bf16.mxu0 0
  %200 = vmatpush1.bf16.msra.mxu0 0
  %201 = vmatprep.subr.bf16.mxu0 0
  %202 = vmatpush1.bf16.msra.mxu0 0
  %203 = vmatprep.subr.bf16.mxu0 0
  %204 = vmatpush1.bf16.msra.mxu0 0
  %205 = vmatprep.subr.bf16.mxu0 0
  %206 = vmatpush1.bf16.msra.mxu0 0
  %207 = vmatprep.subr.bf16.mxu0 0
  %208 = vmatpush1.bf16.msra.mxu0 0
  %209 = vmatprep.subr.bf16.mxu0 0
  %210 = vmatpush1.bf16.msra.mxu0 0
  %211 = vmatprep.subr.bf16.mxu0 0
  %212 = vmatpush1.bf16.msra.mxu0 0
  %213 = vmatprep.subr.bf16.mxu0 0
  %214 = vmatpush1.bf16.msra.mxu0 0
  %215 = vmatprep.mubr.bf16.mxu0 0
  %216 = vmatmul.mubr.bf16.gmra.mrb[0].mxu0 %v125
  %v217 = vpop.f32.mrb[0].mxu0
  %v218 = vadd.f32 0.0, %v217
  %v219 = vpop.f32.mrb[0].mxu0
  %v220 = vadd.f32 0.0, %v219
  %v221 = vpop.f32.mrb[0].mxu0
  %v222 = vadd.f32 0.0, %v221
  %v223 = vpop.f32.mrb[0].mxu0
  %v224 = vadd.f32 0.0, %v223
  %225 = vmatprep.mubr.bf16.mxu0 0
  %226 = vmatmul.mubr.bf16.gmra.mrb[0].mxu0 %v128
  %v227 = vpop.f32.mrb[0].mxu0
  %v228 = vadd.f32 0.0, %v227
  %v229 = vpop.f32.mrb[0].mxu0
  %v230 = vadd.f32 0.0, %v229
  %v231 = vpop.f32.mrb[0].mxu0
  %v232 = vadd.f32 0.0, %v231
  %v233 = vpop.f32.mrb[0].mxu0
  %v234 = vadd.f32 0.0, %v233
  %235 = vdwg.mxu0
  %s236 = scalar_lea.vmem %s3, 16
  %v237 = vld [vmem:[%s236] sm:$0xf]
  %v238 = vld [vmem:[%s236 + $0x4] sm:$0xf]
  %v239 = vld [vmem:[%s236 + $0x8] sm:$0xf]
  %v240 = vld [vmem:[%s236 + $0xc] sm:$0xf]
  %v241 = vpack.c.bf16 %v69, %v65
  %v242 = vpack.c.bf16 %v70, %v66
  %v243 = vpack.c.bf16 %v71, %v67
  %v244 = vpack.c.bf16 %v72, %v68
  %v249 = vunpack.c.l.b16 %v237
  %v250 = vunpack.c.l.b16 %v238
  %v251 = vunpack.c.l.b16 %v239
  %v252 = vunpack.c.l.b16 %v240
  %v253 = vpack.c.b16 %v250, %v249
  %v254 = vpack.c.b16 %v252, %v251
  %v256 = vsel %vm123, %v253, 0
  %v259 = vsel %vm123, %v254, 0
  %261 = vmatprep.subr.bf16.mxu0 %v242
  %262 = vmatpush1.bf16.msra.mxu0 %v241
  %263 = vmatprep.subr.bf16.mxu0 0
  %264 = vmatpush1.bf16.msra.mxu0 0
  %265 = vmatprep.subr.bf16.mxu0 0
  %266 = vmatpush1.bf16.msra.mxu0 0
  %267 = vmatprep.subr.bf16.mxu0 0
  %268 = vmatpush1.bf16.msra.mxu0 0
  %269 = vmatprep.subr.bf16.mxu0 0
  %270 = vmatpush1.bf16.msra.mxu0 0
  %271 = vmatprep.subr.bf16.mxu0 0
  %272 = vmatpush1.bf16.msra.mxu0 0
  %273 = vmatprep.subr.bf16.mxu0 0
  %274 = vmatpush1.bf16.msra.mxu0 0
  %275 = vmatprep.subr.bf16.mxu0 0
  %276 = vmatpush1.bf16.msra.mxu0 0
  %277 = vmatprep.subr.bf16.mxu0 0
  %278 = vmatpush1.bf16.msra.mxu0 0
  %279 = vmatprep.subr.bf16.mxu0 0
  %280 = vmatpush1.bf16.msra.mxu0 0
  %281 = vmatprep.subr.bf16.mxu0 0
  %282 = vmatpush1.bf16.msra.mxu0 0
  %283 = vmatprep.subr.bf16.mxu0 0
  %284 = vmatpush1.bf16.msra.mxu0 0
  %285 = vmatprep.subr.bf16.mxu0 0
  %286 = vmatpush1.bf16.msra.mxu0 0
  %287 = vmatprep.subr.bf16.mxu0 0
  %288 = vmatpush1.bf16.msra.mxu0 0
  %289 = vmatprep.subr.bf16.mxu0 0
  %290 = vmatpush1.bf16.msra.mxu0 0
  %291 = vmatprep.subr.bf16.mxu0 0
  %292 = vmatpush1.bf16.msra.mxu0 0
  %293 = vmatprep.mubr.bf16.mxu0 0
  %294 = vmatmul.mubr.bf16.gmra.mrb[0].mxu0 %v256
  %v295 = vpop.f32.mrb[0].mxu0
  %v296 = vadd.f32 0.0, %v295
  %v297 = vpop.f32.mrb[0].mxu0
  %v298 = vadd.f32 0.0, %v297
  %v299 = vpop.f32.mrb[0].mxu0
  %v300 = vadd.f32 0.0, %v299
  %v301 = vpop.f32.mrb[0].mxu0
  %v302 = vadd.f32 0.0, %v301
  %303 = vmatprep.mubr.bf16.mxu0 0
  %304 = vmatmul.mubr.bf16.gmra.mrb[0].mxu0 %v259
  %v305 = vpop.f32.mrb[0].mxu0
  %v306 = vadd.f32 0.0, %v305
  %v307 = vpop.f32.mrb[0].mxu0
  %v308 = vadd.f32 0.0, %v307
  %v309 = vpop.f32.mrb[0].mxu0
  %v310 = vadd.f32 0.0, %v309
  %v311 = vpop.f32.mrb[0].mxu0
  %v312 = vadd.f32 0.0, %v311
  %313 = vdwg.mxu0
  %314 = vmatprep.subr.bf16.mxu0 %v244
  %315 = vmatpush1.bf16.msra.mxu0 %v243
  %316 = vmatprep.subr.bf16.mxu0 0
  %317 = vmatpush1.bf16.msra.mxu0 0
  %318 = vmatprep.subr.bf16.mxu0 0
  %319 = vmatpush1.bf16.msra.mxu0 0
  %320 = vmatprep.subr.bf16.mxu0 0
  %321 = vmatpush1.bf16.msra.mxu0 0
  %322 = vmatprep.subr.bf16.mxu0 0
  %323 = vmatpush1.bf16.msra.mxu0 0
  %324 = vmatprep.subr.bf16.mxu0 0
  %325 = vmatpush1.bf16.msra.mxu0 0
  %326 = vmatprep.subr.bf16.mxu0 0
  %327 = vmatpush1.bf16.msra.mxu0 0
  %328 = vmatprep.subr.bf16.mxu0 0
  %329 = vmatpush1.bf16.msra.mxu0 0
  %330 = vmatprep.subr.bf16.mxu0 0
  %331 = vmatpush1.bf16.msra.mxu0 0
  %332 = vmatprep.subr.bf16.mxu0 0
  %333 = vmatpush1.bf16.msra.mxu0 0
  %334 = vmatprep.subr.bf16.mxu0 0
  %335 = vmatpush1.bf16.msra.mxu0 0
  %336 = vmatprep.subr.bf16.mxu0 0
  %337 = vmatpush1.bf16.msra.mxu0 0
  %338 = vmatprep.subr.bf16.mxu0 0
  %339 = vmatpush1.bf16.msra.mxu0 0
  %340 = vmatprep.subr.bf16.mxu0 0
  %341 = vmatpush1.bf16.msra.mxu0 0
  %342 = vmatprep.subr.bf16.mxu0 0
  %343 = vmatpush1.bf16.msra.mxu0 0
  %344 = vmatprep.subr.bf16.mxu0 0
  %345 = vmatpush1.bf16.msra.mxu0 0
  %346 = vmatprep.mubr.bf16.mxu0 0
  %347 = vmatmul.mubr.bf16.gmra.mrb[0].mxu0 %v256
  %v348 = vpop.f32.mrb[0].mxu0
  %v349 = vadd.f32 0.0, %v348
  %v350 = vpop.f32.mrb[0].mxu0
  %v351 = vadd.f32 0.0, %v350
  %v352 = vpop.f32.mrb[0].mxu0
  %v353 = vadd.f32 0.0, %v352
  %v354 = vpop.f32.mrb[0].mxu0
  %v355 = vadd.f32 0.0, %v354
  %356 = vmatprep.mubr.bf16.mxu0 0
  %357 = vmatmul.mubr.bf16.gmra.mrb[0].mxu0 %v259
  %v358 = vpop.f32.mrb[0].mxu0
  %v359 = vadd.f32 0.0, %v358
  %v360 = vpop.f32.mrb[0].mxu0
  %v361 = vadd.f32 0.0, %v360
  %v362 = vpop.f32.mrb[0].mxu0
  %v363 = vadd.f32 0.0, %v362
  %v364 = vpop.f32.mrb[0].mxu0
  %v365 = vadd.f32 0.0, %v364
  %366 = vdwg.mxu0
  %s367 = scalar_lea.vmem %s3, 32
  %v368 = vld [vmem:[%s367] sm:$0xf]
  %v369 = vld [vmem:[%s367 + $0x4] sm:$0xf]
  %v370 = vld [vmem:[%s367 + $0x8] sm:$0xf]
  %v371 = vld [vmem:[%s367 + $0xc] sm:$0xf]
  %v372 = vpack.c.bf16 %v93, %v89
  %v373 = vpack.c.bf16 %v94, %v90
  %v374 = vpack.c.bf16 %v95, %v91
  %v375 = vpack.c.bf16 %v96, %v92
  %v380 = vunpack.c.l.b16 %v368
  %v381 = vunpack.c.l.b16 %v369
  %v382 = vunpack.c.l.b16 %v370
  %v383 = vunpack.c.l.b16 %v371
  %v384 = vpack.c.b16 %v381, %v380
  %v385 = vpack.c.b16 %v383, %v382
  %v387 = vsel %vm123, %v384, 0
  %v390 = vsel %vm123, %v385, 0
  %392 = vmatprep.subr.bf16.mxu0 %v373
  %393 = vmatpush1.bf16.msra.mxu0 %v372
  %394 = vmatprep.subr.bf16.mxu0 0
  %395 = vmatpush1.bf16.msra.mxu0 0
  %396 = vmatprep.subr.bf16.mxu0 0
  %397 = vmatpush1.bf16.msra.mxu0 0
  %398 = vmatprep.subr.bf16.mxu0 0
  %399 = vmatpush1.bf16.msra.mxu0 0
  %400 = vmatprep.subr.bf16.mxu0 0
  %401 = vmatpush1.bf16.msra.mxu0 0
  %402 = vmatprep.subr.bf16.mxu0 0
  %403 = vmatpush1.bf16.msra.mxu0 0
  %404 = vmatprep.subr.bf16.mxu0 0
  %405 = vmatpush1.bf16.msra.mxu0 0
  %406 = vmatprep.subr.bf16.mxu0 0
  %407 = vmatpush1.bf16.msra.mxu0 0
  %408 = vmatprep.subr.bf16.mxu0 0
  %409 = vmatpush1.bf16.msra.mxu0 0
  %410 = vmatprep.subr.bf16.mxu0 0
  %411 = vmatpush1.bf16.msra.mxu0 0
  %412 = vmatprep.subr.bf16.mxu0 0
  %413 = vmatpush1.bf16.msra.mxu0 0
  %414 = vmatprep.subr.bf16.mxu0 0
  %415 = vmatpush1.bf16.msra.mxu0 0
  %416 = vmatprep.subr.bf16.mxu0 0
  %417 = vmatpush1.bf16.msra.mxu0 0
  %418 = vmatprep.subr.bf16.mxu0 0
  %419 = vmatpush1.bf16.msra.mxu0 0
  %420 = vmatprep.subr.bf16.mxu0 0
  %421 = vmatpush1.bf16.msra.mxu0 0
  %422 = vmatprep.subr.bf16.mxu0 0
  %423 = vmatpush1.bf16.msra.mxu0 0
  %424 = vmatprep.mubr.bf16.mxu0 0
  %425 = vmatmul.mubr.bf16.gmra.mrb[0].mxu0 %v387
  %v426 = vpop.f32.mrb[0].mxu0
  %v427 = vadd.f32 0.0, %v426
  %v428 = vpop.f32.mrb[0].mxu0
  %v429 = vadd.f32 0.0, %v428
  %v430 = vpop.f32.mrb[0].mxu0
  %v431 = vadd.f32 0.0, %v430
  %v432 = vpop.f32.mrb[0].mxu0
  %v433 = vadd.f32 0.0, %v432
  %434 = vmatprep.mubr.bf16.mxu0 0
  %435 = vmatmul.mubr.bf16.gmra.mrb[0].mxu0 %v390
  %v436 = vpop.f32.mrb[0].mxu0
  %v437 = vadd.f32 0.0, %v436
  %v438 = vpop.f32.mrb[0].mxu0
  %v439 = vadd.f32 0.0, %v438
  %v440 = vpop.f32.mrb[0].mxu0
  %v441 = vadd.f32 0.0, %v440
  %v442 = vpop.f32.mrb[0].mxu0
  %v443 = vadd.f32 0.0, %v442
  %444 = vdwg.mxu0
  %445 = vmatprep.subr.bf16.mxu0 %v375
  %446 = vmatpush1.bf16.msra.mxu0 %v374
  %447 = vmatprep.subr.bf16.mxu0 0
  %448 = vmatpush1.bf16.msra.mxu0 0
  %449 = vmatprep.subr.bf16.mxu0 0
  %450 = vmatpush1.bf16.msra.mxu0 0
  %451 = vmatprep.subr.bf16.mxu0 0
  %452 = vmatpush1.bf16.msra.mxu0 0
  %453 = vmatprep.subr.bf16.mxu0 0
  %454 = vmatpush1.bf16.msra.mxu0 0
  %455 = vmatprep.subr.bf16.mxu0 0
  %456 = vmatpush1.bf16.msra.mxu0 0
  %457 = vmatprep.subr.bf16.mxu0 0
  %458 = vmatpush1.bf16.msra.mxu0 0
  %459 = vmatprep.subr.bf16.mxu0 0
  %460 = vmatpush1.bf16.msra.mxu0 0
  %461 = vmatprep.subr.bf16.mxu0 0
  %462 = vmatpush1.bf16.msra.mxu0 0
  %463 = vmatprep.subr.bf16.mxu0 0
  %464 = vmatpush1.bf16.msra.mxu0 0
  %465 = vmatprep.subr.bf16.mxu0 0
  %466 = vmatpush1.bf16.msra.mxu0 0
  %467 = vmatprep.subr.bf16.mxu0 0
  %468 = vmatpush1.bf16.msra.mxu0 0
  %469 = vmatprep.subr.bf16.mxu0 0
  %470 = vmatpush1.bf16.msra.mxu0 0
  %471 = vmatprep.subr.bf16.mxu0 0
  %472 = vmatpush1.bf16.msra.mxu0 0
  %473 = vmatprep.subr.bf16.mxu0 0
  %474 = vmatpush1.bf16.msra.mxu0 0
  %475 = vmatprep.subr.bf16.mxu0 0
  %476 = vmatpush1.bf16.msra.mxu0 0
  %477 = vmatprep.mubr.bf16.mxu0 0
  %478 = vmatmul.mubr.bf16.gmra.mrb[0].mxu0 %v387
  %v479 = vpop.f32.mrb[0].mxu0
  %v480 = vadd.f32 0.0, %v479
  %v481 = vpop.f32.mrb[0].mxu0
  %v482 = vadd.f32 0.0, %v481
  %v483 = vpop.f32.mrb[0].mxu0
  %v484 = vadd.f32 0.0, %v483
  %v485 = vpop.f32.mrb[0].mxu0
  %v486 = vadd.f32 0.0, %v485
  %487 = vmatprep.mubr.bf16.mxu0 0
  %488 = vmatmul.mubr.bf16.gmra.mrb[0].mxu0 %v390
  %v489 = vpop.f32.mrb[0].mxu0
  %v490 = vadd.f32 0.0, %v489
  %v491 = vpop.f32.mrb[0].mxu0
  %v492 = vadd.f32 0.0, %v491
  %v493 = vpop.f32.mrb[0].mxu0
  %v494 = vadd.f32 0.0, %v493
  %v495 = vpop.f32.mrb[0].mxu0
  %v496 = vadd.f32 0.0, %v495
  %497 = vdwg.mxu0
  %v498 = vsub.f32 %v165, %v427
  %v499 = vsub.f32 %v167, %v429
  %v500 = vsub.f32 %v218, %v480
  %v501 = vsub.f32 %v220, %v482
  %v502 = vsub.f32 %v169, %v431
  %v503 = vsub.f32 %v171, %v433
  %v504 = vsub.f32 %v222, %v484
  %v505 = vsub.f32 %v224, %v486
  %v506 = vsub.f32 %v175, %v437
  %v507 = vsub.f32 %v177, %v439
  %v508 = vsub.f32 %v228, %v490
  %v509 = vsub.f32 %v230, %v492
  %v510 = vsub.f32 %v179, %v441
  %v511 = vsub.f32 %v181, %v443
  %v512 = vsub.f32 %v232, %v494
  %v513 = vsub.f32 %v234, %v496
  %v514 = vadd.f32 %v165, %v296
  %v515 = vadd.f32 %v167, %v298
  %v516 = vadd.f32 %v218, %v349
  %v517 = vadd.f32 %v220, %v351
  %v518 = vadd.f32 %v169, %v300
  %v519 = vadd.f32 %v171, %v302
  %v520 = vadd.f32 %v222, %v353
  %v521 = vadd.f32 %v224, %v355
  %v522 = vadd.f32 %v175, %v306
  %v523 = vadd.f32 %v177, %v308
  %v524 = vadd.f32 %v228, %v359
  %v525 = vadd.f32 %v230, %v361
  %v526 = vadd.f32 %v179, %v310
  %v527 = vadd.f32 %v181, %v312
  %v528 = vadd.f32 %v232, %v363
  %v529 = vadd.f32 %v234, %v365
  %534 = vrot.lane.b32.xlu0 %v498, 112
  %v535 = vpop.permute.xlu0 %534
  %536 = vrot.lane.b32.xlu0 %v502, 112
  %v537 = vpop.permute.xlu0 %536
  %538 = vrot.lane.b32.xlu0 %v506, 112
  %v539 = vpop.permute.xlu0 %538
  %540 = vrot.lane.b32.xlu0 %v510, 112
  %v541 = vpop.permute.xlu0 %540
  %546 = vrot.lane.b32.xlu0 %v498, 96
  %v547 = vpop.permute.xlu0 %546
  %548 = vrot.lane.b32.xlu0 %v502, 96
  %v549 = vpop.permute.xlu0 %548
  %550 = vrot.lane.b32.xlu0 %v506, 96
  %v551 = vpop.permute.xlu0 %550
  %552 = vrot.lane.b32.xlu0 %v510, 96
  %v553 = vpop.permute.xlu0 %552
  %558 = vrot.lane.b32.xlu0 %v498, 80
  %v559 = vpop.permute.xlu0 %558
  %560 = vrot.lane.b32.xlu0 %v502, 80
  %v561 = vpop.permute.xlu0 %560
  %562 = vrot.lane.b32.xlu0 %v506, 80
  %v563 = vpop.permute.xlu0 %562
  %564 = vrot.lane.b32.xlu0 %v510, 80
  %v565 = vpop.permute.xlu0 %564
  %570 = vrot.lane.b32.xlu0 %v498, 64
  %v571 = vpop.permute.xlu0 %570
  %572 = vrot.lane.b32.xlu0 %v502, 64
  %v573 = vpop.permute.xlu0 %572
  %574 = vrot.lane.b32.xlu0 %v506, 64
  %v575 = vpop.permute.xlu0 %574
  %576 = vrot.lane.b32.xlu0 %v510, 64
  %v577 = vpop.permute.xlu0 %576
  %582 = vrot.lane.b32.xlu0 %v498, 48
  %v583 = vpop.permute.xlu0 %582
  %584 = vrot.lane.b32.xlu0 %v502, 48
  %v585 = vpop.permute.xlu0 %584
  %586 = vrot.lane.b32.xlu0 %v506, 48
  %v587 = vpop.permute.xlu0 %586
  %588 = vrot.lane.b32.xlu0 %v510, 48
  %v589 = vpop.permute.xlu0 %588
  %594 = vrot.lane.b32.xlu0 %v498, 32
  %v595 = vpop.permute.xlu0 %594
  %596 = vrot.lane.b32.xlu0 %v502, 32
  %v597 = vpop.permute.xlu0 %596
  %598 = vrot.lane.b32.xlu0 %v506, 32
  %v599 = vpop.permute.xlu0 %598
  %600 = vrot.lane.b32.xlu0 %v510, 32
  %v601 = vpop.permute.xlu0 %600
  %606 = vrot.lane.b32.xlu0 %v498, 16
  %v607 = vpop.permute.xlu0 %606
  %608 = vrot.lane.b32.xlu0 %v502, 16
  %v609 = vpop.permute.xlu0 %608
  %610 = vrot.lane.b32.xlu0 %v506, 16
  %v611 = vpop.permute.xlu0 %610
  %612 = vrot.lane.b32.xlu0 %v510, 16
  %v613 = vpop.permute.xlu0 %612
  %622 = vrot.lane.b32.xlu0 %v499, 112
  %v623 = vpop.permute.xlu0 %622
  %624 = vrot.lane.b32.xlu0 %v503, 112
  %v625 = vpop.permute.xlu0 %624
  %626 = vrot.lane.b32.xlu0 %v507, 112
  %v627 = vpop.permute.xlu0 %626
  %628 = vrot.lane.b32.xlu0 %v511, 112
  %v629 = vpop.permute.xlu0 %628
  %634 = vrot.lane.b32.xlu0 %v499, 96
  %v635 = vpop.permute.xlu0 %634
  %636 = vrot.lane.b32.xlu0 %v503, 96
  %v637 = vpop.permute.xlu0 %636
  %638 = vrot.lane.b32.xlu0 %v507, 96
  %v639 = vpop.permute.xlu0 %638
  %640 = vrot.lane.b32.xlu0 %v511, 96
  %v641 = vpop.permute.xlu0 %640
  %646 = vrot.lane.b32.xlu0 %v499, 80
  %v647 = vpop.permute.xlu0 %646
  %648 = vrot.lane.b32.xlu0 %v503, 80
  %v649 = vpop.permute.xlu0 %648
  %650 = vrot.lane.b32.xlu0 %v507, 80
  %v651 = vpop.permute.xlu0 %650
  %652 = vrot.lane.b32.xlu0 %v511, 80
  %v653 = vpop.permute.xlu0 %652
  %658 = vrot.lane.b32.xlu0 %v499, 64
  %v659 = vpop.permute.xlu0 %658
  %660 = vrot.lane.b32.xlu0 %v503, 64
  %v661 = vpop.permute.xlu0 %660
  %662 = vrot.lane.b32.xlu0 %v507, 64
  %v663 = vpop.permute.xlu0 %662
  %664 = vrot.lane.b32.xlu0 %v511, 64
  %v665 = vpop.permute.xlu0 %664
  %670 = vrot.lane.b32.xlu0 %v499, 48
  %v671 = vpop.permute.xlu0 %670
  %672 = vrot.lane.b32.xlu0 %v503, 48
  %v673 = vpop.permute.xlu0 %672
  %674 = vrot.lane.b32.xlu0 %v507, 48
  %v675 = vpop.permute.xlu0 %674
  %676 = vrot.lane.b32.xlu0 %v511, 48
  %v677 = vpop.permute.xlu0 %676
  %682 = vrot.lane.b32.xlu0 %v499, 32
  %v683 = vpop.permute.xlu0 %682
  %684 = vrot.lane.b32.xlu0 %v503, 32
  %v685 = vpop.permute.xlu0 %684
  %686 = vrot.lane.b32.xlu0 %v507, 32
  %v687 = vpop.permute.xlu0 %686
  %688 = vrot.lane.b32.xlu0 %v511, 32
  %v689 = vpop.permute.xlu0 %688
  %694 = vrot.lane.b32.xlu0 %v499, 16
  %v695 = vpop.permute.xlu0 %694
  %696 = vrot.lane.b32.xlu0 %v503, 16
  %v697 = vpop.permute.xlu0 %696
  %698 = vrot.lane.b32.xlu0 %v507, 16
  %v699 = vpop.permute.xlu0 %698
  %700 = vrot.lane.b32.xlu0 %v511, 16
  %v701 = vpop.permute.xlu0 %700
  %710 = vrot.lane.b32.xlu0 %v500, 112
  %v711 = vpop.permute.xlu0 %710
  %712 = vrot.lane.b32.xlu0 %v504, 112
  %v713 = vpop.permute.xlu0 %712
  %714 = vrot.lane.b32.xlu0 %v508, 112
  %v715 = vpop.permute.xlu0 %714
  %716 = vrot.lane.b32.xlu0 %v512, 112
  %v717 = vpop.permute.xlu0 %716
  %722 = vrot.lane.b32.xlu0 %v500, 96
  %v723 = vpop.permute.xlu0 %722
  %724 = vrot.lane.b32.xlu0 %v504, 96
  %v725 = vpop.permute.xlu0 %724
  %726 = vrot.lane.b32.xlu0 %v508, 96
  %v727 = vpop.permute.xlu0 %726
  %728 = vrot.lane.b32.xlu0 %v512, 96
  %v729 = vpop.permute.xlu0 %728
  %734 = vrot.lane.b32.xlu0 %v500, 80
  %v735 = vpop.permute.xlu0 %734
  %736 = vrot.lane.b32.xlu0 %v504, 80
  %v737 = vpop.permute.xlu0 %736
  %738 = vrot.lane.b32.xlu0 %v508, 80
  %v739 = vpop.permute.xlu0 %738
  %740 = vrot.lane.b32.xlu0 %v512, 80
  %v741 = vpop.permute.xlu0 %740
  %746 = vrot.lane.b32.xlu0 %v500, 64
  %v747 = vpop.permute.xlu0 %746
  %748 = vrot.lane.b32.xlu0 %v504, 64
  %v749 = vpop.permute.xlu0 %748
  %750 = vrot.lane.b32.xlu0 %v508, 64
  %v751 = vpop.permute.xlu0 %750
  %752 = vrot.lane.b32.xlu0 %v512, 64
  %v753 = vpop.permute.xlu0 %752
  %758 = vrot.lane.b32.xlu0 %v500, 48
  %v759 = vpop.permute.xlu0 %758
  %760 = vrot.lane.b32.xlu0 %v504, 48
  %v761 = vpop.permute.xlu0 %760
  %762 = vrot.lane.b32.xlu0 %v508, 48
  %v763 = vpop.permute.xlu0 %762
  %764 = vrot.lane.b32.xlu0 %v512, 48
  %v765 = vpop.permute.xlu0 %764
  %770 = vrot.lane.b32.xlu0 %v500, 32
  %v771 = vpop.permute.xlu0 %770
  %772 = vrot.lane.b32.xlu0 %v504, 32
  %v773 = vpop.permute.xlu0 %772
  %774 = vrot.lane.b32.xlu0 %v508, 32
  %v775 = vpop.permute.xlu0 %774
  %776 = vrot.lane.b32.xlu0 %v512, 32
  %v777 = vpop.permute.xlu0 %776
  %782 = vrot.lane.b32.xlu0 %v500, 16
  %v783 = vpop.permute.xlu0 %782
  %784 = vrot.lane.b32.xlu0 %v504, 16
  %v785 = vpop.permute.xlu0 %784
  %786 = vrot.lane.b32.xlu0 %v508, 16
  %v787 = vpop.permute.xlu0 %786
  %788 = vrot.lane.b32.xlu0 %v512, 16
  %v789 = vpop.permute.xlu0 %788
  %798 = vrot.lane.b32.xlu0 %v501, 112
  %v799 = vpop.permute.xlu0 %798
  %800 = vrot.lane.b32.xlu0 %v505, 112
  %v801 = vpop.permute.xlu0 %800
  %802 = vrot.lane.b32.xlu0 %v509, 112
  %v803 = vpop.permute.xlu0 %802
  %804 = vrot.lane.b32.xlu0 %v513, 112
  %v805 = vpop.permute.xlu0 %804
  %810 = vrot.lane.b32.xlu0 %v501, 96
  %v811 = vpop.permute.xlu0 %810
  %812 = vrot.lane.b32.xlu0 %v505, 96
  %v813 = vpop.permute.xlu0 %812
  %814 = vrot.lane.b32.xlu0 %v509, 96
  %v815 = vpop.permute.xlu0 %814
  %816 = vrot.lane.b32.xlu0 %v513, 96
  %v817 = vpop.permute.xlu0 %816
  %822 = vrot.lane.b32.xlu0 %v501, 80
  %v823 = vpop.permute.xlu0 %822
  %824 = vrot.lane.b32.xlu0 %v505, 80
  %v825 = vpop.permute.xlu0 %824
  %826 = vrot.lane.b32.xlu0 %v509, 80
  %v827 = vpop.permute.xlu0 %826
  %828 = vrot.lane.b32.xlu0 %v513, 80
  %v829 = vpop.permute.xlu0 %828
  %834 = vrot.lane.b32.xlu0 %v501, 64
  %v835 = vpop.permute.xlu0 %834
  %836 = vrot.lane.b32.xlu0 %v505, 64
  %v837 = vpop.permute.xlu0 %836
  %838 = vrot.lane.b32.xlu0 %v509, 64
  %v839 = vpop.permute.xlu0 %838
  %840 = vrot.lane.b32.xlu0 %v513, 64
  %v841 = vpop.permute.xlu0 %840
  %846 = vrot.lane.b32.xlu0 %v501, 48
  %v847 = vpop.permute.xlu0 %846
  %848 = vrot.lane.b32.xlu0 %v505, 48
  %v849 = vpop.permute.xlu0 %848
  %850 = vrot.lane.b32.xlu0 %v509, 48
  %v851 = vpop.permute.xlu0 %850
  %852 = vrot.lane.b32.xlu0 %v513, 48
  %v853 = vpop.permute.xlu0 %852
  %858 = vrot.lane.b32.xlu0 %v501, 32
  %v859 = vpop.permute.xlu0 %858
  %860 = vrot.lane.b32.xlu0 %v505, 32
  %v861 = vpop.permute.xlu0 %860
  %862 = vrot.lane.b32.xlu0 %v509, 32
  %v863 = vpop.permute.xlu0 %862
  %864 = vrot.lane.b32.xlu0 %v513, 32
  %v865 = vpop.permute.xlu0 %864
  %870 = vrot.lane.b32.xlu0 %v501, 16
  %v871 = vpop.permute.xlu0 %870
  %872 = vrot.lane.b32.xlu0 %v505, 16
  %v873 = vpop.permute.xlu0 %872
  %874 = vrot.lane.b32.xlu0 %v509, 16
  %v875 = vpop.permute.xlu0 %874
  %876 = vrot.lane.b32.xlu0 %v513, 16
  %v877 = vpop.permute.xlu0 %876
  %886 = vrot.lane.b32.xlu0 %v514, 112
  %v887 = vpop.permute.xlu0 %886
  %888 = vrot.lane.b32.xlu0 %v518, 112
  %v889 = vpop.permute.xlu0 %888
  %890 = vrot.lane.b32.xlu0 %v522, 112
  %v891 = vpop.permute.xlu0 %890
  %892 = vrot.lane.b32.xlu0 %v526, 112
  %v893 = vpop.permute.xlu0 %892
  %898 = vrot.lane.b32.xlu0 %v514, 96
  %v899 = vpop.permute.xlu0 %898
  %900 = vrot.lane.b32.xlu0 %v518, 96
  %v901 = vpop.permute.xlu0 %900
  %902 = vrot.lane.b32.xlu0 %v522, 96
  %v903 = vpop.permute.xlu0 %902
  %904 = vrot.lane.b32.xlu0 %v526, 96
  %v905 = vpop.permute.xlu0 %904
  %910 = vrot.lane.b32.xlu0 %v514, 80
  %v911 = vpop.permute.xlu0 %910
  %912 = vrot.lane.b32.xlu0 %v518, 80
  %v913 = vpop.permute.xlu0 %912
  %914 = vrot.lane.b32.xlu0 %v522, 80
  %v915 = vpop.permute.xlu0 %914
  %916 = vrot.lane.b32.xlu0 %v526, 80
  %v917 = vpop.permute.xlu0 %916
  %922 = vrot.lane.b32.xlu0 %v514, 64
  %v923 = vpop.permute.xlu0 %922
  %924 = vrot.lane.b32.xlu0 %v518, 64
  %v925 = vpop.permute.xlu0 %924
  %926 = vrot.lane.b32.xlu0 %v522, 64
  %v927 = vpop.permute.xlu0 %926
  %928 = vrot.lane.b32.xlu0 %v526, 64
  %v929 = vpop.permute.xlu0 %928
  %934 = vrot.lane.b32.xlu0 %v514, 48
  %v935 = vpop.permute.xlu0 %934
  %936 = vrot.lane.b32.xlu0 %v518, 48
  %v937 = vpop.permute.xlu0 %936
  %938 = vrot.lane.b32.xlu0 %v522, 48
  %v939 = vpop.permute.xlu0 %938
  %940 = vrot.lane.b32.xlu0 %v526, 48
  %v941 = vpop.permute.xlu0 %940
  %946 = vrot.lane.b32.xlu0 %v514, 32
  %v947 = vpop.permute.xlu0 %946
  %948 = vrot.lane.b32.xlu0 %v518, 32
  %v949 = vpop.permute.xlu0 %948
  %950 = vrot.lane.b32.xlu0 %v522, 32
  %v951 = vpop.permute.xlu0 %950
  %952 = vrot.lane.b32.xlu0 %v526, 32
  %v953 = vpop.permute.xlu0 %952
  %958 = vrot.lane.b32.xlu0 %v514, 16
  %v959 = vpop.permute.xlu0 %958
  %960 = vrot.lane.b32.xlu0 %v518, 16
  %v961 = vpop.permute.xlu0 %960
  %962 = vrot.lane.b32.xlu0 %v522, 16
  %v963 = vpop.permute.xlu0 %962
  %964 = vrot.lane.b32.xlu0 %v526, 16
  %v965 = vpop.permute.xlu0 %964
  %974 = vrot.lane.b32.xlu0 %v515, 112
  %v975 = vpop.permute.xlu0 %974
  %976 = vrot.lane.b32.xlu0 %v519, 112
  %v977 = vpop.permute.xlu0 %976
  %978 = vrot.lane.b32.xlu0 %v523, 112
  %v979 = vpop.permute.xlu0 %978
  %980 = vrot.lane.b32.xlu0 %v527, 112
  %v981 = vpop.permute.xlu0 %980
  %986 = vrot.lane.b32.xlu0 %v515, 96
  %v987 = vpop.permute.xlu0 %986
  %988 = vrot.lane.b32.xlu0 %v519, 96
  %v989 = vpop.permute.xlu0 %988
  %990 = vrot.lane.b32.xlu0 %v523, 96
  %v991 = vpop.permute.xlu0 %990
  %992 = vrot.lane.b32.xlu0 %v527, 96
  %v993 = vpop.permute.xlu0 %992
  %998 = vrot.lane.b32.xlu0 %v515, 80
  %v999 = vpop.permute.xlu0 %998
  %1000 = vrot.lane.b32.xlu0 %v519, 80
  %v1001 = vpop.permute.xlu0 %1000
  %1002 = vrot.lane.b32.xlu0 %v523, 80
  %v1003 = vpop.permute.xlu0 %1002
  %1004 = vrot.lane.b32.xlu0 %v527, 80
  %v1005 = vpop.permute.xlu0 %1004
  %1010 = vrot.lane.b32.xlu0 %v515, 64
  %v1011 = vpop.permute.xlu0 %1010
  %1012 = vrot.lane.b32.xlu0 %v519, 64
  %v1013 = vpop.permute.xlu0 %1012
  %1014 = vrot.lane.b32.xlu0 %v523, 64
  %v1015 = vpop.permute.xlu0 %1014
  %1016 = vrot.lane.b32.xlu0 %v527, 64
  %v1017 = vpop.permute.xlu0 %1016
  %1022 = vrot.lane.b32.xlu0 %v515, 48
  %v1023 = vpop.permute.xlu0 %1022
  %1024 = vrot.lane.b32.xlu0 %v519, 48
  %v1025 = vpop.permute.xlu0 %1024
  %1026 = vrot.lane.b32.xlu0 %v523, 48
  %v1027 = vpop.permute.xlu0 %1026
  %1028 = vrot.lane.b32.xlu0 %v527, 48
  %v1029 = vpop.permute.xlu0 %1028
  %1034 = vrot.lane.b32.xlu0 %v515, 32
  %v1035 = vpop.permute.xlu0 %1034
  %1036 = vrot.lane.b32.xlu0 %v519, 32
  %v1037 = vpop.permute.xlu0 %1036
  %1038 = vrot.lane.b32.xlu0 %v523, 32
  %v1039 = vpop.permute.xlu0 %1038
  %1040 = vrot.lane.b32.xlu0 %v527, 32
  %v1041 = vpop.permute.xlu0 %1040
  %1046 = vrot.lane.b32.xlu0 %v515, 16
  %v1047 = vpop.permute.xlu0 %1046
  %1048 = vrot.lane.b32.xlu0 %v519, 16
  %v1049 = vpop.permute.xlu0 %1048
  %1050 = vrot.lane.b32.xlu0 %v523, 16
  %v1051 = vpop.permute.xlu0 %1050
  %1052 = vrot.lane.b32.xlu0 %v527, 16
  %v1053 = vpop.permute.xlu0 %1052
  %1062 = vrot.lane.b32.xlu0 %v516, 112
  %v1063 = vpop.permute.xlu0 %1062
  %1064 = vrot.lane.b32.xlu0 %v520, 112
  %v1065 = vpop.permute.xlu0 %1064
  %1066 = vrot.lane.b32.xlu0 %v524, 112
  %v1067 = vpop.permute.xlu0 %1066
  %1068 = vrot.lane.b32.xlu0 %v528, 112
  %v1069 = vpop.permute.xlu0 %1068
  %1074 = vrot.lane.b32.xlu0 %v516, 96
  %v1075 = vpop.permute.xlu0 %1074
  %1076 = vrot.lane.b32.xlu0 %v520, 96
  %v1077 = vpop.permute.xlu0 %1076
  %1078 = vrot.lane.b32.xlu0 %v524, 96
  %v1079 = vpop.permute.xlu0 %1078
  %1080 = vrot.lane.b32.xlu0 %v528, 96
  %v1081 = vpop.permute.xlu0 %1080
  %1086 = vrot.lane.b32.xlu0 %v516, 80
  %v1087 = vpop.permute.xlu0 %1086
  %1088 = vrot.lane.b32.xlu0 %v520, 80
  %v1089 = vpop.permute.xlu0 %1088
  %1090 = vrot.lane.b32.xlu0 %v524, 80
  %v1091 = vpop.permute.xlu0 %1090
  %1092 = vrot.lane.b32.xlu0 %v528, 80
  %v1093 = vpop.permute.xlu0 %1092
  %1098 = vrot.lane.b32.xlu0 %v516, 64
  %v1099 = vpop.permute.xlu0 %1098
  %1100 = vrot.lane.b32.xlu0 %v520, 64
  %v1101 = vpop.permute.xlu0 %1100
  %1102 = vrot.lane.b32.xlu0 %v524, 64
  %v1103 = vpop.permute.xlu0 %1102
  %1104 = vrot.lane.b32.xlu0 %v528, 64
  %v1105 = vpop.permute.xlu0 %1104
  %1110 = vrot.lane.b32.xlu0 %v516, 48
  %v1111 = vpop.permute.xlu0 %1110
  %1112 = vrot.lane.b32.xlu0 %v520, 48
  %v1113 = vpop.permute.xlu0 %1112
  %1114 = vrot.lane.b32.xlu0 %v524, 48
  %v1115 = vpop.permute.xlu0 %1114
  %1116 = vrot.lane.b32.xlu0 %v528, 48
  %v1117 = vpop.permute.xlu0 %1116
  %1122 = vrot.lane.b32.xlu0 %v516, 32
  %v1123 = vpop.permute.xlu0 %1122
  %1124 = vrot.lane.b32.xlu0 %v520, 32
  %v1125 = vpop.permute.xlu0 %1124
  %1126 = vrot.lane.b32.xlu0 %v524, 32
  %v1127 = vpop.permute.xlu0 %1126
  %1128 = vrot.lane.b32.xlu0 %v528, 32
  %v1129 = vpop.permute.xlu0 %1128
  %1134 = vrot.lane.b32.xlu0 %v516, 16
  %v1135 = vpop.permute.xlu0 %1134
  %1136 = vrot.lane.b32.xlu0 %v520, 16
  %v1137 = vpop.permute.xlu0 %1136
  %1138 = vrot.lane.b32.xlu0 %v524, 16
  %v1139 = vpop.permute.xlu0 %1138
  %1140 = vrot.lane.b32.xlu0 %v528, 16
  %v1141 = vpop.permute.xlu0 %1140
  %1150 = vrot.lane.b32.xlu0 %v517, 112
  %v1151 = vpop.permute.xlu0 %1150
  %1152 = vrot.lane.b32.xlu0 %v521, 112
  %v1153 = vpop.permute.xlu0 %1152
  %1154 = vrot.lane.b32.xlu0 %v525, 112
  %v1155 = vpop.permute.xlu0 %1154
  %1156 = vrot.lane.b32.xlu0 %v529, 112
  %v1157 = vpop.permute.xlu0 %1156
  %1162 = vrot.lane.b32.xlu0 %v517, 96
  %v1163 = vpop.permute.xlu0 %1162
  %1164 = vrot.lane.b32.xlu0 %v521, 96
  %v1165 = vpop.permute.xlu0 %1164
  %1166 = vrot.lane.b32.xlu0 %v525, 96
  %v1167 = vpop.permute.xlu0 %1166
  %1168 = vrot.lane.b32.xlu0 %v529, 96
  %v1169 = vpop.permute.xlu0 %1168
  %1174 = vrot.lane.b32.xlu0 %v517, 80
  %v1175 = vpop.permute.xlu0 %1174
  %1176 = vrot.lane.b32.xlu0 %v521, 80
  %v1177 = vpop.permute.xlu0 %1176
  %1178 = vrot.lane.b32.xlu0 %v525, 80
  %v1179 = vpop.permute.xlu0 %1178
  %1180 = vrot.lane.b32.xlu0 %v529, 80
  %v1181 = vpop.permute.xlu0 %1180
  %1186 = vrot.lane.b32.xlu0 %v517, 64
  %v1187 = vpop.permute.xlu0 %1186
  %1188 = vrot.lane.b32.xlu0 %v521, 64
  %v1189 = vpop.permute.xlu0 %1188
  %1190 = vrot.lane.b32.xlu0 %v525, 64
  %v1191 = vpop.permute.xlu0 %1190
  %1192 = vrot.lane.b32.xlu0 %v529, 64
  %v1193 = vpop.permute.xlu0 %1192
  %1198 = vrot.lane.b32.xlu0 %v517, 48
  %v1199 = vpop.permute.xlu0 %1198
  %1200 = vrot.lane.b32.xlu0 %v521, 48
  %v1201 = vpop.permute.xlu0 %1200
  %1202 = vrot.lane.b32.xlu0 %v525, 48
  %v1203 = vpop.permute.xlu0 %1202
  %1204 = vrot.lane.b32.xlu0 %v529, 48
  %v1205 = vpop.permute.xlu0 %1204
  %1210 = vrot.lane.b32.xlu0 %v517, 32
  %v1211 = vpop.permute.xlu0 %1210
  %1212 = vrot.lane.b32.xlu0 %v521, 32
  %v1213 = vpop.permute.xlu0 %1212
  %1214 = vrot.lane.b32.xlu0 %v525, 32
  %v1215 = vpop.permute.xlu0 %1214
  %1216 = vrot.lane.b32.xlu0 %v529, 32
  %v1217 = vpop.permute.xlu0 %1216
  %1222 = vrot.lane.b32.xlu0 %v517, 16
  %v1223 = vpop.permute.xlu0 %1222
  %1224 = vrot.lane.b32.xlu0 %v521, 16
  %v1225 = vpop.permute.xlu0 %1224
  %1226 = vrot.lane.b32.xlu0 %v525, 16
  %v1227 = vpop.permute.xlu0 %1226
  %1228 = vrot.lane.b32.xlu0 %v529, 16
  %v1229 = vpop.permute.xlu0 %1228
  %v1234 = vadd.f32 %v498, %v514
  %v1235 = vadd.f32 %v502, %v518
  %v1236 = vadd.f32 %v506, %v522
  %v1237 = vadd.f32 %v510, %v526
  %v1238 = vadd.f32 %v535, %v887
  %v1239 = vadd.f32 %v537, %v889
  %v1240 = vadd.f32 %v539, %v891
  %v1241 = vadd.f32 %v541, %v893
  %v1242 = vadd.f32 %v547, %v899
  %v1243 = vadd.f32 %v549, %v901
  %v1244 = vadd.f32 %v551, %v903
  %v1245 = vadd.f32 %v553, %v905
  %v1246 = vadd.f32 %v559, %v911
  %v1247 = vadd.f32 %v561, %v913
  %v1248 = vadd.f32 %v563, %v915
  %v1249 = vadd.f32 %v565, %v917
  %v1250 = vadd.f32 %v571, %v923
  %v1251 = vadd.f32 %v573, %v925
  %v1252 = vadd.f32 %v575, %v927
  %v1253 = vadd.f32 %v577, %v929
  %v1254 = vadd.f32 %v583, %v935
  %v1255 = vadd.f32 %v585, %v937
  %v1256 = vadd.f32 %v587, %v939
  %v1257 = vadd.f32 %v589, %v941
  %v1258 = vadd.f32 %v595, %v947
  %v1259 = vadd.f32 %v597, %v949
  %v1260 = vadd.f32 %v599, %v951
  %v1261 = vadd.f32 %v601, %v953
  %v1262 = vadd.f32 %v607, %v959
  %v1263 = vadd.f32 %v609, %v961
  %v1264 = vadd.f32 %v611, %v963
  %v1265 = vadd.f32 %v613, %v965
  %v1266 = vadd.f32 %v499, %v515
  %v1267 = vadd.f32 %v503, %v519
  %v1268 = vadd.f32 %v507, %v523
  %v1269 = vadd.f32 %v511, %v527
  %v1270 = vadd.f32 %v623, %v975
  %v1271 = vadd.f32 %v625, %v977
  %v1272 = vadd.f32 %v627, %v979
  %v1273 = vadd.f32 %v629, %v981
  %v1274 = vadd.f32 %v635, %v987
  %v1275 = vadd.f32 %v637, %v989
  %v1276 = vadd.f32 %v639, %v991
  %v1277 = vadd.f32 %v641, %v993
  %v1278 = vadd.f32 %v647, %v999
  %v1279 = vadd.f32 %v649, %v1001
  %v1280 = vadd.f32 %v651, %v1003
  %v1281 = vadd.f32 %v653, %v1005
  %v1282 = vadd.f32 %v659, %v1011
  %v1283 = vadd.f32 %v661, %v1013
  %v1284 = vadd.f32 %v663, %v1015
  %v1285 = vadd.f32 %v665, %v1017
  %v1286 = vadd.f32 %v671, %v1023
  %v1287 = vadd.f32 %v673, %v1025
  %v1288 = vadd.f32 %v675, %v1027
  %v1289 = vadd.f32 %v677, %v1029
  %v1290 = vadd.f32 %v683, %v1035
  %v1291 = vadd.f32 %v685, %v1037
  %v1292 = vadd.f32 %v687, %v1039
  %v1293 = vadd.f32 %v689, %v1041
  %v1294 = vadd.f32 %v695, %v1047
  %v1295 = vadd.f32 %v697, %v1049
  %v1296 = vadd.f32 %v699, %v1051
  %v1297 = vadd.f32 %v701, %v1053
  %v1298 = vadd.f32 %v500, %v516
  %v1299 = vadd.f32 %v504, %v520
  %v1300 = vadd.f32 %v508, %v524
  %v1301 = vadd.f32 %v512, %v528
  %v1302 = vadd.f32 %v711, %v1063
  %v1303 = vadd.f32 %v713, %v1065
  %v1304 = vadd.f32 %v715, %v1067
  %v1305 = vadd.f32 %v717, %v1069
  %v1306 = vadd.f32 %v723, %v1075
  %v1307 = vadd.f32 %v725, %v1077
  %v1308 = vadd.f32 %v727, %v1079
  %v1309 = vadd.f32 %v729, %v1081
  %v1310 = vadd.f32 %v735, %v1087
  %v1311 = vadd.f32 %v737, %v1089
  %v1312 = vadd.f32 %v739, %v1091
  %v1313 = vadd.f32 %v741, %v1093
  %v1314 = vadd.f32 %v747, %v1099
  %v1315 = vadd.f32 %v749, %v1101
  %v1316 = vadd.f32 %v751, %v1103
  %v1317 = vadd.f32 %v753, %v1105
  %v1318 = vadd.f32 %v759, %v1111
  %v1319 = vadd.f32 %v761, %v1113
  %v1320 = vadd.f32 %v763, %v1115
  %v1321 = vadd.f32 %v765, %v1117
  %v1322 = vadd.f32 %v771, %v1123
  %v1323 = vadd.f32 %v773, %v1125
  %v1324 = vadd.f32 %v775, %v1127
  %v1325 = vadd.f32 %v777, %v1129
  %v1326 = vadd.f32 %v783, %v1135
  %v1327 = vadd.f32 %v785, %v1137
  %v1328 = vadd.f32 %v787, %v1139
  %v1329 = vadd.f32 %v789, %v1141
  %v1330 = vadd.f32 %v501, %v517
  %v1331 = vadd.f32 %v505, %v521
  %v1332 = vadd.f32 %v509, %v525
  %v1333 = vadd.f32 %v513, %v529
  %v1334 = vadd.f32 %v799, %v1151
  %v1335 = vadd.f32 %v801, %v1153
  %v1336 = vadd.f32 %v803, %v1155
  %v1337 = vadd.f32 %v805, %v1157
  %v1338 = vadd.f32 %v811, %v1163
  %v1339 = vadd.f32 %v813, %v1165
  %v1340 = vadd.f32 %v815, %v1167
  %v1341 = vadd.f32 %v817, %v1169
  %v1342 = vadd.f32 %v823, %v1175
  %v1343 = vadd.f32 %v825, %v1177
  %v1344 = vadd.f32 %v827, %v1179
  %v1345 = vadd.f32 %v829, %v1181
  %v1346 = vadd.f32 %v835, %v1187
  %v1347 = vadd.f32 %v837, %v1189
  %v1348 = vadd.f32 %v839, %v1191
  %v1349 = vadd.f32 %v841, %v1193
  %v1350 = vadd.f32 %v847, %v1199
  %v1351 = vadd.f32 %v849, %v1201
  %v1352 = vadd.f32 %v851, %v1203
  %v1353 = vadd.f32 %v853, %v1205
  %v1354 = vadd.f32 %v859, %v1211
  %v1355 = vadd.f32 %v861, %v1213
  %v1356 = vadd.f32 %v863, %v1215
  %v1357 = vadd.f32 %v865, %v1217
  %v1358 = vadd.f32 %v871, %v1223
  %v1359 = vadd.f32 %v873, %v1225
  %v1360 = vadd.f32 %v875, %v1227
  %v1361 = vadd.f32 %v877, %v1229
  %v1362 = vpack.c.bf16 %v1235, %v1234
  %v1363 = vpack.c.bf16 %v1237, %v1236
  %v1364 = vpack.c.bf16 %v1239, %v1238
  %v1365 = vpack.c.bf16 %v1241, %v1240
  %v1366 = vpack.c.bf16 %v1243, %v1242
  %v1367 = vpack.c.bf16 %v1245, %v1244
  %v1368 = vpack.c.bf16 %v1247, %v1246
  %v1369 = vpack.c.bf16 %v1249, %v1248
  %v1370 = vpack.c.bf16 %v1251, %v1250
  %v1371 = vpack.c.bf16 %v1253, %v1252
  %v1372 = vpack.c.bf16 %v1255, %v1254
  %v1373 = vpack.c.bf16 %v1257, %v1256
  %v1374 = vpack.c.bf16 %v1259, %v1258
  %v1375 = vpack.c.bf16 %v1261, %v1260
  %v1376 = vpack.c.bf16 %v1263, %v1262
  %v1377 = vpack.c.bf16 %v1265, %v1264
  %v1378 = vpack.c.bf16 %v1267, %v1266
  %v1379 = vpack.c.bf16 %v1269, %v1268
  %v1380 = vpack.c.bf16 %v1271, %v1270
  %v1381 = vpack.c.bf16 %v1273, %v1272
  %v1382 = vpack.c.bf16 %v1275, %v1274
  %v1383 = vpack.c.bf16 %v1277, %v1276
  %v1384 = vpack.c.bf16 %v1279, %v1278
  %v1385 = vpack.c.bf16 %v1281, %v1280
  %v1386 = vpack.c.bf16 %v1283, %v1282
  %v1387 = vpack.c.bf16 %v1285, %v1284
  %v1388 = vpack.c.bf16 %v1287, %v1286
  %v1389 = vpack.c.bf16 %v1289, %v1288
  %v1390 = vpack.c.bf16 %v1291, %v1290
  %v1391 = vpack.c.bf16 %v1293, %v1292
  %v1392 = vpack.c.bf16 %v1295, %v1294
  %v1393 = vpack.c.bf16 %v1297, %v1296
  %v1394 = vpack.c.bf16 %v1299, %v1298
  %v1395 = vpack.c.bf16 %v1301, %v1300
  %v1396 = vpack.c.bf16 %v1303, %v1302
  %v1397 = vpack.c.bf16 %v1305, %v1304
  %v1398 = vpack.c.bf16 %v1307, %v1306
  %v1399 = vpack.c.bf16 %v1309, %v1308
  %v1400 = vpack.c.bf16 %v1311, %v1310
  %v1401 = vpack.c.bf16 %v1313, %v1312
  %v1402 = vpack.c.bf16 %v1315, %v1314
  %v1403 = vpack.c.bf16 %v1317, %v1316
  %v1404 = vpack.c.bf16 %v1319, %v1318
  %v1405 = vpack.c.bf16 %v1321, %v1320
  %v1406 = vpack.c.bf16 %v1323, %v1322
  %v1407 = vpack.c.bf16 %v1325, %v1324
  %v1408 = vpack.c.bf16 %v1327, %v1326
  %v1409 = vpack.c.bf16 %v1329, %v1328
  %v1410 = vpack.c.bf16 %v1331, %v1330
  %v1411 = vpack.c.bf16 %v1333, %v1332
  %v1412 = vpack.c.bf16 %v1335, %v1334
  %v1413 = vpack.c.bf16 %v1337, %v1336
  %v1414 = vpack.c.bf16 %v1339, %v1338
  %v1415 = vpack.c.bf16 %v1341, %v1340
  %v1416 = vpack.c.bf16 %v1343, %v1342
  %v1417 = vpack.c.bf16 %v1345, %v1344
  %v1418 = vpack.c.bf16 %v1347, %v1346
  %v1419 = vpack.c.bf16 %v1349, %v1348
  %v1420 = vpack.c.bf16 %v1351, %v1350
  %v1421 = vpack.c.bf16 %v1353, %v1352
  %v1422 = vpack.c.bf16 %v1355, %v1354
  %v1423 = vpack.c.bf16 %v1357, %v1356
  %v1424 = vpack.c.bf16 %v1359, %v1358
  %v1425 = vpack.c.bf16 %v1361, %v1360
  %v1426 = vld [vmem:[%s4] sm:$0xf]
  %v1427 = vld [vmem:[%s4 + $0x4] sm:$0xf]
  %v1430 = vunpack.c.l.b16 %v1426
  %v1431 = vunpack.c.l.b16 %v1427
  %v1432 = vpack.c.b16 %v1431, %v1430
  %v1435 = vsel %vm123, %v1362, 0
  %v1438 = vsel %vm123, %v1363, 0
  %v1441 = vsel %vm123, %v1364, 0
  %v1444 = vsel %vm123, %v1365, 0
  %v1447 = vsel %vm123, %v1366, 0
  %v1450 = vsel %vm123, %v1367, 0
  %v1453 = vsel %vm123, %v1368, 0
  %v1456 = vsel %vm123, %v1369, 0
  %v1459 = vsel %vm123, %v1370, 0
  %v1462 = vsel %vm123, %v1371, 0
  %v1465 = vsel %vm123, %v1372, 0
  %v1468 = vsel %vm123, %v1373, 0
  %v1471 = vsel %vm123, %v1374, 0
  %v1474 = vsel %vm123, %v1375, 0
  %v1477 = vsel %vm123, %v1376, 0
  %v1480 = vsel %vm123, %v1377, 0
  %v1483 = vsel %vm123, %v1378, 0
  %v1486 = vsel %vm123, %v1379, 0
  %v1489 = vsel %vm123, %v1380, 0
  %v1492 = vsel %vm123, %v1381, 0
  %v1495 = vsel %vm123, %v1382, 0
  %v1498 = vsel %vm123, %v1383, 0
  %v1501 = vsel %vm123, %v1384, 0
  %v1504 = vsel %vm123, %v1385, 0
  %v1507 = vsel %vm123, %v1386, 0
  %v1510 = vsel %vm123, %v1387, 0
  %v1513 = vsel %vm123, %v1388, 0
  %v1516 = vsel %vm123, %v1389, 0
  %v1519 = vsel %vm123, %v1390, 0
  %v1522 = vsel %vm123, %v1391, 0
  %v1525 = vsel %vm123, %v1392, 0
  %v1528 = vsel %vm123, %v1393, 0
  %v1531 = vsel %vm123, %v1394, 0
  %v1534 = vsel %vm123, %v1395, 0
  %v1537 = vsel %vm123, %v1396, 0
  %v1540 = vsel %vm123, %v1397, 0
  %v1543 = vsel %vm123, %v1398, 0
  %v1546 = vsel %vm123, %v1399, 0
  %v1549 = vsel %vm123, %v1400, 0
  %v1552 = vsel %vm123, %v1401, 0
  %v1555 = vsel %vm123, %v1402, 0
  %v1558 = vsel %vm123, %v1403, 0
  %v1561 = vsel %vm123, %v1404, 0
  %v1564 = vsel %vm123, %v1405, 0
  %v1567 = vsel %vm123, %v1406, 0
  %v1570 = vsel %vm123, %v1407, 0
  %v1573 = vsel %vm123, %v1408, 0
  %v1576 = vsel %vm123, %v1409, 0
  %v1579 = vsel %vm123, %v1410, 0
  %v1582 = vsel %vm123, %v1411, 0
  %v1585 = vsel %vm123, %v1412, 0
  %v1588 = vsel %vm123, %v1413, 0
  %v1591 = vsel %vm123, %v1414, 0
  %v1594 = vsel %vm123, %v1415, 0
  %v1597 = vsel %vm123, %v1416, 0
  %v1600 = vsel %vm123, %v1417, 0
  %v1603 = vsel %vm123, %v1418, 0
  %v1606 = vsel %vm123, %v1419, 0
  %v1609 = vsel %vm123, %v1420, 0
  %v1612 = vsel %vm123, %v1421, 0
  %v1615 = vsel %vm123, %v1422, 0
  %v1618 = vsel %vm123, %v1423, 0
  %v1621 = vsel %vm123, %v1424, 0
  %v1624 = vsel %vm123, %v1425, 0
  %1626 = vmatprep.subr.bf16.mxu0 0
  %1627 = vmatpush1.bf16.msra.mxu0 %v1432
  %1628 = vmatprep.subr.bf16.mxu0 0
  %1629 = vmatpush1.bf16.msra.mxu0 0
  %1630 = vmatprep.subr.bf16.mxu0 0
  %1631 = vmatpush1.bf16.msra.mxu0 0
  %1632 = vmatprep.subr.bf16.mxu0 0
  %1633 = vmatpush1.bf16.msra.mxu0 0
  %1634 = vmatprep.subr.bf16.mxu0 0
  %1635 = vmatpush1.bf16.msra.mxu0 0
  %1636 = vmatprep.subr.bf16.mxu0 0
  %1637 = vmatpush1.bf16.msra.mxu0 0
  %1638 = vmatprep.subr.bf16.mxu0 0
  %1639 = vmatpush1.bf16.msra.mxu0 0
  %1640 = vmatprep.subr.bf16.mxu0 0
  %1641 = vmatpush1.bf16.msra.mxu0 0
  %1642 = vmatprep.subr.bf16.mxu0 0
  %1643 = vmatpush1.bf16.msra.mxu0 0
  %1644 = vmatprep.subr.bf16.mxu0 0
  %1645 = vmatpush1.bf16.msra.mxu0 0
  %1646 = vmatprep.subr.bf16.mxu0 0
  %1647 = vmatpush1.bf16.msra.mxu0 0
  %1648 = vmatprep.subr.bf16.mxu0 0
  %1649 = vmatpush1.bf16.msra.mxu0 0
  %1650 = vmatprep.subr.bf16.mxu0 0
  %1651 = vmatpush1.bf16.msra.mxu0 0
  %1652 = vmatprep.subr.bf16.mxu0 0
  %1653 = vmatpush1.bf16.msra.mxu0 0
  %1654 = vmatprep.subr.bf16.mxu0 0
  %1655 = vmatpush1.bf16.msra.mxu0 0
  %1656 = vmatprep.subr.bf16.mxu0 0
  %1657 = vmatpush1.bf16.msra.mxu0 0
  %1658 = vmatprep.mubr.bf16.mxu0 0
  %1659 = vmatmul.mubr.bf16.gmra.mrb[0].mxu0 %v1435
  %v1660 = vpop.f32.mrb[0].mxu0
  %v1661 = vadd.f32 0.0, %v1660
  %v1662 = vpop.f32.mrb[0].mxu0
  %v1663 = vpop.f32.mrb[0].mxu0
  %v1664 = vadd.f32 0.0, %v1663
  %v1665 = vpop.f32.mrb[0].mxu0
  %1666 = vmatprep.mubr.bf16.mxu0 0
  %1667 = vmatmul.mubr.bf16.gmra.mrb[0].mxu0 %v1438
  %v1668 = vpop.f32.mrb[0].mxu0
  %v1669 = vadd.f32 0.0, %v1668
  %v1670 = vpop.f32.mrb[0].mxu0
  %v1671 = vpop.f32.mrb[0].mxu0
  %v1672 = vadd.f32 0.0, %v1671
  %v1673 = vpop.f32.mrb[0].mxu0
  %1674 = vmatprep.mubr.bf16.mxu0 0
  %1675 = vmatmul.mubr.bf16.gmra.mrb[0].mxu0 %v1441
  %v1676 = vpop.f32.mrb[0].mxu0
  %v1677 = vadd.f32 0.0, %v1676
  %v1678 = vpop.f32.mrb[0].mxu0
  %v1679 = vpop.f32.mrb[0].mxu0
  %v1680 = vadd.f32 0.0, %v1679
  %v1681 = vpop.f32.mrb[0].mxu0
  %1682 = vmatprep.mubr.bf16.mxu0 0
  %1683 = vmatmul.mubr.bf16.gmra.mrb[0].mxu0 %v1444
  %v1684 = vpop.f32.mrb[0].mxu0
  %v1685 = vadd.f32 0.0, %v1684
  %v1686 = vpop.f32.mrb[0].mxu0
  %v1687 = vpop.f32.mrb[0].mxu0
  %v1688 = vadd.f32 0.0, %v1687
  %v1689 = vpop.f32.mrb[0].mxu0
  %1690 = vmatprep.mubr.bf16.mxu0 0
  %1691 = vmatmul.mubr.bf16.gmra.mrb[0].mxu0 %v1447
  %v1692 = vpop.f32.mrb[0].mxu0
  %v1693 = vadd.f32 0.0, %v1692
  %v1694 = vpop.f32.mrb[0].mxu0
  %v1695 = vpop.f32.mrb[0].mxu0
  %v1696 = vadd.f32 0.0, %v1695
  %v1697 = vpop.f32.mrb[0].mxu0
  %1698 = vmatprep.mubr.bf16.mxu0 0
  %1699 = vmatmul.mubr.bf16.gmra.mrb[0].mxu0 %v1450
  %v1700 = vpop.f32.mrb[0].mxu0
  %v1701 = vadd.f32 0.0, %v1700
  %v1702 = vpop.f32.mrb[0].mxu0
  %v1703 = vpop.f32.mrb[0].mxu0
  %v1704 = vadd.f32 0.0, %v1703
  %v1705 = vpop.f32.mrb[0].mxu0
  %1706 = vmatprep.mubr.bf16.mxu0 0
  %1707 = vmatmul.mubr.bf16.gmra.mrb[0].mxu0 %v1453
  %v1708 = vpop.f32.mrb[0].mxu0
  %v1709 = vadd.f32 0.0, %v1708
  %v1710 = vpop.f32.mrb[0].mxu0
  %v1711 = vpop.f32.mrb[0].mxu0
  %v1712 = vadd.f32 0.0, %v1711
  %v1713 = vpop.f32.mrb[0].mxu0
  %1714 = vmatprep.mubr.bf16.mxu0 0
  %1715 = vmatmul.mubr.bf16.gmra.mrb[0].mxu0 %v1456
  %v1716 = vpop.f32.mrb[0].mxu0
  %v1717 = vadd.f32 0.0, %v1716
  %v1718 = vpop.f32.mrb[0].mxu0
  %v1719 = vpop.f32.mrb[0].mxu0
  %v1720 = vadd.f32 0.0, %v1719
  %v1721 = vpop.f32.mrb[0].mxu0
  %1722 = vmatprep.mubr.bf16.mxu0 0
  %1723 = vmatmul.mubr.bf16.gmra.mrb[0].mxu0 %v1459
  %v1724 = vpop.f32.mrb[0].mxu0
  %v1725 = vadd.f32 0.0, %v1724
  %v1726 = vpop.f32.mrb[0].mxu0
  %v1727 = vpop.f32.mrb[0].mxu0
  %v1728 = vadd.f32 0.0, %v1727
  %v1729 = vpop.f32.mrb[0].mxu0
  %1730 = vmatprep.mubr.bf16.mxu0 0
  %1731 = vmatmul.mubr.bf16.gmra.mrb[0].mxu0 %v1462
  %v1732 = vpop.f32.mrb[0].mxu0
  %v1733 = vadd.f32 0.0, %v1732
  %v1734 = vpop.f32.mrb[0].mxu0
  %v1735 = vpop.f32.mrb[0].mxu0
  %v1736 = vadd.f32 0.0, %v1735
  %v1737 = vpop.f32.mrb[0].mxu0
  %1738 = vmatprep.mubr.bf16.mxu0 0
  %1739 = vmatmul.mubr.bf16.gmra.mrb[0].mxu0 %v1465
  %v1740 = vpop.f32.mrb[0].mxu0
  %v1741 = vadd.f32 0.0, %v1740
  %v1742 = vpop.f32.mrb[0].mxu0
  %v1743 = vpop.f32.mrb[0].mxu0
  %v1744 = vadd.f32 0.0, %v1743
  %v1745 = vpop.f32.mrb[0].mxu0
  %1746 = vmatprep.mubr.bf16.mxu0 0
  %1747 = vmatmul.mubr.bf16.gmra.mrb[0].mxu0 %v1468
  %v1748 = vpop.f32.mrb[0].mxu0
  %v1749 = vadd.f32 0.0, %v1748
  %v1750 = vpop.f32.mrb[0].mxu0
  %v1751 = vpop.f32.mrb[0].mxu0
  %v1752 = vadd.f32 0.0, %v1751
  %v1753 = vpop.f32.mrb[0].mxu0
  %1754 = vmatprep.mubr.bf16.mxu0 0
  %1755 = vmatmul.mubr.bf16.gmra.mrb[0].mxu0 %v1471
  %v1756 = vpop.f32.mrb[0].mxu0
  %v1757 = vadd.f32 0.0, %v1756
  %v1758 = vpop.f32.mrb[0].mxu0
  %v1759 = vpop.f32.mrb[0].mxu0
  %v1760 = vadd.f32 0.0, %v1759
  %v1761 = vpop.f32.mrb[0].mxu0
  %1762 = vmatprep.mubr.bf16.mxu0 0
  %1763 = vmatmul.mubr.bf16.gmra.mrb[0].mxu0 %v1474
  %v1764 = vpop.f32.mrb[0].mxu0
  %v1765 = vadd.f32 0.0, %v1764
  %v1766 = vpop.f32.mrb[0].mxu0
  %v1767 = vpop.f32.mrb[0].mxu0
  %v1768 = vadd.f32 0.0, %v1767
  %v1769 = vpop.f32.mrb[0].mxu0
  %1770 = vmatprep.mubr.bf16.mxu0 0
  %1771 = vmatmul.mubr.bf16.gmra.mrb[0].mxu0 %v1477
  %v1772 = vpop.f32.mrb[0].mxu0
  %v1773 = vadd.f32 0.0, %v1772
  %v1774 = vpop.f32.mrb[0].mxu0
  %v1775 = vpop.f32.mrb[0].mxu0
  %v1776 = vadd.f32 0.0, %v1775
  %v1777 = vpop.f32.mrb[0].mxu0
  %1778 = vmatprep.mubr.bf16.mxu0 0
  %1779 = vmatmul.mubr.bf16.gmra.mrb[0].mxu0 %v1480
  %v1780 = vpop.f32.mrb[0].mxu0
  %v1781 = vadd.f32 0.0, %v1780
  %v1782 = vpop.f32.mrb[0].mxu0
  %v1783 = vpop.f32.mrb[0].mxu0
  %v1784 = vadd.f32 0.0, %v1783
  %v1785 = vpop.f32.mrb[0].mxu0
  %1786 = vmatprep.mubr.bf16.mxu0 0
  %1787 = vmatmul.mubr.bf16.gmra.mrb[0].mxu0 %v1483
  %v1788 = vpop.f32.mrb[0].mxu0
  %v1789 = vadd.f32 0.0, %v1788
  %v1790 = vpop.f32.mrb[0].mxu0
  %v1791 = vpop.f32.mrb[0].mxu0
  %v1792 = vadd.f32 0.0, %v1791
  %v1793 = vpop.f32.mrb[0].mxu0
  %1794 = vmatprep.mubr.bf16.mxu0 0
  %1795 = vmatmul.mubr.bf16.gmra.mrb[0].mxu0 %v1486
  %v1796 = vpop.f32.mrb[0].mxu0
  %v1797 = vadd.f32 0.0, %v1796
  %v1798 = vpop.f32.mrb[0].mxu0
  %v1799 = vpop.f32.mrb[0].mxu0
  %v1800 = vadd.f32 0.0, %v1799
  %v1801 = vpop.f32.mrb[0].mxu0
  %1802 = vmatprep.mubr.bf16.mxu0 0
  %1803 = vmatmul.mubr.bf16.gmra.mrb[0].mxu0 %v1489
  %v1804 = vpop.f32.mrb[0].mxu0
  %v1805 = vadd.f32 0.0, %v1804
  %v1806 = vpop.f32.mrb[0].mxu0
  %v1807 = vpop.f32.mrb[0].mxu0
  %v1808 = vadd.f32 0.0, %v1807
  %v1809 = vpop.f32.mrb[0].mxu0
  %1810 = vmatprep.mubr.bf16.mxu0 0
  %1811 = vmatmul.mubr.bf16.gmra.mrb[0].mxu0 %v1492
  %v1812 = vpop.f32.mrb[0].mxu0
  %v1813 = vadd.f32 0.0, %v1812
  %v1814 = vpop.f32.mrb[0].mxu0
  %v1815 = vpop.f32.mrb[0].mxu0
  %v1816 = vadd.f32 0.0, %v1815
  %v1817 = vpop.f32.mrb[0].mxu0
  %1818 = vmatprep.mubr.bf16.mxu0 0
  %1819 = vmatmul.mubr.bf16.gmra.mrb[0].mxu0 %v1495
  %v1820 = vpop.f32.mrb[0].mxu0
  %v1821 = vadd.f32 0.0, %v1820
  %v1822 = vpop.f32.mrb[0].mxu0
  %v1823 = vpop.f32.mrb[0].mxu0
  %v1824 = vadd.f32 0.0, %v1823
  %v1825 = vpop.f32.mrb[0].mxu0
  %1826 = vmatprep.mubr.bf16.mxu0 0
  %1827 = vmatmul.mubr.bf16.gmra.mrb[0].mxu0 %v1498
  %v1828 = vpop.f32.mrb[0].mxu0
  %v1829 = vadd.f32 0.0, %v1828
  %v1830 = vpop.f32.mrb[0].mxu0
  %v1831 = vpop.f32.mrb[0].mxu0
  %v1832 = vadd.f32 0.0, %v1831
  %v1833 = vpop.f32.mrb[0].mxu0
  %1834 = vmatprep.mubr.bf16.mxu0 0
  %1835 = vmatmul.mubr.bf16.gmra.mrb[0].mxu0 %v1501
  %v1836 = vpop.f32.mrb[0].mxu0
  %v1837 = vadd.f32 0.0, %v1836
  %v1838 = vpop.f32.mrb[0].mxu0
  %v1839 = vpop.f32.mrb[0].mxu0
  %v1840 = vadd.f32 0.0, %v1839
  %v1841 = vpop.f32.mrb[0].mxu0
  %1842 = vmatprep.mubr.bf16.mxu0 0
  %1843 = vmatmul.mubr.bf16.gmra.mrb[0].mxu0 %v1504
  %v1844 = vpop.f32.mrb[0].mxu0
  %v1845 = vadd.f32 0.0, %v1844
  %v1846 = vpop.f32.mrb[0].mxu0
  %v1847 = vpop.f32.mrb[0].mxu0
  %v1848 = vadd.f32 0.0, %v1847
  %v1849 = vpop.f32.mrb[0].mxu0
  %1850 = vmatprep.mubr.bf16.mxu0 0
  %1851 = vmatmul.mubr.bf16.gmra.mrb[0].mxu0 %v1507
  %v1852 = vpop.f32.mrb[0].mxu0
  %v1853 = vadd.f32 0.0, %v1852
  %v1854 = vpop.f32.mrb[0].mxu0
  %v1855 = vpop.f32.mrb[0].mxu0
  %v1856 = vadd.f32 0.0, %v1855
  %v1857 = vpop.f32.mrb[0].mxu0
  %1858 = vmatprep.mubr.bf16.mxu0 0
  %1859 = vmatmul.mubr.bf16.gmra.mrb[0].mxu0 %v1510
  %v1860 = vpop.f32.mrb[0].mxu0
  %v1861 = vadd.f32 0.0, %v1860
  %v1862 = vpop.f32.mrb[0].mxu0
  %v1863 = vpop.f32.mrb[0].mxu0
  %v1864 = vadd.f32 0.0, %v1863
  %v1865 = vpop.f32.mrb[0].mxu0
  %1866 = vmatprep.mubr.bf16.mxu0 0
  %1867 = vmatmul.mubr.bf16.gmra.mrb[0].mxu0 %v1513
  %v1868 = vpop.f32.mrb[0].mxu0
  %v1869 = vadd.f32 0.0, %v1868
  %v1870 = vpop.f32.mrb[0].mxu0
  %v1871 = vpop.f32.mrb[0].mxu0
  %v1872 = vadd.f32 0.0, %v1871
  %v1873 = vpop.f32.mrb[0].mxu0
  %1874 = vmatprep.mubr.bf16.mxu0 0
  %1875 = vmatmul.mubr.bf16.gmra.mrb[0].mxu0 %v1516
  %v1876 = vpop.f32.mrb[0].mxu0
  %v1877 = vadd.f32 0.0, %v1876
  %v1878 = vpop.f32.mrb[0].mxu0
  %v1879 = vpop.f32.mrb[0].mxu0
  %v1880 = vadd.f32 0.0, %v1879
  %v1881 = vpop.f32.mrb[0].mxu0
  %1882 = vmatprep.mubr.bf16.mxu0 0
  %1883 = vmatmul.mubr.bf16.gmra.mrb[0].mxu0 %v1519
  %v1884 = vpop.f32.mrb[0].mxu0
  %v1885 = vadd.f32 0.0, %v1884
  %v1886 = vpop.f32.mrb[0].mxu0
  %v1887 = vpop.f32.mrb[0].mxu0
  %v1888 = vadd.f32 0.0, %v1887
  %v1889 = vpop.f32.mrb[0].mxu0
  %1890 = vmatprep.mubr.bf16.mxu0 0
  %1891 = vmatmul.mubr.bf16.gmra.mrb[0].mxu0 %v1522
  %v1892 = vpop.f32.mrb[0].mxu0
  %v1893 = vadd.f32 0.0, %v1892
  %v1894 = vpop.f32.mrb[0].mxu0
  %v1895 = vpop.f32.mrb[0].mxu0
  %v1896 = vadd.f32 0.0, %v1895
  %v1897 = vpop.f32.mrb[0].mxu0
  %1898 = vmatprep.mubr.bf16.mxu0 0
  %1899 = vmatmul.mubr.bf16.gmra.mrb[0].mxu0 %v1525
  %v1900 = vpop.f32.mrb[0].mxu0
  %v1901 = vadd.f32 0.0, %v1900
  %v1902 = vpop.f32.mrb[0].mxu0
  %v1903 = vpop.f32.mrb[0].mxu0
  %v1904 = vadd.f32 0.0, %v1903
  %v1905 = vpop.f32.mrb[0].mxu0
  %1906 = vmatprep.mubr.bf16.mxu0 0
  %1907 = vmatmul.mubr.bf16.gmra.mrb[0].mxu0 %v1528
  %v1908 = vpop.f32.mrb[0].mxu0
  %v1909 = vadd.f32 0.0, %v1908
  %v1910 = vpop.f32.mrb[0].mxu0
  %v1911 = vpop.f32.mrb[0].mxu0
  %v1912 = vadd.f32 0.0, %v1911
  %v1913 = vpop.f32.mrb[0].mxu0
  %1914 = vmatprep.mubr.bf16.mxu0 0
  %1915 = vmatmul.mubr.bf16.gmra.mrb[0].mxu0 %v1531
  %v1916 = vpop.f32.mrb[0].mxu0
  %v1917 = vadd.f32 0.0, %v1916
  %v1918 = vpop.f32.mrb[0].mxu0
  %v1919 = vpop.f32.mrb[0].mxu0
  %v1920 = vadd.f32 0.0, %v1919
  %v1921 = vpop.f32.mrb[0].mxu0
  %1922 = vmatprep.mubr.bf16.mxu0 0
  %1923 = vmatmul.mubr.bf16.gmra.mrb[0].mxu0 %v1534
  %v1924 = vpop.f32.mrb[0].mxu0
  %v1925 = vadd.f32 0.0, %v1924
  %v1926 = vpop.f32.mrb[0].mxu0
  %v1927 = vpop.f32.mrb[0].mxu0
  %v1928 = vadd.f32 0.0, %v1927
  %v1929 = vpop.f32.mrb[0].mxu0
  %1930 = vmatprep.mubr.bf16.mxu0 0
  %1931 = vmatmul.mubr.bf16.gmra.mrb[0].mxu0 %v1537
  %v1932 = vpop.f32.mrb[0].mxu0
  %v1933 = vadd.f32 0.0, %v1932
  %v1934 = vpop.f32.mrb[0].mxu0
  %v1935 = vpop.f32.mrb[0].mxu0
  %v1936 = vadd.f32 0.0, %v1935
  %v1937 = vpop.f32.mrb[0].mxu0
  %1938 = vmatprep.mubr.bf16.mxu0 0
  %1939 = vmatmul.mubr.bf16.gmra.mrb[0].mxu0 %v1540
  %v1940 = vpop.f32.mrb[0].mxu0
  %v1941 = vadd.f32 0.0, %v1940
  %v1942 = vpop.f32.mrb[0].mxu0
  %v1943 = vpop.f32.mrb[0].mxu0
  %v1944 = vadd.f32 0.0, %v1943
  %v1945 = vpop.f32.mrb[0].mxu0
  %1946 = vmatprep.mubr.bf16.mxu0 0
  %1947 = vmatmul.mubr.bf16.gmra.mrb[0].mxu0 %v1543
  %v1948 = vpop.f32.mrb[0].mxu0
  %v1949 = vadd.f32 0.0, %v1948
  %v1950 = vpop.f32.mrb[0].mxu0
  %v1951 = vpop.f32.mrb[0].mxu0
  %v1952 = vadd.f32 0.0, %v1951
  %v1953 = vpop.f32.mrb[0].mxu0
  %1954 = vmatprep.mubr.bf16.mxu0 0
  %1955 = vmatmul.mubr.bf16.gmra.mrb[0].mxu0 %v1546
  %v1956 = vpop.f32.mrb[0].mxu0
  %v1957 = vadd.f32 0.0, %v1956
  %v1958 = vpop.f32.mrb[0].mxu0
  %v1959 = vpop.f32.mrb[0].mxu0
  %v1960 = vadd.f32 0.0, %v1959
  %v1961 = vpop.f32.mrb[0].mxu0
  %1962 = vmatprep.mubr.bf16.mxu0 0
  %1963 = vmatmul.mubr.bf16.gmra.mrb[0].mxu0 %v1549
  %v1964 = vpop.f32.mrb[0].mxu0
  %v1965 = vadd.f32 0.0, %v1964
  %v1966 = vpop.f32.mrb[0].mxu0
  %v1967 = vpop.f32.mrb[0].mxu0
  %v1968 = vadd.f32 0.0, %v1967
  %v1969 = vpop.f32.mrb[0].mxu0
  %1970 = vmatprep.mubr.bf16.mxu0 0
  %1971 = vmatmul.mubr.bf16.gmra.mrb[0].mxu0 %v1552
  %v1972 = vpop.f32.mrb[0].mxu0
  %v1973 = vadd.f32 0.0, %v1972
  %v1974 = vpop.f32.mrb[0].mxu0
  %v1975 = vpop.f32.mrb[0].mxu0
  %v1976 = vadd.f32 0.0, %v1975
  %v1977 = vpop.f32.mrb[0].mxu0
  %1978 = vmatprep.mubr.bf16.mxu0 0
  %1979 = vmatmul.mubr.bf16.gmra.mrb[0].mxu0 %v1555
  %v1980 = vpop.f32.mrb[0].mxu0
  %v1981 = vadd.f32 0.0, %v1980
  %v1982 = vpop.f32.mrb[0].mxu0
  %v1983 = vpop.f32.mrb[0].mxu0
  %v1984 = vadd.f32 0.0, %v1983
  %v1985 = vpop.f32.mrb[0].mxu0
  %1986 = vmatprep.mubr.bf16.mxu0 0
  %1987 = vmatmul.mubr.bf16.gmra.mrb[0].mxu0 %v1558
  %v1988 = vpop.f32.mrb[0].mxu0
  %v1989 = vadd.f32 0.0, %v1988
  %v1990 = vpop.f32.mrb[0].mxu0
  %v1991 = vpop.f32.mrb[0].mxu0
  %v1992 = vadd.f32 0.0, %v1991
  %v1993 = vpop.f32.mrb[0].mxu0
  %1994 = vmatprep.mubr.bf16.mxu0 0
  %1995 = vmatmul.mubr.bf16.gmra.mrb[0].mxu0 %v1561
  %v1996 = vpop.f32.mrb[0].mxu0
  %v1997 = vadd.f32 0.0, %v1996
  %v1998 = vpop.f32.mrb[0].mxu0
  %v1999 = vpop.f32.mrb[0].mxu0
  %v2000 = vadd.f32 0.0, %v1999
  %v2001 = vpop.f32.mrb[0].mxu0
  %2002 = vmatprep.mubr.bf16.mxu0 0
  %2003 = vmatmul.mubr.bf16.gmra.mrb[0].mxu0 %v1564
  %v2004 = vpop.f32.mrb[0].mxu0
  %v2005 = vadd.f32 0.0, %v2004
  %v2006 = vpop.f32.mrb[0].mxu0
  %v2007 = vpop.f32.mrb[0].mxu0
  %v2008 = vadd.f32 0.0, %v2007
  %v2009 = vpop.f32.mrb[0].mxu0
  %2010 = vmatprep.mubr.bf16.mxu0 0
  %2011 = vmatmul.mubr.bf16.gmra.mrb[0].mxu0 %v1567
  %v2012 = vpop.f32.mrb[0].mxu0
  %v2013 = vadd.f32 0.0, %v2012
  %v2014 = vpop.f32.mrb[0].mxu0
  %v2015 = vpop.f32.mrb[0].mxu0
  %v2016 = vadd.f32 0.0, %v2015
  %v2017 = vpop.f32.mrb[0].mxu0
  %2018 = vmatprep.mubr.bf16.mxu0 0
  %2019 = vmatmul.mubr.bf16.gmra.mrb[0].mxu0 %v1570
  %v2020 = vpop.f32.mrb[0].mxu0
  %v2021 = vadd.f32 0.0, %v2020
  %v2022 = vpop.f32.mrb[0].mxu0
  %v2023 = vpop.f32.mrb[0].mxu0
  %v2024 = vadd.f32 0.0, %v2023
  %v2025 = vpop.f32.mrb[0].mxu0
  %2026 = vmatprep.mubr.bf16.mxu0 0
  %2027 = vmatmul.mubr.bf16.gmra.mrb[0].mxu0 %v1573
  %v2028 = vpop.f32.mrb[0].mxu0
  %v2029 = vadd.f32 0.0, %v2028
  %v2030 = vpop.f32.mrb[0].mxu0
  %v2031 = vpop.f32.mrb[0].mxu0
  %v2032 = vadd.f32 0.0, %v2031
  %v2033 = vpop.f32.mrb[0].mxu0
  %2034 = vmatprep.mubr.bf16.mxu0 0
  %2035 = vmatmul.mubr.bf16.gmra.mrb[0].mxu0 %v1576
  %v2036 = vpop.f32.mrb[0].mxu0
  %v2037 = vadd.f32 0.0, %v2036
  %v2038 = vpop.f32.mrb[0].mxu0
  %v2039 = vpop.f32.mrb[0].mxu0
  %v2040 = vadd.f32 0.0, %v2039
  %v2041 = vpop.f32.mrb[0].mxu0
  %2042 = vmatprep.mubr.bf16.mxu0 0
  %2043 = vmatmul.mubr.bf16.gmra.mrb[0].mxu0 %v1579
  %v2044 = vpop.f32.mrb[0].mxu0
  %v2045 = vadd.f32 0.0, %v2044
  %v2046 = vpop.f32.mrb[0].mxu0
  %v2047 = vpop.f32.mrb[0].mxu0
  %v2048 = vadd.f32 0.0, %v2047
  %v2049 = vpop.f32.mrb[0].mxu0
  %2050 = vmatprep.mubr.bf16.mxu0 0
  %2051 = vmatmul.mubr.bf16.gmra.mrb[0].mxu0 %v1582
  %v2052 = vpop.f32.mrb[0].mxu0
  %v2053 = vadd.f32 0.0, %v2052
  %v2054 = vpop.f32.mrb[0].mxu0
  %v2055 = vpop.f32.mrb[0].mxu0
  %v2056 = vadd.f32 0.0, %v2055
  %v2057 = vpop.f32.mrb[0].mxu0
  %2058 = vmatprep.mubr.bf16.mxu0 0
  %2059 = vmatmul.mubr.bf16.gmra.mrb[0].mxu0 %v1585
  %v2060 = vpop.f32.mrb[0].mxu0
  %v2061 = vadd.f32 0.0, %v2060
  %v2062 = vpop.f32.mrb[0].mxu0
  %v2063 = vpop.f32.mrb[0].mxu0
  %v2064 = vadd.f32 0.0, %v2063
  %v2065 = vpop.f32.mrb[0].mxu0
  %2066 = vmatprep.mubr.bf16.mxu0 0
  %2067 = vmatmul.mubr.bf16.gmra.mrb[0].mxu0 %v1588
  %v2068 = vpop.f32.mrb[0].mxu0
  %v2069 = vadd.f32 0.0, %v2068
  %v2070 = vpop.f32.mrb[0].mxu0
  %v2071 = vpop.f32.mrb[0].mxu0
  %v2072 = vadd.f32 0.0, %v2071
  %v2073 = vpop.f32.mrb[0].mxu0
  %2074 = vmatprep.mubr.bf16.mxu0 0
  %2075 = vmatmul.mubr.bf16.gmra.mrb[0].mxu0 %v1591
  %v2076 = vpop.f32.mrb[0].mxu0
  %v2077 = vadd.f32 0.0, %v2076
  %v2078 = vpop.f32.mrb[0].mxu0
  %v2079 = vpop.f32.mrb[0].mxu0
  %v2080 = vadd.f32 0.0, %v2079
  %v2081 = vpop.f32.mrb[0].mxu0
  %2082 = vmatprep.mubr.bf16.mxu0 0
  %2083 = vmatmul.mubr.bf16.gmra.mrb[0].mxu0 %v1594
  %v2084 = vpop.f32.mrb[0].mxu0
  %v2085 = vadd.f32 0.0, %v2084
  %v2086 = vpop.f32.mrb[0].mxu0
  %v2087 = vpop.f32.mrb[0].mxu0
  %v2088 = vadd.f32 0.0, %v2087
  %v2089 = vpop.f32.mrb[0].mxu0
  %2090 = vmatprep.mubr.bf16.mxu0 0
  %2091 = vmatmul.mubr.bf16.gmra.mrb[0].mxu0 %v1597
  %v2092 = vpop.f32.mrb[0].mxu0
  %v2093 = vadd.f32 0.0, %v2092
  %v2094 = vpop.f32.mrb[0].mxu0
  %v2095 = vpop.f32.mrb[0].mxu0
  %v2096 = vadd.f32 0.0, %v2095
  %v2097 = vpop.f32.mrb[0].mxu0
  %2098 = vmatprep.mubr.bf16.mxu0 0
  %2099 = vmatmul.mubr.bf16.gmra.mrb[0].mxu0 %v1600
  %v2100 = vpop.f32.mrb[0].mxu0
  %v2101 = vadd.f32 0.0, %v2100
  %v2102 = vpop.f32.mrb[0].mxu0
  %v2103 = vpop.f32.mrb[0].mxu0
  %v2104 = vadd.f32 0.0, %v2103
  %v2105 = vpop.f32.mrb[0].mxu0
  %2106 = vmatprep.mubr.bf16.mxu0 0
  %2107 = vmatmul.mubr.bf16.gmra.mrb[0].mxu0 %v1603
  %v2108 = vpop.f32.mrb[0].mxu0
  %v2109 = vadd.f32 0.0, %v2108
  %v2110 = vpop.f32.mrb[0].mxu0
  %v2111 = vpop.f32.mrb[0].mxu0
  %v2112 = vadd.f32 0.0, %v2111
  %v2113 = vpop.f32.mrb[0].mxu0
  %2114 = vmatprep.mubr.bf16.mxu0 0
  %2115 = vmatmul.mubr.bf16.gmra.mrb[0].mxu0 %v1606
  %v2116 = vpop.f32.mrb[0].mxu0
  %v2117 = vadd.f32 0.0, %v2116
  %v2118 = vpop.f32.mrb[0].mxu0
  %v2119 = vpop.f32.mrb[0].mxu0
  %v2120 = vadd.f32 0.0, %v2119
  %v2121 = vpop.f32.mrb[0].mxu0
  %2122 = vmatprep.mubr.bf16.mxu0 0
  %2123 = vmatmul.mubr.bf16.gmra.mrb[0].mxu0 %v1609
  %v2124 = vpop.f32.mrb[0].mxu0
  %v2125 = vadd.f32 0.0, %v2124
  %v2126 = vpop.f32.mrb[0].mxu0
  %v2127 = vpop.f32.mrb[0].mxu0
  %v2128 = vadd.f32 0.0, %v2127
  %v2129 = vpop.f32.mrb[0].mxu0
  %2130 = vmatprep.mubr.bf16.mxu0 0
  %2131 = vmatmul.mubr.bf16.gmra.mrb[0].mxu0 %v1612
  %v2132 = vpop.f32.mrb[0].mxu0
  %v2133 = vadd.f32 0.0, %v2132
  %v2134 = vpop.f32.mrb[0].mxu0
  %v2135 = vpop.f32.mrb[0].mxu0
  %v2136 = vadd.f32 0.0, %v2135
  %v2137 = vpop.f32.mrb[0].mxu0
  %2138 = vmatprep.mubr.bf16.mxu0 0
  %2139 = vmatmul.mubr.bf16.gmra.mrb[0].mxu0 %v1615
  %v2140 = vpop.f32.mrb[0].mxu0
  %v2141 = vadd.f32 0.0, %v2140
  %v2142 = vpop.f32.mrb[0].mxu0
  %v2143 = vpop.f32.mrb[0].mxu0
  %v2144 = vadd.f32 0.0, %v2143
  %v2145 = vpop.f32.mrb[0].mxu0
  %2146 = vmatprep.mubr.bf16.mxu0 0
  %2147 = vmatmul.mubr.bf16.gmra.mrb[0].mxu0 %v1618
  %v2148 = vpop.f32.mrb[0].mxu0
  %v2149 = vadd.f32 0.0, %v2148
  %v2150 = vpop.f32.mrb[0].mxu0
  %v2151 = vpop.f32.mrb[0].mxu0
  %v2152 = vadd.f32 0.0, %v2151
  %v2153 = vpop.f32.mrb[0].mxu0
  %2154 = vmatprep.mubr.bf16.mxu0 0
  %2155 = vmatmul.mubr.bf16.gmra.mrb[0].mxu0 %v1621
  %v2156 = vpop.f32.mrb[0].mxu0
  %v2157 = vadd.f32 0.0, %v2156
  %v2158 = vpop.f32.mrb[0].mxu0
  %v2159 = vpop.f32.mrb[0].mxu0
  %v2160 = vadd.f32 0.0, %v2159
  %v2161 = vpop.f32.mrb[0].mxu0
  %2162 = vmatprep.mubr.bf16.mxu0 0
  %2163 = vmatmul.mubr.bf16.gmra.mrb[0].mxu0 %v1624
  %v2164 = vpop.f32.mrb[0].mxu0
  %v2165 = vadd.f32 0.0, %v2164
  %v2166 = vpop.f32.mrb[0].mxu0
  %v2167 = vpop.f32.mrb[0].mxu0
  %v2168 = vadd.f32 0.0, %v2167
  %v2169 = vpop.f32.mrb[0].mxu0
  %2170 = vdwg.mxu0
  %v2171 = vpack.c.bf16 %v502, %v498
  %v2172 = vpack.c.bf16 %v510, %v506
  %v2173 = vpack.c.bf16 %v537, %v535
  %v2174 = vpack.c.bf16 %v541, %v539
  %v2175 = vpack.c.bf16 %v549, %v547
  %v2176 = vpack.c.bf16 %v553, %v551
  %v2177 = vpack.c.bf16 %v561, %v559
  %v2178 = vpack.c.bf16 %v565, %v563
  %v2179 = vpack.c.bf16 %v573, %v571
  %v2180 = vpack.c.bf16 %v577, %v575
  %v2181 = vpack.c.bf16 %v585, %v583
  %v2182 = vpack.c.bf16 %v589, %v587
  %v2183 = vpack.c.bf16 %v597, %v595
  %v2184 = vpack.c.bf16 %v601, %v599
  %v2185 = vpack.c.bf16 %v609, %v607
  %v2186 = vpack.c.bf16 %v613, %v611
  %v2187 = vpack.c.bf16 %v503, %v499
  %v2188 = vpack.c.bf16 %v511, %v507
  %v2189 = vpack.c.bf16 %v625, %v623
  %v2190 = vpack.c.bf16 %v629, %v627
  %v2191 = vpack.c.bf16 %v637, %v635
  %v2192 = vpack.c.bf16 %v641, %v639
  %v2193 = vpack.c.bf16 %v649, %v647
  %v2194 = vpack.c.bf16 %v653, %v651
  %v2195 = vpack.c.bf16 %v661, %v659
  %v2196 = vpack.c.bf16 %v665, %v663
  %v2197 = vpack.c.bf16 %v673, %v671
  %v2198 = vpack.c.bf16 %v677, %v675
  %v2199 = vpack.c.bf16 %v685, %v683
  %v2200 = vpack.c.bf16 %v689, %v687
  %v2201 = vpack.c.bf16 %v697, %v695
  %v2202 = vpack.c.bf16 %v701, %v699
  %v2203 = vpack.c.bf16 %v504, %v500
  %v2204 = vpack.c.bf16 %v512, %v508
  %v2205 = vpack.c.bf16 %v713, %v711
  %v2206 = vpack.c.bf16 %v717, %v715
  %v2207 = vpack.c.bf16 %v725, %v723
  %v2208 = vpack.c.bf16 %v729, %v727
  %v2209 = vpack.c.bf16 %v737, %v735
  %v2210 = vpack.c.bf16 %v741, %v739
  %v2211 = vpack.c.bf16 %v749, %v747
  %v2212 = vpack.c.bf16 %v753, %v751
  %v2213 = vpack.c.bf16 %v761, %v759
  %v2214 = vpack.c.bf16 %v765, %v763
  %v2215 = vpack.c.bf16 %v773, %v771
  %v2216 = vpack.c.bf16 %v777, %v775
  %v2217 = vpack.c.bf16 %v785, %v783
  %v2218 = vpack.c.bf16 %v789, %v787
  %v2219 = vpack.c.bf16 %v505, %v501
  %v2220 = vpack.c.bf16 %v513, %v509
  %v2221 = vpack.c.bf16 %v801, %v799
  %v2222 = vpack.c.bf16 %v805, %v803
  %v2223 = vpack.c.bf16 %v813, %v811
  %v2224 = vpack.c.bf16 %v817, %v815
  %v2225 = vpack.c.bf16 %v825, %v823
  %v2226 = vpack.c.bf16 %v829, %v827
  %v2227 = vpack.c.bf16 %v837, %v835
  %v2228 = vpack.c.bf16 %v841, %v839
  %v2229 = vpack.c.bf16 %v849, %v847
  %v2230 = vpack.c.bf16 %v853, %v851
  %v2231 = vpack.c.bf16 %v861, %v859
  %v2232 = vpack.c.bf16 %v865, %v863
  %v2233 = vpack.c.bf16 %v873, %v871
  %v2234 = vpack.c.bf16 %v877, %v875
  %s2235 = scalar_lea.vmem %s4, 8
  %v2236 = vld [vmem:[%s2235] sm:$0xf]
  %v2237 = vld [vmem:[%s2235 + $0x4] sm:$0xf]
  %v2240 = vunpack.c.l.b16 %v2236
  %v2241 = vunpack.c.l.b16 %v2237
  %v2242 = vpack.c.b16 %v2241, %v2240
  %v2245 = vsel %vm123, %v2171, 0
  %v2248 = vsel %vm123, %v2172, 0
  %v2251 = vsel %vm123, %v2173, 0
  %v2254 = vsel %vm123, %v2174, 0
  %v2257 = vsel %vm123, %v2175, 0
  %v2260 = vsel %vm123, %v2176, 0
  %v2263 = vsel %vm123, %v2177, 0
  %v2266 = vsel %vm123, %v2178, 0
  %v2269 = vsel %vm123, %v2179, 0
  %v2272 = vsel %vm123, %v2180, 0
  %v2275 = vsel %vm123, %v2181, 0
  %v2278 = vsel %vm123, %v2182, 0
  %v2281 = vsel %vm123, %v2183, 0
  %v2284 = vsel %vm123, %v2184, 0
  %v2287 = vsel %vm123, %v2185, 0
  %v2290 = vsel %vm123, %v2186, 0
  %v2293 = vsel %vm123, %v2187, 0
  %v2296 = vsel %vm123, %v2188, 0
  %v2299 = vsel %vm123, %v2189, 0
  %v2302 = vsel %vm123, %v2190, 0
  %v2305 = vsel %vm123, %v2191, 0
  %v2308 = vsel %vm123, %v2192, 0
  %v2311 = vsel %vm123, %v2193, 0
  %v2314 = vsel %vm123, %v2194, 0
  %v2317 = vsel %vm123, %v2195, 0
  %v2320 = vsel %vm123, %v2196, 0
  %v2323 = vsel %vm123, %v2197, 0
  %v2326 = vsel %vm123, %v2198, 0
  %v2329 = vsel %vm123, %v2199, 0
  %v2332 = vsel %vm123, %v2200, 0
  %v2335 = vsel %vm123, %v2201, 0
  %v2338 = vsel %vm123, %v2202, 0
  %v2341 = vsel %vm123, %v2203, 0
  %v2344 = vsel %vm123, %v2204, 0
  %v2347 = vsel %vm123, %v2205, 0
  %v2350 = vsel %vm123, %v2206, 0
  %v2353 = vsel %vm123, %v2207, 0
  %v2356 = vsel %vm123, %v2208, 0
  %v2359 = vsel %vm123, %v2209, 0
  %v2362 = vsel %vm123, %v2210, 0
  %v2365 = vsel %vm123, %v2211, 0
  %v2368 = vsel %vm123, %v2212, 0
  %v2371 = vsel %vm123, %v2213, 0
  %v2374 = vsel %vm123, %v2214, 0
  %v2377 = vsel %vm123, %v2215, 0
  %v2380 = vsel %vm123, %v2216, 0
  %v2383 = vsel %vm123, %v2217, 0
  %v2386 = vsel %vm123, %v2218, 0
  %v2389 = vsel %vm123, %v2219, 0
  %v2392 = vsel %vm123, %v2220, 0
  %v2395 = vsel %vm123, %v2221, 0
  %v2398 = vsel %vm123, %v2222, 0
  %v2401 = vsel %vm123, %v2223, 0
  %v2404 = vsel %vm123, %v2224, 0
  %v2407 = vsel %vm123, %v2225, 0
  %v2410 = vsel %vm123, %v2226, 0
  %v2413 = vsel %vm123, %v2227, 0
  %v2416 = vsel %vm123, %v2228, 0
  %v2419 = vsel %vm123, %v2229, 0
  %v2422 = vsel %vm123, %v2230, 0
  %v2425 = vsel %vm123, %v2231, 0
  %v2428 = vsel %vm123, %v2232, 0
  %v2431 = vsel %vm123, %v2233, 0
  %v2434 = vsel %vm123, %v2234, 0
  %2436 = vmatprep.subr.bf16.mxu0 0
  %2437 = vmatpush1.bf16.msra.mxu0 %v2242
  %2438 = vmatprep.subr.bf16.mxu0 0
  %2439 = vmatpush1.bf16.msra.mxu0 0
  %2440 = vmatprep.subr.bf16.mxu0 0
  %2441 = vmatpush1.bf16.msra.mxu0 0
  %2442 = vmatprep.subr.bf16.mxu0 0
  %2443 = vmatpush1.bf16.msra.mxu0 0
  %2444 = vmatprep.subr.bf16.mxu0 0
  %2445 = vmatpush1.bf16.msra.mxu0 0
  %2446 = vmatprep.subr.bf16.mxu0 0
  %2447 = vmatpush1.bf16.msra.mxu0 0
  %2448 = vmatprep.subr.bf16.mxu0 0
  %2449 = vmatpush1.bf16.msra.mxu0 0
  %2450 = vmatprep.subr.bf16.mxu0 0
  %2451 = vmatpush1.bf16.msra.mxu0 0
  %2452 = vmatprep.subr.bf16.mxu0 0
  %2453 = vmatpush1.bf16.msra.mxu0 0
  %2454 = vmatprep.subr.bf16.mxu0 0
  %2455 = vmatpush1.bf16.msra.mxu0 0
  %2456 = vmatprep.subr.bf16.mxu0 0
  %2457 = vmatpush1.bf16.msra.mxu0 0
  %2458 = vmatprep.subr.bf16.mxu0 0
  %2459 = vmatpush1.bf16.msra.mxu0 0
  %2460 = vmatprep.subr.bf16.mxu0 0
  %2461 = vmatpush1.bf16.msra.mxu0 0
  %2462 = vmatprep.subr.bf16.mxu0 0
  %2463 = vmatpush1.bf16.msra.mxu0 0
  %2464 = vmatprep.subr.bf16.mxu0 0
  %2465 = vmatpush1.bf16.msra.mxu0 0
  %2466 = vmatprep.subr.bf16.mxu0 0
  %2467 = vmatpush1.bf16.msra.mxu0 0
  %2468 = vmatprep.mubr.bf16.mxu0 0
  %2469 = vmatmul.mubr.bf16.gmra.mrb[0].mxu0 %v2245
  %v2470 = vpop.f32.mrb[0].mxu0
  %v2471 = vadd.f32 0.0, %v2470
  %v2472 = vpop.f32.mrb[0].mxu0
  %v2473 = vpop.f32.mrb[0].mxu0
  %v2474 = vadd.f32 0.0, %v2473
  %v2475 = vpop.f32.mrb[0].mxu0
  %2476 = vmatprep.mubr.bf16.mxu0 0
  %2477 = vmatmul.mubr.bf16.gmra.mrb[0].mxu0 %v2248
  %v2478 = vpop.f32.mrb[0].mxu0
  %v2479 = vadd.f32 0.0, %v2478
  %v2480 = vpop.f32.mrb[0].mxu0
  %v2481 = vpop.f32.mrb[0].mxu0
  %v2482 = vadd.f32 0.0, %v2481
  %v2483 = vpop.f32.mrb[0].mxu0
  %2484 = vmatprep.mubr.bf16.mxu0 0
  %2485 = vmatmul.mubr.bf16.gmra.mrb[0].mxu0 %v2251
  %v2486 = vpop.f32.mrb[0].mxu0
  %v2487 = vadd.f32 0.0, %v2486
  %v2488 = vpop.f32.mrb[0].mxu0
  %v2489 = vpop.f32.mrb[0].mxu0
  %v2490 = vadd.f32 0.0, %v2489
  %v2491 = vpop.f32.mrb[0].mxu0
  %2492 = vmatprep.mubr.bf16.mxu0 0
  %2493 = vmatmul.mubr.bf16.gmra.mrb[0].mxu0 %v2254
  %v2494 = vpop.f32.mrb[0].mxu0
  %v2495 = vadd.f32 0.0, %v2494
  %v2496 = vpop.f32.mrb[0].mxu0
  %v2497 = vpop.f32.mrb[0].mxu0
  %v2498 = vadd.f32 0.0, %v2497
  %v2499 = vpop.f32.mrb[0].mxu0
  %2500 = vmatprep.mubr.bf16.mxu0 0
  %2501 = vmatmul.mubr.bf16.gmra.mrb[0].mxu0 %v2257
  %v2502 = vpop.f32.mrb[0].mxu0
  %v2503 = vadd.f32 0.0, %v2502
  %v2504 = vpop.f32.mrb[0].mxu0
  %v2505 = vpop.f32.mrb[0].mxu0
  %v2506 = vadd.f32 0.0, %v2505
  %v2507 = vpop.f32.mrb[0].mxu0
  %2508 = vmatprep.mubr.bf16.mxu0 0
  %2509 = vmatmul.mubr.bf16.gmra.mrb[0].mxu0 %v2260
  %v2510 = vpop.f32.mrb[0].mxu0
  %v2511 = vadd.f32 0.0, %v2510
  %v2512 = vpop.f32.mrb[0].mxu0
  %v2513 = vpop.f32.mrb[0].mxu0
  %v2514 = vadd.f32 0.0, %v2513
  %v2515 = vpop.f32.mrb[0].mxu0
  %2516 = vmatprep.mubr.bf16.mxu0 0
  %2517 = vmatmul.mubr.bf16.gmra.mrb[0].mxu0 %v2263
  %v2518 = vpop.f32.mrb[0].mxu0
  %v2519 = vadd.f32 0.0, %v2518
  %v2520 = vpop.f32.mrb[0].mxu0
  %v2521 = vpop.f32.mrb[0].mxu0
  %v2522 = vadd.f32 0.0, %v2521
  %v2523 = vpop.f32.mrb[0].mxu0
  %2524 = vmatprep.mubr.bf16.mxu0 0
  %2525 = vmatmul.mubr.bf16.gmra.mrb[0].mxu0 %v2266
  %v2526 = vpop.f32.mrb[0].mxu0
  %v2527 = vadd.f32 0.0, %v2526
  %v2528 = vpop.f32.mrb[0].mxu0
  %v2529 = vpop.f32.mrb[0].mxu0
  %v2530 = vadd.f32 0.0, %v2529
  %v2531 = vpop.f32.mrb[0].mxu0
  %2532 = vmatprep.mubr.bf16.mxu0 0
  %2533 = vmatmul.mubr.bf16.gmra.mrb[0].mxu0 %v2269
  %v2534 = vpop.f32.mrb[0].mxu0
  %v2535 = vadd.f32 0.0, %v2534
  %v2536 = vpop.f32.mrb[0].mxu0
  %v2537 = vpop.f32.mrb[0].mxu0
  %v2538 = vadd.f32 0.0, %v2537
  %v2539 = vpop.f32.mrb[0].mxu0
  %2540 = vmatprep.mubr.bf16.mxu0 0
  %2541 = vmatmul.mubr.bf16.gmra.mrb[0].mxu0 %v2272
  %v2542 = vpop.f32.mrb[0].mxu0
  %v2543 = vadd.f32 0.0, %v2542
  %v2544 = vpop.f32.mrb[0].mxu0
  %v2545 = vpop.f32.mrb[0].mxu0
  %v2546 = vadd.f32 0.0, %v2545
  %v2547 = vpop.f32.mrb[0].mxu0
  %2548 = vmatprep.mubr.bf16.mxu0 0
  %2549 = vmatmul.mubr.bf16.gmra.mrb[0].mxu0 %v2275
  %v2550 = vpop.f32.mrb[0].mxu0
  %v2551 = vadd.f32 0.0, %v2550
  %v2552 = vpop.f32.mrb[0].mxu0
  %v2553 = vpop.f32.mrb[0].mxu0
  %v2554 = vadd.f32 0.0, %v2553
  %v2555 = vpop.f32.mrb[0].mxu0
  %2556 = vmatprep.mubr.bf16.mxu0 0
  %2557 = vmatmul.mubr.bf16.gmra.mrb[0].mxu0 %v2278
  %v2558 = vpop.f32.mrb[0].mxu0
  %v2559 = vadd.f32 0.0, %v2558
  %v2560 = vpop.f32.mrb[0].mxu0
  %v2561 = vpop.f32.mrb[0].mxu0
  %v2562 = vadd.f32 0.0, %v2561
  %v2563 = vpop.f32.mrb[0].mxu0
  %2564 = vmatprep.mubr.bf16.mxu0 0
  %2565 = vmatmul.mubr.bf16.gmra.mrb[0].mxu0 %v2281
  %v2566 = vpop.f32.mrb[0].mxu0
  %v2567 = vadd.f32 0.0, %v2566
  %v2568 = vpop.f32.mrb[0].mxu0
  %v2569 = vpop.f32.mrb[0].mxu0
  %v2570 = vadd.f32 0.0, %v2569
  %v2571 = vpop.f32.mrb[0].mxu0
  %2572 = vmatprep.mubr.bf16.mxu0 0
  %2573 = vmatmul.mubr.bf16.gmra.mrb[0].mxu0 %v2284
  %v2574 = vpop.f32.mrb[0].mxu0
  %v2575 = vadd.f32 0.0, %v2574
  %v2576 = vpop.f32.mrb[0].mxu0
  %v2577 = vpop.f32.mrb[0].mxu0
  %v2578 = vadd.f32 0.0, %v2577
  %v2579 = vpop.f32.mrb[0].mxu0
  %2580 = vmatprep.mubr.bf16.mxu0 0
  %2581 = vmatmul.mubr.bf16.gmra.mrb[0].mxu0 %v2287
  %v2582 = vpop.f32.mrb[0].mxu0
  %v2583 = vadd.f32 0.0, %v2582
  %v2584 = vpop.f32.mrb[0].mxu0
  %v2585 = vpop.f32.mrb[0].mxu0
  %v2586 = vadd.f32 0.0, %v2585
  %v2587 = vpop.f32.mrb[0].mxu0
  %2588 = vmatprep.mubr.bf16.mxu0 0
  %2589 = vmatmul.mubr.bf16.gmra.mrb[0].mxu0 %v2290
  %v2590 = vpop.f32.mrb[0].mxu0
  %v2591 = vadd.f32 0.0, %v2590
  %v2592 = vpop.f32.mrb[0].mxu0
  %v2593 = vpop.f32.mrb[0].mxu0
  %v2594 = vadd.f32 0.0, %v2593
  %v2595 = vpop.f32.mrb[0].mxu0
  %2596 = vmatprep.mubr.bf16.mxu0 0
  %2597 = vmatmul.mubr.bf16.gmra.mrb[0].mxu0 %v2293
  %v2598 = vpop.f32.mrb[0].mxu0
  %v2599 = vadd.f32 0.0, %v2598
  %v2600 = vpop.f32.mrb[0].mxu0
  %v2601 = vpop.f32.mrb[0].mxu0
  %v2602 = vadd.f32 0.0, %v2601
  %v2603 = vpop.f32.mrb[0].mxu0
  %2604 = vmatprep.mubr.bf16.mxu0 0
  %2605 = vmatmul.mubr.bf16.gmra.mrb[0].mxu0 %v2296
  %v2606 = vpop.f32.mrb[0].mxu0
  %v2607 = vadd.f32 0.0, %v2606
  %v2608 = vpop.f32.mrb[0].mxu0
  %v2609 = vpop.f32.mrb[0].mxu0
  %v2610 = vadd.f32 0.0, %v2609
  %v2611 = vpop.f32.mrb[0].mxu0
  %2612 = vmatprep.mubr.bf16.mxu0 0
  %2613 = vmatmul.mubr.bf16.gmra.mrb[0].mxu0 %v2299
  %v2614 = vpop.f32.mrb[0].mxu0
  %v2615 = vadd.f32 0.0, %v2614
  %v2616 = vpop.f32.mrb[0].mxu0
  %v2617 = vpop.f32.mrb[0].mxu0
  %v2618 = vadd.f32 0.0, %v2617
  %v2619 = vpop.f32.mrb[0].mxu0
  %2620 = vmatprep.mubr.bf16.mxu0 0
  %2621 = vmatmul.mubr.bf16.gmra.mrb[0].mxu0 %v2302
  %v2622 = vpop.f32.mrb[0].mxu0
  %v2623 = vadd.f32 0.0, %v2622
  %v2624 = vpop.f32.mrb[0].mxu0
  %v2625 = vpop.f32.mrb[0].mxu0
  %v2626 = vadd.f32 0.0, %v2625
  %v2627 = vpop.f32.mrb[0].mxu0
  %2628 = vmatprep.mubr.bf16.mxu0 0
  %2629 = vmatmul.mubr.bf16.gmra.mrb[0].mxu0 %v2305
  %v2630 = vpop.f32.mrb[0].mxu0
  %v2631 = vadd.f32 0.0, %v2630
  %v2632 = vpop.f32.mrb[0].mxu0
  %v2633 = vpop.f32.mrb[0].mxu0
  %v2634 = vadd.f32 0.0, %v2633
  %v2635 = vpop.f32.mrb[0].mxu0
  %2636 = vmatprep.mubr.bf16.mxu0 0
  %2637 = vmatmul.mubr.bf16.gmra.mrb[0].mxu0 %v2308
  %v2638 = vpop.f32.mrb[0].mxu0
  %v2639 = vadd.f32 0.0, %v2638
  %v2640 = vpop.f32.mrb[0].mxu0
  %v2641 = vpop.f32.mrb[0].mxu0
  %v2642 = vadd.f32 0.0, %v2641
  %v2643 = vpop.f32.mrb[0].mxu0
  %2644 = vmatprep.mubr.bf16.mxu0 0
  %2645 = vmatmul.mubr.bf16.gmra.mrb[0].mxu0 %v2311
  %v2646 = vpop.f32.mrb[0].mxu0
  %v2647 = vadd.f32 0.0, %v2646
  %v2648 = vpop.f32.mrb[0].mxu0
  %v2649 = vpop.f32.mrb[0].mxu0
  %v2650 = vadd.f32 0.0, %v2649
  %v2651 = vpop.f32.mrb[0].mxu0
  %2652 = vmatprep.mubr.bf16.mxu0 0
  %2653 = vmatmul.mubr.bf16.gmra.mrb[0].mxu0 %v2314
  %v2654 = vpop.f32.mrb[0].mxu0
  %v2655 = vadd.f32 0.0, %v2654
  %v2656 = vpop.f32.mrb[0].mxu0
  %v2657 = vpop.f32.mrb[0].mxu0
  %v2658 = vadd.f32 0.0, %v2657
  %v2659 = vpop.f32.mrb[0].mxu0
  %2660 = vmatprep.mubr.bf16.mxu0 0
  %2661 = vmatmul.mubr.bf16.gmra.mrb[0].mxu0 %v2317
  %v2662 = vpop.f32.mrb[0].mxu0
  %v2663 = vadd.f32 0.0, %v2662
  %v2664 = vpop.f32.mrb[0].mxu0
  %v2665 = vpop.f32.mrb[0].mxu0
  %v2666 = vadd.f32 0.0, %v2665
  %v2667 = vpop.f32.mrb[0].mxu0
  %2668 = vmatprep.mubr.bf16.mxu0 0
  %2669 = vmatmul.mubr.bf16.gmra.mrb[0].mxu0 %v2320
  %v2670 = vpop.f32.mrb[0].mxu0
  %v2671 = vadd.f32 0.0, %v2670
  %v2672 = vpop.f32.mrb[0].mxu0
  %v2673 = vpop.f32.mrb[0].mxu0
  %v2674 = vadd.f32 0.0, %v2673
  %v2675 = vpop.f32.mrb[0].mxu0
  %2676 = vmatprep.mubr.bf16.mxu0 0
  %2677 = vmatmul.mubr.bf16.gmra.mrb[0].mxu0 %v2323
  %v2678 = vpop.f32.mrb[0].mxu0
  %v2679 = vadd.f32 0.0, %v2678
  %v2680 = vpop.f32.mrb[0].mxu0
  %v2681 = vpop.f32.mrb[0].mxu0
  %v2682 = vadd.f32 0.0, %v2681
  %v2683 = vpop.f32.mrb[0].mxu0
  %2684 = vmatprep.mubr.bf16.mxu0 0
  %2685 = vmatmul.mubr.bf16.gmra.mrb[0].mxu0 %v2326
  %v2686 = vpop.f32.mrb[0].mxu0
  %v2687 = vadd.f32 0.0, %v2686
  %v2688 = vpop.f32.mrb[0].mxu0
  %v2689 = vpop.f32.mrb[0].mxu0
  %v2690 = vadd.f32 0.0, %v2689
  %v2691 = vpop.f32.mrb[0].mxu0
  %2692 = vmatprep.mubr.bf16.mxu0 0
  %2693 = vmatmul.mubr.bf16.gmra.mrb[0].mxu0 %v2329
  %v2694 = vpop.f32.mrb[0].mxu0
  %v2695 = vadd.f32 0.0, %v2694
  %v2696 = vpop.f32.mrb[0].mxu0
  %v2697 = vpop.f32.mrb[0].mxu0
  %v2698 = vadd.f32 0.0, %v2697
  %v2699 = vpop.f32.mrb[0].mxu0
  %2700 = vmatprep.mubr.bf16.mxu0 0
  %2701 = vmatmul.mubr.bf16.gmra.mrb[0].mxu0 %v2332
  %v2702 = vpop.f32.mrb[0].mxu0
  %v2703 = vadd.f32 0.0, %v2702
  %v2704 = vpop.f32.mrb[0].mxu0
  %v2705 = vpop.f32.mrb[0].mxu0
  %v2706 = vadd.f32 0.0, %v2705
  %v2707 = vpop.f32.mrb[0].mxu0
  %2708 = vmatprep.mubr.bf16.mxu0 0
  %2709 = vmatmul.mubr.bf16.gmra.mrb[0].mxu0 %v2335
  %v2710 = vpop.f32.mrb[0].mxu0
  %v2711 = vadd.f32 0.0, %v2710
  %v2712 = vpop.f32.mrb[0].mxu0
  %v2713 = vpop.f32.mrb[0].mxu0
  %v2714 = vadd.f32 0.0, %v2713
  %v2715 = vpop.f32.mrb[0].mxu0
  %2716 = vmatprep.mubr.bf16.mxu0 0
  %2717 = vmatmul.mubr.bf16.gmra.mrb[0].mxu0 %v2338
  %v2718 = vpop.f32.mrb[0].mxu0
  %v2719 = vadd.f32 0.0, %v2718
  %v2720 = vpop.f32.mrb[0].mxu0
  %v2721 = vpop.f32.mrb[0].mxu0
  %v2722 = vadd.f32 0.0, %v2721
  %v2723 = vpop.f32.mrb[0].mxu0
  %2724 = vmatprep.mubr.bf16.mxu0 0
  %2725 = vmatmul.mubr.bf16.gmra.mrb[0].mxu0 %v2341
  %v2726 = vpop.f32.mrb[0].mxu0
  %v2727 = vadd.f32 0.0, %v2726
  %v2728 = vpop.f32.mrb[0].mxu0
  %v2729 = vpop.f32.mrb[0].mxu0
  %v2730 = vadd.f32 0.0, %v2729
  %v2731 = vpop.f32.mrb[0].mxu0
  %2732 = vmatprep.mubr.bf16.mxu0 0
  %2733 = vmatmul.mubr.bf16.gmra.mrb[0].mxu0 %v2344
  %v2734 = vpop.f32.mrb[0].mxu0
  %v2735 = vadd.f32 0.0, %v2734
  %v2736 = vpop.f32.mrb[0].mxu0
  %v2737 = vpop.f32.mrb[0].mxu0
  %v2738 = vadd.f32 0.0, %v2737
  %v2739 = vpop.f32.mrb[0].mxu0
  %2740 = vmatprep.mubr.bf16.mxu0 0
  %2741 = vmatmul.mubr.bf16.gmra.mrb[0].mxu0 %v2347
  %v2742 = vpop.f32.mrb[0].mxu0
  %v2743 = vadd.f32 0.0, %v2742
  %v2744 = vpop.f32.mrb[0].mxu0
  %v2745 = vpop.f32.mrb[0].mxu0
  %v2746 = vadd.f32 0.0, %v2745
  %v2747 = vpop.f32.mrb[0].mxu0
  %2748 = vmatprep.mubr.bf16.mxu0 0
  %2749 = vmatmul.mubr.bf16.gmra.mrb[0].mxu0 %v2350
  %v2750 = vpop.f32.mrb[0].mxu0
  %v2751 = vadd.f32 0.0, %v2750
  %v2752 = vpop.f32.mrb[0].mxu0
  %v2753 = vpop.f32.mrb[0].mxu0
  %v2754 = vadd.f32 0.0, %v2753
  %v2755 = vpop.f32.mrb[0].mxu0
  %2756 = vmatprep.mubr.bf16.mxu0 0
  %2757 = vmatmul.mubr.bf16.gmra.mrb[0].mxu0 %v2353
  %v2758 = vpop.f32.mrb[0].mxu0
  %v2759 = vadd.f32 0.0, %v2758
  %v2760 = vpop.f32.mrb[0].mxu0
  %v2761 = vpop.f32.mrb[0].mxu0
  %v2762 = vadd.f32 0.0, %v2761
  %v2763 = vpop.f32.mrb[0].mxu0
  %2764 = vmatprep.mubr.bf16.mxu0 0
  %2765 = vmatmul.mubr.bf16.gmra.mrb[0].mxu0 %v2356
  %v2766 = vpop.f32.mrb[0].mxu0
  %v2767 = vadd.f32 0.0, %v2766
  %v2768 = vpop.f32.mrb[0].mxu0
  %v2769 = vpop.f32.mrb[0].mxu0
  %v2770 = vadd.f32 0.0, %v2769
  %v2771 = vpop.f32.mrb[0].mxu0
  %2772 = vmatprep.mubr.bf16.mxu0 0
  %2773 = vmatmul.mubr.bf16.gmra.mrb[0].mxu0 %v2359
  %v2774 = vpop.f32.mrb[0].mxu0
  %v2775 = vadd.f32 0.0, %v2774
  %v2776 = vpop.f32.mrb[0].mxu0
  %v2777 = vpop.f32.mrb[0].mxu0
  %v2778 = vadd.f32 0.0, %v2777
  %v2779 = vpop.f32.mrb[0].mxu0
  %2780 = vmatprep.mubr.bf16.mxu0 0
  %2781 = vmatmul.mubr.bf16.gmra.mrb[0].mxu0 %v2362
  %v2782 = vpop.f32.mrb[0].mxu0
  %v2783 = vadd.f32 0.0, %v2782
  %v2784 = vpop.f32.mrb[0].mxu0
  %v2785 = vpop.f32.mrb[0].mxu0
  %v2786 = vadd.f32 0.0, %v2785
  %v2787 = vpop.f32.mrb[0].mxu0
  %2788 = vmatprep.mubr.bf16.mxu0 0
  %2789 = vmatmul.mubr.bf16.gmra.mrb[0].mxu0 %v2365
  %v2790 = vpop.f32.mrb[0].mxu0
  %v2791 = vadd.f32 0.0, %v2790
  %v2792 = vpop.f32.mrb[0].mxu0
  %v2793 = vpop.f32.mrb[0].mxu0
  %v2794 = vadd.f32 0.0, %v2793
  %v2795 = vpop.f32.mrb[0].mxu0
  %2796 = vmatprep.mubr.bf16.mxu0 0
  %2797 = vmatmul.mubr.bf16.gmra.mrb[0].mxu0 %v2368
  %v2798 = vpop.f32.mrb[0].mxu0
  %v2799 = vadd.f32 0.0, %v2798
  %v2800 = vpop.f32.mrb[0].mxu0
  %v2801 = vpop.f32.mrb[0].mxu0
  %v2802 = vadd.f32 0.0, %v2801
  %v2803 = vpop.f32.mrb[0].mxu0
  %2804 = vmatprep.mubr.bf16.mxu0 0
  %2805 = vmatmul.mubr.bf16.gmra.mrb[0].mxu0 %v2371
  %v2806 = vpop.f32.mrb[0].mxu0
  %v2807 = vadd.f32 0.0, %v2806
  %v2808 = vpop.f32.mrb[0].mxu0
  %v2809 = vpop.f32.mrb[0].mxu0
  %v2810 = vadd.f32 0.0, %v2809
  %v2811 = vpop.f32.mrb[0].mxu0
  %2812 = vmatprep.mubr.bf16.mxu0 0
  %2813 = vmatmul.mubr.bf16.gmra.mrb[0].mxu0 %v2374
  %v2814 = vpop.f32.mrb[0].mxu0
  %v2815 = vadd.f32 0.0, %v2814
  %v2816 = vpop.f32.mrb[0].mxu0
  %v2817 = vpop.f32.mrb[0].mxu0
  %v2818 = vadd.f32 0.0, %v2817
  %v2819 = vpop.f32.mrb[0].mxu0
  %2820 = vmatprep.mubr.bf16.mxu0 0
  %2821 = vmatmul.mubr.bf16.gmra.mrb[0].mxu0 %v2377
  %v2822 = vpop.f32.mrb[0].mxu0
  %v2823 = vadd.f32 0.0, %v2822
  %v2824 = vpop.f32.mrb[0].mxu0
  %v2825 = vpop.f32.mrb[0].mxu0
  %v2826 = vadd.f32 0.0, %v2825
  %v2827 = vpop.f32.mrb[0].mxu0
  %2828 = vmatprep.mubr.bf16.mxu0 0
  %2829 = vmatmul.mubr.bf16.gmra.mrb[0].mxu0 %v2380
  %v2830 = vpop.f32.mrb[0].mxu0
  %v2831 = vadd.f32 0.0, %v2830
  %v2832 = vpop.f32.mrb[0].mxu0
  %v2833 = vpop.f32.mrb[0].mxu0
  %v2834 = vadd.f32 0.0, %v2833
  %v2835 = vpop.f32.mrb[0].mxu0
  %2836 = vmatprep.mubr.bf16.mxu0 0
  %2837 = vmatmul.mubr.bf16.gmra.mrb[0].mxu0 %v2383
  %v2838 = vpop.f32.mrb[0].mxu0
  %v2839 = vadd.f32 0.0, %v2838
  %v2840 = vpop.f32.mrb[0].mxu0
  %v2841 = vpop.f32.mrb[0].mxu0
  %v2842 = vadd.f32 0.0, %v2841
  %v2843 = vpop.f32.mrb[0].mxu0
  %2844 = vmatprep.mubr.bf16.mxu0 0
  %2845 = vmatmul.mubr.bf16.gmra.mrb[0].mxu0 %v2386
  %v2846 = vpop.f32.mrb[0].mxu0
  %v2847 = vadd.f32 0.0, %v2846
  %v2848 = vpop.f32.mrb[0].mxu0
  %v2849 = vpop.f32.mrb[0].mxu0
  %v2850 = vadd.f32 0.0, %v2849
  %v2851 = vpop.f32.mrb[0].mxu0
  %2852 = vmatprep.mubr.bf16.mxu0 0
  %2853 = vmatmul.mubr.bf16.gmra.mrb[0].mxu0 %v2389
  %v2854 = vpop.f32.mrb[0].mxu0
  %v2855 = vadd.f32 0.0, %v2854
  %v2856 = vpop.f32.mrb[0].mxu0
  %v2857 = vpop.f32.mrb[0].mxu0
  %v2858 = vadd.f32 0.0, %v2857
  %v2859 = vpop.f32.mrb[0].mxu0
  %2860 = vmatprep.mubr.bf16.mxu0 0
  %2861 = vmatmul.mubr.bf16.gmra.mrb[0].mxu0 %v2392
  %v2862 = vpop.f32.mrb[0].mxu0
  %v2863 = vadd.f32 0.0, %v2862
  %v2864 = vpop.f32.mrb[0].mxu0
  %v2865 = vpop.f32.mrb[0].mxu0
  %v2866 = vadd.f32 0.0, %v2865
  %v2867 = vpop.f32.mrb[0].mxu0
  %2868 = vmatprep.mubr.bf16.mxu0 0
  %2869 = vmatmul.mubr.bf16.gmra.mrb[0].mxu0 %v2395
  %v2870 = vpop.f32.mrb[0].mxu0
  %v2871 = vadd.f32 0.0, %v2870
  %v2872 = vpop.f32.mrb[0].mxu0
  %v2873 = vpop.f32.mrb[0].mxu0
  %v2874 = vadd.f32 0.0, %v2873
  %v2875 = vpop.f32.mrb[0].mxu0
  %2876 = vmatprep.mubr.bf16.mxu0 0
  %2877 = vmatmul.mubr.bf16.gmra.mrb[0].mxu0 %v2398
  %v2878 = vpop.f32.mrb[0].mxu0
  %v2879 = vadd.f32 0.0, %v2878
  %v2880 = vpop.f32.mrb[0].mxu0
  %v2881 = vpop.f32.mrb[0].mxu0
  %v2882 = vadd.f32 0.0, %v2881
  %v2883 = vpop.f32.mrb[0].mxu0
  %2884 = vmatprep.mubr.bf16.mxu0 0
  %2885 = vmatmul.mubr.bf16.gmra.mrb[0].mxu0 %v2401
  %v2886 = vpop.f32.mrb[0].mxu0
  %v2887 = vadd.f32 0.0, %v2886
  %v2888 = vpop.f32.mrb[0].mxu0
  %v2889 = vpop.f32.mrb[0].mxu0
  %v2890 = vadd.f32 0.0, %v2889
  %v2891 = vpop.f32.mrb[0].mxu0
  %2892 = vmatprep.mubr.bf16.mxu0 0
  %2893 = vmatmul.mubr.bf16.gmra.mrb[0].mxu0 %v2404
  %v2894 = vpop.f32.mrb[0].mxu0
  %v2895 = vadd.f32 0.0, %v2894
  %v2896 = vpop.f32.mrb[0].mxu0
  %v2897 = vpop.f32.mrb[0].mxu0
  %v2898 = vadd.f32 0.0, %v2897
  %v2899 = vpop.f32.mrb[0].mxu0
  %2900 = vmatprep.mubr.bf16.mxu0 0
  %2901 = vmatmul.mubr.bf16.gmra.mrb[0].mxu0 %v2407
  %v2902 = vpop.f32.mrb[0].mxu0
  %v2903 = vadd.f32 0.0, %v2902
  %v2904 = vpop.f32.mrb[0].mxu0
  %v2905 = vpop.f32.mrb[0].mxu0
  %v2906 = vadd.f32 0.0, %v2905
  %v2907 = vpop.f32.mrb[0].mxu0
  %2908 = vmatprep.mubr.bf16.mxu0 0
  %2909 = vmatmul.mubr.bf16.gmra.mrb[0].mxu0 %v2410
  %v2910 = vpop.f32.mrb[0].mxu0
  %v2911 = vadd.f32 0.0, %v2910
  %v2912 = vpop.f32.mrb[0].mxu0
  %v2913 = vpop.f32.mrb[0].mxu0
  %v2914 = vadd.f32 0.0, %v2913
  %v2915 = vpop.f32.mrb[0].mxu0
  %2916 = vmatprep.mubr.bf16.mxu0 0
  %2917 = vmatmul.mubr.bf16.gmra.mrb[0].mxu0 %v2413
  %v2918 = vpop.f32.mrb[0].mxu0
  %v2919 = vadd.f32 0.0, %v2918
  %v2920 = vpop.f32.mrb[0].mxu0
  %v2921 = vpop.f32.mrb[0].mxu0
  %v2922 = vadd.f32 0.0, %v2921
  %v2923 = vpop.f32.mrb[0].mxu0
  %2924 = vmatprep.mubr.bf16.mxu0 0
  %2925 = vmatmul.mubr.bf16.gmra.mrb[0].mxu0 %v2416
  %v2926 = vpop.f32.mrb[0].mxu0
  %v2927 = vadd.f32 0.0, %v2926
  %v2928 = vpop.f32.mrb[0].mxu0
  %v2929 = vpop.f32.mrb[0].mxu0
  %v2930 = vadd.f32 0.0, %v2929
  %v2931 = vpop.f32.mrb[0].mxu0
  %2932 = vmatprep.mubr.bf16.mxu0 0
  %2933 = vmatmul.mubr.bf16.gmra.mrb[0].mxu0 %v2419
  %v2934 = vpop.f32.mrb[0].mxu0
  %v2935 = vadd.f32 0.0, %v2934
  %v2936 = vpop.f32.mrb[0].mxu0
  %v2937 = vpop.f32.mrb[0].mxu0
  %v2938 = vadd.f32 0.0, %v2937
  %v2939 = vpop.f32.mrb[0].mxu0
  %2940 = vmatprep.mubr.bf16.mxu0 0
  %2941 = vmatmul.mubr.bf16.gmra.mrb[0].mxu0 %v2422
  %v2942 = vpop.f32.mrb[0].mxu0
  %v2943 = vadd.f32 0.0, %v2942
  %v2944 = vpop.f32.mrb[0].mxu0
  %v2945 = vpop.f32.mrb[0].mxu0
  %v2946 = vadd.f32 0.0, %v2945
  %v2947 = vpop.f32.mrb[0].mxu0
  %2948 = vmatprep.mubr.bf16.mxu0 0
  %2949 = vmatmul.mubr.bf16.gmra.mrb[0].mxu0 %v2425
  %v2950 = vpop.f32.mrb[0].mxu0
  %v2951 = vadd.f32 0.0, %v2950
  %v2952 = vpop.f32.mrb[0].mxu0
  %v2953 = vpop.f32.mrb[0].mxu0
  %v2954 = vadd.f32 0.0, %v2953
  %v2955 = vpop.f32.mrb[0].mxu0
  %2956 = vmatprep.mubr.bf16.mxu0 0
  %2957 = vmatmul.mubr.bf16.gmra.mrb[0].mxu0 %v2428
  %v2958 = vpop.f32.mrb[0].mxu0
  %v2959 = vadd.f32 0.0, %v2958
  %v2960 = vpop.f32.mrb[0].mxu0
  %v2961 = vpop.f32.mrb[0].mxu0
  %v2962 = vadd.f32 0.0, %v2961
  %v2963 = vpop.f32.mrb[0].mxu0
  %2964 = vmatprep.mubr.bf16.mxu0 0
  %2965 = vmatmul.mubr.bf16.gmra.mrb[0].mxu0 %v2431
  %v2966 = vpop.f32.mrb[0].mxu0
  %v2967 = vadd.f32 0.0, %v2966
  %v2968 = vpop.f32.mrb[0].mxu0
  %v2969 = vpop.f32.mrb[0].mxu0
  %v2970 = vadd.f32 0.0, %v2969
  %v2971 = vpop.f32.mrb[0].mxu0
  %2972 = vmatprep.mubr.bf16.mxu0 0
  %2973 = vmatmul.mubr.bf16.gmra.mrb[0].mxu0 %v2434
  %v2974 = vpop.f32.mrb[0].mxu0
  %v2975 = vadd.f32 0.0, %v2974
  %v2976 = vpop.f32.mrb[0].mxu0
  %v2977 = vpop.f32.mrb[0].mxu0
  %v2978 = vadd.f32 0.0, %v2977
  %v2979 = vpop.f32.mrb[0].mxu0
  %2980 = vdwg.mxu0
  %v2981 = vpack.c.bf16 %v518, %v514
  %v2982 = vpack.c.bf16 %v526, %v522
  %v2983 = vpack.c.bf16 %v889, %v887
  %v2984 = vpack.c.bf16 %v893, %v891
  %v2985 = vpack.c.bf16 %v901, %v899
  %v2986 = vpack.c.bf16 %v905, %v903
  %v2987 = vpack.c.bf16 %v913, %v911
  %v2988 = vpack.c.bf16 %v917, %v915
  %v2989 = vpack.c.bf16 %v925, %v923
  %v2990 = vpack.c.bf16 %v929, %v927
  %v2991 = vpack.c.bf16 %v937, %v935
  %v2992 = vpack.c.bf16 %v941, %v939
  %v2993 = vpack.c.bf16 %v949, %v947
  %v2994 = vpack.c.bf16 %v953, %v951
  %v2995 = vpack.c.bf16 %v961, %v959
  %v2996 = vpack.c.bf16 %v965, %v963
  %v2997 = vpack.c.bf16 %v519, %v515
  %v2998 = vpack.c.bf16 %v527, %v523
  %v2999 = vpack.c.bf16 %v977, %v975
  %v3000 = vpack.c.bf16 %v981, %v979
  %v3001 = vpack.c.bf16 %v989, %v987
  %v3002 = vpack.c.bf16 %v993, %v991
  %v3003 = vpack.c.bf16 %v1001, %v999
  %v3004 = vpack.c.bf16 %v1005, %v1003
  %v3005 = vpack.c.bf16 %v1013, %v1011
  %v3006 = vpack.c.bf16 %v1017, %v1015
  %v3007 = vpack.c.bf16 %v1025, %v1023
  %v3008 = vpack.c.bf16 %v1029, %v1027
  %v3009 = vpack.c.bf16 %v1037, %v1035
  %v3010 = vpack.c.bf16 %v1041, %v1039
  %v3011 = vpack.c.bf16 %v1049, %v1047
  %v3012 = vpack.c.bf16 %v1053, %v1051
  %v3013 = vpack.c.bf16 %v520, %v516
  %v3014 = vpack.c.bf16 %v528, %v524
  %v3015 = vpack.c.bf16 %v1065, %v1063
  %v3016 = vpack.c.bf16 %v1069, %v1067
  %v3017 = vpack.c.bf16 %v1077, %v1075
  %v3018 = vpack.c.bf16 %v1081, %v1079
  %v3019 = vpack.c.bf16 %v1089, %v1087
  %v3020 = vpack.c.bf16 %v1093, %v1091
  %v3021 = vpack.c.bf16 %v1101, %v1099
  %v3022 = vpack.c.bf16 %v1105, %v1103
  %v3023 = vpack.c.bf16 %v1113, %v1111
  %v3024 = vpack.c.bf16 %v1117, %v1115
  %v3025 = vpack.c.bf16 %v1125, %v1123
  %v3026 = vpack.c.bf16 %v1129, %v1127
  %v3027 = vpack.c.bf16 %v1137, %v1135
  %v3028 = vpack.c.bf16 %v1141, %v1139
  %v3029 = vpack.c.bf16 %v521, %v517
  %v3030 = vpack.c.bf16 %v529, %v525
  %v3031 = vpack.c.bf16 %v1153, %v1151
  %v3032 = vpack.c.bf16 %v1157, %v1155
  %v3033 = vpack.c.bf16 %v1165, %v1163
  %v3034 = vpack.c.bf16 %v1169, %v1167
  %v3035 = vpack.c.bf16 %v1177, %v1175
  %v3036 = vpack.c.bf16 %v1181, %v1179
  %v3037 = vpack.c.bf16 %v1189, %v1187
  %v3038 = vpack.c.bf16 %v1193, %v1191
  %v3039 = vpack.c.bf16 %v1201, %v1199
  %v3040 = vpack.c.bf16 %v1205, %v1203
  %v3041 = vpack.c.bf16 %v1213, %v1211
  %v3042 = vpack.c.bf16 %v1217, %v1215
  %v3043 = vpack.c.bf16 %v1225, %v1223
  %v3044 = vpack.c.bf16 %v1229, %v1227
  %s3045 = scalar_lea.vmem %s4, 16
  %v3046 = vld [vmem:[%s3045] sm:$0xf]
  %v3047 = vld [vmem:[%s3045 + $0x4] sm:$0xf]
  %v3050 = vunpack.c.l.b16 %v3046
  %v3051 = vunpack.c.l.b16 %v3047
  %v3052 = vpack.c.b16 %v3051, %v3050
  %v3055 = vsel %vm123, %v2981, 0
  %v3058 = vsel %vm123, %v2982, 0
  %v3061 = vsel %vm123, %v2983, 0
  %v3064 = vsel %vm123, %v2984, 0
  %v3067 = vsel %vm123, %v2985, 0
  %v3070 = vsel %vm123, %v2986, 0
  %v3073 = vsel %vm123, %v2987, 0
  %v3076 = vsel %vm123, %v2988, 0
  %v3079 = vsel %vm123, %v2989, 0
  %v3082 = vsel %vm123, %v2990, 0
  %v3085 = vsel %vm123, %v2991, 0
  %v3088 = vsel %vm123, %v2992, 0
  %v3091 = vsel %vm123, %v2993, 0
  %v3094 = vsel %vm123, %v2994, 0
  %v3097 = vsel %vm123, %v2995, 0
  %v3100 = vsel %vm123, %v2996, 0
  %v3103 = vsel %vm123, %v2997, 0
  %v3106 = vsel %vm123, %v2998, 0
  %v3109 = vsel %vm123, %v2999, 0
  %v3112 = vsel %vm123, %v3000, 0
  %v3115 = vsel %vm123, %v3001, 0
  %v3118 = vsel %vm123, %v3002, 0
  %v3121 = vsel %vm123, %v3003, 0
  %v3124 = vsel %vm123, %v3004, 0
  %v3127 = vsel %vm123, %v3005, 0
  %v3130 = vsel %vm123, %v3006, 0
  %v3133 = vsel %vm123, %v3007, 0
  %v3136 = vsel %vm123, %v3008, 0
  %v3139 = vsel %vm123, %v3009, 0
  %v3142 = vsel %vm123, %v3010, 0
  %v3145 = vsel %vm123, %v3011, 0
  %v3148 = vsel %vm123, %v3012, 0
  %v3151 = vsel %vm123, %v3013, 0
  %v3154 = vsel %vm123, %v3014, 0
  %v3157 = vsel %vm123, %v3015, 0
  %v3160 = vsel %vm123, %v3016, 0
  %v3163 = vsel %vm123, %v3017, 0
  %v3166 = vsel %vm123, %v3018, 0
  %v3169 = vsel %vm123, %v3019, 0
  %v3172 = vsel %vm123, %v3020, 0
  %v3175 = vsel %vm123, %v3021, 0
  %v3178 = vsel %vm123, %v3022, 0
  %v3181 = vsel %vm123, %v3023, 0
  %v3184 = vsel %vm123, %v3024, 0
  %v3187 = vsel %vm123, %v3025, 0
  %v3190 = vsel %vm123, %v3026, 0
  %v3193 = vsel %vm123, %v3027, 0
  %v3196 = vsel %vm123, %v3028, 0
  %v3199 = vsel %vm123, %v3029, 0
  %v3202 = vsel %vm123, %v3030, 0
  %v3205 = vsel %vm123, %v3031, 0
  %v3208 = vsel %vm123, %v3032, 0
  %v3211 = vsel %vm123, %v3033, 0
  %v3214 = vsel %vm123, %v3034, 0
  %v3217 = vsel %vm123, %v3035, 0
  %v3220 = vsel %vm123, %v3036, 0
  %v3223 = vsel %vm123, %v3037, 0
  %v3226 = vsel %vm123, %v3038, 0
  %v3229 = vsel %vm123, %v3039, 0
  %v3232 = vsel %vm123, %v3040, 0
  %v3235 = vsel %vm123, %v3041, 0
  %v3238 = vsel %vm123, %v3042, 0
  %v3241 = vsel %vm123, %v3043, 0
  %v3244 = vsel %vm123, %v3044, 0
  %3246 = vmatprep.subr.bf16.mxu0 0
  %3247 = vmatpush1.bf16.msra.mxu0 %v3052
  %3248 = vmatprep.subr.bf16.mxu0 0
  %3249 = vmatpush1.bf16.msra.mxu0 0
  %3250 = vmatprep.subr.bf16.mxu0 0
  %3251 = vmatpush1.bf16.msra.mxu0 0
  %3252 = vmatprep.subr.bf16.mxu0 0
  %3253 = vmatpush1.bf16.msra.mxu0 0
  %3254 = vmatprep.subr.bf16.mxu0 0
  %3255 = vmatpush1.bf16.msra.mxu0 0
  %3256 = vmatprep.subr.bf16.mxu0 0
  %3257 = vmatpush1.bf16.msra.mxu0 0
  %3258 = vmatprep.subr.bf16.mxu0 0
  %3259 = vmatpush1.bf16.msra.mxu0 0
  %3260 = vmatprep.subr.bf16.mxu0 0
  %3261 = vmatpush1.bf16.msra.mxu0 0
  %3262 = vmatprep.subr.bf16.mxu0 0
  %3263 = vmatpush1.bf16.msra.mxu0 0
  %3264 = vmatprep.subr.bf16.mxu0 0
  %3265 = vmatpush1.bf16.msra.mxu0 0
  %3266 = vmatprep.subr.bf16.mxu0 0
  %3267 = vmatpush1.bf16.msra.mxu0 0
  %3268 = vmatprep.subr.bf16.mxu0 0
  %3269 = vmatpush1.bf16.msra.mxu0 0
  %3270 = vmatprep.subr.bf16.mxu0 0
  %3271 = vmatpush1.bf16.msra.mxu0 0
  %3272 = vmatprep.subr.bf16.mxu0 0
  %3273 = vmatpush1.bf16.msra.mxu0 0
  %3274 = vmatprep.subr.bf16.mxu0 0
  %3275 = vmatpush1.bf16.msra.mxu0 0
  %3276 = vmatprep.subr.bf16.mxu0 0
  %3277 = vmatpush1.bf16.msra.mxu0 0
  %3278 = vmatprep.mubr.bf16.mxu0 0
  %3279 = vmatmul.mubr.bf16.gmra.mrb[0].mxu0 %v3055
  %v3280 = vpop.f32.mrb[0].mxu0
  %v3281 = vadd.f32 0.0, %v3280
  %v3282 = vpop.f32.mrb[0].mxu0
  %v3283 = vpop.f32.mrb[0].mxu0
  %v3284 = vadd.f32 0.0, %v3283
  %v3285 = vpop.f32.mrb[0].mxu0
  %3286 = vmatprep.mubr.bf16.mxu0 0
  %3287 = vmatmul.mubr.bf16.gmra.mrb[0].mxu0 %v3058
  %v3288 = vpop.f32.mrb[0].mxu0
  %v3289 = vadd.f32 0.0, %v3288
  %v3290 = vpop.f32.mrb[0].mxu0
  %v3291 = vpop.f32.mrb[0].mxu0
  %v3292 = vadd.f32 0.0, %v3291
  %v3293 = vpop.f32.mrb[0].mxu0
  %3294 = vmatprep.mubr.bf16.mxu0 0
  %3295 = vmatmul.mubr.bf16.gmra.mrb[0].mxu0 %v3061
  %v3296 = vpop.f32.mrb[0].mxu0
  %v3297 = vadd.f32 0.0, %v3296
  %v3298 = vpop.f32.mrb[0].mxu0
  %v3299 = vpop.f32.mrb[0].mxu0
  %v3300 = vadd.f32 0.0, %v3299
  %v3301 = vpop.f32.mrb[0].mxu0
  %3302 = vmatprep.mubr.bf16.mxu0 0
  %3303 = vmatmul.mubr.bf16.gmra.mrb[0].mxu0 %v3064
  %v3304 = vpop.f32.mrb[0].mxu0
  %v3305 = vadd.f32 0.0, %v3304
  %v3306 = vpop.f32.mrb[0].mxu0
  %v3307 = vpop.f32.mrb[0].mxu0
  %v3308 = vadd.f32 0.0, %v3307
  %v3309 = vpop.f32.mrb[0].mxu0
  %3310 = vmatprep.mubr.bf16.mxu0 0
  %3311 = vmatmul.mubr.bf16.gmra.mrb[0].mxu0 %v3067
  %v3312 = vpop.f32.mrb[0].mxu0
  %v3313 = vadd.f32 0.0, %v3312
  %v3314 = vpop.f32.mrb[0].mxu0
  %v3315 = vpop.f32.mrb[0].mxu0
  %v3316 = vadd.f32 0.0, %v3315
  %v3317 = vpop.f32.mrb[0].mxu0
  %3318 = vmatprep.mubr.bf16.mxu0 0
  %3319 = vmatmul.mubr.bf16.gmra.mrb[0].mxu0 %v3070
  %v3320 = vpop.f32.mrb[0].mxu0
  %v3321 = vadd.f32 0.0, %v3320
  %v3322 = vpop.f32.mrb[0].mxu0
  %v3323 = vpop.f32.mrb[0].mxu0
  %v3324 = vadd.f32 0.0, %v3323
  %v3325 = vpop.f32.mrb[0].mxu0
  %3326 = vmatprep.mubr.bf16.mxu0 0
  %3327 = vmatmul.mubr.bf16.gmra.mrb[0].mxu0 %v3073
  %v3328 = vpop.f32.mrb[0].mxu0
  %v3329 = vadd.f32 0.0, %v3328
  %v3330 = vpop.f32.mrb[0].mxu0
  %v3331 = vpop.f32.mrb[0].mxu0
  %v3332 = vadd.f32 0.0, %v3331
  %v3333 = vpop.f32.mrb[0].mxu0
  %3334 = vmatprep.mubr.bf16.mxu0 0
  %3335 = vmatmul.mubr.bf16.gmra.mrb[0].mxu0 %v3076
  %v3336 = vpop.f32.mrb[0].mxu0
  %v3337 = vadd.f32 0.0, %v3336
  %v3338 = vpop.f32.mrb[0].mxu0
  %v3339 = vpop.f32.mrb[0].mxu0
  %v3340 = vadd.f32 0.0, %v3339
  %v3341 = vpop.f32.mrb[0].mxu0
  %3342 = vmatprep.mubr.bf16.mxu0 0
  %3343 = vmatmul.mubr.bf16.gmra.mrb[0].mxu0 %v3079
  %v3344 = vpop.f32.mrb[0].mxu0
  %v3345 = vadd.f32 0.0, %v3344
  %v3346 = vpop.f32.mrb[0].mxu0
  %v3347 = vpop.f32.mrb[0].mxu0
  %v3348 = vadd.f32 0.0, %v3347
  %v3349 = vpop.f32.mrb[0].mxu0
  %3350 = vmatprep.mubr.bf16.mxu0 0
  %3351 = vmatmul.mubr.bf16.gmra.mrb[0].mxu0 %v3082
  %v3352 = vpop.f32.mrb[0].mxu0
  %v3353 = vadd.f32 0.0, %v3352
  %v3354 = vpop.f32.mrb[0].mxu0
  %v3355 = vpop.f32.mrb[0].mxu0
  %v3356 = vadd.f32 0.0, %v3355
  %v3357 = vpop.f32.mrb[0].mxu0
  %3358 = vmatprep.mubr.bf16.mxu0 0
  %3359 = vmatmul.mubr.bf16.gmra.mrb[0].mxu0 %v3085
  %v3360 = vpop.f32.mrb[0].mxu0
  %v3361 = vadd.f32 0.0, %v3360
  %v3362 = vpop.f32.mrb[0].mxu0
  %v3363 = vpop.f32.mrb[0].mxu0
  %v3364 = vadd.f32 0.0, %v3363
  %v3365 = vpop.f32.mrb[0].mxu0
  %3366 = vmatprep.mubr.bf16.mxu0 0
  %3367 = vmatmul.mubr.bf16.gmra.mrb[0].mxu0 %v3088
  %v3368 = vpop.f32.mrb[0].mxu0
  %v3369 = vadd.f32 0.0, %v3368
  %v3370 = vpop.f32.mrb[0].mxu0
  %v3371 = vpop.f32.mrb[0].mxu0
  %v3372 = vadd.f32 0.0, %v3371
  %v3373 = vpop.f32.mrb[0].mxu0
  %3374 = vmatprep.mubr.bf16.mxu0 0
  %3375 = vmatmul.mubr.bf16.gmra.mrb[0].mxu0 %v3091
  %v3376 = vpop.f32.mrb[0].mxu0
  %v3377 = vadd.f32 0.0, %v3376
  %v3378 = vpop.f32.mrb[0].mxu0
  %v3379 = vpop.f32.mrb[0].mxu0
  %v3380 = vadd.f32 0.0, %v3379
  %v3381 = vpop.f32.mrb[0].mxu0
  %3382 = vmatprep.mubr.bf16.mxu0 0
  %3383 = vmatmul.mubr.bf16.gmra.mrb[0].mxu0 %v3094
  %v3384 = vpop.f32.mrb[0].mxu0
  %v3385 = vadd.f32 0.0, %v3384
  %v3386 = vpop.f32.mrb[0].mxu0
  %v3387 = vpop.f32.mrb[0].mxu0
  %v3388 = vadd.f32 0.0, %v3387
  %v3389 = vpop.f32.mrb[0].mxu0
  %3390 = vmatprep.mubr.bf16.mxu0 0
  %3391 = vmatmul.mubr.bf16.gmra.mrb[0].mxu0 %v3097
  %v3392 = vpop.f32.mrb[0].mxu0
  %v3393 = vadd.f32 0.0, %v3392
  %v3394 = vpop.f32.mrb[0].mxu0
  %v3395 = vpop.f32.mrb[0].mxu0
  %v3396 = vadd.f32 0.0, %v3395
  %v3397 = vpop.f32.mrb[0].mxu0
  %3398 = vmatprep.mubr.bf16.mxu0 0
  %3399 = vmatmul.mubr.bf16.gmra.mrb[0].mxu0 %v3100
  %v3400 = vpop.f32.mrb[0].mxu0
  %v3401 = vadd.f32 0.0, %v3400
  %v3402 = vpop.f32.mrb[0].mxu0
  %v3403 = vpop.f32.mrb[0].mxu0
  %v3404 = vadd.f32 0.0, %v3403
  %v3405 = vpop.f32.mrb[0].mxu0
  %3406 = vmatprep.mubr.bf16.mxu0 0
  %3407 = vmatmul.mubr.bf16.gmra.mrb[0].mxu0 %v3103
  %v3408 = vpop.f32.mrb[0].mxu0
  %v3409 = vadd.f32 0.0, %v3408
  %v3410 = vpop.f32.mrb[0].mxu0
  %v3411 = vpop.f32.mrb[0].mxu0
  %v3412 = vadd.f32 0.0, %v3411
  %v3413 = vpop.f32.mrb[0].mxu0
  %3414 = vmatprep.mubr.bf16.mxu0 0
  %3415 = vmatmul.mubr.bf16.gmra.mrb[0].mxu0 %v3106
  %v3416 = vpop.f32.mrb[0].mxu0
  %v3417 = vadd.f32 0.0, %v3416
  %v3418 = vpop.f32.mrb[0].mxu0
  %v3419 = vpop.f32.mrb[0].mxu0
  %v3420 = vadd.f32 0.0, %v3419
  %v3421 = vpop.f32.mrb[0].mxu0
  %3422 = vmatprep.mubr.bf16.mxu0 0
  %3423 = vmatmul.mubr.bf16.gmra.mrb[0].mxu0 %v3109
  %v3424 = vpop.f32.mrb[0].mxu0
  %v3425 = vadd.f32 0.0, %v3424
  %v3426 = vpop.f32.mrb[0].mxu0
  %v3427 = vpop.f32.mrb[0].mxu0
  %v3428 = vadd.f32 0.0, %v3427
  %v3429 = vpop.f32.mrb[0].mxu0
  %3430 = vmatprep.mubr.bf16.mxu0 0
  %3431 = vmatmul.mubr.bf16.gmra.mrb[0].mxu0 %v3112
  %v3432 = vpop.f32.mrb[0].mxu0
  %v3433 = vadd.f32 0.0, %v3432
  %v3434 = vpop.f32.mrb[0].mxu0
  %v3435 = vpop.f32.mrb[0].mxu0
  %v3436 = vadd.f32 0.0, %v3435
  %v3437 = vpop.f32.mrb[0].mxu0
  %3438 = vmatprep.mubr.bf16.mxu0 0
  %3439 = vmatmul.mubr.bf16.gmra.mrb[0].mxu0 %v3115
  %v3440 = vpop.f32.mrb[0].mxu0
  %v3441 = vadd.f32 0.0, %v3440
  %v3442 = vpop.f32.mrb[0].mxu0
  %v3443 = vpop.f32.mrb[0].mxu0
  %v3444 = vadd.f32 0.0, %v3443
  %v3445 = vpop.f32.mrb[0].mxu0
  %3446 = vmatprep.mubr.bf16.mxu0 0
  %3447 = vmatmul.mubr.bf16.gmra.mrb[0].mxu0 %v3118
  %v3448 = vpop.f32.mrb[0].mxu0
  %v3449 = vadd.f32 0.0, %v3448
  %v3450 = vpop.f32.mrb[0].mxu0
  %v3451 = vpop.f32.mrb[0].mxu0
  %v3452 = vadd.f32 0.0, %v3451
  %v3453 = vpop.f32.mrb[0].mxu0
  %3454 = vmatprep.mubr.bf16.mxu0 0
  %3455 = vmatmul.mubr.bf16.gmra.mrb[0].mxu0 %v3121
  %v3456 = vpop.f32.mrb[0].mxu0
  %v3457 = vadd.f32 0.0, %v3456
  %v3458 = vpop.f32.mrb[0].mxu0
  %v3459 = vpop.f32.mrb[0].mxu0
  %v3460 = vadd.f32 0.0, %v3459
  %v3461 = vpop.f32.mrb[0].mxu0
  %3462 = vmatprep.mubr.bf16.mxu0 0
  %3463 = vmatmul.mubr.bf16.gmra.mrb[0].mxu0 %v3124
  %v3464 = vpop.f32.mrb[0].mxu0
  %v3465 = vadd.f32 0.0, %v3464
  %v3466 = vpop.f32.mrb[0].mxu0
  %v3467 = vpop.f32.mrb[0].mxu0
  %v3468 = vadd.f32 0.0, %v3467
  %v3469 = vpop.f32.mrb[0].mxu0
  %3470 = vmatprep.mubr.bf16.mxu0 0
  %3471 = vmatmul.mubr.bf16.gmra.mrb[0].mxu0 %v3127
  %v3472 = vpop.f32.mrb[0].mxu0
  %v3473 = vadd.f32 0.0, %v3472
  %v3474 = vpop.f32.mrb[0].mxu0
  %v3475 = vpop.f32.mrb[0].mxu0
  %v3476 = vadd.f32 0.0, %v3475
  %v3477 = vpop.f32.mrb[0].mxu0
  %3478 = vmatprep.mubr.bf16.mxu0 0
  %3479 = vmatmul.mubr.bf16.gmra.mrb[0].mxu0 %v3130
  %v3480 = vpop.f32.mrb[0].mxu0
  %v3481 = vadd.f32 0.0, %v3480
  %v3482 = vpop.f32.mrb[0].mxu0
  %v3483 = vpop.f32.mrb[0].mxu0
  %v3484 = vadd.f32 0.0, %v3483
  %v3485 = vpop.f32.mrb[0].mxu0
  %3486 = vmatprep.mubr.bf16.mxu0 0
  %3487 = vmatmul.mubr.bf16.gmra.mrb[0].mxu0 %v3133
  %v3488 = vpop.f32.mrb[0].mxu0
  %v3489 = vadd.f32 0.0, %v3488
  %v3490 = vpop.f32.mrb[0].mxu0
  %v3491 = vpop.f32.mrb[0].mxu0
  %v3492 = vadd.f32 0.0, %v3491
  %v3493 = vpop.f32.mrb[0].mxu0
  %3494 = vmatprep.mubr.bf16.mxu0 0
  %3495 = vmatmul.mubr.bf16.gmra.mrb[0].mxu0 %v3136
  %v3496 = vpop.f32.mrb[0].mxu0
  %v3497 = vadd.f32 0.0, %v3496
  %v3498 = vpop.f32.mrb[0].mxu0
  %v3499 = vpop.f32.mrb[0].mxu0
  %v3500 = vadd.f32 0.0, %v3499
  %v3501 = vpop.f32.mrb[0].mxu0
  %3502 = vmatprep.mubr.bf16.mxu0 0
  %3503 = vmatmul.mubr.bf16.gmra.mrb[0].mxu0 %v3139
  %v3504 = vpop.f32.mrb[0].mxu0
  %v3505 = vadd.f32 0.0, %v3504
  %v3506 = vpop.f32.mrb[0].mxu0
  %v3507 = vpop.f32.mrb[0].mxu0
  %v3508 = vadd.f32 0.0, %v3507
  %v3509 = vpop.f32.mrb[0].mxu0
  %3510 = vmatprep.mubr.bf16.mxu0 0
  %3511 = vmatmul.mubr.bf16.gmra.mrb[0].mxu0 %v3142
  %v3512 = vpop.f32.mrb[0].mxu0
  %v3513 = vadd.f32 0.0, %v3512
  %v3514 = vpop.f32.mrb[0].mxu0
  %v3515 = vpop.f32.mrb[0].mxu0
  %v3516 = vadd.f32 0.0, %v3515
  %v3517 = vpop.f32.mrb[0].mxu0
  %3518 = vmatprep.mubr.bf16.mxu0 0
  %3519 = vmatmul.mubr.bf16.gmra.mrb[0].mxu0 %v3145
  %v3520 = vpop.f32.mrb[0].mxu0
  %v3521 = vadd.f32 0.0, %v3520
  %v3522 = vpop.f32.mrb[0].mxu0
  %v3523 = vpop.f32.mrb[0].mxu0
  %v3524 = vadd.f32 0.0, %v3523
  %v3525 = vpop.f32.mrb[0].mxu0
  %3526 = vmatprep.mubr.bf16.mxu0 0
  %3527 = vmatmul.mubr.bf16.gmra.mrb[0].mxu0 %v3148
  %v3528 = vpop.f32.mrb[0].mxu0
  %v3529 = vadd.f32 0.0, %v3528
  %v3530 = vpop.f32.mrb[0].mxu0
  %v3531 = vpop.f32.mrb[0].mxu0
  %v3532 = vadd.f32 0.0, %v3531
  %v3533 = vpop.f32.mrb[0].mxu0
  %3534 = vmatprep.mubr.bf16.mxu0 0
  %3535 = vmatmul.mubr.bf16.gmra.mrb[0].mxu0 %v3151
  %v3536 = vpop.f32.mrb[0].mxu0
  %v3537 = vadd.f32 0.0, %v3536
  %v3538 = vpop.f32.mrb[0].mxu0
  %v3539 = vpop.f32.mrb[0].mxu0
  %v3540 = vadd.f32 0.0, %v3539
  %v3541 = vpop.f32.mrb[0].mxu0
  %3542 = vmatprep.mubr.bf16.mxu0 0
  %3543 = vmatmul.mubr.bf16.gmra.mrb[0].mxu0 %v3154
  %v3544 = vpop.f32.mrb[0].mxu0
  %v3545 = vadd.f32 0.0, %v3544
  %v3546 = vpop.f32.mrb[0].mxu0
  %v3547 = vpop.f32.mrb[0].mxu0
  %v3548 = vadd.f32 0.0, %v3547
  %v3549 = vpop.f32.mrb[0].mxu0
  %3550 = vmatprep.mubr.bf16.mxu0 0
  %3551 = vmatmul.mubr.bf16.gmra.mrb[0].mxu0 %v3157
  %v3552 = vpop.f32.mrb[0].mxu0
  %v3553 = vadd.f32 0.0, %v3552
  %v3554 = vpop.f32.mrb[0].mxu0
  %v3555 = vpop.f32.mrb[0].mxu0
  %v3556 = vadd.f32 0.0, %v3555
  %v3557 = vpop.f32.mrb[0].mxu0
  %3558 = vmatprep.mubr.bf16.mxu0 0
  %3559 = vmatmul.mubr.bf16.gmra.mrb[0].mxu0 %v3160
  %v3560 = vpop.f32.mrb[0].mxu0
  %v3561 = vadd.f32 0.0, %v3560
  %v3562 = vpop.f32.mrb[0].mxu0
  %v3563 = vpop.f32.mrb[0].mxu0
  %v3564 = vadd.f32 0.0, %v3563
  %v3565 = vpop.f32.mrb[0].mxu0
  %3566 = vmatprep.mubr.bf16.mxu0 0
  %3567 = vmatmul.mubr.bf16.gmra.mrb[0].mxu0 %v3163
  %v3568 = vpop.f32.mrb[0].mxu0
  %v3569 = vadd.f32 0.0, %v3568
  %v3570 = vpop.f32.mrb[0].mxu0
  %v3571 = vpop.f32.mrb[0].mxu0
  %v3572 = vadd.f32 0.0, %v3571
  %v3573 = vpop.f32.mrb[0].mxu0
  %3574 = vmatprep.mubr.bf16.mxu0 0
  %3575 = vmatmul.mubr.bf16.gmra.mrb[0].mxu0 %v3166
  %v3576 = vpop.f32.mrb[0].mxu0
  %v3577 = vadd.f32 0.0, %v3576
  %v3578 = vpop.f32.mrb[0].mxu0
  %v3579 = vpop.f32.mrb[0].mxu0
  %v3580 = vadd.f32 0.0, %v3579
  %v3581 = vpop.f32.mrb[0].mxu0
  %3582 = vmatprep.mubr.bf16.mxu0 0
  %3583 = vmatmul.mubr.bf16.gmra.mrb[0].mxu0 %v3169
  %v3584 = vpop.f32.mrb[0].mxu0
  %v3585 = vadd.f32 0.0, %v3584
  %v3586 = vpop.f32.mrb[0].mxu0
  %v3587 = vpop.f32.mrb[0].mxu0
  %v3588 = vadd.f32 0.0, %v3587
  %v3589 = vpop.f32.mrb[0].mxu0
  %3590 = vmatprep.mubr.bf16.mxu0 0
  %3591 = vmatmul.mubr.bf16.gmra.mrb[0].mxu0 %v3172
  %v3592 = vpop.f32.mrb[0].mxu0
  %v3593 = vadd.f32 0.0, %v3592
  %v3594 = vpop.f32.mrb[0].mxu0
  %v3595 = vpop.f32.mrb[0].mxu0
  %v3596 = vadd.f32 0.0, %v3595
  %v3597 = vpop.f32.mrb[0].mxu0
  %3598 = vmatprep.mubr.bf16.mxu0 0
  %3599 = vmatmul.mubr.bf16.gmra.mrb[0].mxu0 %v3175
  %v3600 = vpop.f32.mrb[0].mxu0
  %v3601 = vadd.f32 0.0, %v3600
  %v3602 = vpop.f32.mrb[0].mxu0
  %v3603 = vpop.f32.mrb[0].mxu0
  %v3604 = vadd.f32 0.0, %v3603
  %v3605 = vpop.f32.mrb[0].mxu0
  %3606 = vmatprep.mubr.bf16.mxu0 0
  %3607 = vmatmul.mubr.bf16.gmra.mrb[0].mxu0 %v3178
  %v3608 = vpop.f32.mrb[0].mxu0
  %v3609 = vadd.f32 0.0, %v3608
  %v3610 = vpop.f32.mrb[0].mxu0
  %v3611 = vpop.f32.mrb[0].mxu0
  %v3612 = vadd.f32 0.0, %v3611
  %v3613 = vpop.f32.mrb[0].mxu0
  %3614 = vmatprep.mubr.bf16.mxu0 0
  %3615 = vmatmul.mubr.bf16.gmra.mrb[0].mxu0 %v3181
  %v3616 = vpop.f32.mrb[0].mxu0
  %v3617 = vadd.f32 0.0, %v3616
  %v3618 = vpop.f32.mrb[0].mxu0
  %v3619 = vpop.f32.mrb[0].mxu0
  %v3620 = vadd.f32 0.0, %v3619
  %v3621 = vpop.f32.mrb[0].mxu0
  %3622 = vmatprep.mubr.bf16.mxu0 0
  %3623 = vmatmul.mubr.bf16.gmra.mrb[0].mxu0 %v3184
  %v3624 = vpop.f32.mrb[0].mxu0
  %v3625 = vadd.f32 0.0, %v3624
  %v3626 = vpop.f32.mrb[0].mxu0
  %v3627 = vpop.f32.mrb[0].mxu0
  %v3628 = vadd.f32 0.0, %v3627
  %v3629 = vpop.f32.mrb[0].mxu0
  %3630 = vmatprep.mubr.bf16.mxu0 0
  %3631 = vmatmul.mubr.bf16.gmra.mrb[0].mxu0 %v3187
  %v3632 = vpop.f32.mrb[0].mxu0
  %v3633 = vadd.f32 0.0, %v3632
  %v3634 = vpop.f32.mrb[0].mxu0
  %v3635 = vpop.f32.mrb[0].mxu0
  %v3636 = vadd.f32 0.0, %v3635
  %v3637 = vpop.f32.mrb[0].mxu0
  %3638 = vmatprep.mubr.bf16.mxu0 0
  %3639 = vmatmul.mubr.bf16.gmra.mrb[0].mxu0 %v3190
  %v3640 = vpop.f32.mrb[0].mxu0
  %v3641 = vadd.f32 0.0, %v3640
  %v3642 = vpop.f32.mrb[0].mxu0
  %v3643 = vpop.f32.mrb[0].mxu0
  %v3644 = vadd.f32 0.0, %v3643
  %v3645 = vpop.f32.mrb[0].mxu0
  %3646 = vmatprep.mubr.bf16.mxu0 0
  %3647 = vmatmul.mubr.bf16.gmra.mrb[0].mxu0 %v3193
  %v3648 = vpop.f32.mrb[0].mxu0
  %v3649 = vadd.f32 0.0, %v3648
  %v3650 = vpop.f32.mrb[0].mxu0
  %v3651 = vpop.f32.mrb[0].mxu0
  %v3652 = vadd.f32 0.0, %v3651
  %v3653 = vpop.f32.mrb[0].mxu0
  %3654 = vmatprep.mubr.bf16.mxu0 0
  %3655 = vmatmul.mubr.bf16.gmra.mrb[0].mxu0 %v3196
  %v3656 = vpop.f32.mrb[0].mxu0
  %v3657 = vadd.f32 0.0, %v3656
  %v3658 = vpop.f32.mrb[0].mxu0
  %v3659 = vpop.f32.mrb[0].mxu0
  %v3660 = vadd.f32 0.0, %v3659
  %v3661 = vpop.f32.mrb[0].mxu0
  %3662 = vmatprep.mubr.bf16.mxu0 0
  %3663 = vmatmul.mubr.bf16.gmra.mrb[0].mxu0 %v3199
  %v3664 = vpop.f32.mrb[0].mxu0
  %v3665 = vadd.f32 0.0, %v3664
  %v3666 = vpop.f32.mrb[0].mxu0
  %v3667 = vpop.f32.mrb[0].mxu0
  %v3668 = vadd.f32 0.0, %v3667
  %v3669 = vpop.f32.mrb[0].mxu0
  %3670 = vmatprep.mubr.bf16.mxu0 0
  %3671 = vmatmul.mubr.bf16.gmra.mrb[0].mxu0 %v3202
  %v3672 = vpop.f32.mrb[0].mxu0
  %v3673 = vadd.f32 0.0, %v3672
  %v3674 = vpop.f32.mrb[0].mxu0
  %v3675 = vpop.f32.mrb[0].mxu0
  %v3676 = vadd.f32 0.0, %v3675
  %v3677 = vpop.f32.mrb[0].mxu0
  %3678 = vmatprep.mubr.bf16.mxu0 0
  %3679 = vmatmul.mubr.bf16.gmra.mrb[0].mxu0 %v3205
  %v3680 = vpop.f32.mrb[0].mxu0
  %v3681 = vadd.f32 0.0, %v3680
  %v3682 = vpop.f32.mrb[0].mxu0
  %v3683 = vpop.f32.mrb[0].mxu0
  %v3684 = vadd.f32 0.0, %v3683
  %v3685 = vpop.f32.mrb[0].mxu0
  %3686 = vmatprep.mubr.bf16.mxu0 0
  %3687 = vmatmul.mubr.bf16.gmra.mrb[0].mxu0 %v3208
  %v3688 = vpop.f32.mrb[0].mxu0
  %v3689 = vadd.f32 0.0, %v3688
  %v3690 = vpop.f32.mrb[0].mxu0
  %v3691 = vpop.f32.mrb[0].mxu0
  %v3692 = vadd.f32 0.0, %v3691
  %v3693 = vpop.f32.mrb[0].mxu0
  %3694 = vmatprep.mubr.bf16.mxu0 0
  %3695 = vmatmul.mubr.bf16.gmra.mrb[0].mxu0 %v3211
  %v3696 = vpop.f32.mrb[0].mxu0
  %v3697 = vadd.f32 0.0, %v3696
  %v3698 = vpop.f32.mrb[0].mxu0
  %v3699 = vpop.f32.mrb[0].mxu0
  %v3700 = vadd.f32 0.0, %v3699
  %v3701 = vpop.f32.mrb[0].mxu0
  %3702 = vmatprep.mubr.bf16.mxu0 0
  %3703 = vmatmul.mubr.bf16.gmra.mrb[0].mxu0 %v3214
  %v3704 = vpop.f32.mrb[0].mxu0
  %v3705 = vadd.f32 0.0, %v3704
  %v3706 = vpop.f32.mrb[0].mxu0
  %v3707 = vpop.f32.mrb[0].mxu0
  %v3708 = vadd.f32 0.0, %v3707
  %v3709 = vpop.f32.mrb[0].mxu0
  %3710 = vmatprep.mubr.bf16.mxu0 0
  %3711 = vmatmul.mubr.bf16.gmra.mrb[0].mxu0 %v3217
  %v3712 = vpop.f32.mrb[0].mxu0
  %v3713 = vadd.f32 0.0, %v3712
  %v3714 = vpop.f32.mrb[0].mxu0
  %v3715 = vpop.f32.mrb[0].mxu0
  %v3716 = vadd.f32 0.0, %v3715
  %v3717 = vpop.f32.mrb[0].mxu0
  %3718 = vmatprep.mubr.bf16.mxu0 0
  %3719 = vmatmul.mubr.bf16.gmra.mrb[0].mxu0 %v3220
  %v3720 = vpop.f32.mrb[0].mxu0
  %v3721 = vadd.f32 0.0, %v3720
  %v3722 = vpop.f32.mrb[0].mxu0
  %v3723 = vpop.f32.mrb[0].mxu0
  %v3724 = vadd.f32 0.0, %v3723
  %v3725 = vpop.f32.mrb[0].mxu0
  %3726 = vmatprep.mubr.bf16.mxu0 0
  %3727 = vmatmul.mubr.bf16.gmra.mrb[0].mxu0 %v3223
  %v3728 = vpop.f32.mrb[0].mxu0
  %v3729 = vadd.f32 0.0, %v3728
  %v3730 = vpop.f32.mrb[0].mxu0
  %v3731 = vpop.f32.mrb[0].mxu0
  %v3732 = vadd.f32 0.0, %v3731
  %v3733 = vpop.f32.mrb[0].mxu0
  %3734 = vmatprep.mubr.bf16.mxu0 0
  %3735 = vmatmul.mubr.bf16.gmra.mrb[0].mxu0 %v3226
  %v3736 = vpop.f32.mrb[0].mxu0
  %v3737 = vadd.f32 0.0, %v3736
  %v3738 = vpop.f32.mrb[0].mxu0
  %v3739 = vpop.f32.mrb[0].mxu0
  %v3740 = vadd.f32 0.0, %v3739
  %v3741 = vpop.f32.mrb[0].mxu0
  %3742 = vmatprep.mubr.bf16.mxu0 0
  %3743 = vmatmul.mubr.bf16.gmra.mrb[0].mxu0 %v3229
  %v3744 = vpop.f32.mrb[0].mxu0
  %v3745 = vadd.f32 0.0, %v3744
  %v3746 = vpop.f32.mrb[0].mxu0
  %v3747 = vpop.f32.mrb[0].mxu0
  %v3748 = vadd.f32 0.0, %v3747
  %v3749 = vpop.f32.mrb[0].mxu0
  %3750 = vmatprep.mubr.bf16.mxu0 0
  %3751 = vmatmul.mubr.bf16.gmra.mrb[0].mxu0 %v3232
  %v3752 = vpop.f32.mrb[0].mxu0
  %v3753 = vadd.f32 0.0, %v3752
  %v3754 = vpop.f32.mrb[0].mxu0
  %v3755 = vpop.f32.mrb[0].mxu0
  %v3756 = vadd.f32 0.0, %v3755
  %v3757 = vpop.f32.mrb[0].mxu0
  %3758 = vmatprep.mubr.bf16.mxu0 0
  %3759 = vmatmul.mubr.bf16.gmra.mrb[0].mxu0 %v3235
  %v3760 = vpop.f32.mrb[0].mxu0
  %v3761 = vadd.f32 0.0, %v3760
  %v3762 = vpop.f32.mrb[0].mxu0
  %v3763 = vpop.f32.mrb[0].mxu0
  %v3764 = vadd.f32 0.0, %v3763
  %v3765 = vpop.f32.mrb[0].mxu0
  %3766 = vmatprep.mubr.bf16.mxu0 0
  %3767 = vmatmul.mubr.bf16.gmra.mrb[0].mxu0 %v3238
  %v3768 = vpop.f32.mrb[0].mxu0
  %v3769 = vadd.f32 0.0, %v3768
  %v3770 = vpop.f32.mrb[0].mxu0
  %v3771 = vpop.f32.mrb[0].mxu0
  %v3772 = vadd.f32 0.0, %v3771
  %v3773 = vpop.f32.mrb[0].mxu0
  %3774 = vmatprep.mubr.bf16.mxu0 0
  %3775 = vmatmul.mubr.bf16.gmra.mrb[0].mxu0 %v3241
  %v3776 = vpop.f32.mrb[0].mxu0
  %v3777 = vadd.f32 0.0, %v3776
  %v3778 = vpop.f32.mrb[0].mxu0
  %v3779 = vpop.f32.mrb[0].mxu0
  %v3780 = vadd.f32 0.0, %v3779
  %v3781 = vpop.f32.mrb[0].mxu0
  %3782 = vmatprep.mubr.bf16.mxu0 0
  %3783 = vmatmul.mubr.bf16.gmra.mrb[0].mxu0 %v3244
  %v3784 = vpop.f32.mrb[0].mxu0
  %v3785 = vadd.f32 0.0, %v3784
  %v3786 = vpop.f32.mrb[0].mxu0
  %v3787 = vpop.f32.mrb[0].mxu0
  %v3788 = vadd.f32 0.0, %v3787
  %v3789 = vpop.f32.mrb[0].mxu0
  %3790 = vdwg.mxu0
  %v3791 = vsub.f32 %v1661, %v3281
  %v3792 = vsub.f32 %v1664, %v3284
  %v3793 = vsub.f32 %v1669, %v3289
  %v3794 = vsub.f32 %v1672, %v3292
  %v3795 = vsub.f32 %v1677, %v3297
  %v3796 = vsub.f32 %v1680, %v3300
  %v3797 = vsub.f32 %v1685, %v3305
  %v3798 = vsub.f32 %v1688, %v3308
  %v3799 = vsub.f32 %v1693, %v3313
  %v3800 = vsub.f32 %v1696, %v3316
  %v3801 = vsub.f32 %v1701, %v3321
  %v3802 = vsub.f32 %v1704, %v3324
  %v3803 = vsub.f32 %v1709, %v3329
  %v3804 = vsub.f32 %v1712, %v3332
  %v3805 = vsub.f32 %v1717, %v3337
  %v3806 = vsub.f32 %v1720, %v3340
  %v3807 = vsub.f32 %v1725, %v3345
  %v3808 = vsub.f32 %v1728, %v3348
  %v3809 = vsub.f32 %v1733, %v3353
  %v3810 = vsub.f32 %v1736, %v3356
  %v3811 = vsub.f32 %v1741, %v3361
  %v3812 = vsub.f32 %v1744, %v3364
  %v3813 = vsub.f32 %v1749, %v3369
  %v3814 = vsub.f32 %v1752, %v3372
  %v3815 = vsub.f32 %v1757, %v3377
  %v3816 = vsub.f32 %v1760, %v3380
  %v3817 = vsub.f32 %v1765, %v3385
  %v3818 = vsub.f32 %v1768, %v3388
  %v3819 = vsub.f32 %v1773, %v3393
  %v3820 = vsub.f32 %v1776, %v3396
  %v3821 = vsub.f32 %v1781, %v3401
  %v3822 = vsub.f32 %v1784, %v3404
  %v3823 = vsub.f32 %v1789, %v3409
  %v3824 = vsub.f32 %v1792, %v3412
  %v3825 = vsub.f32 %v1797, %v3417
  %v3826 = vsub.f32 %v1800, %v3420
  %v3827 = vsub.f32 %v1805, %v3425
  %v3828 = vsub.f32 %v1808, %v3428
  %v3829 = vsub.f32 %v1813, %v3433
  %v3830 = vsub.f32 %v1816, %v3436
  %v3831 = vsub.f32 %v1821, %v3441
  %v3832 = vsub.f32 %v1824, %v3444
  %v3833 = vsub.f32 %v1829, %v3449
  %v3834 = vsub.f32 %v1832, %v3452
  %v3835 = vsub.f32 %v1837, %v3457
  %v3836 = vsub.f32 %v1840, %v3460
  %v3837 = vsub.f32 %v1845, %v3465
  %v3838 = vsub.f32 %v1848, %v3468
  %v3839 = vsub.f32 %v1853, %v3473
  %v3840 = vsub.f32 %v1856, %v3476
  %v3841 = vsub.f32 %v1861, %v3481
  %v3842 = vsub.f32 %v1864, %v3484
  %v3843 = vsub.f32 %v1869, %v3489
  %v3844 = vsub.f32 %v1872, %v3492
  %v3845 = vsub.f32 %v1877, %v3497
  %v3846 = vsub.f32 %v1880, %v3500
  %v3847 = vsub.f32 %v1885, %v3505
  %v3848 = vsub.f32 %v1888, %v3508
  %v3849 = vsub.f32 %v1893, %v3513
  %v3850 = vsub.f32 %v1896, %v3516
  %v3851 = vsub.f32 %v1901, %v3521
  %v3852 = vsub.f32 %v1904, %v3524
  %v3853 = vsub.f32 %v1909, %v3529
  %v3854 = vsub.f32 %v1912, %v3532
  %v3855 = vsub.f32 %v1917, %v3537
  %v3856 = vsub.f32 %v1920, %v3540
  %v3857 = vsub.f32 %v1925, %v3545
  %v3858 = vsub.f32 %v1928, %v3548
  %v3859 = vsub.f32 %v1933, %v3553
  %v3860 = vsub.f32 %v1936, %v3556
  %v3861 = vsub.f32 %v1941, %v3561
  %v3862 = vsub.f32 %v1944, %v3564
  %v3863 = vsub.f32 %v1949, %v3569
  %v3864 = vsub.f32 %v1952, %v3572
  %v3865 = vsub.f32 %v1957, %v3577
  %v3866 = vsub.f32 %v1960, %v3580
  %v3867 = vsub.f32 %v1965, %v3585
  %v3868 = vsub.f32 %v1968, %v3588
  %v3869 = vsub.f32 %v1973, %v3593
  %v3870 = vsub.f32 %v1976, %v3596
  %v3871 = vsub.f32 %v1981, %v3601
  %v3872 = vsub.f32 %v1984, %v3604
  %v3873 = vsub.f32 %v1989, %v3609
  %v3874 = vsub.f32 %v1992, %v3612
  %v3875 = vsub.f32 %v1997, %v3617
  %v3876 = vsub.f32 %v2000, %v3620
  %v3877 = vsub.f32 %v2005, %v3625
  %v3878 = vsub.f32 %v2008, %v3628
  %v3879 = vsub.f32 %v2013, %v3633
  %v3880 = vsub.f32 %v2016, %v3636
  %v3881 = vsub.f32 %v2021, %v3641
  %v3882 = vsub.f32 %v2024, %v3644
  %v3883 = vsub.f32 %v2029, %v3649
  %v3884 = vsub.f32 %v2032, %v3652
  %v3885 = vsub.f32 %v2037, %v3657
  %v3886 = vsub.f32 %v2040, %v3660
  %v3887 = vsub.f32 %v2045, %v3665
  %v3888 = vsub.f32 %v2048, %v3668
  %v3889 = vsub.f32 %v2053, %v3673
  %v3890 = vsub.f32 %v2056, %v3676
  %v3891 = vsub.f32 %v2061, %v3681
  %v3892 = vsub.f32 %v2064, %v3684
  %v3893 = vsub.f32 %v2069, %v3689
  %v3894 = vsub.f32 %v2072, %v3692
  %v3895 = vsub.f32 %v2077, %v3697
  %v3896 = vsub.f32 %v2080, %v3700
  %v3897 = vsub.f32 %v2085, %v3705
  %v3898 = vsub.f32 %v2088, %v3708
  %v3899 = vsub.f32 %v2093, %v3713
  %v3900 = vsub.f32 %v2096, %v3716
  %v3901 = vsub.f32 %v2101, %v3721
  %v3902 = vsub.f32 %v2104, %v3724
  %v3903 = vsub.f32 %v2109, %v3729
  %v3904 = vsub.f32 %v2112, %v3732
  %v3905 = vsub.f32 %v2117, %v3737
  %v3906 = vsub.f32 %v2120, %v3740
  %v3907 = vsub.f32 %v2125, %v3745
  %v3908 = vsub.f32 %v2128, %v3748
  %v3909 = vsub.f32 %v2133, %v3753
  %v3910 = vsub.f32 %v2136, %v3756
  %v3911 = vsub.f32 %v2141, %v3761
  %v3912 = vsub.f32 %v2144, %v3764
  %v3913 = vsub.f32 %v2149, %v3769
  %v3914 = vsub.f32 %v2152, %v3772
  %v3915 = vsub.f32 %v2157, %v3777
  %v3916 = vsub.f32 %v2160, %v3780
  %v3917 = vsub.f32 %v2165, %v3785
  %v3918 = vsub.f32 %v2168, %v3788
  %v3919 = vadd.f32 %v1661, %v2471
  %v3920 = vadd.f32 %v1664, %v2474
  %v3921 = vadd.f32 %v1669, %v2479
  %v3922 = vadd.f32 %v1672, %v2482
  %v3923 = vadd.f32 %v1677, %v2487
  %v3924 = vadd.f32 %v1680, %v2490
  %v3925 = vadd.f32 %v1685, %v2495
  %v3926 = vadd.f32 %v1688, %v2498
  %v3927 = vadd.f32 %v1693, %v2503
  %v3928 = vadd.f32 %v1696, %v2506
  %v3929 = vadd.f32 %v1701, %v2511
  %v3930 = vadd.f32 %v1704, %v2514
  %v3931 = vadd.f32 %v1709, %v2519
  %v3932 = vadd.f32 %v1712, %v2522
  %v3933 = vadd.f32 %v1717, %v2527
  %v3934 = vadd.f32 %v1720, %v2530
  %v3935 = vadd.f32 %v1725, %v2535
  %v3936 = vadd.f32 %v1728, %v2538
  %v3937 = vadd.f32 %v1733, %v2543
  %v3938 = vadd.f32 %v1736, %v2546
  %v3939 = vadd.f32 %v1741, %v2551
  %v3940 = vadd.f32 %v1744, %v2554
  %v3941 = vadd.f32 %v1749, %v2559
  %v3942 = vadd.f32 %v1752, %v2562
  %v3943 = vadd.f32 %v1757, %v2567
  %v3944 = vadd.f32 %v1760, %v2570
  %v3945 = vadd.f32 %v1765, %v2575
  %v3946 = vadd.f32 %v1768, %v2578
  %v3947 = vadd.f32 %v1773, %v2583
  %v3948 = vadd.f32 %v1776, %v2586
  %v3949 = vadd.f32 %v1781, %v2591
  %v3950 = vadd.f32 %v1784, %v2594
  %v3951 = vadd.f32 %v1789, %v2599
  %v3952 = vadd.f32 %v1792, %v2602
  %v3953 = vadd.f32 %v1797, %v2607
  %v3954 = vadd.f32 %v1800, %v2610
  %v3955 = vadd.f32 %v1805, %v2615
  %v3956 = vadd.f32 %v1808, %v2618
  %v3957 = vadd.f32 %v1813, %v2623
  %v3958 = vadd.f32 %v1816, %v2626
  %v3959 = vadd.f32 %v1821, %v2631
  %v3960 = vadd.f32 %v1824, %v2634
  %v3961 = vadd.f32 %v1829, %v2639
  %v3962 = vadd.f32 %v1832, %v2642
  %v3963 = vadd.f32 %v1837, %v2647
  %v3964 = vadd.f32 %v1840, %v2650
  %v3965 = vadd.f32 %v1845, %v2655
  %v3966 = vadd.f32 %v1848, %v2658
  %v3967 = vadd.f32 %v1853, %v2663
  %v3968 = vadd.f32 %v1856, %v2666
  %v3969 = vadd.f32 %v1861, %v2671
  %v3970 = vadd.f32 %v1864, %v2674
  %v3971 = vadd.f32 %v1869, %v2679
  %v3972 = vadd.f32 %v1872, %v2682
  %v3973 = vadd.f32 %v1877, %v2687
  %v3974 = vadd.f32 %v1880, %v2690
  %v3975 = vadd.f32 %v1885, %v2695
  %v3976 = vadd.f32 %v1888, %v2698
  %v3977 = vadd.f32 %v1893, %v2703
  %v3978 = vadd.f32 %v1896, %v2706
  %v3979 = vadd.f32 %v1901, %v2711
  %v3980 = vadd.f32 %v1904, %v2714
  %v3981 = vadd.f32 %v1909, %v2719
  %v3982 = vadd.f32 %v1912, %v2722
  %v3983 = vadd.f32 %v1917, %v2727
  %v3984 = vadd.f32 %v1920, %v2730
  %v3985 = vadd.f32 %v1925, %v2735
  %v3986 = vadd.f32 %v1928, %v2738
  %v3987 = vadd.f32 %v1933, %v2743
  %v3988 = vadd.f32 %v1936, %v2746
  %v3989 = vadd.f32 %v1941, %v2751
  %v3990 = vadd.f32 %v1944, %v2754
  %v3991 = vadd.f32 %v1949, %v2759
  %v3992 = vadd.f32 %v1952, %v2762
  %v3993 = vadd.f32 %v1957, %v2767
  %v3994 = vadd.f32 %v1960, %v2770
  %v3995 = vadd.f32 %v1965, %v2775
  %v3996 = vadd.f32 %v1968, %v2778
  %v3997 = vadd.f32 %v1973, %v2783
  %v3998 = vadd.f32 %v1976, %v2786
  %v3999 = vadd.f32 %v1981, %v2791
  %v4000 = vadd.f32 %v1984, %v2794
  %v4001 = vadd.f32 %v1989, %v2799
  %v4002 = vadd.f32 %v1992, %v2802
  %v4003 = vadd.f32 %v1997, %v2807
  %v4004 = vadd.f32 %v2000, %v2810
  %v4005 = vadd.f32 %v2005, %v2815
  %v4006 = vadd.f32 %v2008, %v2818
  %v4007 = vadd.f32 %v2013, %v2823
  %v4008 = vadd.f32 %v2016, %v2826
  %v4009 = vadd.f32 %v2021, %v2831
  %v4010 = vadd.f32 %v2024, %v2834
  %v4011 = vadd.f32 %v2029, %v2839
  %v4012 = vadd.f32 %v2032, %v2842
  %v4013 = vadd.f32 %v2037, %v2847
  %v4014 = vadd.f32 %v2040, %v2850
  %v4015 = vadd.f32 %v2045, %v2855
  %v4016 = vadd.f32 %v2048, %v2858
  %v4017 = vadd.f32 %v2053, %v2863
  %v4018 = vadd.f32 %v2056, %v2866
  %v4019 = vadd.f32 %v2061, %v2871
  %v4020 = vadd.f32 %v2064, %v2874
  %v4021 = vadd.f32 %v2069, %v2879
  %v4022 = vadd.f32 %v2072, %v2882
  %v4023 = vadd.f32 %v2077, %v2887
  %v4024 = vadd.f32 %v2080, %v2890
  %v4025 = vadd.f32 %v2085, %v2895
  %v4026 = vadd.f32 %v2088, %v2898
  %v4027 = vadd.f32 %v2093, %v2903
  %v4028 = vadd.f32 %v2096, %v2906
  %v4029 = vadd.f32 %v2101, %v2911
  %v4030 = vadd.f32 %v2104, %v2914
  %v4031 = vadd.f32 %v2109, %v2919
  %v4032 = vadd.f32 %v2112, %v2922
  %v4033 = vadd.f32 %v2117, %v2927
  %v4034 = vadd.f32 %v2120, %v2930
  %v4035 = vadd.f32 %v2125, %v2935
  %v4036 = vadd.f32 %v2128, %v2938
  %v4037 = vadd.f32 %v2133, %v2943
  %v4038 = vadd.f32 %v2136, %v2946
  %v4039 = vadd.f32 %v2141, %v2951
  %v4040 = vadd.f32 %v2144, %v2954
  %v4041 = vadd.f32 %v2149, %v2959
  %v4042 = vadd.f32 %v2152, %v2962
  %v4043 = vadd.f32 %v2157, %v2967
  %v4044 = vadd.f32 %v2160, %v2970
  %v4045 = vadd.f32 %v2165, %v2975
  %v4046 = vadd.f32 %v2168, %v2978
  %v4047 = vld [vmem:[%s1] sm:$0xf]
  %v4048 = vld [vmem:[%s1 + $0x4] sm:$0xf]
  %v4049 = vld [vmem:[%s1 + $0x8] sm:$0xf]
  %v4050 = vld [vmem:[%s1 + $0xc] sm:$0xf]
  %v4051 = vld [vmem:[%s1 + $0x10] sm:$0xf]
  %v4052 = vld [vmem:[%s1 + $0x14] sm:$0xf]
  %v4053 = vld [vmem:[%s1 + $0x18] sm:$0xf]
  %v4054 = vld [vmem:[%s1 + $0x1c] sm:$0xf]
  %v4055 = vld [vmem:[%s1 + $0x20] sm:$0xf]
  %v4056 = vld [vmem:[%s1 + $0x24] sm:$0xf]
  %v4057 = vld [vmem:[%s1 + $0x28] sm:$0xf]
  %v4058 = vld [vmem:[%s1 + $0x2c] sm:$0xf]
  %v4059 = vld [vmem:[%s1 + $0x30] sm:$0xf]
  %v4060 = vld [vmem:[%s1 + $0x34] sm:$0xf]
  %v4061 = vld [vmem:[%s1 + $0x38] sm:$0xf]
  %v4062 = vld [vmem:[%s1 + $0x3c] sm:$0xf]
  %v4063 = vld [vmem:[%s1 + $0x40] sm:$0xf]
  %v4064 = vld [vmem:[%s1 + $0x44] sm:$0xf]
  %v4065 = vld [vmem:[%s1 + $0x48] sm:$0xf]
  %v4066 = vld [vmem:[%s1 + $0x4c] sm:$0xf]
  %v4067 = vld [vmem:[%s1 + $0x50] sm:$0xf]
  %v4068 = vld [vmem:[%s1 + $0x54] sm:$0xf]
  %v4069 = vld [vmem:[%s1 + $0x58] sm:$0xf]
  %v4070 = vld [vmem:[%s1 + $0x5c] sm:$0xf]
  %v4071 = vld [vmem:[%s1 + $0x60] sm:$0xf]
  %v4072 = vld [vmem:[%s1 + $0x64] sm:$0xf]
  %v4073 = vld [vmem:[%s1 + $0x68] sm:$0xf]
  %v4074 = vld [vmem:[%s1 + $0x6c] sm:$0xf]
  %v4075 = vld [vmem:[%s1 + $0x70] sm:$0xf]
  %v4076 = vld [vmem:[%s1 + $0x74] sm:$0xf]
  %v4077 = vld [vmem:[%s1 + $0x78] sm:$0xf]
  %v4078 = vld [vmem:[%s1 + $0x7c] sm:$0xf]
  %v4111 = vunpack.c.l.b16 %v4047
  %v4112 = vunpack.c.l.b16 %v4048
  %v4113 = vunpack.c.l.b16 %v4049
  %v4114 = vunpack.c.l.b16 %v4050
  %v4115 = vunpack.c.l.b16 %v4051
  %v4116 = vunpack.c.l.b16 %v4052
  %v4117 = vunpack.c.l.b16 %v4053
  %v4118 = vunpack.c.l.b16 %v4054
  %v4119 = vunpack.c.l.b16 %v4055
  %v4120 = vunpack.c.l.b16 %v4056
  %v4121 = vunpack.c.l.b16 %v4057
  %v4122 = vunpack.c.l.b16 %v4058
  %v4123 = vunpack.c.l.b16 %v4059
  %v4124 = vunpack.c.l.b16 %v4060
  %v4125 = vunpack.c.l.b16 %v4061
  %v4126 = vunpack.c.l.b16 %v4062
  %v4127 = vunpack.c.l.b16 %v4063
  %v4128 = vunpack.c.l.b16 %v4064
  %v4129 = vunpack.c.l.b16 %v4065
  %v4130 = vunpack.c.l.b16 %v4066
  %v4131 = vunpack.c.l.b16 %v4067
  %v4132 = vunpack.c.l.b16 %v4068
  %v4133 = vunpack.c.l.b16 %v4069
  %v4134 = vunpack.c.l.b16 %v4070
  %v4135 = vunpack.c.l.b16 %v4071
  %v4136 = vunpack.c.l.b16 %v4072
  %v4137 = vunpack.c.l.b16 %v4073
  %v4138 = vunpack.c.l.b16 %v4074
  %v4139 = vunpack.c.l.b16 %v4075
  %v4140 = vunpack.c.l.b16 %v4076
  %v4141 = vunpack.c.l.b16 %v4077
  %v4142 = vunpack.c.l.b16 %v4078
  %v4143 = vpack.c.b16 %v4112, %v4111
  %v4144 = vpack.c.b16 %v4114, %v4113
  %v4145 = vpack.c.b16 %v4116, %v4115
  %v4146 = vpack.c.b16 %v4118, %v4117
  %v4147 = vpack.c.b16 %v4120, %v4119
  %v4148 = vpack.c.b16 %v4122, %v4121
  %v4149 = vpack.c.b16 %v4124, %v4123
  %v4150 = vpack.c.b16 %v4126, %v4125
  %v4151 = vpack.c.b16 %v4128, %v4127
  %v4152 = vpack.c.b16 %v4130, %v4129
  %v4153 = vpack.c.b16 %v4132, %v4131
  %v4154 = vpack.c.b16 %v4134, %v4133
  %v4155 = vpack.c.b16 %v4136, %v4135
  %v4156 = vpack.c.b16 %v4138, %v4137
  %v4157 = vpack.c.b16 %v4140, %v4139
  %v4158 = vpack.c.b16 %v4142, %v4141
  %v4175 = vunpack.c.l.bf16 %v4143
  %v4176 = vunpack.c.h.bf16 %v4143
  %v4177 = vunpack.c.l.bf16 %v4144
  %v4178 = vunpack.c.h.bf16 %v4144
  %v4179 = vunpack.c.l.bf16 %v4145
  %v4180 = vunpack.c.h.bf16 %v4145
  %v4181 = vunpack.c.l.bf16 %v4146
  %v4182 = vunpack.c.h.bf16 %v4146
  %v4183 = vunpack.c.l.bf16 %v4147
  %v4184 = vunpack.c.h.bf16 %v4147
  %v4185 = vunpack.c.l.bf16 %v4148
  %v4186 = vunpack.c.h.bf16 %v4148
  %v4187 = vunpack.c.l.bf16 %v4149
  %v4188 = vunpack.c.h.bf16 %v4149
  %v4189 = vunpack.c.l.bf16 %v4150
  %v4190 = vunpack.c.h.bf16 %v4150
  %v4191 = vunpack.c.l.bf16 %v4151
  %v4192 = vunpack.c.h.bf16 %v4151
  %v4193 = vunpack.c.l.bf16 %v4152
  %v4194 = vunpack.c.h.bf16 %v4152
  %v4195 = vunpack.c.l.bf16 %v4153
  %v4196 = vunpack.c.h.bf16 %v4153
  %v4197 = vunpack.c.l.bf16 %v4154
  %v4198 = vunpack.c.h.bf16 %v4154
  %v4199 = vunpack.c.l.bf16 %v4155
  %v4200 = vunpack.c.h.bf16 %v4155
  %v4201 = vunpack.c.l.bf16 %v4156
  %v4202 = vunpack.c.h.bf16 %v4156
  %v4203 = vunpack.c.l.bf16 %v4157
  %v4204 = vunpack.c.h.bf16 %v4157
  %v4205 = vunpack.c.l.bf16 %v4158
  %v4206 = vunpack.c.h.bf16 %v4158
  %s4207 = scalar_lea.vmem %s1, 128
  %v4208 = vld [vmem:[%s4207] sm:$0xf]
  %v4209 = vld [vmem:[%s4207 + $0x4] sm:$0xf]
  %v4210 = vld [vmem:[%s4207 + $0x8] sm:$0xf]
  %v4211 = vld [vmem:[%s4207 + $0xc] sm:$0xf]
  %v4212 = vld [vmem:[%s4207 + $0x10] sm:$0xf]
  %v4213 = vld [vmem:[%s4207 + $0x14] sm:$0xf]
  %v4214 = vld [vmem:[%s4207 + $0x18] sm:$0xf]
  %v4215 = vld [vmem:[%s4207 + $0x1c] sm:$0xf]
  %v4216 = vld [vmem:[%s4207 + $0x20] sm:$0xf]
  %v4217 = vld [vmem:[%s4207 + $0x24] sm:$0xf]
  %v4218 = vld [vmem:[%s4207 + $0x28] sm:$0xf]
  %v4219 = vld [vmem:[%s4207 + $0x2c] sm:$0xf]
  %v4220 = vld [vmem:[%s4207 + $0x30] sm:$0xf]
  %v4221 = vld [vmem:[%s4207 + $0x34] sm:$0xf]
  %v4222 = vld [vmem:[%s4207 + $0x38] sm:$0xf]
  %v4223 = vld [vmem:[%s4207 + $0x3c] sm:$0xf]
  %v4224 = vld [vmem:[%s4207 + $0x40] sm:$0xf]
  %v4225 = vld [vmem:[%s4207 + $0x44] sm:$0xf]
  %v4226 = vld [vmem:[%s4207 + $0x48] sm:$0xf]
  %v4227 = vld [vmem:[%s4207 + $0x4c] sm:$0xf]
  %v4228 = vld [vmem:[%s4207 + $0x50] sm:$0xf]
  %v4229 = vld [vmem:[%s4207 + $0x54] sm:$0xf]
  %v4230 = vld [vmem:[%s4207 + $0x58] sm:$0xf]
  %v4231 = vld [vmem:[%s4207 + $0x5c] sm:$0xf]
  %v4232 = vld [vmem:[%s4207 + $0x60] sm:$0xf]
  %v4233 = vld [vmem:[%s4207 + $0x64] sm:$0xf]
  %v4234 = vld [vmem:[%s4207 + $0x68] sm:$0xf]
  %v4235 = vld [vmem:[%s4207 + $0x6c] sm:$0xf]
  %v4236 = vld [vmem:[%s4207 + $0x70] sm:$0xf]
  %v4237 = vld [vmem:[%s4207 + $0x74] sm:$0xf]
  %v4238 = vld [vmem:[%s4207 + $0x78] sm:$0xf]
  %v4239 = vld [vmem:[%s4207 + $0x7c] sm:$0xf]
  %v4272 = vunpack.c.l.b16 %v4208
  %v4273 = vunpack.c.l.b16 %v4209
  %v4274 = vunpack.c.l.b16 %v4210
  %v4275 = vunpack.c.l.b16 %v4211
  %v4276 = vunpack.c.l.b16 %v4212
  %v4277 = vunpack.c.l.b16 %v4213
  %v4278 = vunpack.c.l.b16 %v4214
  %v4279 = vunpack.c.l.b16 %v4215
  %v4280 = vunpack.c.l.b16 %v4216
  %v4281 = vunpack.c.l.b16 %v4217
  %v4282 = vunpack.c.l.b16 %v4218
  %v4283 = vunpack.c.l.b16 %v4219
  %v4284 = vunpack.c.l.b16 %v4220
  %v4285 = vunpack.c.l.b16 %v4221
  %v4286 = vunpack.c.l.b16 %v4222
  %v4287 = vunpack.c.l.b16 %v4223
  %v4288 = vunpack.c.l.b16 %v4224
  %v4289 = vunpack.c.l.b16 %v4225
  %v4290 = vunpack.c.l.b16 %v4226
  %v4291 = vunpack.c.l.b16 %v4227
  %v4292 = vunpack.c.l.b16 %v4228
  %v4293 = vunpack.c.l.b16 %v4229
  %v4294 = vunpack.c.l.b16 %v4230
  %v4295 = vunpack.c.l.b16 %v4231
  %v4296 = vunpack.c.l.b16 %v4232
  %v4297 = vunpack.c.l.b16 %v4233
  %v4298 = vunpack.c.l.b16 %v4234
  %v4299 = vunpack.c.l.b16 %v4235
  %v4300 = vunpack.c.l.b16 %v4236
  %v4301 = vunpack.c.l.b16 %v4237
  %v4302 = vunpack.c.l.b16 %v4238
  %v4303 = vunpack.c.l.b16 %v4239
  %v4304 = vpack.c.b16 %v4273, %v4272
  %v4305 = vpack.c.b16 %v4275, %v4274
  %v4306 = vpack.c.b16 %v4277, %v4276
  %v4307 = vpack.c.b16 %v4279, %v4278
  %v4308 = vpack.c.b16 %v4281, %v4280
  %v4309 = vpack.c.b16 %v4283, %v4282
  %v4310 = vpack.c.b16 %v4285, %v4284
  %v4311 = vpack.c.b16 %v4287, %v4286
  %v4312 = vpack.c.b16 %v4289, %v4288
  %v4313 = vpack.c.b16 %v4291, %v4290
  %v4314 = vpack.c.b16 %v4293, %v4292
  %v4315 = vpack.c.b16 %v4295, %v4294
  %v4316 = vpack.c.b16 %v4297, %v4296
  %v4317 = vpack.c.b16 %v4299, %v4298
  %v4318 = vpack.c.b16 %v4301, %v4300
  %v4319 = vpack.c.b16 %v4303, %v4302
  %v4336 = vunpack.c.l.bf16 %v4304
  %v4337 = vunpack.c.h.bf16 %v4304
  %v4338 = vunpack.c.l.bf16 %v4305
  %v4339 = vunpack.c.h.bf16 %v4305
  %v4340 = vunpack.c.l.bf16 %v4306
  %v4341 = vunpack.c.h.bf16 %v4306
  %v4342 = vunpack.c.l.bf16 %v4307
  %v4343 = vunpack.c.h.bf16 %v4307
  %v4344 = vunpack.c.l.bf16 %v4308
  %v4345 = vunpack.c.h.bf16 %v4308
  %v4346 = vunpack.c.l.bf16 %v4309
  %v4347 = vunpack.c.h.bf16 %v4309
  %v4348 = vunpack.c.l.bf16 %v4310
  %v4349 = vunpack.c.h.bf16 %v4310
  %v4350 = vunpack.c.l.bf16 %v4311
  %v4351 = vunpack.c.h.bf16 %v4311
  %v4352 = vunpack.c.l.bf16 %v4312
  %v4353 = vunpack.c.h.bf16 %v4312
  %v4354 = vunpack.c.l.bf16 %v4313
  %v4355 = vunpack.c.h.bf16 %v4313
  %v4356 = vunpack.c.l.bf16 %v4314
  %v4357 = vunpack.c.h.bf16 %v4314
  %v4358 = vunpack.c.l.bf16 %v4315
  %v4359 = vunpack.c.h.bf16 %v4315
  %v4360 = vunpack.c.l.bf16 %v4316
  %v4361 = vunpack.c.h.bf16 %v4316
  %v4362 = vunpack.c.l.bf16 %v4317
  %v4363 = vunpack.c.h.bf16 %v4317
  %v4364 = vunpack.c.l.bf16 %v4318
  %v4365 = vunpack.c.h.bf16 %v4318
  %v4366 = vunpack.c.l.bf16 %v4319
  %v4367 = vunpack.c.h.bf16 %v4319
  %v4368 = vmul.f32 %v3791, %v4175
  %v4369 = vmul.f32 %v3792, %v4176
  %v4370 = vmul.f32 %v3793, %v4177
  %v4371 = vmul.f32 %v3794, %v4178
  %v4372 = vmul.f32 %v3795, %v4179
  %v4373 = vmul.f32 %v3796, %v4180
  %v4374 = vmul.f32 %v3797, %v4181
  %v4375 = vmul.f32 %v3798, %v4182
  %v4376 = vmul.f32 %v3799, %v4183
  %v4377 = vmul.f32 %v3800, %v4184
  %v4378 = vmul.f32 %v3801, %v4185
  %v4379 = vmul.f32 %v3802, %v4186
  %v4380 = vmul.f32 %v3803, %v4187
  %v4381 = vmul.f32 %v3804, %v4188
  %v4382 = vmul.f32 %v3805, %v4189
  %v4383 = vmul.f32 %v3806, %v4190
  %v4384 = vmul.f32 %v3807, %v4191
  %v4385 = vmul.f32 %v3808, %v4192
  %v4386 = vmul.f32 %v3809, %v4193
  %v4387 = vmul.f32 %v3810, %v4194
  %v4388 = vmul.f32 %v3811, %v4195
  %v4389 = vmul.f32 %v3812, %v4196
  %v4390 = vmul.f32 %v3813, %v4197
  %v4391 = vmul.f32 %v3814, %v4198
  %v4392 = vmul.f32 %v3815, %v4199
  %v4393 = vmul.f32 %v3816, %v4200
  %v4394 = vmul.f32 %v3817, %v4201
  %v4395 = vmul.f32 %v3818, %v4202
  %v4396 = vmul.f32 %v3819, %v4203
  %v4397 = vmul.f32 %v3820, %v4204
  %v4398 = vmul.f32 %v3821, %v4205
  %v4399 = vmul.f32 %v3822, %v4206
  %v4400 = vmul.f32 %v3823, %v4175
  %v4401 = vmul.f32 %v3824, %v4176
  %v4402 = vmul.f32 %v3825, %v4177
  %v4403 = vmul.f32 %v3826, %v4178
  %v4404 = vmul.f32 %v3827, %v4179
  %v4405 = vmul.f32 %v3828, %v4180
  %v4406 = vmul.f32 %v3829, %v4181
  %v4407 = vmul.f32 %v3830, %v4182
  %v4408 = vmul.f32 %v3831, %v4183
  %v4409 = vmul.f32 %v3832, %v4184
  %v4410 = vmul.f32 %v3833, %v4185
  %v4411 = vmul.f32 %v3834, %v4186
  %v4412 = vmul.f32 %v3835, %v4187
  %v4413 = vmul.f32 %v3836, %v4188
  %v4414 = vmul.f32 %v3837, %v4189
  %v4415 = vmul.f32 %v3838, %v4190
  %v4416 = vmul.f32 %v3839, %v4191
  %v4417 = vmul.f32 %v3840, %v4192
  %v4418 = vmul.f32 %v3841, %v4193
  %v4419 = vmul.f32 %v3842, %v4194
  %v4420 = vmul.f32 %v3843, %v4195
  %v4421 = vmul.f32 %v3844, %v4196
  %v4422 = vmul.f32 %v3845, %v4197
  %v4423 = vmul.f32 %v3846, %v4198
  %v4424 = vmul.f32 %v3847, %v4199
  %v4425 = vmul.f32 %v3848, %v4200
  %v4426 = vmul.f32 %v3849, %v4201
  %v4427 = vmul.f32 %v3850, %v4202
  %v4428 = vmul.f32 %v3851, %v4203
  %v4429 = vmul.f32 %v3852, %v4204
  %v4430 = vmul.f32 %v3853, %v4205
  %v4431 = vmul.f32 %v3854, %v4206
  %v4432 = vmul.f32 %v3855, %v4175
  %v4433 = vmul.f32 %v3856, %v4176
  %v4434 = vmul.f32 %v3857, %v4177
  %v4435 = vmul.f32 %v3858, %v4178
  %v4436 = vmul.f32 %v3859, %v4179
  %v4437 = vmul.f32 %v3860, %v4180
  %v4438 = vmul.f32 %v3861, %v4181
  %v4439 = vmul.f32 %v3862, %v4182
  %v4440 = vmul.f32 %v3863, %v4183
  %v4441 = vmul.f32 %v3864, %v4184
  %v4442 = vmul.f32 %v3865, %v4185
  %v4443 = vmul.f32 %v3866, %v4186
  %v4444 = vmul.f32 %v3867, %v4187
  %v4445 = vmul.f32 %v3868, %v4188
  %v4446 = vmul.f32 %v3869, %v4189
  %v4447 = vmul.f32 %v3870, %v4190
  %v4448 = vmul.f32 %v3871, %v4191
  %v4449 = vmul.f32 %v3872, %v4192
  %v4450 = vmul.f32 %v3873, %v4193
  %v4451 = vmul.f32 %v3874, %v4194
  %v4452 = vmul.f32 %v3875, %v4195
  %v4453 = vmul.f32 %v3876, %v4196
  %v4454 = vmul.f32 %v3877, %v4197
  %v4455 = vmul.f32 %v3878, %v4198
  %v4456 = vmul.f32 %v3879, %v4199
  %v4457 = vmul.f32 %v3880, %v4200
  %v4458 = vmul.f32 %v3881, %v4201
  %v4459 = vmul.f32 %v3882, %v4202
  %v4460 = vmul.f32 %v3883, %v4203
  %v4461 = vmul.f32 %v3884, %v4204
  %v4462 = vmul.f32 %v3885, %v4205
  %v4463 = vmul.f32 %v3886, %v4206
  %v4464 = vmul.f32 %v3887, %v4175
  %v4465 = vmul.f32 %v3888, %v4176
  %v4466 = vmul.f32 %v3889, %v4177
  %v4467 = vmul.f32 %v3890, %v4178
  %v4468 = vmul.f32 %v3891, %v4179
  %v4469 = vmul.f32 %v3892, %v4180
  %v4470 = vmul.f32 %v3893, %v4181
  %v4471 = vmul.f32 %v3894, %v4182
  %v4472 = vmul.f32 %v3895, %v4183
  %v4473 = vmul.f32 %v3896, %v4184
  %v4474 = vmul.f32 %v3897, %v4185
  %v4475 = vmul.f32 %v3898, %v4186
  %v4476 = vmul.f32 %v3899, %v4187
  %v4477 = vmul.f32 %v3900, %v4188
  %v4478 = vmul.f32 %v3901, %v4189
  %v4479 = vmul.f32 %v3902, %v4190
  %v4480 = vmul.f32 %v3903, %v4191
  %v4481 = vmul.f32 %v3904, %v4192
  %v4482 = vmul.f32 %v3905, %v4193
  %v4483 = vmul.f32 %v3906, %v4194
  %v4484 = vmul.f32 %v3907, %v4195
  %v4485 = vmul.f32 %v3908, %v4196
  %v4486 = vmul.f32 %v3909, %v4197
  %v4487 = vmul.f32 %v3910, %v4198
  %v4488 = vmul.f32 %v3911, %v4199
  %v4489 = vmul.f32 %v3912, %v4200
  %v4490 = vmul.f32 %v3913, %v4201
  %v4491 = vmul.f32 %v3914, %v4202
  %v4492 = vmul.f32 %v3915, %v4203
  %v4493 = vmul.f32 %v3916, %v4204
  %v4494 = vmul.f32 %v3917, %v4205
  %v4495 = vmul.f32 %v3918, %v4206
  %v4496 = vmul.f32 %v3919, %v4336
  %v4497 = vmul.f32 %v3920, %v4337
  %v4498 = vmul.f32 %v3921, %v4338
  %v4499 = vmul.f32 %v3922, %v4339
  %v4500 = vmul.f32 %v3923, %v4340
  %v4501 = vmul.f32 %v3924, %v4341
  %v4502 = vmul.f32 %v3925, %v4342
  %v4503 = vmul.f32 %v3926, %v4343
  %v4504 = vmul.f32 %v3927, %v4344
  %v4505 = vmul.f32 %v3928, %v4345
  %v4506 = vmul.f32 %v3929, %v4346
  %v4507 = vmul.f32 %v3930, %v4347
  %v4508 = vmul.f32 %v3931, %v4348
  %v4509 = vmul.f32 %v3932, %v4349
  %v4510 = vmul.f32 %v3933, %v4350
  %v4511 = vmul.f32 %v3934, %v4351
  %v4512 = vmul.f32 %v3935, %v4352
  %v4513 = vmul.f32 %v3936, %v4353
  %v4514 = vmul.f32 %v3937, %v4354
  %v4515 = vmul.f32 %v3938, %v4355
  %v4516 = vmul.f32 %v3939, %v4356
  %v4517 = vmul.f32 %v3940, %v4357
  %v4518 = vmul.f32 %v3941, %v4358
  %v4519 = vmul.f32 %v3942, %v4359
  %v4520 = vmul.f32 %v3943, %v4360
  %v4521 = vmul.f32 %v3944, %v4361
  %v4522 = vmul.f32 %v3945, %v4362
  %v4523 = vmul.f32 %v3946, %v4363
  %v4524 = vmul.f32 %v3947, %v4364
  %v4525 = vmul.f32 %v3948, %v4365
  %v4526 = vmul.f32 %v3949, %v4366
  %v4527 = vmul.f32 %v3950, %v4367
  %v4528 = vmul.f32 %v3951, %v4336
  %v4529 = vmul.f32 %v3952, %v4337
  %v4530 = vmul.f32 %v3953, %v4338
  %v4531 = vmul.f32 %v3954, %v4339
  %v4532 = vmul.f32 %v3955, %v4340
  %v4533 = vmul.f32 %v3956, %v4341
  %v4534 = vmul.f32 %v3957, %v4342
  %v4535 = vmul.f32 %v3958, %v4343
  %v4536 = vmul.f32 %v3959, %v4344
  %v4537 = vmul.f32 %v3960, %v4345
  %v4538 = vmul.f32 %v3961, %v4346
  %v4539 = vmul.f32 %v3962, %v4347
  %v4540 = vmul.f32 %v3963, %v4348
  %v4541 = vmul.f32 %v3964, %v4349
  %v4542 = vmul.f32 %v3965, %v4350
  %v4543 = vmul.f32 %v3966, %v4351
  %v4544 = vmul.f32 %v3967, %v4352
  %v4545 = vmul.f32 %v3968, %v4353
  %v4546 = vmul.f32 %v3969, %v4354
  %v4547 = vmul.f32 %v3970, %v4355
  %v4548 = vmul.f32 %v3971, %v4356
  %v4549 = vmul.f32 %v3972, %v4357
  %v4550 = vmul.f32 %v3973, %v4358
  %v4551 = vmul.f32 %v3974, %v4359
  %v4552 = vmul.f32 %v3975, %v4360
  %v4553 = vmul.f32 %v3976, %v4361
  %v4554 = vmul.f32 %v3977, %v4362
  %v4555 = vmul.f32 %v3978, %v4363
  %v4556 = vmul.f32 %v3979, %v4364
  %v4557 = vmul.f32 %v3980, %v4365
  %v4558 = vmul.f32 %v3981, %v4366
  %v4559 = vmul.f32 %v3982, %v4367
  %v4560 = vmul.f32 %v3983, %v4336
  %v4561 = vmul.f32 %v3984, %v4337
  %v4562 = vmul.f32 %v3985, %v4338
  %v4563 = vmul.f32 %v3986, %v4339
  %v4564 = vmul.f32 %v3987, %v4340
  %v4565 = vmul.f32 %v3988, %v4341
  %v4566 = vmul.f32 %v3989, %v4342
  %v4567 = vmul.f32 %v3990, %v4343
  %v4568 = vmul.f32 %v3991, %v4344
  %v4569 = vmul.f32 %v3992, %v4345
  %v4570 = vmul.f32 %v3993, %v4346
  %v4571 = vmul.f32 %v3994, %v4347
  %v4572 = vmul.f32 %v3995, %v4348
  %v4573 = vmul.f32 %v3996, %v4349
  %v4574 = vmul.f32 %v3997, %v4350
  %v4575 = vmul.f32 %v3998, %v4351
  %v4576 = vmul.f32 %v3999, %v4352
  %v4577 = vmul.f32 %v4000, %v4353
  %v4578 = vmul.f32 %v4001, %v4354
  %v4579 = vmul.f32 %v4002, %v4355
  %v4580 = vmul.f32 %v4003, %v4356
  %v4581 = vmul.f32 %v4004, %v4357
  %v4582 = vmul.f32 %v4005, %v4358
  %v4583 = vmul.f32 %v4006, %v4359
  %v4584 = vmul.f32 %v4007, %v4360
  %v4585 = vmul.f32 %v4008, %v4361
  %v4586 = vmul.f32 %v4009, %v4362
  %v4587 = vmul.f32 %v4010, %v4363
  %v4588 = vmul.f32 %v4011, %v4364
  %v4589 = vmul.f32 %v4012, %v4365
  %v4590 = vmul.f32 %v4013, %v4366
  %v4591 = vmul.f32 %v4014, %v4367
  %v4592 = vmul.f32 %v4015, %v4336
  %v4593 = vmul.f32 %v4016, %v4337
  %v4594 = vmul.f32 %v4017, %v4338
  %v4595 = vmul.f32 %v4018, %v4339
  %v4596 = vmul.f32 %v4019, %v4340
  %v4597 = vmul.f32 %v4020, %v4341
  %v4598 = vmul.f32 %v4021, %v4342
  %v4599 = vmul.f32 %v4022, %v4343
  %v4600 = vmul.f32 %v4023, %v4344
  %v4601 = vmul.f32 %v4024, %v4345
  %v4602 = vmul.f32 %v4025, %v4346
  %v4603 = vmul.f32 %v4026, %v4347
  %v4604 = vmul.f32 %v4027, %v4348
  %v4605 = vmul.f32 %v4028, %v4349
  %v4606 = vmul.f32 %v4029, %v4350
  %v4607 = vmul.f32 %v4030, %v4351
  %v4608 = vmul.f32 %v4031, %v4352
  %v4609 = vmul.f32 %v4032, %v4353
  %v4610 = vmul.f32 %v4033, %v4354
  %v4611 = vmul.f32 %v4034, %v4355
  %v4612 = vmul.f32 %v4035, %v4356
  %v4613 = vmul.f32 %v4036, %v4357
  %v4614 = vmul.f32 %v4037, %v4358
  %v4615 = vmul.f32 %v4038, %v4359
  %v4616 = vmul.f32 %v4039, %v4360
  %v4617 = vmul.f32 %v4040, %v4361
  %v4618 = vmul.f32 %v4041, %v4362
  %v4619 = vmul.f32 %v4042, %v4363
  %v4620 = vmul.f32 %v4043, %v4364
  %v4621 = vmul.f32 %v4044, %v4365
  %v4622 = vmul.f32 %v4045, %v4366
  %v4623 = vmul.f32 %v4046, %v4367
  %v4624 = vsub.f32 %v4368, %v4496
  %v4625 = vsub.f32 %v4369, %v4497
  %v4626 = vsub.f32 %v4370, %v4498
  %v4627 = vsub.f32 %v4371, %v4499
  %v4628 = vsub.f32 %v4372, %v4500
  %v4629 = vsub.f32 %v4373, %v4501
  %v4630 = vsub.f32 %v4374, %v4502
  %v4631 = vsub.f32 %v4375, %v4503
  %v4632 = vsub.f32 %v4376, %v4504
  %v4633 = vsub.f32 %v4377, %v4505
  %v4634 = vsub.f32 %v4378, %v4506
  %v4635 = vsub.f32 %v4379, %v4507
  %v4636 = vsub.f32 %v4380, %v4508
  %v4637 = vsub.f32 %v4381, %v4509
  %v4638 = vsub.f32 %v4382, %v4510
  %v4639 = vsub.f32 %v4383, %v4511
  %v4640 = vsub.f32 %v4384, %v4512
  %v4641 = vsub.f32 %v4385, %v4513
  %v4642 = vsub.f32 %v4386, %v4514
  %v4643 = vsub.f32 %v4387, %v4515
  %v4644 = vsub.f32 %v4388, %v4516
  %v4645 = vsub.f32 %v4389, %v4517
  %v4646 = vsub.f32 %v4390, %v4518
  %v4647 = vsub.f32 %v4391, %v4519
  %v4648 = vsub.f32 %v4392, %v4520
  %v4649 = vsub.f32 %v4393, %v4521
  %v4650 = vsub.f32 %v4394, %v4522
  %v4651 = vsub.f32 %v4395, %v4523
  %v4652 = vsub.f32 %v4396, %v4524
  %v4653 = vsub.f32 %v4397, %v4525
  %v4654 = vsub.f32 %v4398, %v4526
  %v4655 = vsub.f32 %v4399, %v4527
  %v4656 = vsub.f32 %v4400, %v4528
  %v4657 = vsub.f32 %v4401, %v4529
  %v4658 = vsub.f32 %v4402, %v4530
  %v4659 = vsub.f32 %v4403, %v4531
  %v4660 = vsub.f32 %v4404, %v4532
  %v4661 = vsub.f32 %v4405, %v4533
  %v4662 = vsub.f32 %v4406, %v4534
  %v4663 = vsub.f32 %v4407, %v4535
  %v4664 = vsub.f32 %v4408, %v4536
  %v4665 = vsub.f32 %v4409, %v4537
  %v4666 = vsub.f32 %v4410, %v4538
  %v4667 = vsub.f32 %v4411, %v4539
  %v4668 = vsub.f32 %v4412, %v4540
  %v4669 = vsub.f32 %v4413, %v4541
  %v4670 = vsub.f32 %v4414, %v4542
  %v4671 = vsub.f32 %v4415, %v4543
  %v4672 = vsub.f32 %v4416, %v4544
  %v4673 = vsub.f32 %v4417, %v4545
  %v4674 = vsub.f32 %v4418, %v4546
  %v4675 = vsub.f32 %v4419, %v4547
  %v4676 = vsub.f32 %v4420, %v4548
  %v4677 = vsub.f32 %v4421, %v4549
  %v4678 = vsub.f32 %v4422, %v4550
  %v4679 = vsub.f32 %v4423, %v4551
  %v4680 = vsub.f32 %v4424, %v4552
  %v4681 = vsub.f32 %v4425, %v4553
  %v4682 = vsub.f32 %v4426, %v4554
  %v4683 = vsub.f32 %v4427, %v4555
  %v4684 = vsub.f32 %v4428, %v4556
  %v4685 = vsub.f32 %v4429, %v4557
  %v4686 = vsub.f32 %v4430, %v4558
  %v4687 = vsub.f32 %v4431, %v4559
  %v4688 = vsub.f32 %v4432, %v4560
  %v4689 = vsub.f32 %v4433, %v4561
  %v4690 = vsub.f32 %v4434, %v4562
  %v4691 = vsub.f32 %v4435, %v4563
  %v4692 = vsub.f32 %v4436, %v4564
  %v4693 = vsub.f32 %v4437, %v4565
  %v4694 = vsub.f32 %v4438, %v4566
  %v4695 = vsub.f32 %v4439, %v4567
  %v4696 = vsub.f32 %v4440, %v4568
  %v4697 = vsub.f32 %v4441, %v4569
  %v4698 = vsub.f32 %v4442, %v4570
  %v4699 = vsub.f32 %v4443, %v4571
  %v4700 = vsub.f32 %v4444, %v4572
  %v4701 = vsub.f32 %v4445, %v4573
  %v4702 = vsub.f32 %v4446, %v4574
  %v4703 = vsub.f32 %v4447, %v4575
  %v4704 = vsub.f32 %v4448, %v4576
  %v4705 = vsub.f32 %v4449, %v4577
  %v4706 = vsub.f32 %v4450, %v4578
  %v4707 = vsub.f32 %v4451, %v4579
  %v4708 = vsub.f32 %v4452, %v4580
  %v4709 = vsub.f32 %v4453, %v4581
  %v4710 = vsub.f32 %v4454, %v4582
  %v4711 = vsub.f32 %v4455, %v4583
  %v4712 = vsub.f32 %v4456, %v4584
  %v4713 = vsub.f32 %v4457, %v4585
  %v4714 = vsub.f32 %v4458, %v4586
  %v4715 = vsub.f32 %v4459, %v4587
  %v4716 = vsub.f32 %v4460, %v4588
  %v4717 = vsub.f32 %v4461, %v4589
  %v4718 = vsub.f32 %v4462, %v4590
  %v4719 = vsub.f32 %v4463, %v4591
  %v4720 = vsub.f32 %v4464, %v4592
  %v4721 = vsub.f32 %v4465, %v4593
  %v4722 = vsub.f32 %v4466, %v4594
  %v4723 = vsub.f32 %v4467, %v4595
  %v4724 = vsub.f32 %v4468, %v4596
  %v4725 = vsub.f32 %v4469, %v4597
  %v4726 = vsub.f32 %v4470, %v4598
  %v4727 = vsub.f32 %v4471, %v4599
  %v4728 = vsub.f32 %v4472, %v4600
  %v4729 = vsub.f32 %v4473, %v4601
  %v4730 = vsub.f32 %v4474, %v4602
  %v4731 = vsub.f32 %v4475, %v4603
  %v4732 = vsub.f32 %v4476, %v4604
  %v4733 = vsub.f32 %v4477, %v4605
  %v4734 = vsub.f32 %v4478, %v4606
  %v4735 = vsub.f32 %v4479, %v4607
  %v4736 = vsub.f32 %v4480, %v4608
  %v4737 = vsub.f32 %v4481, %v4609
  %v4738 = vsub.f32 %v4482, %v4610
  %v4739 = vsub.f32 %v4483, %v4611
  %v4740 = vsub.f32 %v4484, %v4612
  %v4741 = vsub.f32 %v4485, %v4613
  %v4742 = vsub.f32 %v4486, %v4614
  %v4743 = vsub.f32 %v4487, %v4615
  %v4744 = vsub.f32 %v4488, %v4616
  %v4745 = vsub.f32 %v4489, %v4617
  %v4746 = vsub.f32 %v4490, %v4618
  %v4747 = vsub.f32 %v4491, %v4619
  %v4748 = vsub.f32 %v4492, %v4620
  %v4749 = vsub.f32 %v4493, %v4621
  %v4750 = vsub.f32 %v4494, %v4622
  %v4751 = vsub.f32 %v4495, %v4623
  %v4752 = vmul.f32 %v3791, %v4336
  %v4753 = vmul.f32 %v3792, %v4337
  %v4754 = vmul.f32 %v3793, %v4338
  %v4755 = vmul.f32 %v3794, %v4339
  %v4756 = vmul.f32 %v3795, %v4340
  %v4757 = vmul.f32 %v3796, %v4341
  %v4758 = vmul.f32 %v3797, %v4342
  %v4759 = vmul.f32 %v3798, %v4343
  %v4760 = vmul.f32 %v3799, %v4344
  %v4761 = vmul.f32 %v3800, %v4345
  %v4762 = vmul.f32 %v3801, %v4346
  %v4763 = vmul.f32 %v3802, %v4347
  %v4764 = vmul.f32 %v3803, %v4348
  %v4765 = vmul.f32 %v3804, %v4349
  %v4766 = vmul.f32 %v3805, %v4350
  %v4767 = vmul.f32 %v3806, %v4351
  %v4768 = vmul.f32 %v3807, %v4352
  %v4769 = vmul.f32 %v3808, %v4353
  %v4770 = vmul.f32 %v3809, %v4354
  %v4771 = vmul.f32 %v3810, %v4355
  %v4772 = vmul.f32 %v3811, %v4356
  %v4773 = vmul.f32 %v3812, %v4357
  %v4774 = vmul.f32 %v3813, %v4358
  %v4775 = vmul.f32 %v3814, %v4359
  %v4776 = vmul.f32 %v3815, %v4360
  %v4777 = vmul.f32 %v3816, %v4361
  %v4778 = vmul.f32 %v3817, %v4362
  %v4779 = vmul.f32 %v3818, %v4363
  %v4780 = vmul.f32 %v3819, %v4364
  %v4781 = vmul.f32 %v3820, %v4365
  %v4782 = vmul.f32 %v3821, %v4366
  %v4783 = vmul.f32 %v3822, %v4367
  %v4784 = vmul.f32 %v3823, %v4336
  %v4785 = vmul.f32 %v3824, %v4337
  %v4786 = vmul.f32 %v3825, %v4338
  %v4787 = vmul.f32 %v3826, %v4339
  %v4788 = vmul.f32 %v3827, %v4340
  %v4789 = vmul.f32 %v3828, %v4341
  %v4790 = vmul.f32 %v3829, %v4342
  %v4791 = vmul.f32 %v3830, %v4343
  %v4792 = vmul.f32 %v3831, %v4344
  %v4793 = vmul.f32 %v3832, %v4345
  %v4794 = vmul.f32 %v3833, %v4346
  %v4795 = vmul.f32 %v3834, %v4347
  %v4796 = vmul.f32 %v3835, %v4348
  %v4797 = vmul.f32 %v3836, %v4349
  %v4798 = vmul.f32 %v3837, %v4350
  %v4799 = vmul.f32 %v3838, %v4351
  %v4800 = vmul.f32 %v3839, %v4352
  %v4801 = vmul.f32 %v3840, %v4353
  %v4802 = vmul.f32 %v3841, %v4354
  %v4803 = vmul.f32 %v3842, %v4355
  %v4804 = vmul.f32 %v3843, %v4356
  %v4805 = vmul.f32 %v3844, %v4357
  %v4806 = vmul.f32 %v3845, %v4358
  %v4807 = vmul.f32 %v3846, %v4359
  %v4808 = vmul.f32 %v3847, %v4360
  %v4809 = vmul.f32 %v3848, %v4361
  %v4810 = vmul.f32 %v3849, %v4362
  %v4811 = vmul.f32 %v3850, %v4363
  %v4812 = vmul.f32 %v3851, %v4364
  %v4813 = vmul.f32 %v3852, %v4365
  %v4814 = vmul.f32 %v3853, %v4366
  %v4815 = vmul.f32 %v3854, %v4367
  %v4816 = vmul.f32 %v3855, %v4336
  %v4817 = vmul.f32 %v3856, %v4337
  %v4818 = vmul.f32 %v3857, %v4338
  %v4819 = vmul.f32 %v3858, %v4339
  %v4820 = vmul.f32 %v3859, %v4340
  %v4821 = vmul.f32 %v3860, %v4341
  %v4822 = vmul.f32 %v3861, %v4342
  %v4823 = vmul.f32 %v3862, %v4343
  %v4824 = vmul.f32 %v3863, %v4344
  %v4825 = vmul.f32 %v3864, %v4345
  %v4826 = vmul.f32 %v3865, %v4346
  %v4827 = vmul.f32 %v3866, %v4347
  %v4828 = vmul.f32 %v3867, %v4348
  %v4829 = vmul.f32 %v3868, %v4349
  %v4830 = vmul.f32 %v3869, %v4350
  %v4831 = vmul.f32 %v3870, %v4351
  %v4832 = vmul.f32 %v3871, %v4352
  %v4833 = vmul.f32 %v3872, %v4353
  %v4834 = vmul.f32 %v3873, %v4354
  %v4835 = vmul.f32 %v3874, %v4355
  %v4836 = vmul.f32 %v3875, %v4356
  %v4837 = vmul.f32 %v3876, %v4357
  %v4838 = vmul.f32 %v3877, %v4358
  %v4839 = vmul.f32 %v3878, %v4359
  %v4840 = vmul.f32 %v3879, %v4360
  %v4841 = vmul.f32 %v3880, %v4361
  %v4842 = vmul.f32 %v3881, %v4362
  %v4843 = vmul.f32 %v3882, %v4363
  %v4844 = vmul.f32 %v3883, %v4364
  %v4845 = vmul.f32 %v3884, %v4365
  %v4846 = vmul.f32 %v3885, %v4366
  %v4847 = vmul.f32 %v3886, %v4367
  %v4848 = vmul.f32 %v3887, %v4336
  %v4849 = vmul.f32 %v3888, %v4337
  %v4850 = vmul.f32 %v3889, %v4338
  %v4851 = vmul.f32 %v3890, %v4339
  %v4852 = vmul.f32 %v3891, %v4340
  %v4853 = vmul.f32 %v3892, %v4341
  %v4854 = vmul.f32 %v3893, %v4342
  %v4855 = vmul.f32 %v3894, %v4343
  %v4856 = vmul.f32 %v3895, %v4344
  %v4857 = vmul.f32 %v3896, %v4345
  %v4858 = vmul.f32 %v3897, %v4346
  %v4859 = vmul.f32 %v3898, %v4347
  %v4860 = vmul.f32 %v3899, %v4348
  %v4861 = vmul.f32 %v3900, %v4349
  %v4862 = vmul.f32 %v3901, %v4350
  %v4863 = vmul.f32 %v3902, %v4351
  %v4864 = vmul.f32 %v3903, %v4352
  %v4865 = vmul.f32 %v3904, %v4353
  %v4866 = vmul.f32 %v3905, %v4354
  %v4867 = vmul.f32 %v3906, %v4355
  %v4868 = vmul.f32 %v3907, %v4356
  %v4869 = vmul.f32 %v3908, %v4357
  %v4870 = vmul.f32 %v3909, %v4358
  %v4871 = vmul.f32 %v3910, %v4359
  %v4872 = vmul.f32 %v3911, %v4360
  %v4873 = vmul.f32 %v3912, %v4361
  %v4874 = vmul.f32 %v3913, %v4362
  %v4875 = vmul.f32 %v3914, %v4363
  %v4876 = vmul.f32 %v3915, %v4364
  %v4877 = vmul.f32 %v3916, %v4365
  %v4878 = vmul.f32 %v3917, %v4366
  %v4879 = vmul.f32 %v3918, %v4367
  %v4880 = vmul.f32 %v3919, %v4175
  %v4881 = vmul.f32 %v3920, %v4176
  %v4882 = vmul.f32 %v3921, %v4177
  %v4883 = vmul.f32 %v3922, %v4178
  %v4884 = vmul.f32 %v3923, %v4179
  %v4885 = vmul.f32 %v3924, %v4180
  %v4886 = vmul.f32 %v3925, %v4181
  %v4887 = vmul.f32 %v3926, %v4182
  %v4888 = vmul.f32 %v3927, %v4183
  %v4889 = vmul.f32 %v3928, %v4184
  %v4890 = vmul.f32 %v3929, %v4185
  %v4891 = vmul.f32 %v3930, %v4186
  %v4892 = vmul.f32 %v3931, %v4187
  %v4893 = vmul.f32 %v3932, %v4188
  %v4894 = vmul.f32 %v3933, %v4189
  %v4895 = vmul.f32 %v3934, %v4190
  %v4896 = vmul.f32 %v3935, %v4191
  %v4897 = vmul.f32 %v3936, %v4192
  %v4898 = vmul.f32 %v3937, %v4193
  %v4899 = vmul.f32 %v3938, %v4194
  %v4900 = vmul.f32 %v3939, %v4195
  %v4901 = vmul.f32 %v3940, %v4196
  %v4902 = vmul.f32 %v3941, %v4197
  %v4903 = vmul.f32 %v3942, %v4198
  %v4904 = vmul.f32 %v3943, %v4199
  %v4905 = vmul.f32 %v3944, %v4200
  %v4906 = vmul.f32 %v3945, %v4201
  %v4907 = vmul.f32 %v3946, %v4202
  %v4908 = vmul.f32 %v3947, %v4203
  %v4909 = vmul.f32 %v3948, %v4204
  %v4910 = vmul.f32 %v3949, %v4205
  %v4911 = vmul.f32 %v3950, %v4206
  %v4912 = vmul.f32 %v3951, %v4175
  %v4913 = vmul.f32 %v3952, %v4176
  %v4914 = vmul.f32 %v3953, %v4177
  %v4915 = vmul.f32 %v3954, %v4178
  %v4916 = vmul.f32 %v3955, %v4179
  %v4917 = vmul.f32 %v3956, %v4180
  %v4918 = vmul.f32 %v3957, %v4181
  %v4919 = vmul.f32 %v3958, %v4182
  %v4920 = vmul.f32 %v3959, %v4183
  %v4921 = vmul.f32 %v3960, %v4184
  %v4922 = vmul.f32 %v3961, %v4185
  %v4923 = vmul.f32 %v3962, %v4186
  %v4924 = vmul.f32 %v3963, %v4187
  %v4925 = vmul.f32 %v3964, %v4188
  %v4926 = vmul.f32 %v3965, %v4189
  %v4927 = vmul.f32 %v3966, %v4190
  %v4928 = vmul.f32 %v3967, %v4191
  %v4929 = vmul.f32 %v3968, %v4192
  %v4930 = vmul.f32 %v3969, %v4193
  %v4931 = vmul.f32 %v3970, %v4194
  %v4932 = vmul.f32 %v3971, %v4195
  %v4933 = vmul.f32 %v3972, %v4196
  %v4934 = vmul.f32 %v3973, %v4197
  %v4935 = vmul.f32 %v3974, %v4198
  %v4936 = vmul.f32 %v3975, %v4199
  %v4937 = vmul.f32 %v3976, %v4200
  %v4938 = vmul.f32 %v3977, %v4201
  %v4939 = vmul.f32 %v3978, %v4202
  %v4940 = vmul.f32 %v3979, %v4203
  %v4941 = vmul.f32 %v3980, %v4204
  %v4942 = vmul.f32 %v3981, %v4205
  %v4943 = vmul.f32 %v3982, %v4206
  %v4944 = vmul.f32 %v3983, %v4175
  %v4945 = vmul.f32 %v3984, %v4176
  %v4946 = vmul.f32 %v3985, %v4177
  %v4947 = vmul.f32 %v3986, %v4178
  %v4948 = vmul.f32 %v3987, %v4179
  %v4949 = vmul.f32 %v3988, %v4180
  %v4950 = vmul.f32 %v3989, %v4181
  %v4951 = vmul.f32 %v3990, %v4182
  %v4952 = vmul.f32 %v3991, %v4183
  %v4953 = vmul.f32 %v3992, %v4184
  %v4954 = vmul.f32 %v3993, %v4185
  %v4955 = vmul.f32 %v3994, %v4186
  %v4956 = vmul.f32 %v3995, %v4187
  %v4957 = vmul.f32 %v3996, %v4188
  %v4958 = vmul.f32 %v3997, %v4189
  %v4959 = vmul.f32 %v3998, %v4190
  %v4960 = vmul.f32 %v3999, %v4191
  %v4961 = vmul.f32 %v4000, %v4192
  %v4962 = vmul.f32 %v4001, %v4193
  %v4963 = vmul.f32 %v4002, %v4194
  %v4964 = vmul.f32 %v4003, %v4195
  %v4965 = vmul.f32 %v4004, %v4196
  %v4966 = vmul.f32 %v4005, %v4197
  %v4967 = vmul.f32 %v4006, %v4198
  %v4968 = vmul.f32 %v4007, %v4199
  %v4969 = vmul.f32 %v4008, %v4200
  %v4970 = vmul.f32 %v4009, %v4201
  %v4971 = vmul.f32 %v4010, %v4202
  %v4972 = vmul.f32 %v4011, %v4203
  %v4973 = vmul.f32 %v4012, %v4204
  %v4974 = vmul.f32 %v4013, %v4205
  %v4975 = vmul.f32 %v4014, %v4206
  %v4976 = vmul.f32 %v4015, %v4175
  %v4977 = vmul.f32 %v4016, %v4176
  %v4978 = vmul.f32 %v4017, %v4177
  %v4979 = vmul.f32 %v4018, %v4178
  %v4980 = vmul.f32 %v4019, %v4179
  %v4981 = vmul.f32 %v4020, %v4180
  %v4982 = vmul.f32 %v4021, %v4181
  %v4983 = vmul.f32 %v4022, %v4182
  %v4984 = vmul.f32 %v4023, %v4183
  %v4985 = vmul.f32 %v4024, %v4184
  %v4986 = vmul.f32 %v4025, %v4185
  %v4987 = vmul.f32 %v4026, %v4186
  %v4988 = vmul.f32 %v4027, %v4187
  %v4989 = vmul.f32 %v4028, %v4188
  %v4990 = vmul.f32 %v4029, %v4189
  %v4991 = vmul.f32 %v4030, %v4190
  %v4992 = vmul.f32 %v4031, %v4191
  %v4993 = vmul.f32 %v4032, %v4192
  %v4994 = vmul.f32 %v4033, %v4193
  %v4995 = vmul.f32 %v4034, %v4194
  %v4996 = vmul.f32 %v4035, %v4195
  %v4997 = vmul.f32 %v4036, %v4196
  %v4998 = vmul.f32 %v4037, %v4197
  %v4999 = vmul.f32 %v4038, %v4198
  %v5000 = vmul.f32 %v4039, %v4199
  %v5001 = vmul.f32 %v4040, %v4200
  %v5002 = vmul.f32 %v4041, %v4201
  %v5003 = vmul.f32 %v4042, %v4202
  %v5004 = vmul.f32 %v4043, %v4203
  %v5005 = vmul.f32 %v4044, %v4204
  %v5006 = vmul.f32 %v4045, %v4205
  %v5007 = vmul.f32 %v4046, %v4206
  %v5008 = vadd.f32 %v4752, %v4880
  %v5009 = vadd.f32 %v4753, %v4881
  %v5010 = vadd.f32 %v4754, %v4882
  %v5011 = vadd.f32 %v4755, %v4883
  %v5012 = vadd.f32 %v4756, %v4884
  %v5013 = vadd.f32 %v4757, %v4885
  %v5014 = vadd.f32 %v4758, %v4886
  %v5015 = vadd.f32 %v4759, %v4887
  %v5016 = vadd.f32 %v4760, %v4888
  %v5017 = vadd.f32 %v4761, %v4889
  %v5018 = vadd.f32 %v4762, %v4890
  %v5019 = vadd.f32 %v4763, %v4891
  %v5020 = vadd.f32 %v4764, %v4892
  %v5021 = vadd.f32 %v4765, %v4893
  %v5022 = vadd.f32 %v4766, %v4894
  %v5023 = vadd.f32 %v4767, %v4895
  %v5024 = vadd.f32 %v4768, %v4896
  %v5025 = vadd.f32 %v4769, %v4897
  %v5026 = vadd.f32 %v4770, %v4898
  %v5027 = vadd.f32 %v4771, %v4899
  %v5028 = vadd.f32 %v4772, %v4900
  %v5029 = vadd.f32 %v4773, %v4901
  %v5030 = vadd.f32 %v4774, %v4902
  %v5031 = vadd.f32 %v4775, %v4903
  %v5032 = vadd.f32 %v4776, %v4904
  %v5033 = vadd.f32 %v4777, %v4905
  %v5034 = vadd.f32 %v4778, %v4906
  %v5035 = vadd.f32 %v4779, %v4907
  %v5036 = vadd.f32 %v4780, %v4908
  %v5037 = vadd.f32 %v4781, %v4909
  %v5038 = vadd.f32 %v4782, %v4910
  %v5039 = vadd.f32 %v4783, %v4911
  %v5040 = vadd.f32 %v4784, %v4912
  %v5041 = vadd.f32 %v4785, %v4913
  %v5042 = vadd.f32 %v4786, %v4914
  %v5043 = vadd.f32 %v4787, %v4915
  %v5044 = vadd.f32 %v4788, %v4916
  %v5045 = vadd.f32 %v4789, %v4917
  %v5046 = vadd.f32 %v4790, %v4918
  %v5047 = vadd.f32 %v4791, %v4919
  %v5048 = vadd.f32 %v4792, %v4920
  %v5049 = vadd.f32 %v4793, %v4921
  %v5050 = vadd.f32 %v4794, %v4922
  %v5051 = vadd.f32 %v4795, %v4923
  %v5052 = vadd.f32 %v4796, %v4924
  %v5053 = vadd.f32 %v4797, %v4925
  %v5054 = vadd.f32 %v4798, %v4926
  %v5055 = vadd.f32 %v4799, %v4927
  %v5056 = vadd.f32 %v4800, %v4928
  %v5057 = vadd.f32 %v4801, %v4929
  %v5058 = vadd.f32 %v4802, %v4930
  %v5059 = vadd.f32 %v4803, %v4931
  %v5060 = vadd.f32 %v4804, %v4932
  %v5061 = vadd.f32 %v4805, %v4933
  %v5062 = vadd.f32 %v4806, %v4934
  %v5063 = vadd.f32 %v4807, %v4935
  %v5064 = vadd.f32 %v4808, %v4936
  %v5065 = vadd.f32 %v4809, %v4937
  %v5066 = vadd.f32 %v4810, %v4938
  %v5067 = vadd.f32 %v4811, %v4939
  %v5068 = vadd.f32 %v4812, %v4940
  %v5069 = vadd.f32 %v4813, %v4941
  %v5070 = vadd.f32 %v4814, %v4942
  %v5071 = vadd.f32 %v4815, %v4943
  %v5072 = vadd.f32 %v4816, %v4944
  %v5073 = vadd.f32 %v4817, %v4945
  %v5074 = vadd.f32 %v4818, %v4946
  %v5075 = vadd.f32 %v4819, %v4947
  %v5076 = vadd.f32 %v4820, %v4948
  %v5077 = vadd.f32 %v4821, %v4949
  %v5078 = vadd.f32 %v4822, %v4950
  %v5079 = vadd.f32 %v4823, %v4951
  %v5080 = vadd.f32 %v4824, %v4952
  %v5081 = vadd.f32 %v4825, %v4953
  %v5082 = vadd.f32 %v4826, %v4954
  %v5083 = vadd.f32 %v4827, %v4955
  %v5084 = vadd.f32 %v4828, %v4956
  %v5085 = vadd.f32 %v4829, %v4957
  %v5086 = vadd.f32 %v4830, %v4958
  %v5087 = vadd.f32 %v4831, %v4959
  %v5088 = vadd.f32 %v4832, %v4960
  %v5089 = vadd.f32 %v4833, %v4961
  %v5090 = vadd.f32 %v4834, %v4962
  %v5091 = vadd.f32 %v4835, %v4963
  %v5092 = vadd.f32 %v4836, %v4964
  %v5093 = vadd.f32 %v4837, %v4965
  %v5094 = vadd.f32 %v4838, %v4966
  %v5095 = vadd.f32 %v4839, %v4967
  %v5096 = vadd.f32 %v4840, %v4968
  %v5097 = vadd.f32 %v4841, %v4969
  %v5098 = vadd.f32 %v4842, %v4970
  %v5099 = vadd.f32 %v4843, %v4971
  %v5100 = vadd.f32 %v4844, %v4972
  %v5101 = vadd.f32 %v4845, %v4973
  %v5102 = vadd.f32 %v4846, %v4974
  %v5103 = vadd.f32 %v4847, %v4975
  %v5104 = vadd.f32 %v4848, %v4976
  %v5105 = vadd.f32 %v4849, %v4977
  %v5106 = vadd.f32 %v4850, %v4978
  %v5107 = vadd.f32 %v4851, %v4979
  %v5108 = vadd.f32 %v4852, %v4980
  %v5109 = vadd.f32 %v4853, %v4981
  %v5110 = vadd.f32 %v4854, %v4982
  %v5111 = vadd.f32 %v4855, %v4983
  %v5112 = vadd.f32 %v4856, %v4984
  %v5113 = vadd.f32 %v4857, %v4985
  %v5114 = vadd.f32 %v4858, %v4986
  %v5115 = vadd.f32 %v4859, %v4987
  %v5116 = vadd.f32 %v4860, %v4988
  %v5117 = vadd.f32 %v4861, %v4989
  %v5118 = vadd.f32 %v4862, %v4990
  %v5119 = vadd.f32 %v4863, %v4991
  %v5120 = vadd.f32 %v4864, %v4992
  %v5121 = vadd.f32 %v4865, %v4993
  %v5122 = vadd.f32 %v4866, %v4994
  %v5123 = vadd.f32 %v4867, %v4995
  %v5124 = vadd.f32 %v4868, %v4996
  %v5125 = vadd.f32 %v4869, %v4997
  %v5126 = vadd.f32 %v4870, %v4998
  %v5127 = vadd.f32 %v4871, %v4999
  %v5128 = vadd.f32 %v4872, %v5000
  %v5129 = vadd.f32 %v4873, %v5001
  %v5130 = vadd.f32 %v4874, %v5002
  %v5131 = vadd.f32 %v4875, %v5003
  %v5132 = vadd.f32 %v4876, %v5004
  %v5133 = vadd.f32 %v4877, %v5005
  %v5134 = vadd.f32 %v4878, %v5006
  %v5135 = vadd.f32 %v4879, %v5007
  %v5136 = vadd.f32 %v4624, %v5008
  %v5137 = vadd.f32 %v4625, %v5009
  %v5138 = vadd.f32 %v4626, %v5010
  %v5139 = vadd.f32 %v4627, %v5011
  %v5140 = vadd.f32 %v4628, %v5012
  %v5141 = vadd.f32 %v4629, %v5013
  %v5142 = vadd.f32 %v4630, %v5014
  %v5143 = vadd.f32 %v4631, %v5015
  %v5144 = vadd.f32 %v4632, %v5016
  %v5145 = vadd.f32 %v4633, %v5017
  %v5146 = vadd.f32 %v4634, %v5018
  %v5147 = vadd.f32 %v4635, %v5019
  %v5148 = vadd.f32 %v4636, %v5020
  %v5149 = vadd.f32 %v4637, %v5021
  %v5150 = vadd.f32 %v4638, %v5022
  %v5151 = vadd.f32 %v4639, %v5023
  %v5152 = vadd.f32 %v4640, %v5024
  %v5153 = vadd.f32 %v4641, %v5025
  %v5154 = vadd.f32 %v4642, %v5026
  %v5155 = vadd.f32 %v4643, %v5027
  %v5156 = vadd.f32 %v4644, %v5028
  %v5157 = vadd.f32 %v4645, %v5029
  %v5158 = vadd.f32 %v4646, %v5030
  %v5159 = vadd.f32 %v4647, %v5031
  %v5160 = vadd.f32 %v4648, %v5032
  %v5161 = vadd.f32 %v4649, %v5033
  %v5162 = vadd.f32 %v4650, %v5034
  %v5163 = vadd.f32 %v4651, %v5035
  %v5164 = vadd.f32 %v4652, %v5036
  %v5165 = vadd.f32 %v4653, %v5037
  %v5166 = vadd.f32 %v4654, %v5038
  %v5167 = vadd.f32 %v4655, %v5039
  %v5168 = vadd.f32 %v4656, %v5040
  %v5169 = vadd.f32 %v4657, %v5041
  %v5170 = vadd.f32 %v4658, %v5042
  %v5171 = vadd.f32 %v4659, %v5043
  %v5172 = vadd.f32 %v4660, %v5044
  %v5173 = vadd.f32 %v4661, %v5045
  %v5174 = vadd.f32 %v4662, %v5046
  %v5175 = vadd.f32 %v4663, %v5047
  %v5176 = vadd.f32 %v4664, %v5048
  %v5177 = vadd.f32 %v4665, %v5049
  %v5178 = vadd.f32 %v4666, %v5050
  %v5179 = vadd.f32 %v4667, %v5051
  %v5180 = vadd.f32 %v4668, %v5052
  %v5181 = vadd.f32 %v4669, %v5053
  %v5182 = vadd.f32 %v4670, %v5054
  %v5183 = vadd.f32 %v4671, %v5055
  %v5184 = vadd.f32 %v4672, %v5056
  %v5185 = vadd.f32 %v4673, %v5057
  %v5186 = vadd.f32 %v4674, %v5058
  %v5187 = vadd.f32 %v4675, %v5059
  %v5188 = vadd.f32 %v4676, %v5060
  %v5189 = vadd.f32 %v4677, %v5061
  %v5190 = vadd.f32 %v4678, %v5062
  %v5191 = vadd.f32 %v4679, %v5063
  %v5192 = vadd.f32 %v4680, %v5064
  %v5193 = vadd.f32 %v4681, %v5065
  %v5194 = vadd.f32 %v4682, %v5066
  %v5195 = vadd.f32 %v4683, %v5067
  %v5196 = vadd.f32 %v4684, %v5068
  %v5197 = vadd.f32 %v4685, %v5069
  %v5198 = vadd.f32 %v4686, %v5070
  %v5199 = vadd.f32 %v4687, %v5071
  %v5200 = vadd.f32 %v4688, %v5072
  %v5201 = vadd.f32 %v4689, %v5073
  %v5202 = vadd.f32 %v4690, %v5074
  %v5203 = vadd.f32 %v4691, %v5075
  %v5204 = vadd.f32 %v4692, %v5076
  %v5205 = vadd.f32 %v4693, %v5077
  %v5206 = vadd.f32 %v4694, %v5078
  %v5207 = vadd.f32 %v4695, %v5079
  %v5208 = vadd.f32 %v4696, %v5080
  %v5209 = vadd.f32 %v4697, %v5081
  %v5210 = vadd.f32 %v4698, %v5082
  %v5211 = vadd.f32 %v4699, %v5083
  %v5212 = vadd.f32 %v4700, %v5084
  %v5213 = vadd.f32 %v4701, %v5085
  %v5214 = vadd.f32 %v4702, %v5086
  %v5215 = vadd.f32 %v4703, %v5087
  %v5216 = vadd.f32 %v4704, %v5088
  %v5217 = vadd.f32 %v4705, %v5089
  %v5218 = vadd.f32 %v4706, %v5090
  %v5219 = vadd.f32 %v4707, %v5091
  %v5220 = vadd.f32 %v4708, %v5092
  %v5221 = vadd.f32 %v4709, %v5093
  %v5222 = vadd.f32 %v4710, %v5094
  %v5223 = vadd.f32 %v4711, %v5095
  %v5224 = vadd.f32 %v4712, %v5096
  %v5225 = vadd.f32 %v4713, %v5097
  %v5226 = vadd.f32 %v4714, %v5098
  %v5227 = vadd.f32 %v4715, %v5099
  %v5228 = vadd.f32 %v4716, %v5100
  %v5229 = vadd.f32 %v4717, %v5101
  %v5230 = vadd.f32 %v4718, %v5102
  %v5231 = vadd.f32 %v4719, %v5103
  %v5232 = vadd.f32 %v4720, %v5104
  %v5233 = vadd.f32 %v4721, %v5105
  %v5234 = vadd.f32 %v4722, %v5106
  %v5235 = vadd.f32 %v4723, %v5107
  %v5236 = vadd.f32 %v4724, %v5108
  %v5237 = vadd.f32 %v4725, %v5109
  %v5238 = vadd.f32 %v4726, %v5110
  %v5239 = vadd.f32 %v4727, %v5111
  %v5240 = vadd.f32 %v4728, %v5112
  %v5241 = vadd.f32 %v4729, %v5113
  %v5242 = vadd.f32 %v4730, %v5114
  %v5243 = vadd.f32 %v4731, %v5115
  %v5244 = vadd.f32 %v4732, %v5116
  %v5245 = vadd.f32 %v4733, %v5117
  %v5246 = vadd.f32 %v4734, %v5118
  %v5247 = vadd.f32 %v4735, %v5119
  %v5248 = vadd.f32 %v4736, %v5120
  %v5249 = vadd.f32 %v4737, %v5121
  %v5250 = vadd.f32 %v4738, %v5122
  %v5251 = vadd.f32 %v4739, %v5123
  %v5252 = vadd.f32 %v4740, %v5124
  %v5253 = vadd.f32 %v4741, %v5125
  %v5254 = vadd.f32 %v4742, %v5126
  %v5255 = vadd.f32 %v4743, %v5127
  %v5256 = vadd.f32 %v4744, %v5128
  %v5257 = vadd.f32 %v4745, %v5129
  %v5258 = vadd.f32 %v4746, %v5130
  %v5259 = vadd.f32 %v4747, %v5131
  %v5260 = vadd.f32 %v4748, %v5132
  %v5261 = vadd.f32 %v4749, %v5133
  %v5262 = vadd.f32 %v4750, %v5134
  %v5263 = vadd.f32 %v4751, %v5135
  %v5264 = vpack.c.bf16 %v5137, %v5136
  %v5265 = vpack.c.bf16 %v5139, %v5138
  %v5266 = vpack.c.bf16 %v5141, %v5140
  %v5267 = vpack.c.bf16 %v5143, %v5142
  %v5268 = vpack.c.bf16 %v5145, %v5144
  %v5269 = vpack.c.bf16 %v5147, %v5146
  %v5270 = vpack.c.bf16 %v5149, %v5148
  %v5271 = vpack.c.bf16 %v5151, %v5150
  %v5272 = vpack.c.bf16 %v5153, %v5152
  %v5273 = vpack.c.bf16 %v5155, %v5154
  %v5274 = vpack.c.bf16 %v5157, %v5156
  %v5275 = vpack.c.bf16 %v5159, %v5158
  %v5276 = vpack.c.bf16 %v5161, %v5160
  %v5277 = vpack.c.bf16 %v5163, %v5162
  %v5278 = vpack.c.bf16 %v5165, %v5164
  %v5279 = vpack.c.bf16 %v5167, %v5166
  %v5280 = vpack.c.bf16 %v5169, %v5168
  %v5281 = vpack.c.bf16 %v5171, %v5170
  %v5282 = vpack.c.bf16 %v5173, %v5172
  %v5283 = vpack.c.bf16 %v5175, %v5174
  %v5284 = vpack.c.bf16 %v5177, %v5176
  %v5285 = vpack.c.bf16 %v5179, %v5178
  %v5286 = vpack.c.bf16 %v5181, %v5180
  %v5287 = vpack.c.bf16 %v5183, %v5182
  %v5288 = vpack.c.bf16 %v5185, %v5184
  %v5289 = vpack.c.bf16 %v5187, %v5186
  %v5290 = vpack.c.bf16 %v5189, %v5188
  %v5291 = vpack.c.bf16 %v5191, %v5190
  %v5292 = vpack.c.bf16 %v5193, %v5192
  %v5293 = vpack.c.bf16 %v5195, %v5194
  %v5294 = vpack.c.bf16 %v5197, %v5196
  %v5295 = vpack.c.bf16 %v5199, %v5198
  %v5296 = vpack.c.bf16 %v5201, %v5200
  %v5297 = vpack.c.bf16 %v5203, %v5202
  %v5298 = vpack.c.bf16 %v5205, %v5204
  %v5299 = vpack.c.bf16 %v5207, %v5206
  %v5300 = vpack.c.bf16 %v5209, %v5208
  %v5301 = vpack.c.bf16 %v5211, %v5210
  %v5302 = vpack.c.bf16 %v5213, %v5212
  %v5303 = vpack.c.bf16 %v5215, %v5214
  %v5304 = vpack.c.bf16 %v5217, %v5216
  %v5305 = vpack.c.bf16 %v5219, %v5218
  %v5306 = vpack.c.bf16 %v5221, %v5220
  %v5307 = vpack.c.bf16 %v5223, %v5222
  %v5308 = vpack.c.bf16 %v5225, %v5224
  %v5309 = vpack.c.bf16 %v5227, %v5226
  %v5310 = vpack.c.bf16 %v5229, %v5228
  %v5311 = vpack.c.bf16 %v5231, %v5230
  %v5312 = vpack.c.bf16 %v5233, %v5232
  %v5313 = vpack.c.bf16 %v5235, %v5234
  %v5314 = vpack.c.bf16 %v5237, %v5236
  %v5315 = vpack.c.bf16 %v5239, %v5238
  %v5316 = vpack.c.bf16 %v5241, %v5240
  %v5317 = vpack.c.bf16 %v5243, %v5242
  %v5318 = vpack.c.bf16 %v5245, %v5244
  %v5319 = vpack.c.bf16 %v5247, %v5246
  %v5320 = vpack.c.bf16 %v5249, %v5248
  %v5321 = vpack.c.bf16 %v5251, %v5250
  %v5322 = vpack.c.bf16 %v5253, %v5252
  %v5323 = vpack.c.bf16 %v5255, %v5254
  %v5324 = vpack.c.bf16 %v5257, %v5256
  %v5325 = vpack.c.bf16 %v5259, %v5258
  %v5326 = vpack.c.bf16 %v5261, %v5260
  %v5327 = vpack.c.bf16 %v5263, %v5262
  %v5328 = vld [vmem:[%s6] sm:$0xf]
  %v5329 = vld [vmem:[%s6 + $0x4] sm:$0xf]
  %v5330 = vld [vmem:[%s6 + $0x8] sm:$0xf]
  %v5331 = vld [vmem:[%s6 + $0xc] sm:$0xf]
  %v5336 = vunpack.c.l.b16 %v5328
  %v5337 = vunpack.c.l.b16 %v5329
  %v5338 = vunpack.c.l.b16 %v5330
  %v5339 = vunpack.c.l.b16 %v5331
  %v5340 = vpack.c.b16 %v5337, %v5336
  %v5341 = vpack.c.b16 %v5339, %v5338
  %vm5344 = vcmask 261120
  %v5346 = vsel %vm5344, %v5264, 0
  %v5349 = vsel %vm5344, %v5265, 0
  %v5352 = vsel %vm5344, %v5266, 0
  %v5355 = vsel %vm5344, %v5267, 0
  %v5358 = vsel %vm5344, %v5268, 0
  %v5361 = vsel %vm5344, %v5269, 0
  %v5364 = vsel %vm5344, %v5270, 0
  %v5367 = vsel %vm5344, %v5271, 0
  %v5370 = vsel %vm5344, %v5272, 0
  %v5373 = vsel %vm5344, %v5273, 0
  %v5376 = vsel %vm5344, %v5274, 0
  %v5379 = vsel %vm5344, %v5275, 0
  %v5382 = vsel %vm5344, %v5276, 0
  %v5385 = vsel %vm5344, %v5277, 0
  %v5388 = vsel %vm5344, %v5278, 0
  %v5391 = vsel %vm5344, %v5279, 0
  %v5394 = vsel %vm5344, %v5280, 0
  %v5397 = vsel %vm5344, %v5281, 0
  %v5400 = vsel %vm5344, %v5282, 0
  %v5403 = vsel %vm5344, %v5283, 0
  %v5406 = vsel %vm5344, %v5284, 0
  %v5409 = vsel %vm5344, %v5285, 0
  %v5412 = vsel %vm5344, %v5286, 0
  %v5415 = vsel %vm5344, %v5287, 0
  %v5418 = vsel %vm5344, %v5288, 0
  %v5421 = vsel %vm5344, %v5289, 0
  %v5424 = vsel %vm5344, %v5290, 0
  %v5427 = vsel %vm5344, %v5291, 0
  %v5430 = vsel %vm5344, %v5292, 0
  %v5433 = vsel %vm5344, %v5293, 0
  %v5436 = vsel %vm5344, %v5294, 0
  %v5439 = vsel %vm5344, %v5295, 0
  %v5442 = vsel %vm5344, %v5296, 0
  %v5445 = vsel %vm5344, %v5297, 0
  %v5448 = vsel %vm5344, %v5298, 0
  %v5451 = vsel %vm5344, %v5299, 0
  %v5454 = vsel %vm5344, %v5300, 0
  %v5457 = vsel %vm5344, %v5301, 0
  %v5460 = vsel %vm5344, %v5302, 0
  %v5463 = vsel %vm5344, %v5303, 0
  %v5466 = vsel %vm5344, %v5304, 0
  %v5469 = vsel %vm5344, %v5305, 0
  %v5472 = vsel %vm5344, %v5306, 0
  %v5475 = vsel %vm5344, %v5307, 0
  %v5478 = vsel %vm5344, %v5308, 0
  %v5481 = vsel %vm5344, %v5309, 0
  %v5484 = vsel %vm5344, %v5310, 0
  %v5487 = vsel %vm5344, %v5311, 0
  %v5490 = vsel %vm5344, %v5312, 0
  %v5493 = vsel %vm5344, %v5313, 0
  %v5496 = vsel %vm5344, %v5314, 0
  %v5499 = vsel %vm5344, %v5315, 0
  %v5502 = vsel %vm5344, %v5316, 0
  %v5505 = vsel %vm5344, %v5317, 0
  %v5508 = vsel %vm5344, %v5318, 0
  %v5511 = vsel %vm5344, %v5319, 0
  %v5514 = vsel %vm5344, %v5320, 0
  %v5517 = vsel %vm5344, %v5321, 0
  %v5520 = vsel %vm5344, %v5322, 0
  %v5523 = vsel %vm5344, %v5323, 0
  %v5526 = vsel %vm5344, %v5324, 0
  %v5529 = vsel %vm5344, %v5325, 0
  %v5532 = vsel %vm5344, %v5326, 0
  %v5535 = vsel %vm5344, %v5327, 0
  %5537 = vmatprep.subr.bf16.mxu0 0
  %5538 = vmatpush1.bf16.msra.mxu0 %v5340
  %5539 = vmatprep.subr.bf16.mxu0 0
  %5540 = vmatpush1.bf16.msra.mxu0 %v5341
  %5541 = vmatprep.subr.bf16.mxu0 0
  %5542 = vmatpush1.bf16.msra.mxu0 0
  %5543 = vmatprep.subr.bf16.mxu0 0
  %5544 = vmatpush1.bf16.msra.mxu0 0
  %5545 = vmatprep.subr.bf16.mxu0 0
  %5546 = vmatpush1.bf16.msra.mxu0 0
  %5547 = vmatprep.subr.bf16.mxu0 0
  %5548 = vmatpush1.bf16.msra.mxu0 0
  %5549 = vmatprep.subr.bf16.mxu0 0
  %5550 = vmatpush1.bf16.msra.mxu0 0
  %5551 = vmatprep.subr.bf16.mxu0 0
  %5552 = vmatpush1.bf16.msra.mxu0 0
  %5553 = vmatprep.subr.bf16.mxu0 0
  %5554 = vmatpush1.bf16.msra.mxu0 0
  %5555 = vmatprep.subr.bf16.mxu0 0
  %5556 = vmatpush1.bf16.msra.mxu0 0
  %5557 = vmatprep.subr.bf16.mxu0 0
  %5558 = vmatpush1.bf16.msra.mxu0 0
  %5559 = vmatprep.subr.bf16.mxu0 0
  %5560 = vmatpush1.bf16.msra.mxu0 0
  %5561 = vmatprep.subr.bf16.mxu0 0
  %5562 = vmatpush1.bf16.msra.mxu0 0
  %5563 = vmatprep.subr.bf16.mxu0 0
  %5564 = vmatpush1.bf16.msra.mxu0 0
  %5565 = vmatprep.subr.bf16.mxu0 0
  %5566 = vmatpush1.bf16.msra.mxu0 0
  %5567 = vmatprep.subr.bf16.mxu0 0
  %5568 = vmatpush1.bf16.msra.mxu0 0
  %5569 = vmatprep.mubr.bf16.mxu0 0
  %5570 = vmatmul.mubr.bf16.gmra.mrb[0].mxu0 %v5346
  %v5571 = vpop.f32.mrb[0].mxu0
  %v5572 = vadd.f32 0.0, %v5571
  %v5573 = vpop.f32.mrb[0].mxu0
  %v5574 = vpop.f32.mrb[0].mxu0
  %v5575 = vadd.f32 0.0, %v5574
  %v5576 = vpop.f32.mrb[0].mxu0
  %5577 = vmatprep.mubr.bf16.mxu0 0
  %5578 = vmatmul.mubr.bf16.gmra.mrb[0].mxu0 %v5349
  %v5579 = vpop.f32.mrb[0].mxu0
  %v5580 = vadd.f32 0.0, %v5579
  %v5581 = vpop.f32.mrb[0].mxu0
  %v5582 = vpop.f32.mrb[0].mxu0
  %v5583 = vadd.f32 0.0, %v5582
  %v5584 = vpop.f32.mrb[0].mxu0
  %5585 = vmatprep.mubr.bf16.mxu0 0
  %5586 = vmatmul.mubr.bf16.gmra.mrb[0].mxu0 %v5352
  %v5587 = vpop.f32.mrb[0].mxu0
  %v5588 = vadd.f32 0.0, %v5587
  %v5589 = vpop.f32.mrb[0].mxu0
  %v5590 = vpop.f32.mrb[0].mxu0
  %v5591 = vadd.f32 0.0, %v5590
  %v5592 = vpop.f32.mrb[0].mxu0
  %5593 = vmatprep.mubr.bf16.mxu0 0
  %5594 = vmatmul.mubr.bf16.gmra.mrb[0].mxu0 %v5355
  %v5595 = vpop.f32.mrb[0].mxu0
  %v5596 = vadd.f32 0.0, %v5595
  %v5597 = vpop.f32.mrb[0].mxu0
  %v5598 = vpop.f32.mrb[0].mxu0
  %v5599 = vadd.f32 0.0, %v5598
  %v5600 = vpop.f32.mrb[0].mxu0
  %5601 = vmatprep.mubr.bf16.mxu0 0
  %5602 = vmatmul.mubr.bf16.gmra.mrb[0].mxu0 %v5358
  %v5603 = vpop.f32.mrb[0].mxu0
  %v5604 = vadd.f32 0.0, %v5603
  %v5605 = vpop.f32.mrb[0].mxu0
  %v5606 = vpop.f32.mrb[0].mxu0
  %v5607 = vadd.f32 0.0, %v5606
  %v5608 = vpop.f32.mrb[0].mxu0
  %5609 = vmatprep.mubr.bf16.mxu0 0
  %5610 = vmatmul.mubr.bf16.gmra.mrb[0].mxu0 %v5361
  %v5611 = vpop.f32.mrb[0].mxu0
  %v5612 = vadd.f32 0.0, %v5611
  %v5613 = vpop.f32.mrb[0].mxu0
  %v5614 = vpop.f32.mrb[0].mxu0
  %v5615 = vadd.f32 0.0, %v5614
  %v5616 = vpop.f32.mrb[0].mxu0
  %5617 = vmatprep.mubr.bf16.mxu0 0
  %5618 = vmatmul.mubr.bf16.gmra.mrb[0].mxu0 %v5364
  %v5619 = vpop.f32.mrb[0].mxu0
  %v5620 = vadd.f32 0.0, %v5619
  %v5621 = vpop.f32.mrb[0].mxu0
  %v5622 = vpop.f32.mrb[0].mxu0
  %v5623 = vadd.f32 0.0, %v5622
  %v5624 = vpop.f32.mrb[0].mxu0
  %5625 = vmatprep.mubr.bf16.mxu0 0
  %5626 = vmatmul.mubr.bf16.gmra.mrb[0].mxu0 %v5367
  %v5627 = vpop.f32.mrb[0].mxu0
  %v5628 = vadd.f32 0.0, %v5627
  %v5629 = vpop.f32.mrb[0].mxu0
  %v5630 = vpop.f32.mrb[0].mxu0
  %v5631 = vadd.f32 0.0, %v5630
  %v5632 = vpop.f32.mrb[0].mxu0
  %5633 = vmatprep.mubr.bf16.mxu0 0
  %5634 = vmatmul.mubr.bf16.gmra.mrb[0].mxu0 %v5370
  %v5635 = vpop.f32.mrb[0].mxu0
  %v5636 = vadd.f32 0.0, %v5635
  %v5637 = vpop.f32.mrb[0].mxu0
  %v5638 = vpop.f32.mrb[0].mxu0
  %v5639 = vadd.f32 0.0, %v5638
  %v5640 = vpop.f32.mrb[0].mxu0
  %5641 = vmatprep.mubr.bf16.mxu0 0
  %5642 = vmatmul.mubr.bf16.gmra.mrb[0].mxu0 %v5373
  %v5643 = vpop.f32.mrb[0].mxu0
  %v5644 = vadd.f32 0.0, %v5643
  %v5645 = vpop.f32.mrb[0].mxu0
  %v5646 = vpop.f32.mrb[0].mxu0
  %v5647 = vadd.f32 0.0, %v5646
  %v5648 = vpop.f32.mrb[0].mxu0
  %5649 = vmatprep.mubr.bf16.mxu0 0
  %5650 = vmatmul.mubr.bf16.gmra.mrb[0].mxu0 %v5376
  %v5651 = vpop.f32.mrb[0].mxu0
  %v5652 = vadd.f32 0.0, %v5651
  %v5653 = vpop.f32.mrb[0].mxu0
  %v5654 = vpop.f32.mrb[0].mxu0
  %v5655 = vadd.f32 0.0, %v5654
  %v5656 = vpop.f32.mrb[0].mxu0
  %5657 = vmatprep.mubr.bf16.mxu0 0
  %5658 = vmatmul.mubr.bf16.gmra.mrb[0].mxu0 %v5379
  %v5659 = vpop.f32.mrb[0].mxu0
  %v5660 = vadd.f32 0.0, %v5659
  %v5661 = vpop.f32.mrb[0].mxu0
  %v5662 = vpop.f32.mrb[0].mxu0
  %v5663 = vadd.f32 0.0, %v5662
  %v5664 = vpop.f32.mrb[0].mxu0
  %5665 = vmatprep.mubr.bf16.mxu0 0
  %5666 = vmatmul.mubr.bf16.gmra.mrb[0].mxu0 %v5382
  %v5667 = vpop.f32.mrb[0].mxu0
  %v5668 = vadd.f32 0.0, %v5667
  %v5669 = vpop.f32.mrb[0].mxu0
  %v5670 = vpop.f32.mrb[0].mxu0
  %v5671 = vadd.f32 0.0, %v5670
  %v5672 = vpop.f32.mrb[0].mxu0
  %5673 = vmatprep.mubr.bf16.mxu0 0
  %5674 = vmatmul.mubr.bf16.gmra.mrb[0].mxu0 %v5385
  %v5675 = vpop.f32.mrb[0].mxu0
  %v5676 = vadd.f32 0.0, %v5675
  %v5677 = vpop.f32.mrb[0].mxu0
  %v5678 = vpop.f32.mrb[0].mxu0
  %v5679 = vadd.f32 0.0, %v5678
  %v5680 = vpop.f32.mrb[0].mxu0
  %5681 = vmatprep.mubr.bf16.mxu0 0
  %5682 = vmatmul.mubr.bf16.gmra.mrb[0].mxu0 %v5388
  %v5683 = vpop.f32.mrb[0].mxu0
  %v5684 = vadd.f32 0.0, %v5683
  %v5685 = vpop.f32.mrb[0].mxu0
  %v5686 = vpop.f32.mrb[0].mxu0
  %v5687 = vadd.f32 0.0, %v5686
  %v5688 = vpop.f32.mrb[0].mxu0
  %5689 = vmatprep.mubr.bf16.mxu0 0
  %5690 = vmatmul.mubr.bf16.gmra.mrb[0].mxu0 %v5391
  %v5691 = vpop.f32.mrb[0].mxu0
  %v5692 = vadd.f32 0.0, %v5691
  %v5693 = vpop.f32.mrb[0].mxu0
  %v5694 = vpop.f32.mrb[0].mxu0
  %v5695 = vadd.f32 0.0, %v5694
  %v5696 = vpop.f32.mrb[0].mxu0
  %5697 = vmatprep.mubr.bf16.mxu0 0
  %5698 = vmatmul.mubr.bf16.gmra.mrb[0].mxu0 %v5394
  %v5699 = vpop.f32.mrb[0].mxu0
  %v5700 = vadd.f32 0.0, %v5699
  %v5701 = vpop.f32.mrb[0].mxu0
  %v5702 = vpop.f32.mrb[0].mxu0
  %v5703 = vadd.f32 0.0, %v5702
  %v5704 = vpop.f32.mrb[0].mxu0
  %5705 = vmatprep.mubr.bf16.mxu0 0
  %5706 = vmatmul.mubr.bf16.gmra.mrb[0].mxu0 %v5397
  %v5707 = vpop.f32.mrb[0].mxu0
  %v5708 = vadd.f32 0.0, %v5707
  %v5709 = vpop.f32.mrb[0].mxu0
  %v5710 = vpop.f32.mrb[0].mxu0
  %v5711 = vadd.f32 0.0, %v5710
  %v5712 = vpop.f32.mrb[0].mxu0
  %5713 = vmatprep.mubr.bf16.mxu0 0
  %5714 = vmatmul.mubr.bf16.gmra.mrb[0].mxu0 %v5400
  %v5715 = vpop.f32.mrb[0].mxu0
  %v5716 = vadd.f32 0.0, %v5715
  %v5717 = vpop.f32.mrb[0].mxu0
  %v5718 = vpop.f32.mrb[0].mxu0
  %v5719 = vadd.f32 0.0, %v5718
  %v5720 = vpop.f32.mrb[0].mxu0
  %5721 = vmatprep.mubr.bf16.mxu0 0
  %5722 = vmatmul.mubr.bf16.gmra.mrb[0].mxu0 %v5403
  %v5723 = vpop.f32.mrb[0].mxu0
  %v5724 = vadd.f32 0.0, %v5723
  %v5725 = vpop.f32.mrb[0].mxu0
  %v5726 = vpop.f32.mrb[0].mxu0
  %v5727 = vadd.f32 0.0, %v5726
  %v5728 = vpop.f32.mrb[0].mxu0
  %5729 = vmatprep.mubr.bf16.mxu0 0
  %5730 = vmatmul.mubr.bf16.gmra.mrb[0].mxu0 %v5406
  %v5731 = vpop.f32.mrb[0].mxu0
  %v5732 = vadd.f32 0.0, %v5731
  %v5733 = vpop.f32.mrb[0].mxu0
  %v5734 = vpop.f32.mrb[0].mxu0
  %v5735 = vadd.f32 0.0, %v5734
  %v5736 = vpop.f32.mrb[0].mxu0
  %5737 = vmatprep.mubr.bf16.mxu0 0
  %5738 = vmatmul.mubr.bf16.gmra.mrb[0].mxu0 %v5409
  %v5739 = vpop.f32.mrb[0].mxu0
  %v5740 = vadd.f32 0.0, %v5739
  %v5741 = vpop.f32.mrb[0].mxu0
  %v5742 = vpop.f32.mrb[0].mxu0
  %v5743 = vadd.f32 0.0, %v5742
  %v5744 = vpop.f32.mrb[0].mxu0
  %5745 = vmatprep.mubr.bf16.mxu0 0
  %5746 = vmatmul.mubr.bf16.gmra.mrb[0].mxu0 %v5412
  %v5747 = vpop.f32.mrb[0].mxu0
  %v5748 = vadd.f32 0.0, %v5747
  %v5749 = vpop.f32.mrb[0].mxu0
  %v5750 = vpop.f32.mrb[0].mxu0
  %v5751 = vadd.f32 0.0, %v5750
  %v5752 = vpop.f32.mrb[0].mxu0
  %5753 = vmatprep.mubr.bf16.mxu0 0
  %5754 = vmatmul.mubr.bf16.gmra.mrb[0].mxu0 %v5415
  %v5755 = vpop.f32.mrb[0].mxu0
  %v5756 = vadd.f32 0.0, %v5755
  %v5757 = vpop.f32.mrb[0].mxu0
  %v5758 = vpop.f32.mrb[0].mxu0
  %v5759 = vadd.f32 0.0, %v5758
  %v5760 = vpop.f32.mrb[0].mxu0
  %5761 = vmatprep.mubr.bf16.mxu0 0
  %5762 = vmatmul.mubr.bf16.gmra.mrb[0].mxu0 %v5418
  %v5763 = vpop.f32.mrb[0].mxu0
  %v5764 = vadd.f32 0.0, %v5763
  %v5765 = vpop.f32.mrb[0].mxu0
  %v5766 = vpop.f32.mrb[0].mxu0
  %v5767 = vadd.f32 0.0, %v5766
  %v5768 = vpop.f32.mrb[0].mxu0
  %5769 = vmatprep.mubr.bf16.mxu0 0
  %5770 = vmatmul.mubr.bf16.gmra.mrb[0].mxu0 %v5421
  %v5771 = vpop.f32.mrb[0].mxu0
  %v5772 = vadd.f32 0.0, %v5771
  %v5773 = vpop.f32.mrb[0].mxu0
  %v5774 = vpop.f32.mrb[0].mxu0
  %v5775 = vadd.f32 0.0, %v5774
  %v5776 = vpop.f32.mrb[0].mxu0
  %5777 = vmatprep.mubr.bf16.mxu0 0
  %5778 = vmatmul.mubr.bf16.gmra.mrb[0].mxu0 %v5424
  %v5779 = vpop.f32.mrb[0].mxu0
  %v5780 = vadd.f32 0.0, %v5779
  %v5781 = vpop.f32.mrb[0].mxu0
  %v5782 = vpop.f32.mrb[0].mxu0
  %v5783 = vadd.f32 0.0, %v5782
  %v5784 = vpop.f32.mrb[0].mxu0
  %5785 = vmatprep.mubr.bf16.mxu0 0
  %5786 = vmatmul.mubr.bf16.gmra.mrb[0].mxu0 %v5427
  %v5787 = vpop.f32.mrb[0].mxu0
  %v5788 = vadd.f32 0.0, %v5787
  %v5789 = vpop.f32.mrb[0].mxu0
  %v5790 = vpop.f32.mrb[0].mxu0
  %v5791 = vadd.f32 0.0, %v5790
  %v5792 = vpop.f32.mrb[0].mxu0
  %5793 = vmatprep.mubr.bf16.mxu0 0
  %5794 = vmatmul.mubr.bf16.gmra.mrb[0].mxu0 %v5430
  %v5795 = vpop.f32.mrb[0].mxu0
  %v5796 = vadd.f32 0.0, %v5795
  %v5797 = vpop.f32.mrb[0].mxu0
  %v5798 = vpop.f32.mrb[0].mxu0
  %v5799 = vadd.f32 0.0, %v5798
  %v5800 = vpop.f32.mrb[0].mxu0
  %5801 = vmatprep.mubr.bf16.mxu0 0
  %5802 = vmatmul.mubr.bf16.gmra.mrb[0].mxu0 %v5433
  %v5803 = vpop.f32.mrb[0].mxu0
  %v5804 = vadd.f32 0.0, %v5803
  %v5805 = vpop.f32.mrb[0].mxu0
  %v5806 = vpop.f32.mrb[0].mxu0
  %v5807 = vadd.f32 0.0, %v5806
  %v5808 = vpop.f32.mrb[0].mxu0
  %5809 = vmatprep.mubr.bf16.mxu0 0
  %5810 = vmatmul.mubr.bf16.gmra.mrb[0].mxu0 %v5436
  %v5811 = vpop.f32.mrb[0].mxu0
  %v5812 = vadd.f32 0.0, %v5811
  %v5813 = vpop.f32.mrb[0].mxu0
  %v5814 = vpop.f32.mrb[0].mxu0
  %v5815 = vadd.f32 0.0, %v5814
  %v5816 = vpop.f32.mrb[0].mxu0
  %5817 = vmatprep.mubr.bf16.mxu0 0
  %5818 = vmatmul.mubr.bf16.gmra.mrb[0].mxu0 %v5439
  %v5819 = vpop.f32.mrb[0].mxu0
  %v5820 = vadd.f32 0.0, %v5819
  %v5821 = vpop.f32.mrb[0].mxu0
  %v5822 = vpop.f32.mrb[0].mxu0
  %v5823 = vadd.f32 0.0, %v5822
  %v5824 = vpop.f32.mrb[0].mxu0
  %5825 = vmatprep.mubr.bf16.mxu0 0
  %5826 = vmatmul.mubr.bf16.gmra.mrb[0].mxu0 %v5442
  %v5827 = vpop.f32.mrb[0].mxu0
  %v5828 = vadd.f32 0.0, %v5827
  %v5829 = vpop.f32.mrb[0].mxu0
  %v5830 = vpop.f32.mrb[0].mxu0
  %v5831 = vadd.f32 0.0, %v5830
  %v5832 = vpop.f32.mrb[0].mxu0
  %5833 = vmatprep.mubr.bf16.mxu0 0
  %5834 = vmatmul.mubr.bf16.gmra.mrb[0].mxu0 %v5445
  %v5835 = vpop.f32.mrb[0].mxu0
  %v5836 = vadd.f32 0.0, %v5835
  %v5837 = vpop.f32.mrb[0].mxu0
  %v5838 = vpop.f32.mrb[0].mxu0
  %v5839 = vadd.f32 0.0, %v5838
  %v5840 = vpop.f32.mrb[0].mxu0
  %5841 = vmatprep.mubr.bf16.mxu0 0
  %5842 = vmatmul.mubr.bf16.gmra.mrb[0].mxu0 %v5448
  %v5843 = vpop.f32.mrb[0].mxu0
  %v5844 = vadd.f32 0.0, %v5843
  %v5845 = vpop.f32.mrb[0].mxu0
  %v5846 = vpop.f32.mrb[0].mxu0
  %v5847 = vadd.f32 0.0, %v5846
  %v5848 = vpop.f32.mrb[0].mxu0
  %5849 = vmatprep.mubr.bf16.mxu0 0
  %5850 = vmatmul.mubr.bf16.gmra.mrb[0].mxu0 %v5451
  %v5851 = vpop.f32.mrb[0].mxu0
  %v5852 = vadd.f32 0.0, %v5851
  %v5853 = vpop.f32.mrb[0].mxu0
  %v5854 = vpop.f32.mrb[0].mxu0
  %v5855 = vadd.f32 0.0, %v5854
  %v5856 = vpop.f32.mrb[0].mxu0
  %5857 = vmatprep.mubr.bf16.mxu0 0
  %5858 = vmatmul.mubr.bf16.gmra.mrb[0].mxu0 %v5454
  %v5859 = vpop.f32.mrb[0].mxu0
  %v5860 = vadd.f32 0.0, %v5859
  %v5861 = vpop.f32.mrb[0].mxu0
  %v5862 = vpop.f32.mrb[0].mxu0
  %v5863 = vadd.f32 0.0, %v5862
  %v5864 = vpop.f32.mrb[0].mxu0
  %5865 = vmatprep.mubr.bf16.mxu0 0
  %5866 = vmatmul.mubr.bf16.gmra.mrb[0].mxu0 %v5457
  %v5867 = vpop.f32.mrb[0].mxu0
  %v5868 = vadd.f32 0.0, %v5867
  %v5869 = vpop.f32.mrb[0].mxu0
  %v5870 = vpop.f32.mrb[0].mxu0
  %v5871 = vadd.f32 0.0, %v5870
  %v5872 = vpop.f32.mrb[0].mxu0
  %5873 = vmatprep.mubr.bf16.mxu0 0
  %5874 = vmatmul.mubr.bf16.gmra.mrb[0].mxu0 %v5460
  %v5875 = vpop.f32.mrb[0].mxu0
  %v5876 = vadd.f32 0.0, %v5875
  %v5877 = vpop.f32.mrb[0].mxu0
  %v5878 = vpop.f32.mrb[0].mxu0
  %v5879 = vadd.f32 0.0, %v5878
  %v5880 = vpop.f32.mrb[0].mxu0
  %5881 = vmatprep.mubr.bf16.mxu0 0
  %5882 = vmatmul.mubr.bf16.gmra.mrb[0].mxu0 %v5463
  %v5883 = vpop.f32.mrb[0].mxu0
  %v5884 = vadd.f32 0.0, %v5883
  %v5885 = vpop.f32.mrb[0].mxu0
  %v5886 = vpop.f32.mrb[0].mxu0
  %v5887 = vadd.f32 0.0, %v5886
  %v5888 = vpop.f32.mrb[0].mxu0
  %5889 = vmatprep.mubr.bf16.mxu0 0
  %5890 = vmatmul.mubr.bf16.gmra.mrb[0].mxu0 %v5466
  %v5891 = vpop.f32.mrb[0].mxu0
  %v5892 = vadd.f32 0.0, %v5891
  %v5893 = vpop.f32.mrb[0].mxu0
  %v5894 = vpop.f32.mrb[0].mxu0
  %v5895 = vadd.f32 0.0, %v5894
  %v5896 = vpop.f32.mrb[0].mxu0
  %5897 = vmatprep.mubr.bf16.mxu0 0
  %5898 = vmatmul.mubr.bf16.gmra.mrb[0].mxu0 %v5469
  %v5899 = vpop.f32.mrb[0].mxu0
  %v5900 = vadd.f32 0.0, %v5899
  %v5901 = vpop.f32.mrb[0].mxu0
  %v5902 = vpop.f32.mrb[0].mxu0
  %v5903 = vadd.f32 0.0, %v5902
  %v5904 = vpop.f32.mrb[0].mxu0
  %5905 = vmatprep.mubr.bf16.mxu0 0
  %5906 = vmatmul.mubr.bf16.gmra.mrb[0].mxu0 %v5472
  %v5907 = vpop.f32.mrb[0].mxu0
  %v5908 = vadd.f32 0.0, %v5907
  %v5909 = vpop.f32.mrb[0].mxu0
  %v5910 = vpop.f32.mrb[0].mxu0
  %v5911 = vadd.f32 0.0, %v5910
  %v5912 = vpop.f32.mrb[0].mxu0
  %5913 = vmatprep.mubr.bf16.mxu0 0
  %5914 = vmatmul.mubr.bf16.gmra.mrb[0].mxu0 %v5475
  %v5915 = vpop.f32.mrb[0].mxu0
  %v5916 = vadd.f32 0.0, %v5915
  %v5917 = vpop.f32.mrb[0].mxu0
  %v5918 = vpop.f32.mrb[0].mxu0
  %v5919 = vadd.f32 0.0, %v5918
  %v5920 = vpop.f32.mrb[0].mxu0
  %5921 = vmatprep.mubr.bf16.mxu0 0
  %5922 = vmatmul.mubr.bf16.gmra.mrb[0].mxu0 %v5478
  %v5923 = vpop.f32.mrb[0].mxu0
  %v5924 = vadd.f32 0.0, %v5923
  %v5925 = vpop.f32.mrb[0].mxu0
  %v5926 = vpop.f32.mrb[0].mxu0
  %v5927 = vadd.f32 0.0, %v5926
  %v5928 = vpop.f32.mrb[0].mxu0
  %5929 = vmatprep.mubr.bf16.mxu0 0
  %5930 = vmatmul.mubr.bf16.gmra.mrb[0].mxu0 %v5481
  %v5931 = vpop.f32.mrb[0].mxu0
  %v5932 = vadd.f32 0.0, %v5931
  %v5933 = vpop.f32.mrb[0].mxu0
  %v5934 = vpop.f32.mrb[0].mxu0
  %v5935 = vadd.f32 0.0, %v5934
  %v5936 = vpop.f32.mrb[0].mxu0
  %5937 = vmatprep.mubr.bf16.mxu0 0
  %5938 = vmatmul.mubr.bf16.gmra.mrb[0].mxu0 %v5484
  %v5939 = vpop.f32.mrb[0].mxu0
  %v5940 = vadd.f32 0.0, %v5939
  %v5941 = vpop.f32.mrb[0].mxu0
  %v5942 = vpop.f32.mrb[0].mxu0
  %v5943 = vadd.f32 0.0, %v5942
  %v5944 = vpop.f32.mrb[0].mxu0
  %5945 = vmatprep.mubr.bf16.mxu0 0
  %5946 = vmatmul.mubr.bf16.gmra.mrb[0].mxu0 %v5487
  %v5947 = vpop.f32.mrb[0].mxu0
  %v5948 = vadd.f32 0.0, %v5947
  %v5949 = vpop.f32.mrb[0].mxu0
  %v5950 = vpop.f32.mrb[0].mxu0
  %v5951 = vadd.f32 0.0, %v5950
  %v5952 = vpop.f32.mrb[0].mxu0
  %5953 = vmatprep.mubr.bf16.mxu0 0
  %5954 = vmatmul.mubr.bf16.gmra.mrb[0].mxu0 %v5490
  %v5955 = vpop.f32.mrb[0].mxu0
  %v5956 = vadd.f32 0.0, %v5955
  %v5957 = vpop.f32.mrb[0].mxu0
  %v5958 = vpop.f32.mrb[0].mxu0
  %v5959 = vadd.f32 0.0, %v5958
  %v5960 = vpop.f32.mrb[0].mxu0
  %5961 = vmatprep.mubr.bf16.mxu0 0
  %5962 = vmatmul.mubr.bf16.gmra.mrb[0].mxu0 %v5493
  %v5963 = vpop.f32.mrb[0].mxu0
  %v5964 = vadd.f32 0.0, %v5963
  %v5965 = vpop.f32.mrb[0].mxu0
  %v5966 = vpop.f32.mrb[0].mxu0
  %v5967 = vadd.f32 0.0, %v5966
  %v5968 = vpop.f32.mrb[0].mxu0
  %5969 = vmatprep.mubr.bf16.mxu0 0
  %5970 = vmatmul.mubr.bf16.gmra.mrb[0].mxu0 %v5496
  %v5971 = vpop.f32.mrb[0].mxu0
  %v5972 = vadd.f32 0.0, %v5971
  %v5973 = vpop.f32.mrb[0].mxu0
  %v5974 = vpop.f32.mrb[0].mxu0
  %v5975 = vadd.f32 0.0, %v5974
  %v5976 = vpop.f32.mrb[0].mxu0
  %5977 = vmatprep.mubr.bf16.mxu0 0
  %5978 = vmatmul.mubr.bf16.gmra.mrb[0].mxu0 %v5499
  %v5979 = vpop.f32.mrb[0].mxu0
  %v5980 = vadd.f32 0.0, %v5979
  %v5981 = vpop.f32.mrb[0].mxu0
  %v5982 = vpop.f32.mrb[0].mxu0
  %v5983 = vadd.f32 0.0, %v5982
  %v5984 = vpop.f32.mrb[0].mxu0
  %5985 = vmatprep.mubr.bf16.mxu0 0
  %5986 = vmatmul.mubr.bf16.gmra.mrb[0].mxu0 %v5502
  %v5987 = vpop.f32.mrb[0].mxu0
  %v5988 = vadd.f32 0.0, %v5987
  %v5989 = vpop.f32.mrb[0].mxu0
  %v5990 = vpop.f32.mrb[0].mxu0
  %v5991 = vadd.f32 0.0, %v5990
  %v5992 = vpop.f32.mrb[0].mxu0
  %5993 = vmatprep.mubr.bf16.mxu0 0
  %5994 = vmatmul.mubr.bf16.gmra.mrb[0].mxu0 %v5505
  %v5995 = vpop.f32.mrb[0].mxu0
  %v5996 = vadd.f32 0.0, %v5995
  %v5997 = vpop.f32.mrb[0].mxu0
  %v5998 = vpop.f32.mrb[0].mxu0
  %v5999 = vadd.f32 0.0, %v5998
  %v6000 = vpop.f32.mrb[0].mxu0
  %6001 = vmatprep.mubr.bf16.mxu0 0
  %6002 = vmatmul.mubr.bf16.gmra.mrb[0].mxu0 %v5508
  %v6003 = vpop.f32.mrb[0].mxu0
  %v6004 = vadd.f32 0.0, %v6003
  %v6005 = vpop.f32.mrb[0].mxu0
  %v6006 = vpop.f32.mrb[0].mxu0
  %v6007 = vadd.f32 0.0, %v6006
  %v6008 = vpop.f32.mrb[0].mxu0
  %6009 = vmatprep.mubr.bf16.mxu0 0
  %6010 = vmatmul.mubr.bf16.gmra.mrb[0].mxu0 %v5511
  %v6011 = vpop.f32.mrb[0].mxu0
  %v6012 = vadd.f32 0.0, %v6011
  %v6013 = vpop.f32.mrb[0].mxu0
  %v6014 = vpop.f32.mrb[0].mxu0
  %v6015 = vadd.f32 0.0, %v6014
  %v6016 = vpop.f32.mrb[0].mxu0
  %6017 = vmatprep.mubr.bf16.mxu0 0
  %6018 = vmatmul.mubr.bf16.gmra.mrb[0].mxu0 %v5514
  %v6019 = vpop.f32.mrb[0].mxu0
  %v6020 = vadd.f32 0.0, %v6019
  %v6021 = vpop.f32.mrb[0].mxu0
  %v6022 = vpop.f32.mrb[0].mxu0
  %v6023 = vadd.f32 0.0, %v6022
  %v6024 = vpop.f32.mrb[0].mxu0
  %6025 = vmatprep.mubr.bf16.mxu0 0
  %6026 = vmatmul.mubr.bf16.gmra.mrb[0].mxu0 %v5517
  %v6027 = vpop.f32.mrb[0].mxu0
  %v6028 = vadd.f32 0.0, %v6027
  %v6029 = vpop.f32.mrb[0].mxu0
  %v6030 = vpop.f32.mrb[0].mxu0
  %v6031 = vadd.f32 0.0, %v6030
  %v6032 = vpop.f32.mrb[0].mxu0
  %6033 = vmatprep.mubr.bf16.mxu0 0
  %6034 = vmatmul.mubr.bf16.gmra.mrb[0].mxu0 %v5520
  %v6035 = vpop.f32.mrb[0].mxu0
  %v6036 = vadd.f32 0.0, %v6035
  %v6037 = vpop.f32.mrb[0].mxu0
  %v6038 = vpop.f32.mrb[0].mxu0
  %v6039 = vadd.f32 0.0, %v6038
  %v6040 = vpop.f32.mrb[0].mxu0
  %6041 = vmatprep.mubr.bf16.mxu0 0
  %6042 = vmatmul.mubr.bf16.gmra.mrb[0].mxu0 %v5523
  %v6043 = vpop.f32.mrb[0].mxu0
  %v6044 = vadd.f32 0.0, %v6043
  %v6045 = vpop.f32.mrb[0].mxu0
  %v6046 = vpop.f32.mrb[0].mxu0
  %v6047 = vadd.f32 0.0, %v6046
  %v6048 = vpop.f32.mrb[0].mxu0
  %6049 = vmatprep.mubr.bf16.mxu0 0
  %6050 = vmatmul.mubr.bf16.gmra.mrb[0].mxu0 %v5526
  %v6051 = vpop.f32.mrb[0].mxu0
  %v6052 = vadd.f32 0.0, %v6051
  %v6053 = vpop.f32.mrb[0].mxu0
  %v6054 = vpop.f32.mrb[0].mxu0
  %v6055 = vadd.f32 0.0, %v6054
  %v6056 = vpop.f32.mrb[0].mxu0
  %6057 = vmatprep.mubr.bf16.mxu0 0
  %6058 = vmatmul.mubr.bf16.gmra.mrb[0].mxu0 %v5529
  %v6059 = vpop.f32.mrb[0].mxu0
  %v6060 = vadd.f32 0.0, %v6059
  %v6061 = vpop.f32.mrb[0].mxu0
  %v6062 = vpop.f32.mrb[0].mxu0
  %v6063 = vadd.f32 0.0, %v6062
  %v6064 = vpop.f32.mrb[0].mxu0
  %6065 = vmatprep.mubr.bf16.mxu0 0
  %6066 = vmatmul.mubr.bf16.gmra.mrb[0].mxu0 %v5532
  %v6067 = vpop.f32.mrb[0].mxu0
  %v6068 = vadd.f32 0.0, %v6067
  %v6069 = vpop.f32.mrb[0].mxu0
  %v6070 = vpop.f32.mrb[0].mxu0
  %v6071 = vadd.f32 0.0, %v6070
  %v6072 = vpop.f32.mrb[0].mxu0
  %6073 = vmatprep.mubr.bf16.mxu0 0
  %6074 = vmatmul.mubr.bf16.gmra.mrb[0].mxu0 %v5535
  %v6075 = vpop.f32.mrb[0].mxu0
  %v6076 = vadd.f32 0.0, %v6075
  %v6077 = vpop.f32.mrb[0].mxu0
  %v6078 = vpop.f32.mrb[0].mxu0
  %v6079 = vadd.f32 0.0, %v6078
  %v6080 = vpop.f32.mrb[0].mxu0
  %6081 = vdwg.mxu0
  %v6082 = vpack.c.bf16 %v4625, %v4624
  %v6083 = vpack.c.bf16 %v4627, %v4626
  %v6084 = vpack.c.bf16 %v4629, %v4628
  %v6085 = vpack.c.bf16 %v4631, %v4630
  %v6086 = vpack.c.bf16 %v4633, %v4632
  %v6087 = vpack.c.bf16 %v4635, %v4634
  %v6088 = vpack.c.bf16 %v4637, %v4636
  %v6089 = vpack.c.bf16 %v4639, %v4638
  %v6090 = vpack.c.bf16 %v4641, %v4640
  %v6091 = vpack.c.bf16 %v4643, %v4642
  %v6092 = vpack.c.bf16 %v4645, %v4644
  %v6093 = vpack.c.bf16 %v4647, %v4646
  %v6094 = vpack.c.bf16 %v4649, %v4648
  %v6095 = vpack.c.bf16 %v4651, %v4650
  %v6096 = vpack.c.bf16 %v4653, %v4652
  %v6097 = vpack.c.bf16 %v4655, %v4654
  %v6098 = vpack.c.bf16 %v4657, %v4656
  %v6099 = vpack.c.bf16 %v4659, %v4658
  %v6100 = vpack.c.bf16 %v4661, %v4660
  %v6101 = vpack.c.bf16 %v4663, %v4662
  %v6102 = vpack.c.bf16 %v4665, %v4664
  %v6103 = vpack.c.bf16 %v4667, %v4666
  %v6104 = vpack.c.bf16 %v4669, %v4668
  %v6105 = vpack.c.bf16 %v4671, %v4670
  %v6106 = vpack.c.bf16 %v4673, %v4672
  %v6107 = vpack.c.bf16 %v4675, %v4674
  %v6108 = vpack.c.bf16 %v4677, %v4676
  %v6109 = vpack.c.bf16 %v4679, %v4678
  %v6110 = vpack.c.bf16 %v4681, %v4680
  %v6111 = vpack.c.bf16 %v4683, %v4682
  %v6112 = vpack.c.bf16 %v4685, %v4684
  %v6113 = vpack.c.bf16 %v4687, %v4686
  %v6114 = vpack.c.bf16 %v4689, %v4688
  %v6115 = vpack.c.bf16 %v4691, %v4690
  %v6116 = vpack.c.bf16 %v4693, %v4692
  %v6117 = vpack.c.bf16 %v4695, %v4694
  %v6118 = vpack.c.bf16 %v4697, %v4696
  %v6119 = vpack.c.bf16 %v4699, %v4698
  %v6120 = vpack.c.bf16 %v4701, %v4700
  %v6121 = vpack.c.bf16 %v4703, %v4702
  %v6122 = vpack.c.bf16 %v4705, %v4704
  %v6123 = vpack.c.bf16 %v4707, %v4706
  %v6124 = vpack.c.bf16 %v4709, %v4708
  %v6125 = vpack.c.bf16 %v4711, %v4710
  %v6126 = vpack.c.bf16 %v4713, %v4712
  %v6127 = vpack.c.bf16 %v4715, %v4714
  %v6128 = vpack.c.bf16 %v4717, %v4716
  %v6129 = vpack.c.bf16 %v4719, %v4718
  %v6130 = vpack.c.bf16 %v4721, %v4720
  %v6131 = vpack.c.bf16 %v4723, %v4722
  %v6132 = vpack.c.bf16 %v4725, %v4724
  %v6133 = vpack.c.bf16 %v4727, %v4726
  %v6134 = vpack.c.bf16 %v4729, %v4728
  %v6135 = vpack.c.bf16 %v4731, %v4730
  %v6136 = vpack.c.bf16 %v4733, %v4732
  %v6137 = vpack.c.bf16 %v4735, %v4734
  %v6138 = vpack.c.bf16 %v4737, %v4736
  %v6139 = vpack.c.bf16 %v4739, %v4738
  %v6140 = vpack.c.bf16 %v4741, %v4740
  %v6141 = vpack.c.bf16 %v4743, %v4742
  %v6142 = vpack.c.bf16 %v4745, %v4744
  %v6143 = vpack.c.bf16 %v4747, %v4746
  %v6144 = vpack.c.bf16 %v4749, %v4748
  %v6145 = vpack.c.bf16 %v4751, %v4750
  %s6146 = scalar_lea.vmem %s6, 16
  %v6147 = vld [vmem:[%s6146] sm:$0xf]
  %v6148 = vld [vmem:[%s6146 + $0x4] sm:$0xf]
  %v6149 = vld [vmem:[%s6146 + $0x8] sm:$0xf]
  %v6150 = vld [vmem:[%s6146 + $0xc] sm:$0xf]
  %v6155 = vunpack.c.l.b16 %v6147
  %v6156 = vunpack.c.l.b16 %v6148
  %v6157 = vunpack.c.l.b16 %v6149
  %v6158 = vunpack.c.l.b16 %v6150
  %v6159 = vpack.c.b16 %v6156, %v6155
  %v6160 = vpack.c.b16 %v6158, %v6157
  %v6164 = vsel %vm5344, %v6082, 0
  %v6167 = vsel %vm5344, %v6083, 0
  %v6170 = vsel %vm5344, %v6084, 0
  %v6173 = vsel %vm5344, %v6085, 0
  %v6176 = vsel %vm5344, %v6086, 0
  %v6179 = vsel %vm5344, %v6087, 0
  %v6182 = vsel %vm5344, %v6088, 0
  %v6185 = vsel %vm5344, %v6089, 0
  %v6188 = vsel %vm5344, %v6090, 0
  %v6191 = vsel %vm5344, %v6091, 0
  %v6194 = vsel %vm5344, %v6092, 0
  %v6197 = vsel %vm5344, %v6093, 0
  %v6200 = vsel %vm5344, %v6094, 0
  %v6203 = vsel %vm5344, %v6095, 0
  %v6206 = vsel %vm5344, %v6096, 0
  %v6209 = vsel %vm5344, %v6097, 0
  %v6212 = vsel %vm5344, %v6098, 0
  %v6215 = vsel %vm5344, %v6099, 0
  %v6218 = vsel %vm5344, %v6100, 0
  %v6221 = vsel %vm5344, %v6101, 0
  %v6224 = vsel %vm5344, %v6102, 0
  %v6227 = vsel %vm5344, %v6103, 0
  %v6230 = vsel %vm5344, %v6104, 0
  %v6233 = vsel %vm5344, %v6105, 0
  %v6236 = vsel %vm5344, %v6106, 0
  %v6239 = vsel %vm5344, %v6107, 0
  %v6242 = vsel %vm5344, %v6108, 0
  %v6245 = vsel %vm5344, %v6109, 0
  %v6248 = vsel %vm5344, %v6110, 0
  %v6251 = vsel %vm5344, %v6111, 0
  %v6254 = vsel %vm5344, %v6112, 0
  %v6257 = vsel %vm5344, %v6113, 0
  %v6260 = vsel %vm5344, %v6114, 0
  %v6263 = vsel %vm5344, %v6115, 0
  %v6266 = vsel %vm5344, %v6116, 0
  %v6269 = vsel %vm5344, %v6117, 0
  %v6272 = vsel %vm5344, %v6118, 0
  %v6275 = vsel %vm5344, %v6119, 0
  %v6278 = vsel %vm5344, %v6120, 0
  %v6281 = vsel %vm5344, %v6121, 0
  %v6284 = vsel %vm5344, %v6122, 0
  %v6287 = vsel %vm5344, %v6123, 0
  %v6290 = vsel %vm5344, %v6124, 0
  %v6293 = vsel %vm5344, %v6125, 0
  %v6296 = vsel %vm5344, %v6126, 0
  %v6299 = vsel %vm5344, %v6127, 0
  %v6302 = vsel %vm5344, %v6128, 0
  %v6305 = vsel %vm5344, %v6129, 0
  %v6308 = vsel %vm5344, %v6130, 0
  %v6311 = vsel %vm5344, %v6131, 0
  %v6314 = vsel %vm5344, %v6132, 0
  %v6317 = vsel %vm5344, %v6133, 0
  %v6320 = vsel %vm5344, %v6134, 0
  %v6323 = vsel %vm5344, %v6135, 0
  %v6326 = vsel %vm5344, %v6136, 0
  %v6329 = vsel %vm5344, %v6137, 0
  %v6332 = vsel %vm5344, %v6138, 0
  %v6335 = vsel %vm5344, %v6139, 0
  %v6338 = vsel %vm5344, %v6140, 0
  %v6341 = vsel %vm5344, %v6141, 0
  %v6344 = vsel %vm5344, %v6142, 0
  %v6347 = vsel %vm5344, %v6143, 0
  %v6350 = vsel %vm5344, %v6144, 0
  %v6353 = vsel %vm5344, %v6145, 0
  %6355 = vmatprep.subr.bf16.mxu0 0
  %6356 = vmatpush1.bf16.msra.mxu0 %v6159
  %6357 = vmatprep.subr.bf16.mxu0 0
  %6358 = vmatpush1.bf16.msra.mxu0 %v6160
  %6359 = vmatprep.subr.bf16.mxu0 0
  %6360 = vmatpush1.bf16.msra.mxu0 0
  %6361 = vmatprep.subr.bf16.mxu0 0
  %6362 = vmatpush1.bf16.msra.mxu0 0
  %6363 = vmatprep.subr.bf16.mxu0 0
  %6364 = vmatpush1.bf16.msra.mxu0 0
  %6365 = vmatprep.subr.bf16.mxu0 0
  %6366 = vmatpush1.bf16.msra.mxu0 0
  %6367 = vmatprep.subr.bf16.mxu0 0
  %6368 = vmatpush1.bf16.msra.mxu0 0
  %6369 = vmatprep.subr.bf16.mxu0 0
  %6370 = vmatpush1.bf16.msra.mxu0 0
  %6371 = vmatprep.subr.bf16.mxu0 0
  %6372 = vmatpush1.bf16.msra.mxu0 0
  %6373 = vmatprep.subr.bf16.mxu0 0
  %6374 = vmatpush1.bf16.msra.mxu0 0
  %6375 = vmatprep.subr.bf16.mxu0 0
  %6376 = vmatpush1.bf16.msra.mxu0 0
  %6377 = vmatprep.subr.bf16.mxu0 0
  %6378 = vmatpush1.bf16.msra.mxu0 0
  %6379 = vmatprep.subr.bf16.mxu0 0
  %6380 = vmatpush1.bf16.msra.mxu0 0
  %6381 = vmatprep.subr.bf16.mxu0 0
  %6382 = vmatpush1.bf16.msra.mxu0 0
  %6383 = vmatprep.subr.bf16.mxu0 0
  %6384 = vmatpush1.bf16.msra.mxu0 0
  %6385 = vmatprep.subr.bf16.mxu0 0
  %6386 = vmatpush1.bf16.msra.mxu0 0
  %6387 = vmatprep.mubr.bf16.mxu0 0
  %6388 = vmatmul.mubr.bf16.gmra.mrb[0].mxu0 %v6164
  %v6389 = vpop.f32.mrb[0].mxu0
  %v6390 = vadd.f32 0.0, %v6389
  %v6391 = vpop.f32.mrb[0].mxu0
  %v6392 = vpop.f32.mrb[0].mxu0
  %v6393 = vadd.f32 0.0, %v6392
  %v6394 = vpop.f32.mrb[0].mxu0
  %6395 = vmatprep.mubr.bf16.mxu0 0
  %6396 = vmatmul.mubr.bf16.gmra.mrb[0].mxu0 %v6167
  %v6397 = vpop.f32.mrb[0].mxu0
  %v6398 = vadd.f32 0.0, %v6397
  %v6399 = vpop.f32.mrb[0].mxu0
  %v6400 = vpop.f32.mrb[0].mxu0
  %v6401 = vadd.f32 0.0, %v6400
  %v6402 = vpop.f32.mrb[0].mxu0
  %6403 = vmatprep.mubr.bf16.mxu0 0
  %6404 = vmatmul.mubr.bf16.gmra.mrb[0].mxu0 %v6170
  %v6405 = vpop.f32.mrb[0].mxu0
  %v6406 = vadd.f32 0.0, %v6405
  %v6407 = vpop.f32.mrb[0].mxu0
  %v6408 = vpop.f32.mrb[0].mxu0
  %v6409 = vadd.f32 0.0, %v6408
  %v6410 = vpop.f32.mrb[0].mxu0
  %6411 = vmatprep.mubr.bf16.mxu0 0
  %6412 = vmatmul.mubr.bf16.gmra.mrb[0].mxu0 %v6173
  %v6413 = vpop.f32.mrb[0].mxu0
  %v6414 = vadd.f32 0.0, %v6413
  %v6415 = vpop.f32.mrb[0].mxu0
  %v6416 = vpop.f32.mrb[0].mxu0
  %v6417 = vadd.f32 0.0, %v6416
  %v6418 = vpop.f32.mrb[0].mxu0
  %6419 = vmatprep.mubr.bf16.mxu0 0
  %6420 = vmatmul.mubr.bf16.gmra.mrb[0].mxu0 %v6176
  %v6421 = vpop.f32.mrb[0].mxu0
  %v6422 = vadd.f32 0.0, %v6421
  %v6423 = vpop.f32.mrb[0].mxu0
  %v6424 = vpop.f32.mrb[0].mxu0
  %v6425 = vadd.f32 0.0, %v6424
  %v6426 = vpop.f32.mrb[0].mxu0
  %6427 = vmatprep.mubr.bf16.mxu0 0
  %6428 = vmatmul.mubr.bf16.gmra.mrb[0].mxu0 %v6179
  %v6429 = vpop.f32.mrb[0].mxu0
  %v6430 = vadd.f32 0.0, %v6429
  %v6431 = vpop.f32.mrb[0].mxu0
  %v6432 = vpop.f32.mrb[0].mxu0
  %v6433 = vadd.f32 0.0, %v6432
  %v6434 = vpop.f32.mrb[0].mxu0
  %6435 = vmatprep.mubr.bf16.mxu0 0
  %6436 = vmatmul.mubr.bf16.gmra.mrb[0].mxu0 %v6182
  %v6437 = vpop.f32.mrb[0].mxu0
  %v6438 = vadd.f32 0.0, %v6437
  %v6439 = vpop.f32.mrb[0].mxu0
  %v6440 = vpop.f32.mrb[0].mxu0
  %v6441 = vadd.f32 0.0, %v6440
  %v6442 = vpop.f32.mrb[0].mxu0
  %6443 = vmatprep.mubr.bf16.mxu0 0
  %6444 = vmatmul.mubr.bf16.gmra.mrb[0].mxu0 %v6185
  %v6445 = vpop.f32.mrb[0].mxu0
  %v6446 = vadd.f32 0.0, %v6445
  %v6447 = vpop.f32.mrb[0].mxu0
  %v6448 = vpop.f32.mrb[0].mxu0
  %v6449 = vadd.f32 0.0, %v6448
  %v6450 = vpop.f32.mrb[0].mxu0
  %6451 = vmatprep.mubr.bf16.mxu0 0
  %6452 = vmatmul.mubr.bf16.gmra.mrb[0].mxu0 %v6188
  %v6453 = vpop.f32.mrb[0].mxu0
  %v6454 = vadd.f32 0.0, %v6453
  %v6455 = vpop.f32.mrb[0].mxu0
  %v6456 = vpop.f32.mrb[0].mxu0
  %v6457 = vadd.f32 0.0, %v6456
  %v6458 = vpop.f32.mrb[0].mxu0
  %6459 = vmatprep.mubr.bf16.mxu0 0
  %6460 = vmatmul.mubr.bf16.gmra.mrb[0].mxu0 %v6191
  %v6461 = vpop.f32.mrb[0].mxu0
  %v6462 = vadd.f32 0.0, %v6461
  %v6463 = vpop.f32.mrb[0].mxu0
  %v6464 = vpop.f32.mrb[0].mxu0
  %v6465 = vadd.f32 0.0, %v6464
  %v6466 = vpop.f32.mrb[0].mxu0
  %6467 = vmatprep.mubr.bf16.mxu0 0
  %6468 = vmatmul.mubr.bf16.gmra.mrb[0].mxu0 %v6194
  %v6469 = vpop.f32.mrb[0].mxu0
  %v6470 = vadd.f32 0.0, %v6469
  %v6471 = vpop.f32.mrb[0].mxu0
  %v6472 = vpop.f32.mrb[0].mxu0
  %v6473 = vadd.f32 0.0, %v6472
  %v6474 = vpop.f32.mrb[0].mxu0
  %6475 = vmatprep.mubr.bf16.mxu0 0
  %6476 = vmatmul.mubr.bf16.gmra.mrb[0].mxu0 %v6197
  %v6477 = vpop.f32.mrb[0].mxu0
  %v6478 = vadd.f32 0.0, %v6477
  %v6479 = vpop.f32.mrb[0].mxu0
  %v6480 = vpop.f32.mrb[0].mxu0
  %v6481 = vadd.f32 0.0, %v6480
  %v6482 = vpop.f32.mrb[0].mxu0
  %6483 = vmatprep.mubr.bf16.mxu0 0
  %6484 = vmatmul.mubr.bf16.gmra.mrb[0].mxu0 %v6200
  %v6485 = vpop.f32.mrb[0].mxu0
  %v6486 = vadd.f32 0.0, %v6485
  %v6487 = vpop.f32.mrb[0].mxu0
  %v6488 = vpop.f32.mrb[0].mxu0
  %v6489 = vadd.f32 0.0, %v6488
  %v6490 = vpop.f32.mrb[0].mxu0
  %6491 = vmatprep.mubr.bf16.mxu0 0
  %6492 = vmatmul.mubr.bf16.gmra.mrb[0].mxu0 %v6203
  %v6493 = vpop.f32.mrb[0].mxu0
  %v6494 = vadd.f32 0.0, %v6493
  %v6495 = vpop.f32.mrb[0].mxu0
  %v6496 = vpop.f32.mrb[0].mxu0
  %v6497 = vadd.f32 0.0, %v6496
  %v6498 = vpop.f32.mrb[0].mxu0
  %6499 = vmatprep.mubr.bf16.mxu0 0
  %6500 = vmatmul.mubr.bf16.gmra.mrb[0].mxu0 %v6206
  %v6501 = vpop.f32.mrb[0].mxu0
  %v6502 = vadd.f32 0.0, %v6501
  %v6503 = vpop.f32.mrb[0].mxu0
  %v6504 = vpop.f32.mrb[0].mxu0
  %v6505 = vadd.f32 0.0, %v6504
  %v6506 = vpop.f32.mrb[0].mxu0
  %6507 = vmatprep.mubr.bf16.mxu0 0
  %6508 = vmatmul.mubr.bf16.gmra.mrb[0].mxu0 %v6209
  %v6509 = vpop.f32.mrb[0].mxu0
  %v6510 = vadd.f32 0.0, %v6509
  %v6511 = vpop.f32.mrb[0].mxu0
  %v6512 = vpop.f32.mrb[0].mxu0
  %v6513 = vadd.f32 0.0, %v6512
  %v6514 = vpop.f32.mrb[0].mxu0
  %6515 = vmatprep.mubr.bf16.mxu0 0
  %6516 = vmatmul.mubr.bf16.gmra.mrb[0].mxu0 %v6212
  %v6517 = vpop.f32.mrb[0].mxu0
  %v6518 = vadd.f32 0.0, %v6517
  %v6519 = vpop.f32.mrb[0].mxu0
  %v6520 = vpop.f32.mrb[0].mxu0
  %v6521 = vadd.f32 0.0, %v6520
  %v6522 = vpop.f32.mrb[0].mxu0
  %6523 = vmatprep.mubr.bf16.mxu0 0
  %6524 = vmatmul.mubr.bf16.gmra.mrb[0].mxu0 %v6215
  %v6525 = vpop.f32.mrb[0].mxu0
  %v6526 = vadd.f32 0.0, %v6525
  %v6527 = vpop.f32.mrb[0].mxu0
  %v6528 = vpop.f32.mrb[0].mxu0
  %v6529 = vadd.f32 0.0, %v6528
  %v6530 = vpop.f32.mrb[0].mxu0
  %6531 = vmatprep.mubr.bf16.mxu0 0
  %6532 = vmatmul.mubr.bf16.gmra.mrb[0].mxu0 %v6218
  %v6533 = vpop.f32.mrb[0].mxu0
  %v6534 = vadd.f32 0.0, %v6533
  %v6535 = vpop.f32.mrb[0].mxu0
  %v6536 = vpop.f32.mrb[0].mxu0
  %v6537 = vadd.f32 0.0, %v6536
  %v6538 = vpop.f32.mrb[0].mxu0
  %6539 = vmatprep.mubr.bf16.mxu0 0
  %6540 = vmatmul.mubr.bf16.gmra.mrb[0].mxu0 %v6221
  %v6541 = vpop.f32.mrb[0].mxu0
  %v6542 = vadd.f32 0.0, %v6541
  %v6543 = vpop.f32.mrb[0].mxu0
  %v6544 = vpop.f32.mrb[0].mxu0
  %v6545 = vadd.f32 0.0, %v6544
  %v6546 = vpop.f32.mrb[0].mxu0
  %6547 = vmatprep.mubr.bf16.mxu0 0
  %6548 = vmatmul.mubr.bf16.gmra.mrb[0].mxu0 %v6224
  %v6549 = vpop.f32.mrb[0].mxu0
  %v6550 = vadd.f32 0.0, %v6549
  %v6551 = vpop.f32.mrb[0].mxu0
  %v6552 = vpop.f32.mrb[0].mxu0
  %v6553 = vadd.f32 0.0, %v6552
  %v6554 = vpop.f32.mrb[0].mxu0
  %6555 = vmatprep.mubr.bf16.mxu0 0
  %6556 = vmatmul.mubr.bf16.gmra.mrb[0].mxu0 %v6227
  %v6557 = vpop.f32.mrb[0].mxu0
  %v6558 = vadd.f32 0.0, %v6557
  %v6559 = vpop.f32.mrb[0].mxu0
  %v6560 = vpop.f32.mrb[0].mxu0
  %v6561 = vadd.f32 0.0, %v6560
  %v6562 = vpop.f32.mrb[0].mxu0
  %6563 = vmatprep.mubr.bf16.mxu0 0
  %6564 = vmatmul.mubr.bf16.gmra.mrb[0].mxu0 %v6230
  %v6565 = vpop.f32.mrb[0].mxu0
  %v6566 = vadd.f32 0.0, %v6565
  %v6567 = vpop.f32.mrb[0].mxu0
  %v6568 = vpop.f32.mrb[0].mxu0
  %v6569 = vadd.f32 0.0, %v6568
  %v6570 = vpop.f32.mrb[0].mxu0
  %6571 = vmatprep.mubr.bf16.mxu0 0
  %6572 = vmatmul.mubr.bf16.gmra.mrb[0].mxu0 %v6233
  %v6573 = vpop.f32.mrb[0].mxu0
  %v6574 = vadd.f32 0.0, %v6573
  %v6575 = vpop.f32.mrb[0].mxu0
  %v6576 = vpop.f32.mrb[0].mxu0
  %v6577 = vadd.f32 0.0, %v6576
  %v6578 = vpop.f32.mrb[0].mxu0
  %6579 = vmatprep.mubr.bf16.mxu0 0
  %6580 = vmatmul.mubr.bf16.gmra.mrb[0].mxu0 %v6236
  %v6581 = vpop.f32.mrb[0].mxu0
  %v6582 = vadd.f32 0.0, %v6581
  %v6583 = vpop.f32.mrb[0].mxu0
  %v6584 = vpop.f32.mrb[0].mxu0
  %v6585 = vadd.f32 0.0, %v6584
  %v6586 = vpop.f32.mrb[0].mxu0
  %6587 = vmatprep.mubr.bf16.mxu0 0
  %6588 = vmatmul.mubr.bf16.gmra.mrb[0].mxu0 %v6239
  %v6589 = vpop.f32.mrb[0].mxu0
  %v6590 = vadd.f32 0.0, %v6589
  %v6591 = vpop.f32.mrb[0].mxu0
  %v6592 = vpop.f32.mrb[0].mxu0
  %v6593 = vadd.f32 0.0, %v6592
  %v6594 = vpop.f32.mrb[0].mxu0
  %6595 = vmatprep.mubr.bf16.mxu0 0
  %6596 = vmatmul.mubr.bf16.gmra.mrb[0].mxu0 %v6242
  %v6597 = vpop.f32.mrb[0].mxu0
  %v6598 = vadd.f32 0.0, %v6597
  %v6599 = vpop.f32.mrb[0].mxu0
  %v6600 = vpop.f32.mrb[0].mxu0
  %v6601 = vadd.f32 0.0, %v6600
  %v6602 = vpop.f32.mrb[0].mxu0
  %6603 = vmatprep.mubr.bf16.mxu0 0
  %6604 = vmatmul.mubr.bf16.gmra.mrb[0].mxu0 %v6245
  %v6605 = vpop.f32.mrb[0].mxu0
  %v6606 = vadd.f32 0.0, %v6605
  %v6607 = vpop.f32.mrb[0].mxu0
  %v6608 = vpop.f32.mrb[0].mxu0
  %v6609 = vadd.f32 0.0, %v6608
  %v6610 = vpop.f32.mrb[0].mxu0
  %6611 = vmatprep.mubr.bf16.mxu0 0
  %6612 = vmatmul.mubr.bf16.gmra.mrb[0].mxu0 %v6248
  %v6613 = vpop.f32.mrb[0].mxu0
  %v6614 = vadd.f32 0.0, %v6613
  %v6615 = vpop.f32.mrb[0].mxu0
  %v6616 = vpop.f32.mrb[0].mxu0
  %v6617 = vadd.f32 0.0, %v6616
  %v6618 = vpop.f32.mrb[0].mxu0
  %6619 = vmatprep.mubr.bf16.mxu0 0
  %6620 = vmatmul.mubr.bf16.gmra.mrb[0].mxu0 %v6251
  %v6621 = vpop.f32.mrb[0].mxu0
  %v6622 = vadd.f32 0.0, %v6621
  %v6623 = vpop.f32.mrb[0].mxu0
  %v6624 = vpop.f32.mrb[0].mxu0
  %v6625 = vadd.f32 0.0, %v6624
  %v6626 = vpop.f32.mrb[0].mxu0
  %6627 = vmatprep.mubr.bf16.mxu0 0
  %6628 = vmatmul.mubr.bf16.gmra.mrb[0].mxu0 %v6254
  %v6629 = vpop.f32.mrb[0].mxu0
  %v6630 = vadd.f32 0.0, %v6629
  %v6631 = vpop.f32.mrb[0].mxu0
  %v6632 = vpop.f32.mrb[0].mxu0
  %v6633 = vadd.f32 0.0, %v6632
  %v6634 = vpop.f32.mrb[0].mxu0
  %6635 = vmatprep.mubr.bf16.mxu0 0
  %6636 = vmatmul.mubr.bf16.gmra.mrb[0].mxu0 %v6257
  %v6637 = vpop.f32.mrb[0].mxu0
  %v6638 = vadd.f32 0.0, %v6637
  %v6639 = vpop.f32.mrb[0].mxu0
  %v6640 = vpop.f32.mrb[0].mxu0
  %v6641 = vadd.f32 0.0, %v6640
  %v6642 = vpop.f32.mrb[0].mxu0
  %6643 = vmatprep.mubr.bf16.mxu0 0
  %6644 = vmatmul.mubr.bf16.gmra.mrb[0].mxu0 %v6260
  %v6645 = vpop.f32.mrb[0].mxu0
  %v6646 = vadd.f32 0.0, %v6645
  %v6647 = vpop.f32.mrb[0].mxu0
  %v6648 = vpop.f32.mrb[0].mxu0
  %v6649 = vadd.f32 0.0, %v6648
  %v6650 = vpop.f32.mrb[0].mxu0
  %6651 = vmatprep.mubr.bf16.mxu0 0
  %6652 = vmatmul.mubr.bf16.gmra.mrb[0].mxu0 %v6263
  %v6653 = vpop.f32.mrb[0].mxu0
  %v6654 = vadd.f32 0.0, %v6653
  %v6655 = vpop.f32.mrb[0].mxu0
  %v6656 = vpop.f32.mrb[0].mxu0
  %v6657 = vadd.f32 0.0, %v6656
  %v6658 = vpop.f32.mrb[0].mxu0
  %6659 = vmatprep.mubr.bf16.mxu0 0
  %6660 = vmatmul.mubr.bf16.gmra.mrb[0].mxu0 %v6266
  %v6661 = vpop.f32.mrb[0].mxu0
  %v6662 = vadd.f32 0.0, %v6661
  %v6663 = vpop.f32.mrb[0].mxu0
  %v6664 = vpop.f32.mrb[0].mxu0
  %v6665 = vadd.f32 0.0, %v6664
  %v6666 = vpop.f32.mrb[0].mxu0
  %6667 = vmatprep.mubr.bf16.mxu0 0
  %6668 = vmatmul.mubr.bf16.gmra.mrb[0].mxu0 %v6269
  %v6669 = vpop.f32.mrb[0].mxu0
  %v6670 = vadd.f32 0.0, %v6669
  %v6671 = vpop.f32.mrb[0].mxu0
  %v6672 = vpop.f32.mrb[0].mxu0
  %v6673 = vadd.f32 0.0, %v6672
  %v6674 = vpop.f32.mrb[0].mxu0
  %6675 = vmatprep.mubr.bf16.mxu0 0
  %6676 = vmatmul.mubr.bf16.gmra.mrb[0].mxu0 %v6272
  %v6677 = vpop.f32.mrb[0].mxu0
  %v6678 = vadd.f32 0.0, %v6677
  %v6679 = vpop.f32.mrb[0].mxu0
  %v6680 = vpop.f32.mrb[0].mxu0
  %v6681 = vadd.f32 0.0, %v6680
  %v6682 = vpop.f32.mrb[0].mxu0
  %6683 = vmatprep.mubr.bf16.mxu0 0
  %6684 = vmatmul.mubr.bf16.gmra.mrb[0].mxu0 %v6275
  %v6685 = vpop.f32.mrb[0].mxu0
  %v6686 = vadd.f32 0.0, %v6685
  %v6687 = vpop.f32.mrb[0].mxu0
  %v6688 = vpop.f32.mrb[0].mxu0
  %v6689 = vadd.f32 0.0, %v6688
  %v6690 = vpop.f32.mrb[0].mxu0
  %6691 = vmatprep.mubr.bf16.mxu0 0
  %6692 = vmatmul.mubr.bf16.gmra.mrb[0].mxu0 %v6278
  %v6693 = vpop.f32.mrb[0].mxu0
  %v6694 = vadd.f32 0.0, %v6693
  %v6695 = vpop.f32.mrb[0].mxu0
  %v6696 = vpop.f32.mrb[0].mxu0
  %v6697 = vadd.f32 0.0, %v6696
  %v6698 = vpop.f32.mrb[0].mxu0
  %6699 = vmatprep.mubr.bf16.mxu0 0
  %6700 = vmatmul.mubr.bf16.gmra.mrb[0].mxu0 %v6281
  %v6701 = vpop.f32.mrb[0].mxu0
  %v6702 = vadd.f32 0.0, %v6701
  %v6703 = vpop.f32.mrb[0].mxu0
  %v6704 = vpop.f32.mrb[0].mxu0
  %v6705 = vadd.f32 0.0, %v6704
  %v6706 = vpop.f32.mrb[0].mxu0
  %6707 = vmatprep.mubr.bf16.mxu0 0
  %6708 = vmatmul.mubr.bf16.gmra.mrb[0].mxu0 %v6284
  %v6709 = vpop.f32.mrb[0].mxu0
  %v6710 = vadd.f32 0.0, %v6709
  %v6711 = vpop.f32.mrb[0].mxu0
  %v6712 = vpop.f32.mrb[0].mxu0
  %v6713 = vadd.f32 0.0, %v6712
  %v6714 = vpop.f32.mrb[0].mxu0
  %6715 = vmatprep.mubr.bf16.mxu0 0
  %6716 = vmatmul.mubr.bf16.gmra.mrb[0].mxu0 %v6287
  %v6717 = vpop.f32.mrb[0].mxu0
  %v6718 = vadd.f32 0.0, %v6717
  %v6719 = vpop.f32.mrb[0].mxu0
  %v6720 = vpop.f32.mrb[0].mxu0
  %v6721 = vadd.f32 0.0, %v6720
  %v6722 = vpop.f32.mrb[0].mxu0
  %6723 = vmatprep.mubr.bf16.mxu0 0
  %6724 = vmatmul.mubr.bf16.gmra.mrb[0].mxu0 %v6290
  %v6725 = vpop.f32.mrb[0].mxu0
  %v6726 = vadd.f32 0.0, %v6725
  %v6727 = vpop.f32.mrb[0].mxu0
  %v6728 = vpop.f32.mrb[0].mxu0
  %v6729 = vadd.f32 0.0, %v6728
  %v6730 = vpop.f32.mrb[0].mxu0
  %6731 = vmatprep.mubr.bf16.mxu0 0
  %6732 = vmatmul.mubr.bf16.gmra.mrb[0].mxu0 %v6293
  %v6733 = vpop.f32.mrb[0].mxu0
  %v6734 = vadd.f32 0.0, %v6733
  %v6735 = vpop.f32.mrb[0].mxu0
  %v6736 = vpop.f32.mrb[0].mxu0
  %v6737 = vadd.f32 0.0, %v6736
  %v6738 = vpop.f32.mrb[0].mxu0
  %6739 = vmatprep.mubr.bf16.mxu0 0
  %6740 = vmatmul.mubr.bf16.gmra.mrb[0].mxu0 %v6296
  %v6741 = vpop.f32.mrb[0].mxu0
  %v6742 = vadd.f32 0.0, %v6741
  %v6743 = vpop.f32.mrb[0].mxu0
  %v6744 = vpop.f32.mrb[0].mxu0
  %v6745 = vadd.f32 0.0, %v6744
  %v6746 = vpop.f32.mrb[0].mxu0
  %6747 = vmatprep.mubr.bf16.mxu0 0
  %6748 = vmatmul.mubr.bf16.gmra.mrb[0].mxu0 %v6299
  %v6749 = vpop.f32.mrb[0].mxu0
  %v6750 = vadd.f32 0.0, %v6749
  %v6751 = vpop.f32.mrb[0].mxu0
  %v6752 = vpop.f32.mrb[0].mxu0
  %v6753 = vadd.f32 0.0, %v6752
  %v6754 = vpop.f32.mrb[0].mxu0
  %6755 = vmatprep.mubr.bf16.mxu0 0
  %6756 = vmatmul.mubr.bf16.gmra.mrb[0].mxu0 %v6302
  %v6757 = vpop.f32.mrb[0].mxu0
  %v6758 = vadd.f32 0.0, %v6757
  %v6759 = vpop.f32.mrb[0].mxu0
  %v6760 = vpop.f32.mrb[0].mxu0
  %v6761 = vadd.f32 0.0, %v6760
  %v6762 = vpop.f32.mrb[0].mxu0
  %6763 = vmatprep.mubr.bf16.mxu0 0
  %6764 = vmatmul.mubr.bf16.gmra.mrb[0].mxu0 %v6305
  %v6765 = vpop.f32.mrb[0].mxu0
  %v6766 = vadd.f32 0.0, %v6765
  %v6767 = vpop.f32.mrb[0].mxu0
  %v6768 = vpop.f32.mrb[0].mxu0
  %v6769 = vadd.f32 0.0, %v6768
  %v6770 = vpop.f32.mrb[0].mxu0
  %6771 = vmatprep.mubr.bf16.mxu0 0
  %6772 = vmatmul.mubr.bf16.gmra.mrb[0].mxu0 %v6308
  %v6773 = vpop.f32.mrb[0].mxu0
  %v6774 = vadd.f32 0.0, %v6773
  %v6775 = vpop.f32.mrb[0].mxu0
  %v6776 = vpop.f32.mrb[0].mxu0
  %v6777 = vadd.f32 0.0, %v6776
  %v6778 = vpop.f32.mrb[0].mxu0
  %6779 = vmatprep.mubr.bf16.mxu0 0
  %6780 = vmatmul.mubr.bf16.gmra.mrb[0].mxu0 %v6311
  %v6781 = vpop.f32.mrb[0].mxu0
  %v6782 = vadd.f32 0.0, %v6781
  %v6783 = vpop.f32.mrb[0].mxu0
  %v6784 = vpop.f32.mrb[0].mxu0
  %v6785 = vadd.f32 0.0, %v6784
  %v6786 = vpop.f32.mrb[0].mxu0
  %6787 = vmatprep.mubr.bf16.mxu0 0
  %6788 = vmatmul.mubr.bf16.gmra.mrb[0].mxu0 %v6314
  %v6789 = vpop.f32.mrb[0].mxu0
  %v6790 = vadd.f32 0.0, %v6789
  %v6791 = vpop.f32.mrb[0].mxu0
  %v6792 = vpop.f32.mrb[0].mxu0
  %v6793 = vadd.f32 0.0, %v6792
  %v6794 = vpop.f32.mrb[0].mxu0
  %6795 = vmatprep.mubr.bf16.mxu0 0
  %6796 = vmatmul.mubr.bf16.gmra.mrb[0].mxu0 %v6317
  %v6797 = vpop.f32.mrb[0].mxu0
  %v6798 = vadd.f32 0.0, %v6797
  %v6799 = vpop.f32.mrb[0].mxu0
  %v6800 = vpop.f32.mrb[0].mxu0
  %v6801 = vadd.f32 0.0, %v6800
  %v6802 = vpop.f32.mrb[0].mxu0
  %6803 = vmatprep.mubr.bf16.mxu0 0
  %6804 = vmatmul.mubr.bf16.gmra.mrb[0].mxu0 %v6320
  %v6805 = vpop.f32.mrb[0].mxu0
  %v6806 = vadd.f32 0.0, %v6805
  %v6807 = vpop.f32.mrb[0].mxu0
  %v6808 = vpop.f32.mrb[0].mxu0
  %v6809 = vadd.f32 0.0, %v6808
  %v6810 = vpop.f32.mrb[0].mxu0
  %6811 = vmatprep.mubr.bf16.mxu0 0
  %6812 = vmatmul.mubr.bf16.gmra.mrb[0].mxu0 %v6323
  %v6813 = vpop.f32.mrb[0].mxu0
  %v6814 = vadd.f32 0.0, %v6813
  %v6815 = vpop.f32.mrb[0].mxu0
  %v6816 = vpop.f32.mrb[0].mxu0
  %v6817 = vadd.f32 0.0, %v6816
  %v6818 = vpop.f32.mrb[0].mxu0
  %6819 = vmatprep.mubr.bf16.mxu0 0
  %6820 = vmatmul.mubr.bf16.gmra.mrb[0].mxu0 %v6326
  %v6821 = vpop.f32.mrb[0].mxu0
  %v6822 = vadd.f32 0.0, %v6821
  %v6823 = vpop.f32.mrb[0].mxu0
  %v6824 = vpop.f32.mrb[0].mxu0
  %v6825 = vadd.f32 0.0, %v6824
  %v6826 = vpop.f32.mrb[0].mxu0
  %6827 = vmatprep.mubr.bf16.mxu0 0
  %6828 = vmatmul.mubr.bf16.gmra.mrb[0].mxu0 %v6329
  %v6829 = vpop.f32.mrb[0].mxu0
  %v6830 = vadd.f32 0.0, %v6829
  %v6831 = vpop.f32.mrb[0].mxu0
  %v6832 = vpop.f32.mrb[0].mxu0
  %v6833 = vadd.f32 0.0, %v6832
  %v6834 = vpop.f32.mrb[0].mxu0
  %6835 = vmatprep.mubr.bf16.mxu0 0
  %6836 = vmatmul.mubr.bf16.gmra.mrb[0].mxu0 %v6332
  %v6837 = vpop.f32.mrb[0].mxu0
  %v6838 = vadd.f32 0.0, %v6837
  %v6839 = vpop.f32.mrb[0].mxu0
  %v6840 = vpop.f32.mrb[0].mxu0
  %v6841 = vadd.f32 0.0, %v6840
  %v6842 = vpop.f32.mrb[0].mxu0
  %6843 = vmatprep.mubr.bf16.mxu0 0
  %6844 = vmatmul.mubr.bf16.gmra.mrb[0].mxu0 %v6335
  %v6845 = vpop.f32.mrb[0].mxu0
  %v6846 = vadd.f32 0.0, %v6845
  %v6847 = vpop.f32.mrb[0].mxu0
  %v6848 = vpop.f32.mrb[0].mxu0
  %v6849 = vadd.f32 0.0, %v6848
  %v6850 = vpop.f32.mrb[0].mxu0
  %6851 = vmatprep.mubr.bf16.mxu0 0
  %6852 = vmatmul.mubr.bf16.gmra.mrb[0].mxu0 %v6338
  %v6853 = vpop.f32.mrb[0].mxu0
  %v6854 = vadd.f32 0.0, %v6853
  %v6855 = vpop.f32.mrb[0].mxu0
  %v6856 = vpop.f32.mrb[0].mxu0
  %v6857 = vadd.f32 0.0, %v6856
  %v6858 = vpop.f32.mrb[0].mxu0
  %6859 = vmatprep.mubr.bf16.mxu0 0
  %6860 = vmatmul.mubr.bf16.gmra.mrb[0].mxu0 %v6341
  %v6861 = vpop.f32.mrb[0].mxu0
  %v6862 = vadd.f32 0.0, %v6861
  %v6863 = vpop.f32.mrb[0].mxu0
  %v6864 = vpop.f32.mrb[0].mxu0
  %v6865 = vadd.f32 0.0, %v6864
  %v6866 = vpop.f32.mrb[0].mxu0
  %6867 = vmatprep.mubr.bf16.mxu0 0
  %6868 = vmatmul.mubr.bf16.gmra.mrb[0].mxu0 %v6344
  %v6869 = vpop.f32.mrb[0].mxu0
  %v6870 = vadd.f32 0.0, %v6869
  %v6871 = vpop.f32.mrb[0].mxu0
  %v6872 = vpop.f32.mrb[0].mxu0
  %v6873 = vadd.f32 0.0, %v6872
  %v6874 = vpop.f32.mrb[0].mxu0
  %6875 = vmatprep.mubr.bf16.mxu0 0
  %6876 = vmatmul.mubr.bf16.gmra.mrb[0].mxu0 %v6347
  %v6877 = vpop.f32.mrb[0].mxu0
  %v6878 = vadd.f32 0.0, %v6877
  %v6879 = vpop.f32.mrb[0].mxu0
  %v6880 = vpop.f32.mrb[0].mxu0
  %v6881 = vadd.f32 0.0, %v6880
  %v6882 = vpop.f32.mrb[0].mxu0
  %6883 = vmatprep.mubr.bf16.mxu0 0
  %6884 = vmatmul.mubr.bf16.gmra.mrb[0].mxu0 %v6350
  %v6885 = vpop.f32.mrb[0].mxu0
  %v6886 = vadd.f32 0.0, %v6885
  %v6887 = vpop.f32.mrb[0].mxu0
  %v6888 = vpop.f32.mrb[0].mxu0
  %v6889 = vadd.f32 0.0, %v6888
  %v6890 = vpop.f32.mrb[0].mxu0
  %6891 = vmatprep.mubr.bf16.mxu0 0
  %6892 = vmatmul.mubr.bf16.gmra.mrb[0].mxu0 %v6353
  %v6893 = vpop.f32.mrb[0].mxu0
  %v6894 = vadd.f32 0.0, %v6893
  %v6895 = vpop.f32.mrb[0].mxu0
  %v6896 = vpop.f32.mrb[0].mxu0
  %v6897 = vadd.f32 0.0, %v6896
  %v6898 = vpop.f32.mrb[0].mxu0
  %6899 = vdwg.mxu0
  %v6900 = vpack.c.bf16 %v5009, %v5008
  %v6901 = vpack.c.bf16 %v5011, %v5010
  %v6902 = vpack.c.bf16 %v5013, %v5012
  %v6903 = vpack.c.bf16 %v5015, %v5014
  %v6904 = vpack.c.bf16 %v5017, %v5016
  %v6905 = vpack.c.bf16 %v5019, %v5018
  %v6906 = vpack.c.bf16 %v5021, %v5020
  %v6907 = vpack.c.bf16 %v5023, %v5022
  %v6908 = vpack.c.bf16 %v5025, %v5024
  %v6909 = vpack.c.bf16 %v5027, %v5026
  %v6910 = vpack.c.bf16 %v5029, %v5028
  %v6911 = vpack.c.bf16 %v5031, %v5030
  %v6912 = vpack.c.bf16 %v5033, %v5032
  %v6913 = vpack.c.bf16 %v5035, %v5034
  %v6914 = vpack.c.bf16 %v5037, %v5036
  %v6915 = vpack.c.bf16 %v5039, %v5038
  %v6916 = vpack.c.bf16 %v5041, %v5040
  %v6917 = vpack.c.bf16 %v5043, %v5042
  %v6918 = vpack.c.bf16 %v5045, %v5044
  %v6919 = vpack.c.bf16 %v5047, %v5046
  %v6920 = vpack.c.bf16 %v5049, %v5048
  %v6921 = vpack.c.bf16 %v5051, %v5050
  %v6922 = vpack.c.bf16 %v5053, %v5052
  %v6923 = vpack.c.bf16 %v5055, %v5054
  %v6924 = vpack.c.bf16 %v5057, %v5056
  %v6925 = vpack.c.bf16 %v5059, %v5058
  %v6926 = vpack.c.bf16 %v5061, %v5060
  %v6927 = vpack.c.bf16 %v5063, %v5062
  %v6928 = vpack.c.bf16 %v5065, %v5064
  %v6929 = vpack.c.bf16 %v5067, %v5066
  %v6930 = vpack.c.bf16 %v5069, %v5068
  %v6931 = vpack.c.bf16 %v5071, %v5070
  %v6932 = vpack.c.bf16 %v5073, %v5072
  %v6933 = vpack.c.bf16 %v5075, %v5074
  %v6934 = vpack.c.bf16 %v5077, %v5076
  %v6935 = vpack.c.bf16 %v5079, %v5078
  %v6936 = vpack.c.bf16 %v5081, %v5080
  %v6937 = vpack.c.bf16 %v5083, %v5082
  %v6938 = vpack.c.bf16 %v5085, %v5084
  %v6939 = vpack.c.bf16 %v5087, %v5086
  %v6940 = vpack.c.bf16 %v5089, %v5088
  %v6941 = vpack.c.bf16 %v5091, %v5090
  %v6942 = vpack.c.bf16 %v5093, %v5092
  %v6943 = vpack.c.bf16 %v5095, %v5094
  %v6944 = vpack.c.bf16 %v5097, %v5096
  %v6945 = vpack.c.bf16 %v5099, %v5098
  %v6946 = vpack.c.bf16 %v5101, %v5100
  %v6947 = vpack.c.bf16 %v5103, %v5102
  %v6948 = vpack.c.bf16 %v5105, %v5104
  %v6949 = vpack.c.bf16 %v5107, %v5106
  %v6950 = vpack.c.bf16 %v5109, %v5108
  %v6951 = vpack.c.bf16 %v5111, %v5110
  %v6952 = vpack.c.bf16 %v5113, %v5112
  %v6953 = vpack.c.bf16 %v5115, %v5114
  %v6954 = vpack.c.bf16 %v5117, %v5116
  %v6955 = vpack.c.bf16 %v5119, %v5118
  %v6956 = vpack.c.bf16 %v5121, %v5120
  %v6957 = vpack.c.bf16 %v5123, %v5122
  %v6958 = vpack.c.bf16 %v5125, %v5124
  %v6959 = vpack.c.bf16 %v5127, %v5126
  %v6960 = vpack.c.bf16 %v5129, %v5128
  %v6961 = vpack.c.bf16 %v5131, %v5130
  %v6962 = vpack.c.bf16 %v5133, %v5132
  %v6963 = vpack.c.bf16 %v5135, %v5134
  %s6964 = scalar_lea.vmem %s6, 32
  %v6965 = vld [vmem:[%s6964] sm:$0xf]
  %v6966 = vld [vmem:[%s6964 + $0x4] sm:$0xf]
  %v6967 = vld [vmem:[%s6964 + $0x8] sm:$0xf]
  %v6968 = vld [vmem:[%s6964 + $0xc] sm:$0xf]
  %v6973 = vunpack.c.l.b16 %v6965
  %v6974 = vunpack.c.l.b16 %v6966
  %v6975 = vunpack.c.l.b16 %v6967
  %v6976 = vunpack.c.l.b16 %v6968
  %v6977 = vpack.c.b16 %v6974, %v6973
  %v6978 = vpack.c.b16 %v6976, %v6975
  %v6982 = vsel %vm5344, %v6900, 0
  %v6985 = vsel %vm5344, %v6901, 0
  %v6988 = vsel %vm5344, %v6902, 0
  %v6991 = vsel %vm5344, %v6903, 0
  %v6994 = vsel %vm5344, %v6904, 0
  %v6997 = vsel %vm5344, %v6905, 0
  %v7000 = vsel %vm5344, %v6906, 0
  %v7003 = vsel %vm5344, %v6907, 0
  %v7006 = vsel %vm5344, %v6908, 0
  %v7009 = vsel %vm5344, %v6909, 0
  %v7012 = vsel %vm5344, %v6910, 0
  %v7015 = vsel %vm5344, %v6911, 0
  %v7018 = vsel %vm5344, %v6912, 0
  %v7021 = vsel %vm5344, %v6913, 0
  %v7024 = vsel %vm5344, %v6914, 0
  %v7027 = vsel %vm5344, %v6915, 0
  %v7030 = vsel %vm5344, %v6916, 0
  %v7033 = vsel %vm5344, %v6917, 0
  %v7036 = vsel %vm5344, %v6918, 0
  %v7039 = vsel %vm5344, %v6919, 0
  %v7042 = vsel %vm5344, %v6920, 0
  %v7045 = vsel %vm5344, %v6921, 0
  %v7048 = vsel %vm5344, %v6922, 0
  %v7051 = vsel %vm5344, %v6923, 0
  %v7054 = vsel %vm5344, %v6924, 0
  %v7057 = vsel %vm5344, %v6925, 0
  %v7060 = vsel %vm5344, %v6926, 0
  %v7063 = vsel %vm5344, %v6927, 0
  %v7066 = vsel %vm5344, %v6928, 0
  %v7069 = vsel %vm5344, %v6929, 0
  %v7072 = vsel %vm5344, %v6930, 0
  %v7075 = vsel %vm5344, %v6931, 0
  %v7078 = vsel %vm5344, %v6932, 0
  %v7081 = vsel %vm5344, %v6933, 0
  %v7084 = vsel %vm5344, %v6934, 0
  %v7087 = vsel %vm5344, %v6935, 0
  %v7090 = vsel %vm5344, %v6936, 0
  %v7093 = vsel %vm5344, %v6937, 0
  %v7096 = vsel %vm5344, %v6938, 0
  %v7099 = vsel %vm5344, %v6939, 0
  %v7102 = vsel %vm5344, %v6940, 0
  %v7105 = vsel %vm5344, %v6941, 0
  %v7108 = vsel %vm5344, %v6942, 0
  %v7111 = vsel %vm5344, %v6943, 0
  %v7114 = vsel %vm5344, %v6944, 0
  %v7117 = vsel %vm5344, %v6945, 0
  %v7120 = vsel %vm5344, %v6946, 0
  %v7123 = vsel %vm5344, %v6947, 0
  %v7126 = vsel %vm5344, %v6948, 0
  %v7129 = vsel %vm5344, %v6949, 0
  %v7132 = vsel %vm5344, %v6950, 0
  %v7135 = vsel %vm5344, %v6951, 0
  %v7138 = vsel %vm5344, %v6952, 0
  %v7141 = vsel %vm5344, %v6953, 0
  %v7144 = vsel %vm5344, %v6954, 0
  %v7147 = vsel %vm5344, %v6955, 0
  %v7150 = vsel %vm5344, %v6956, 0
  %v7153 = vsel %vm5344, %v6957, 0
  %v7156 = vsel %vm5344, %v6958, 0
  %v7159 = vsel %vm5344, %v6959, 0
  %v7162 = vsel %vm5344, %v6960, 0
  %v7165 = vsel %vm5344, %v6961, 0
  %v7168 = vsel %vm5344, %v6962, 0
  %v7171 = vsel %vm5344, %v6963, 0
  %7173 = vmatprep.subr.bf16.mxu0 0
  %7174 = vmatpush1.bf16.msra.mxu0 %v6977
  %7175 = vmatprep.subr.bf16.mxu0 0
  %7176 = vmatpush1.bf16.msra.mxu0 %v6978
  %7177 = vmatprep.subr.bf16.mxu0 0
  %7178 = vmatpush1.bf16.msra.mxu0 0
  %7179 = vmatprep.subr.bf16.mxu0 0
  %7180 = vmatpush1.bf16.msra.mxu0 0
  %7181 = vmatprep.subr.bf16.mxu0 0
  %7182 = vmatpush1.bf16.msra.mxu0 0
  %7183 = vmatprep.subr.bf16.mxu0 0
  %7184 = vmatpush1.bf16.msra.mxu0 0
  %7185 = vmatprep.subr.bf16.mxu0 0
  %7186 = vmatpush1.bf16.msra.mxu0 0
  %7187 = vmatprep.subr.bf16.mxu0 0
  %7188 = vmatpush1.bf16.msra.mxu0 0
  %7189 = vmatprep.subr.bf16.mxu0 0
  %7190 = vmatpush1.bf16.msra.mxu0 0
  %7191 = vmatprep.subr.bf16.mxu0 0
  %7192 = vmatpush1.bf16.msra.mxu0 0
  %7193 = vmatprep.subr.bf16.mxu0 0
  %7194 = vmatpush1.bf16.msra.mxu0 0
  %7195 = vmatprep.subr.bf16.mxu0 0
  %7196 = vmatpush1.bf16.msra.mxu0 0
  %7197 = vmatprep.subr.bf16.mxu0 0
  %7198 = vmatpush1.bf16.msra.mxu0 0
  %7199 = vmatprep.subr.bf16.mxu0 0
  %7200 = vmatpush1.bf16.msra.mxu0 0
  %7201 = vmatprep.subr.bf16.mxu0 0
  %7202 = vmatpush1.bf16.msra.mxu0 0
  %7203 = vmatprep.subr.bf16.mxu0 0
  %7204 = vmatpush1.bf16.msra.mxu0 0
  %7205 = vmatprep.mubr.bf16.mxu0 0
  %7206 = vmatmul.mubr.bf16.gmra.mrb[0].mxu0 %v6982
  %v7207 = vpop.f32.mrb[0].mxu0
  %v7208 = vadd.f32 0.0, %v7207
  %v7209 = vpop.f32.mrb[0].mxu0
  %v7210 = vpop.f32.mrb[0].mxu0
  %v7211 = vadd.f32 0.0, %v7210
  %v7212 = vpop.f32.mrb[0].mxu0
  %7213 = vmatprep.mubr.bf16.mxu0 0
  %7214 = vmatmul.mubr.bf16.gmra.mrb[0].mxu0 %v6985
  %v7215 = vpop.f32.mrb[0].mxu0
  %v7216 = vadd.f32 0.0, %v7215
  %v7217 = vpop.f32.mrb[0].mxu0
  %v7218 = vpop.f32.mrb[0].mxu0
  %v7219 = vadd.f32 0.0, %v7218
  %v7220 = vpop.f32.mrb[0].mxu0
  %7221 = vmatprep.mubr.bf16.mxu0 0
  %7222 = vmatmul.mubr.bf16.gmra.mrb[0].mxu0 %v6988
  %v7223 = vpop.f32.mrb[0].mxu0
  %v7224 = vadd.f32 0.0, %v7223
  %v7225 = vpop.f32.mrb[0].mxu0
  %v7226 = vpop.f32.mrb[0].mxu0
  %v7227 = vadd.f32 0.0, %v7226
  %v7228 = vpop.f32.mrb[0].mxu0
  %7229 = vmatprep.mubr.bf16.mxu0 0
  %7230 = vmatmul.mubr.bf16.gmra.mrb[0].mxu0 %v6991
  %v7231 = vpop.f32.mrb[0].mxu0
  %v7232 = vadd.f32 0.0, %v7231
  %v7233 = vpop.f32.mrb[0].mxu0
  %v7234 = vpop.f32.mrb[0].mxu0
  %v7235 = vadd.f32 0.0, %v7234
  %v7236 = vpop.f32.mrb[0].mxu0
  %7237 = vmatprep.mubr.bf16.mxu0 0
  %7238 = vmatmul.mubr.bf16.gmra.mrb[0].mxu0 %v6994
  %v7239 = vpop.f32.mrb[0].mxu0
  %v7240 = vadd.f32 0.0, %v7239
  %v7241 = vpop.f32.mrb[0].mxu0
  %v7242 = vpop.f32.mrb[0].mxu0
  %v7243 = vadd.f32 0.0, %v7242
  %v7244 = vpop.f32.mrb[0].mxu0
  %7245 = vmatprep.mubr.bf16.mxu0 0
  %7246 = vmatmul.mubr.bf16.gmra.mrb[0].mxu0 %v6997
  %v7247 = vpop.f32.mrb[0].mxu0
  %v7248 = vadd.f32 0.0, %v7247
  %v7249 = vpop.f32.mrb[0].mxu0
  %v7250 = vpop.f32.mrb[0].mxu0
  %v7251 = vadd.f32 0.0, %v7250
  %v7252 = vpop.f32.mrb[0].mxu0
  %7253 = vmatprep.mubr.bf16.mxu0 0
  %7254 = vmatmul.mubr.bf16.gmra.mrb[0].mxu0 %v7000
  %v7255 = vpop.f32.mrb[0].mxu0
  %v7256 = vadd.f32 0.0, %v7255
  %v7257 = vpop.f32.mrb[0].mxu0
  %v7258 = vpop.f32.mrb[0].mxu0
  %v7259 = vadd.f32 0.0, %v7258
  %v7260 = vpop.f32.mrb[0].mxu0
  %7261 = vmatprep.mubr.bf16.mxu0 0
  %7262 = vmatmul.mubr.bf16.gmra.mrb[0].mxu0 %v7003
  %v7263 = vpop.f32.mrb[0].mxu0
  %v7264 = vadd.f32 0.0, %v7263
  %v7265 = vpop.f32.mrb[0].mxu0
  %v7266 = vpop.f32.mrb[0].mxu0
  %v7267 = vadd.f32 0.0, %v7266
  %v7268 = vpop.f32.mrb[0].mxu0
  %7269 = vmatprep.mubr.bf16.mxu0 0
  %7270 = vmatmul.mubr.bf16.gmra.mrb[0].mxu0 %v7006
  %v7271 = vpop.f32.mrb[0].mxu0
  %v7272 = vadd.f32 0.0, %v7271
  %v7273 = vpop.f32.mrb[0].mxu0
  %v7274 = vpop.f32.mrb[0].mxu0
  %v7275 = vadd.f32 0.0, %v7274
  %v7276 = vpop.f32.mrb[0].mxu0
  %7277 = vmatprep.mubr.bf16.mxu0 0
  %7278 = vmatmul.mubr.bf16.gmra.mrb[0].mxu0 %v7009
  %v7279 = vpop.f32.mrb[0].mxu0
  %v7280 = vadd.f32 0.0, %v7279
  %v7281 = vpop.f32.mrb[0].mxu0
  %v7282 = vpop.f32.mrb[0].mxu0
  %v7283 = vadd.f32 0.0, %v7282
  %v7284 = vpop.f32.mrb[0].mxu0
  %7285 = vmatprep.mubr.bf16.mxu0 0
  %7286 = vmatmul.mubr.bf16.gmra.mrb[0].mxu0 %v7012
  %v7287 = vpop.f32.mrb[0].mxu0
  %v7288 = vadd.f32 0.0, %v7287
  %v7289 = vpop.f32.mrb[0].mxu0
  %v7290 = vpop.f32.mrb[0].mxu0
  %v7291 = vadd.f32 0.0, %v7290
  %v7292 = vpop.f32.mrb[0].mxu0
  %7293 = vmatprep.mubr.bf16.mxu0 0
  %7294 = vmatmul.mubr.bf16.gmra.mrb[0].mxu0 %v7015
  %v7295 = vpop.f32.mrb[0].mxu0
  %v7296 = vadd.f32 0.0, %v7295
  %v7297 = vpop.f32.mrb[0].mxu0
  %v7298 = vpop.f32.mrb[0].mxu0
  %v7299 = vadd.f32 0.0, %v7298
  %v7300 = vpop.f32.mrb[0].mxu0
  %7301 = vmatprep.mubr.bf16.mxu0 0
  %7302 = vmatmul.mubr.bf16.gmra.mrb[0].mxu0 %v7018
  %v7303 = vpop.f32.mrb[0].mxu0
  %v7304 = vadd.f32 0.0, %v7303
  %v7305 = vpop.f32.mrb[0].mxu0
  %v7306 = vpop.f32.mrb[0].mxu0
  %v7307 = vadd.f32 0.0, %v7306
  %v7308 = vpop.f32.mrb[0].mxu0
  %7309 = vmatprep.mubr.bf16.mxu0 0
  %7310 = vmatmul.mubr.bf16.gmra.mrb[0].mxu0 %v7021
  %v7311 = vpop.f32.mrb[0].mxu0
  %v7312 = vadd.f32 0.0, %v7311
  %v7313 = vpop.f32.mrb[0].mxu0
  %v7314 = vpop.f32.mrb[0].mxu0
  %v7315 = vadd.f32 0.0, %v7314
  %v7316 = vpop.f32.mrb[0].mxu0
  %7317 = vmatprep.mubr.bf16.mxu0 0
  %7318 = vmatmul.mubr.bf16.gmra.mrb[0].mxu0 %v7024
  %v7319 = vpop.f32.mrb[0].mxu0
  %v7320 = vadd.f32 0.0, %v7319
  %v7321 = vpop.f32.mrb[0].mxu0
  %v7322 = vpop.f32.mrb[0].mxu0
  %v7323 = vadd.f32 0.0, %v7322
  %v7324 = vpop.f32.mrb[0].mxu0
  %7325 = vmatprep.mubr.bf16.mxu0 0
  %7326 = vmatmul.mubr.bf16.gmra.mrb[0].mxu0 %v7027
  %v7327 = vpop.f32.mrb[0].mxu0
  %v7328 = vadd.f32 0.0, %v7327
  %v7329 = vpop.f32.mrb[0].mxu0
  %v7330 = vpop.f32.mrb[0].mxu0
  %v7331 = vadd.f32 0.0, %v7330
  %v7332 = vpop.f32.mrb[0].mxu0
  %7333 = vmatprep.mubr.bf16.mxu0 0
  %7334 = vmatmul.mubr.bf16.gmra.mrb[0].mxu0 %v7030
  %v7335 = vpop.f32.mrb[0].mxu0
  %v7336 = vadd.f32 0.0, %v7335
  %v7337 = vpop.f32.mrb[0].mxu0
  %v7338 = vpop.f32.mrb[0].mxu0
  %v7339 = vadd.f32 0.0, %v7338
  %v7340 = vpop.f32.mrb[0].mxu0
  %7341 = vmatprep.mubr.bf16.mxu0 0
  %7342 = vmatmul.mubr.bf16.gmra.mrb[0].mxu0 %v7033
  %v7343 = vpop.f32.mrb[0].mxu0
  %v7344 = vadd.f32 0.0, %v7343
  %v7345 = vpop.f32.mrb[0].mxu0
  %v7346 = vpop.f32.mrb[0].mxu0
  %v7347 = vadd.f32 0.0, %v7346
  %v7348 = vpop.f32.mrb[0].mxu0
  %7349 = vmatprep.mubr.bf16.mxu0 0
  %7350 = vmatmul.mubr.bf16.gmra.mrb[0].mxu0 %v7036
  %v7351 = vpop.f32.mrb[0].mxu0
  %v7352 = vadd.f32 0.0, %v7351
  %v7353 = vpop.f32.mrb[0].mxu0
  %v7354 = vpop.f32.mrb[0].mxu0
  %v7355 = vadd.f32 0.0, %v7354
  %v7356 = vpop.f32.mrb[0].mxu0
  %7357 = vmatprep.mubr.bf16.mxu0 0
  %7358 = vmatmul.mubr.bf16.gmra.mrb[0].mxu0 %v7039
  %v7359 = vpop.f32.mrb[0].mxu0
  %v7360 = vadd.f32 0.0, %v7359
  %v7361 = vpop.f32.mrb[0].mxu0
  %v7362 = vpop.f32.mrb[0].mxu0
  %v7363 = vadd.f32 0.0, %v7362
  %v7364 = vpop.f32.mrb[0].mxu0
  %7365 = vmatprep.mubr.bf16.mxu0 0
  %7366 = vmatmul.mubr.bf16.gmra.mrb[0].mxu0 %v7042
  %v7367 = vpop.f32.mrb[0].mxu0
  %v7368 = vadd.f32 0.0, %v7367
  %v7369 = vpop.f32.mrb[0].mxu0
  %v7370 = vpop.f32.mrb[0].mxu0
  %v7371 = vadd.f32 0.0, %v7370
  %v7372 = vpop.f32.mrb[0].mxu0
  %7373 = vmatprep.mubr.bf16.mxu0 0
  %7374 = vmatmul.mubr.bf16.gmra.mrb[0].mxu0 %v7045
  %v7375 = vpop.f32.mrb[0].mxu0
  %v7376 = vadd.f32 0.0, %v7375
  %v7377 = vpop.f32.mrb[0].mxu0
  %v7378 = vpop.f32.mrb[0].mxu0
  %v7379 = vadd.f32 0.0, %v7378
  %v7380 = vpop.f32.mrb[0].mxu0
  %7381 = vmatprep.mubr.bf16.mxu0 0
  %7382 = vmatmul.mubr.bf16.gmra.mrb[0].mxu0 %v7048
  %v7383 = vpop.f32.mrb[0].mxu0
  %v7384 = vadd.f32 0.0, %v7383
  %v7385 = vpop.f32.mrb[0].mxu0
  %v7386 = vpop.f32.mrb[0].mxu0
  %v7387 = vadd.f32 0.0, %v7386
  %v7388 = vpop.f32.mrb[0].mxu0
  %7389 = vmatprep.mubr.bf16.mxu0 0
  %7390 = vmatmul.mubr.bf16.gmra.mrb[0].mxu0 %v7051
  %v7391 = vpop.f32.mrb[0].mxu0
  %v7392 = vadd.f32 0.0, %v7391
  %v7393 = vpop.f32.mrb[0].mxu0
  %v7394 = vpop.f32.mrb[0].mxu0
  %v7395 = vadd.f32 0.0, %v7394
  %v7396 = vpop.f32.mrb[0].mxu0
  %7397 = vmatprep.mubr.bf16.mxu0 0
  %7398 = vmatmul.mubr.bf16.gmra.mrb[0].mxu0 %v7054
  %v7399 = vpop.f32.mrb[0].mxu0
  %v7400 = vadd.f32 0.0, %v7399
  %v7401 = vpop.f32.mrb[0].mxu0
  %v7402 = vpop.f32.mrb[0].mxu0
  %v7403 = vadd.f32 0.0, %v7402
  %v7404 = vpop.f32.mrb[0].mxu0
  %7405 = vmatprep.mubr.bf16.mxu0 0
  %7406 = vmatmul.mubr.bf16.gmra.mrb[0].mxu0 %v7057
  %v7407 = vpop.f32.mrb[0].mxu0
  %v7408 = vadd.f32 0.0, %v7407
  %v7409 = vpop.f32.mrb[0].mxu0
  %v7410 = vpop.f32.mrb[0].mxu0
  %v7411 = vadd.f32 0.0, %v7410
  %v7412 = vpop.f32.mrb[0].mxu0
  %7413 = vmatprep.mubr.bf16.mxu0 0
  %7414 = vmatmul.mubr.bf16.gmra.mrb[0].mxu0 %v7060
  %v7415 = vpop.f32.mrb[0].mxu0
  %v7416 = vadd.f32 0.0, %v7415
  %v7417 = vpop.f32.mrb[0].mxu0
  %v7418 = vpop.f32.mrb[0].mxu0
  %v7419 = vadd.f32 0.0, %v7418
  %v7420 = vpop.f32.mrb[0].mxu0
  %7421 = vmatprep.mubr.bf16.mxu0 0
  %7422 = vmatmul.mubr.bf16.gmra.mrb[0].mxu0 %v7063
  %v7423 = vpop.f32.mrb[0].mxu0
  %v7424 = vadd.f32 0.0, %v7423
  %v7425 = vpop.f32.mrb[0].mxu0
  %v7426 = vpop.f32.mrb[0].mxu0
  %v7427 = vadd.f32 0.0, %v7426
  %v7428 = vpop.f32.mrb[0].mxu0
  %7429 = vmatprep.mubr.bf16.mxu0 0
  %7430 = vmatmul.mubr.bf16.gmra.mrb[0].mxu0 %v7066
  %v7431 = vpop.f32.mrb[0].mxu0
  %v7432 = vadd.f32 0.0, %v7431
  %v7433 = vpop.f32.mrb[0].mxu0
  %v7434 = vpop.f32.mrb[0].mxu0
  %v7435 = vadd.f32 0.0, %v7434
  %v7436 = vpop.f32.mrb[0].mxu0
  %7437 = vmatprep.mubr.bf16.mxu0 0
  %7438 = vmatmul.mubr.bf16.gmra.mrb[0].mxu0 %v7069
  %v7439 = vpop.f32.mrb[0].mxu0
  %v7440 = vadd.f32 0.0, %v7439
  %v7441 = vpop.f32.mrb[0].mxu0
  %v7442 = vpop.f32.mrb[0].mxu0
  %v7443 = vadd.f32 0.0, %v7442
  %v7444 = vpop.f32.mrb[0].mxu0
  %7445 = vmatprep.mubr.bf16.mxu0 0
  %7446 = vmatmul.mubr.bf16.gmra.mrb[0].mxu0 %v7072
  %v7447 = vpop.f32.mrb[0].mxu0
  %v7448 = vadd.f32 0.0, %v7447
  %v7449 = vpop.f32.mrb[0].mxu0
  %v7450 = vpop.f32.mrb[0].mxu0
  %v7451 = vadd.f32 0.0, %v7450
  %v7452 = vpop.f32.mrb[0].mxu0
  %7453 = vmatprep.mubr.bf16.mxu0 0
  %7454 = vmatmul.mubr.bf16.gmra.mrb[0].mxu0 %v7075
  %v7455 = vpop.f32.mrb[0].mxu0
  %v7456 = vadd.f32 0.0, %v7455
  %v7457 = vpop.f32.mrb[0].mxu0
  %v7458 = vpop.f32.mrb[0].mxu0
  %v7459 = vadd.f32 0.0, %v7458
  %v7460 = vpop.f32.mrb[0].mxu0
  %7461 = vmatprep.mubr.bf16.mxu0 0
  %7462 = vmatmul.mubr.bf16.gmra.mrb[0].mxu0 %v7078
  %v7463 = vpop.f32.mrb[0].mxu0
  %v7464 = vadd.f32 0.0, %v7463
  %v7465 = vpop.f32.mrb[0].mxu0
  %v7466 = vpop.f32.mrb[0].mxu0
  %v7467 = vadd.f32 0.0, %v7466
  %v7468 = vpop.f32.mrb[0].mxu0
  %7469 = vmatprep.mubr.bf16.mxu0 0
  %7470 = vmatmul.mubr.bf16.gmra.mrb[0].mxu0 %v7081
  %v7471 = vpop.f32.mrb[0].mxu0
  %v7472 = vadd.f32 0.0, %v7471
  %v7473 = vpop.f32.mrb[0].mxu0
  %v7474 = vpop.f32.mrb[0].mxu0
  %v7475 = vadd.f32 0.0, %v7474
  %v7476 = vpop.f32.mrb[0].mxu0
  %7477 = vmatprep.mubr.bf16.mxu0 0
  %7478 = vmatmul.mubr.bf16.gmra.mrb[0].mxu0 %v7084
  %v7479 = vpop.f32.mrb[0].mxu0
  %v7480 = vadd.f32 0.0, %v7479
  %v7481 = vpop.f32.mrb[0].mxu0
  %v7482 = vpop.f32.mrb[0].mxu0
  %v7483 = vadd.f32 0.0, %v7482
  %v7484 = vpop.f32.mrb[0].mxu0
  %7485 = vmatprep.mubr.bf16.mxu0 0
  %7486 = vmatmul.mubr.bf16.gmra.mrb[0].mxu0 %v7087
  %v7487 = vpop.f32.mrb[0].mxu0
  %v7488 = vadd.f32 0.0, %v7487
  %v7489 = vpop.f32.mrb[0].mxu0
  %v7490 = vpop.f32.mrb[0].mxu0
  %v7491 = vadd.f32 0.0, %v7490
  %v7492 = vpop.f32.mrb[0].mxu0
  %7493 = vmatprep.mubr.bf16.mxu0 0
  %7494 = vmatmul.mubr.bf16.gmra.mrb[0].mxu0 %v7090
  %v7495 = vpop.f32.mrb[0].mxu0
  %v7496 = vadd.f32 0.0, %v7495
  %v7497 = vpop.f32.mrb[0].mxu0
  %v7498 = vpop.f32.mrb[0].mxu0
  %v7499 = vadd.f32 0.0, %v7498
  %v7500 = vpop.f32.mrb[0].mxu0
  %7501 = vmatprep.mubr.bf16.mxu0 0
  %7502 = vmatmul.mubr.bf16.gmra.mrb[0].mxu0 %v7093
  %v7503 = vpop.f32.mrb[0].mxu0
  %v7504 = vadd.f32 0.0, %v7503
  %v7505 = vpop.f32.mrb[0].mxu0
  %v7506 = vpop.f32.mrb[0].mxu0
  %v7507 = vadd.f32 0.0, %v7506
  %v7508 = vpop.f32.mrb[0].mxu0
  %7509 = vmatprep.mubr.bf16.mxu0 0
  %7510 = vmatmul.mubr.bf16.gmra.mrb[0].mxu0 %v7096
  %v7511 = vpop.f32.mrb[0].mxu0
  %v7512 = vadd.f32 0.0, %v7511
  %v7513 = vpop.f32.mrb[0].mxu0
  %v7514 = vpop.f32.mrb[0].mxu0
  %v7515 = vadd.f32 0.0, %v7514
  %v7516 = vpop.f32.mrb[0].mxu0
  %7517 = vmatprep.mubr.bf16.mxu0 0
  %7518 = vmatmul.mubr.bf16.gmra.mrb[0].mxu0 %v7099
  %v7519 = vpop.f32.mrb[0].mxu0
  %v7520 = vadd.f32 0.0, %v7519
  %v7521 = vpop.f32.mrb[0].mxu0
  %v7522 = vpop.f32.mrb[0].mxu0
  %v7523 = vadd.f32 0.0, %v7522
  %v7524 = vpop.f32.mrb[0].mxu0
  %7525 = vmatprep.mubr.bf16.mxu0 0
  %7526 = vmatmul.mubr.bf16.gmra.mrb[0].mxu0 %v7102
  %v7527 = vpop.f32.mrb[0].mxu0
  %v7528 = vadd.f32 0.0, %v7527
  %v7529 = vpop.f32.mrb[0].mxu0
  %v7530 = vpop.f32.mrb[0].mxu0
  %v7531 = vadd.f32 0.0, %v7530
  %v7532 = vpop.f32.mrb[0].mxu0
  %7533 = vmatprep.mubr.bf16.mxu0 0
  %7534 = vmatmul.mubr.bf16.gmra.mrb[0].mxu0 %v7105
  %v7535 = vpop.f32.mrb[0].mxu0
  %v7536 = vadd.f32 0.0, %v7535
  %v7537 = vpop.f32.mrb[0].mxu0
  %v7538 = vpop.f32.mrb[0].mxu0
  %v7539 = vadd.f32 0.0, %v7538
  %v7540 = vpop.f32.mrb[0].mxu0
  %7541 = vmatprep.mubr.bf16.mxu0 0
  %7542 = vmatmul.mubr.bf16.gmra.mrb[0].mxu0 %v7108
  %v7543 = vpop.f32.mrb[0].mxu0
  %v7544 = vadd.f32 0.0, %v7543
  %v7545 = vpop.f32.mrb[0].mxu0
  %v7546 = vpop.f32.mrb[0].mxu0
  %v7547 = vadd.f32 0.0, %v7546
  %v7548 = vpop.f32.mrb[0].mxu0
  %7549 = vmatprep.mubr.bf16.mxu0 0
  %7550 = vmatmul.mubr.bf16.gmra.mrb[0].mxu0 %v7111
  %v7551 = vpop.f32.mrb[0].mxu0
  %v7552 = vadd.f32 0.0, %v7551
  %v7553 = vpop.f32.mrb[0].mxu0
  %v7554 = vpop.f32.mrb[0].mxu0
  %v7555 = vadd.f32 0.0, %v7554
  %v7556 = vpop.f32.mrb[0].mxu0
  %7557 = vmatprep.mubr.bf16.mxu0 0
  %7558 = vmatmul.mubr.bf16.gmra.mrb[0].mxu0 %v7114
  %v7559 = vpop.f32.mrb[0].mxu0
  %v7560 = vadd.f32 0.0, %v7559
  %v7561 = vpop.f32.mrb[0].mxu0
  %v7562 = vpop.f32.mrb[0].mxu0
  %v7563 = vadd.f32 0.0, %v7562
  %v7564 = vpop.f32.mrb[0].mxu0
  %7565 = vmatprep.mubr.bf16.mxu0 0
  %7566 = vmatmul.mubr.bf16.gmra.mrb[0].mxu0 %v7117
  %v7567 = vpop.f32.mrb[0].mxu0
  %v7568 = vadd.f32 0.0, %v7567
  %v7569 = vpop.f32.mrb[0].mxu0
  %v7570 = vpop.f32.mrb[0].mxu0
  %v7571 = vadd.f32 0.0, %v7570
  %v7572 = vpop.f32.mrb[0].mxu0
  %7573 = vmatprep.mubr.bf16.mxu0 0
  %7574 = vmatmul.mubr.bf16.gmra.mrb[0].mxu0 %v7120
  %v7575 = vpop.f32.mrb[0].mxu0
  %v7576 = vadd.f32 0.0, %v7575
  %v7577 = vpop.f32.mrb[0].mxu0
  %v7578 = vpop.f32.mrb[0].mxu0
  %v7579 = vadd.f32 0.0, %v7578
  %v7580 = vpop.f32.mrb[0].mxu0
  %7581 = vmatprep.mubr.bf16.mxu0 0
  %7582 = vmatmul.mubr.bf16.gmra.mrb[0].mxu0 %v7123
  %v7583 = vpop.f32.mrb[0].mxu0
  %v7584 = vadd.f32 0.0, %v7583
  %v7585 = vpop.f32.mrb[0].mxu0
  %v7586 = vpop.f32.mrb[0].mxu0
  %v7587 = vadd.f32 0.0, %v7586
  %v7588 = vpop.f32.mrb[0].mxu0
  %7589 = vmatprep.mubr.bf16.mxu0 0
  %7590 = vmatmul.mubr.bf16.gmra.mrb[0].mxu0 %v7126
  %v7591 = vpop.f32.mrb[0].mxu0
  %v7592 = vadd.f32 0.0, %v7591
  %v7593 = vpop.f32.mrb[0].mxu0
  %v7594 = vpop.f32.mrb[0].mxu0
  %v7595 = vadd.f32 0.0, %v7594
  %v7596 = vpop.f32.mrb[0].mxu0
  %7597 = vmatprep.mubr.bf16.mxu0 0
  %7598 = vmatmul.mubr.bf16.gmra.mrb[0].mxu0 %v7129
  %v7599 = vpop.f32.mrb[0].mxu0
  %v7600 = vadd.f32 0.0, %v7599
  %v7601 = vpop.f32.mrb[0].mxu0
  %v7602 = vpop.f32.mrb[0].mxu0
  %v7603 = vadd.f32 0.0, %v7602
  %v7604 = vpop.f32.mrb[0].mxu0
  %7605 = vmatprep.mubr.bf16.mxu0 0
  %7606 = vmatmul.mubr.bf16.gmra.mrb[0].mxu0 %v7132
  %v7607 = vpop.f32.mrb[0].mxu0
  %v7608 = vadd.f32 0.0, %v7607
  %v7609 = vpop.f32.mrb[0].mxu0
  %v7610 = vpop.f32.mrb[0].mxu0
  %v7611 = vadd.f32 0.0, %v7610
  %v7612 = vpop.f32.mrb[0].mxu0
  %7613 = vmatprep.mubr.bf16.mxu0 0
  %7614 = vmatmul.mubr.bf16.gmra.mrb[0].mxu0 %v7135
  %v7615 = vpop.f32.mrb[0].mxu0
  %v7616 = vadd.f32 0.0, %v7615
  %v7617 = vpop.f32.mrb[0].mxu0
  %v7618 = vpop.f32.mrb[0].mxu0
  %v7619 = vadd.f32 0.0, %v7618
  %v7620 = vpop.f32.mrb[0].mxu0
  %7621 = vmatprep.mubr.bf16.mxu0 0
  %7622 = vmatmul.mubr.bf16.gmra.mrb[0].mxu0 %v7138
  %v7623 = vpop.f32.mrb[0].mxu0
  %v7624 = vadd.f32 0.0, %v7623
  %v7625 = vpop.f32.mrb[0].mxu0
  %v7626 = vpop.f32.mrb[0].mxu0
  %v7627 = vadd.f32 0.0, %v7626
  %v7628 = vpop.f32.mrb[0].mxu0
  %7629 = vmatprep.mubr.bf16.mxu0 0
  %7630 = vmatmul.mubr.bf16.gmra.mrb[0].mxu0 %v7141
  %v7631 = vpop.f32.mrb[0].mxu0
  %v7632 = vadd.f32 0.0, %v7631
  %v7633 = vpop.f32.mrb[0].mxu0
  %v7634 = vpop.f32.mrb[0].mxu0
  %v7635 = vadd.f32 0.0, %v7634
  %v7636 = vpop.f32.mrb[0].mxu0
  %7637 = vmatprep.mubr.bf16.mxu0 0
  %7638 = vmatmul.mubr.bf16.gmra.mrb[0].mxu0 %v7144
  %v7639 = vpop.f32.mrb[0].mxu0
  %v7640 = vadd.f32 0.0, %v7639
  %v7641 = vpop.f32.mrb[0].mxu0
  %v7642 = vpop.f32.mrb[0].mxu0
  %v7643 = vadd.f32 0.0, %v7642
  %v7644 = vpop.f32.mrb[0].mxu0
  %7645 = vmatprep.mubr.bf16.mxu0 0
  %7646 = vmatmul.mubr.bf16.gmra.mrb[0].mxu0 %v7147
  %v7647 = vpop.f32.mrb[0].mxu0
  %v7648 = vadd.f32 0.0, %v7647
  %v7649 = vpop.f32.mrb[0].mxu0
  %v7650 = vpop.f32.mrb[0].mxu0
  %v7651 = vadd.f32 0.0, %v7650
  %v7652 = vpop.f32.mrb[0].mxu0
  %7653 = vmatprep.mubr.bf16.mxu0 0
  %7654 = vmatmul.mubr.bf16.gmra.mrb[0].mxu0 %v7150
  %v7655 = vpop.f32.mrb[0].mxu0
  %v7656 = vadd.f32 0.0, %v7655
  %v7657 = vpop.f32.mrb[0].mxu0
  %v7658 = vpop.f32.mrb[0].mxu0
  %v7659 = vadd.f32 0.0, %v7658
  %v7660 = vpop.f32.mrb[0].mxu0
  %7661 = vmatprep.mubr.bf16.mxu0 0
  %7662 = vmatmul.mubr.bf16.gmra.mrb[0].mxu0 %v7153
  %v7663 = vpop.f32.mrb[0].mxu0
  %v7664 = vadd.f32 0.0, %v7663
  %v7665 = vpop.f32.mrb[0].mxu0
  %v7666 = vpop.f32.mrb[0].mxu0
  %v7667 = vadd.f32 0.0, %v7666
  %v7668 = vpop.f32.mrb[0].mxu0
  %7669 = vmatprep.mubr.bf16.mxu0 0
  %7670 = vmatmul.mubr.bf16.gmra.mrb[0].mxu0 %v7156
  %v7671 = vpop.f32.mrb[0].mxu0
  %v7672 = vadd.f32 0.0, %v7671
  %v7673 = vpop.f32.mrb[0].mxu0
  %v7674 = vpop.f32.mrb[0].mxu0
  %v7675 = vadd.f32 0.0, %v7674
  %v7676 = vpop.f32.mrb[0].mxu0
  %7677 = vmatprep.mubr.bf16.mxu0 0
  %7678 = vmatmul.mubr.bf16.gmra.mrb[0].mxu0 %v7159
  %v7679 = vpop.f32.mrb[0].mxu0
  %v7680 = vadd.f32 0.0, %v7679
  %v7681 = vpop.f32.mrb[0].mxu0
  %v7682 = vpop.f32.mrb[0].mxu0
  %v7683 = vadd.f32 0.0, %v7682
  %v7684 = vpop.f32.mrb[0].mxu0
  %7685 = vmatprep.mubr.bf16.mxu0 0
  %7686 = vmatmul.mubr.bf16.gmra.mrb[0].mxu0 %v7162
  %v7687 = vpop.f32.mrb[0].mxu0
  %v7688 = vadd.f32 0.0, %v7687
  %v7689 = vpop.f32.mrb[0].mxu0
  %v7690 = vpop.f32.mrb[0].mxu0
  %v7691 = vadd.f32 0.0, %v7690
  %v7692 = vpop.f32.mrb[0].mxu0
  %7693 = vmatprep.mubr.bf16.mxu0 0
  %7694 = vmatmul.mubr.bf16.gmra.mrb[0].mxu0 %v7165
  %v7695 = vpop.f32.mrb[0].mxu0
  %v7696 = vadd.f32 0.0, %v7695
  %v7697 = vpop.f32.mrb[0].mxu0
  %v7698 = vpop.f32.mrb[0].mxu0
  %v7699 = vadd.f32 0.0, %v7698
  %v7700 = vpop.f32.mrb[0].mxu0
  %7701 = vmatprep.mubr.bf16.mxu0 0
  %7702 = vmatmul.mubr.bf16.gmra.mrb[0].mxu0 %v7168
  %v7703 = vpop.f32.mrb[0].mxu0
  %v7704 = vadd.f32 0.0, %v7703
  %v7705 = vpop.f32.mrb[0].mxu0
  %v7706 = vpop.f32.mrb[0].mxu0
  %v7707 = vadd.f32 0.0, %v7706
  %v7708 = vpop.f32.mrb[0].mxu0
  %7709 = vmatprep.mubr.bf16.mxu0 0
  %7710 = vmatmul.mubr.bf16.gmra.mrb[0].mxu0 %v7171
  %v7711 = vpop.f32.mrb[0].mxu0
  %v7712 = vadd.f32 0.0, %v7711
  %v7713 = vpop.f32.mrb[0].mxu0
  %v7714 = vpop.f32.mrb[0].mxu0
  %v7715 = vadd.f32 0.0, %v7714
  %v7716 = vpop.f32.mrb[0].mxu0
  %7717 = vdwg.mxu0
  %v7718 = vsub.f32 %v5572, %v7208
  %v7719 = vsub.f32 %v5575, %v7211
  %v7720 = vsub.f32 %v5580, %v7216
  %v7721 = vsub.f32 %v5583, %v7219
  %v7722 = vsub.f32 %v5588, %v7224
  %v7723 = vsub.f32 %v5591, %v7227
  %v7724 = vsub.f32 %v5596, %v7232
  %v7725 = vsub.f32 %v5599, %v7235
  %v7726 = vsub.f32 %v5604, %v7240
  %v7727 = vsub.f32 %v5607, %v7243
  %v7728 = vsub.f32 %v5612, %v7248
  %v7729 = vsub.f32 %v5615, %v7251
  %v7730 = vsub.f32 %v5620, %v7256
  %v7731 = vsub.f32 %v5623, %v7259
  %v7732 = vsub.f32 %v5628, %v7264
  %v7733 = vsub.f32 %v5631, %v7267
  %v7734 = vsub.f32 %v5636, %v7272
  %v7735 = vsub.f32 %v5639, %v7275
  %v7736 = vsub.f32 %v5644, %v7280
  %v7737 = vsub.f32 %v5647, %v7283
  %v7738 = vsub.f32 %v5652, %v7288
  %v7739 = vsub.f32 %v5655, %v7291
  %v7740 = vsub.f32 %v5660, %v7296
  %v7741 = vsub.f32 %v5663, %v7299
  %v7742 = vsub.f32 %v5668, %v7304
  %v7743 = vsub.f32 %v5671, %v7307
  %v7744 = vsub.f32 %v5676, %v7312
  %v7745 = vsub.f32 %v5679, %v7315
  %v7746 = vsub.f32 %v5684, %v7320
  %v7747 = vsub.f32 %v5687, %v7323
  %v7748 = vsub.f32 %v5692, %v7328
  %v7749 = vsub.f32 %v5695, %v7331
  %v7750 = vsub.f32 %v5700, %v7336
  %v7751 = vsub.f32 %v5703, %v7339
  %v7752 = vsub.f32 %v5708, %v7344
  %v7753 = vsub.f32 %v5711, %v7347
  %v7754 = vsub.f32 %v5716, %v7352
  %v7755 = vsub.f32 %v5719, %v7355
  %v7756 = vsub.f32 %v5724, %v7360
  %v7757 = vsub.f32 %v5727, %v7363
  %v7758 = vsub.f32 %v5732, %v7368
  %v7759 = vsub.f32 %v5735, %v7371
  %v7760 = vsub.f32 %v5740, %v7376
  %v7761 = vsub.f32 %v5743, %v7379
  %v7762 = vsub.f32 %v5748, %v7384
  %v7763 = vsub.f32 %v5751, %v7387
  %v7764 = vsub.f32 %v5756, %v7392
  %v7765 = vsub.f32 %v5759, %v7395
  %v7766 = vsub.f32 %v5764, %v7400
  %v7767 = vsub.f32 %v5767, %v7403
  %v7768 = vsub.f32 %v5772, %v7408
  %v7769 = vsub.f32 %v5775, %v7411
  %v7770 = vsub.f32 %v5780, %v7416
  %v7771 = vsub.f32 %v5783, %v7419
  %v7772 = vsub.f32 %v5788, %v7424
  %v7773 = vsub.f32 %v5791, %v7427
  %v7774 = vsub.f32 %v5796, %v7432
  %v7775 = vsub.f32 %v5799, %v7435
  %v7776 = vsub.f32 %v5804, %v7440
  %v7777 = vsub.f32 %v5807, %v7443
  %v7778 = vsub.f32 %v5812, %v7448
  %v7779 = vsub.f32 %v5815, %v7451
  %v7780 = vsub.f32 %v5820, %v7456
  %v7781 = vsub.f32 %v5823, %v7459
  %v7782 = vsub.f32 %v5828, %v7464
  %v7783 = vsub.f32 %v5831, %v7467
  %v7784 = vsub.f32 %v5836, %v7472
  %v7785 = vsub.f32 %v5839, %v7475
  %v7786 = vsub.f32 %v5844, %v7480
  %v7787 = vsub.f32 %v5847, %v7483
  %v7788 = vsub.f32 %v5852, %v7488
  %v7789 = vsub.f32 %v5855, %v7491
  %v7790 = vsub.f32 %v5860, %v7496
  %v7791 = vsub.f32 %v5863, %v7499
  %v7792 = vsub.f32 %v5868, %v7504
  %v7793 = vsub.f32 %v5871, %v7507
  %v7794 = vsub.f32 %v5876, %v7512
  %v7795 = vsub.f32 %v5879, %v7515
  %v7796 = vsub.f32 %v5884, %v7520
  %v7797 = vsub.f32 %v5887, %v7523
  %v7798 = vsub.f32 %v5892, %v7528
  %v7799 = vsub.f32 %v5895, %v7531
  %v7800 = vsub.f32 %v5900, %v7536
  %v7801 = vsub.f32 %v5903, %v7539
  %v7802 = vsub.f32 %v5908, %v7544
  %v7803 = vsub.f32 %v5911, %v7547
  %v7804 = vsub.f32 %v5916, %v7552
  %v7805 = vsub.f32 %v5919, %v7555
  %v7806 = vsub.f32 %v5924, %v7560
  %v7807 = vsub.f32 %v5927, %v7563
  %v7808 = vsub.f32 %v5932, %v7568
  %v7809 = vsub.f32 %v5935, %v7571
  %v7810 = vsub.f32 %v5940, %v7576
  %v7811 = vsub.f32 %v5943, %v7579
  %v7812 = vsub.f32 %v5948, %v7584
  %v7813 = vsub.f32 %v5951, %v7587
  %v7814 = vsub.f32 %v5956, %v7592
  %v7815 = vsub.f32 %v5959, %v7595
  %v7816 = vsub.f32 %v5964, %v7600
  %v7817 = vsub.f32 %v5967, %v7603
  %v7818 = vsub.f32 %v5972, %v7608
  %v7819 = vsub.f32 %v5975, %v7611
  %v7820 = vsub.f32 %v5980, %v7616
  %v7821 = vsub.f32 %v5983, %v7619
  %v7822 = vsub.f32 %v5988, %v7624
  %v7823 = vsub.f32 %v5991, %v7627
  %v7824 = vsub.f32 %v5996, %v7632
  %v7825 = vsub.f32 %v5999, %v7635
  %v7826 = vsub.f32 %v6004, %v7640
  %v7827 = vsub.f32 %v6007, %v7643
  %v7828 = vsub.f32 %v6012, %v7648
  %v7829 = vsub.f32 %v6015, %v7651
  %v7830 = vsub.f32 %v6020, %v7656
  %v7831 = vsub.f32 %v6023, %v7659
  %v7832 = vsub.f32 %v6028, %v7664
  %v7833 = vsub.f32 %v6031, %v7667
  %v7834 = vsub.f32 %v6036, %v7672
  %v7835 = vsub.f32 %v6039, %v7675
  %v7836 = vsub.f32 %v6044, %v7680
  %v7837 = vsub.f32 %v6047, %v7683
  %v7838 = vsub.f32 %v6052, %v7688
  %v7839 = vsub.f32 %v6055, %v7691
  %v7840 = vsub.f32 %v6060, %v7696
  %v7841 = vsub.f32 %v6063, %v7699
  %v7842 = vsub.f32 %v6068, %v7704
  %v7843 = vsub.f32 %v6071, %v7707
  %v7844 = vsub.f32 %v6076, %v7712
  %v7845 = vsub.f32 %v6079, %v7715
  %v7846 = vadd.f32 %v5572, %v6390
  %v7847 = vadd.f32 %v5575, %v6393
  %v7848 = vadd.f32 %v5580, %v6398
  %v7849 = vadd.f32 %v5583, %v6401
  %v7850 = vadd.f32 %v5588, %v6406
  %v7851 = vadd.f32 %v5591, %v6409
  %v7852 = vadd.f32 %v5596, %v6414
  %v7853 = vadd.f32 %v5599, %v6417
  %v7854 = vadd.f32 %v5604, %v6422
  %v7855 = vadd.f32 %v5607, %v6425
  %v7856 = vadd.f32 %v5612, %v6430
  %v7857 = vadd.f32 %v5615, %v6433
  %v7858 = vadd.f32 %v5620, %v6438
  %v7859 = vadd.f32 %v5623, %v6441
  %v7860 = vadd.f32 %v5628, %v6446
  %v7861 = vadd.f32 %v5631, %v6449
  %v7862 = vadd.f32 %v5636, %v6454
  %v7863 = vadd.f32 %v5639, %v6457
  %v7864 = vadd.f32 %v5644, %v6462
  %v7865 = vadd.f32 %v5647, %v6465
  %v7866 = vadd.f32 %v5652, %v6470
  %v7867 = vadd.f32 %v5655, %v6473
  %v7868 = vadd.f32 %v5660, %v6478
  %v7869 = vadd.f32 %v5663, %v6481
  %v7870 = vadd.f32 %v5668, %v6486
  %v7871 = vadd.f32 %v5671, %v6489
  %v7872 = vadd.f32 %v5676, %v6494
  %v7873 = vadd.f32 %v5679, %v6497
  %v7874 = vadd.f32 %v5684, %v6502
  %v7875 = vadd.f32 %v5687, %v6505
  %v7876 = vadd.f32 %v5692, %v6510
  %v7877 = vadd.f32 %v5695, %v6513
  %v7878 = vadd.f32 %v5700, %v6518
  %v7879 = vadd.f32 %v5703, %v6521
  %v7880 = vadd.f32 %v5708, %v6526
  %v7881 = vadd.f32 %v5711, %v6529
  %v7882 = vadd.f32 %v5716, %v6534
  %v7883 = vadd.f32 %v5719, %v6537
  %v7884 = vadd.f32 %v5724, %v6542
  %v7885 = vadd.f32 %v5727, %v6545
  %v7886 = vadd.f32 %v5732, %v6550
  %v7887 = vadd.f32 %v5735, %v6553
  %v7888 = vadd.f32 %v5740, %v6558
  %v7889 = vadd.f32 %v5743, %v6561
  %v7890 = vadd.f32 %v5748, %v6566
  %v7891 = vadd.f32 %v5751, %v6569
  %v7892 = vadd.f32 %v5756, %v6574
  %v7893 = vadd.f32 %v5759, %v6577
  %v7894 = vadd.f32 %v5764, %v6582
  %v7895 = vadd.f32 %v5767, %v6585
  %v7896 = vadd.f32 %v5772, %v6590
  %v7897 = vadd.f32 %v5775, %v6593
  %v7898 = vadd.f32 %v5780, %v6598
  %v7899 = vadd.f32 %v5783, %v6601
  %v7900 = vadd.f32 %v5788, %v6606
  %v7901 = vadd.f32 %v5791, %v6609
  %v7902 = vadd.f32 %v5796, %v6614
  %v7903 = vadd.f32 %v5799, %v6617
  %v7904 = vadd.f32 %v5804, %v6622
  %v7905 = vadd.f32 %v5807, %v6625
  %v7906 = vadd.f32 %v5812, %v6630
  %v7907 = vadd.f32 %v5815, %v6633
  %v7908 = vadd.f32 %v5820, %v6638
  %v7909 = vadd.f32 %v5823, %v6641
  %v7910 = vadd.f32 %v5828, %v6646
  %v7911 = vadd.f32 %v5831, %v6649
  %v7912 = vadd.f32 %v5836, %v6654
  %v7913 = vadd.f32 %v5839, %v6657
  %v7914 = vadd.f32 %v5844, %v6662
  %v7915 = vadd.f32 %v5847, %v6665
  %v7916 = vadd.f32 %v5852, %v6670
  %v7917 = vadd.f32 %v5855, %v6673
  %v7918 = vadd.f32 %v5860, %v6678
  %v7919 = vadd.f32 %v5863, %v6681
  %v7920 = vadd.f32 %v5868, %v6686
  %v7921 = vadd.f32 %v5871, %v6689
  %v7922 = vadd.f32 %v5876, %v6694
  %v7923 = vadd.f32 %v5879, %v6697
  %v7924 = vadd.f32 %v5884, %v6702
  %v7925 = vadd.f32 %v5887, %v6705
  %v7926 = vadd.f32 %v5892, %v6710
  %v7927 = vadd.f32 %v5895, %v6713
  %v7928 = vadd.f32 %v5900, %v6718
  %v7929 = vadd.f32 %v5903, %v6721
  %v7930 = vadd.f32 %v5908, %v6726
  %v7931 = vadd.f32 %v5911, %v6729
  %v7932 = vadd.f32 %v5916, %v6734
  %v7933 = vadd.f32 %v5919, %v6737
  %v7934 = vadd.f32 %v5924, %v6742
  %v7935 = vadd.f32 %v5927, %v6745
  %v7936 = vadd.f32 %v5932, %v6750
  %v7937 = vadd.f32 %v5935, %v6753
  %v7938 = vadd.f32 %v5940, %v6758
  %v7939 = vadd.f32 %v5943, %v6761
  %v7940 = vadd.f32 %v5948, %v6766
  %v7941 = vadd.f32 %v5951, %v6769
  %v7942 = vadd.f32 %v5956, %v6774
  %v7943 = vadd.f32 %v5959, %v6777
  %v7944 = vadd.f32 %v5964, %v6782
  %v7945 = vadd.f32 %v5967, %v6785
  %v7946 = vadd.f32 %v5972, %v6790
  %v7947 = vadd.f32 %v5975, %v6793
  %v7948 = vadd.f32 %v5980, %v6798
  %v7949 = vadd.f32 %v5983, %v6801
  %v7950 = vadd.f32 %v5988, %v6806
  %v7951 = vadd.f32 %v5991, %v6809
  %v7952 = vadd.f32 %v5996, %v6814
  %v7953 = vadd.f32 %v5999, %v6817
  %v7954 = vadd.f32 %v6004, %v6822
  %v7955 = vadd.f32 %v6007, %v6825
  %v7956 = vadd.f32 %v6012, %v6830
  %v7957 = vadd.f32 %v6015, %v6833
  %v7958 = vadd.f32 %v6020, %v6838
  %v7959 = vadd.f32 %v6023, %v6841
  %v7960 = vadd.f32 %v6028, %v6846
  %v7961 = vadd.f32 %v6031, %v6849
  %v7962 = vadd.f32 %v6036, %v6854
  %v7963 = vadd.f32 %v6039, %v6857
  %v7964 = vadd.f32 %v6044, %v6862
  %v7965 = vadd.f32 %v6047, %v6865
  %v7966 = vadd.f32 %v6052, %v6870
  %v7967 = vadd.f32 %v6055, %v6873
  %v7968 = vadd.f32 %v6060, %v6878
  %v7969 = vadd.f32 %v6063, %v6881
  %v7970 = vadd.f32 %v6068, %v6886
  %v7971 = vadd.f32 %v6071, %v6889
  %v7972 = vadd.f32 %v6076, %v6894
  %v7973 = vadd.f32 %v6079, %v6897
  %7978 = vrot.lane.b32.xlu0 %v7722, 16
  %v7979 = vpop.permute.xlu0 %7978
  %7980 = vrot.lane.b32.xlu0 %v7723, 16
  %v7981 = vpop.permute.xlu0 %7980
  %7982 = vrot.lane.b32.xlu0 %v7724, 16
  %v7983 = vpop.permute.xlu0 %7982
  %7984 = vrot.lane.b32.xlu0 %v7725, 16
  %v7985 = vpop.permute.xlu0 %7984
  %7994 = vrot.lane.b32.xlu0 %v7726, 32
  %v7995 = vpop.permute.xlu0 %7994
  %7996 = vrot.lane.b32.xlu0 %v7727, 32
  %v7997 = vpop.permute.xlu0 %7996
  %7998 = vrot.lane.b32.xlu0 %v7728, 32
  %v7999 = vpop.permute.xlu0 %7998
  %8000 = vrot.lane.b32.xlu0 %v7729, 32
  %v8001 = vpop.permute.xlu0 %8000
  %8010 = vrot.lane.b32.xlu0 %v7730, 48
  %v8011 = vpop.permute.xlu0 %8010
  %8012 = vrot.lane.b32.xlu0 %v7731, 48
  %v8013 = vpop.permute.xlu0 %8012
  %8014 = vrot.lane.b32.xlu0 %v7732, 48
  %v8015 = vpop.permute.xlu0 %8014
  %8016 = vrot.lane.b32.xlu0 %v7733, 48
  %v8017 = vpop.permute.xlu0 %8016
  %8026 = vrot.lane.b32.xlu0 %v7734, 64
  %v8027 = vpop.permute.xlu0 %8026
  %8028 = vrot.lane.b32.xlu0 %v7735, 64
  %v8029 = vpop.permute.xlu0 %8028
  %8030 = vrot.lane.b32.xlu0 %v7736, 64
  %v8031 = vpop.permute.xlu0 %8030
  %8032 = vrot.lane.b32.xlu0 %v7737, 64
  %v8033 = vpop.permute.xlu0 %8032
  %8042 = vrot.lane.b32.xlu0 %v7738, 80
  %v8043 = vpop.permute.xlu0 %8042
  %8044 = vrot.lane.b32.xlu0 %v7739, 80
  %v8045 = vpop.permute.xlu0 %8044
  %8046 = vrot.lane.b32.xlu0 %v7740, 80
  %v8047 = vpop.permute.xlu0 %8046
  %8048 = vrot.lane.b32.xlu0 %v7741, 80
  %v8049 = vpop.permute.xlu0 %8048
  %8058 = vrot.lane.b32.xlu0 %v7742, 96
  %v8059 = vpop.permute.xlu0 %8058
  %8060 = vrot.lane.b32.xlu0 %v7743, 96
  %v8061 = vpop.permute.xlu0 %8060
  %8062 = vrot.lane.b32.xlu0 %v7744, 96
  %v8063 = vpop.permute.xlu0 %8062
  %8064 = vrot.lane.b32.xlu0 %v7745, 96
  %v8065 = vpop.permute.xlu0 %8064
  %8074 = vrot.lane.b32.xlu0 %v7746, 112
  %v8075 = vpop.permute.xlu0 %8074
  %8076 = vrot.lane.b32.xlu0 %v7747, 112
  %v8077 = vpop.permute.xlu0 %8076
  %8078 = vrot.lane.b32.xlu0 %v7748, 112
  %v8079 = vpop.permute.xlu0 %8078
  %8080 = vrot.lane.b32.xlu0 %v7749, 112
  %v8081 = vpop.permute.xlu0 %8080
  %8090 = vrot.lane.b32.xlu0 %v7754, 16
  %v8091 = vpop.permute.xlu0 %8090
  %8092 = vrot.lane.b32.xlu0 %v7755, 16
  %v8093 = vpop.permute.xlu0 %8092
  %8094 = vrot.lane.b32.xlu0 %v7756, 16
  %v8095 = vpop.permute.xlu0 %8094
  %8096 = vrot.lane.b32.xlu0 %v7757, 16
  %v8097 = vpop.permute.xlu0 %8096
  %8106 = vrot.lane.b32.xlu0 %v7758, 32
  %v8107 = vpop.permute.xlu0 %8106
  %8108 = vrot.lane.b32.xlu0 %v7759, 32
  %v8109 = vpop.permute.xlu0 %8108
  %8110 = vrot.lane.b32.xlu0 %v7760, 32
  %v8111 = vpop.permute.xlu0 %8110
  %8112 = vrot.lane.b32.xlu0 %v7761, 32
  %v8113 = vpop.permute.xlu0 %8112
  %8122 = vrot.lane.b32.xlu0 %v7762, 48
  %v8123 = vpop.permute.xlu0 %8122
  %8124 = vrot.lane.b32.xlu0 %v7763, 48
  %v8125 = vpop.permute.xlu0 %8124
  %8126 = vrot.lane.b32.xlu0 %v7764, 48
  %v8127 = vpop.permute.xlu0 %8126
  %8128 = vrot.lane.b32.xlu0 %v7765, 48
  %v8129 = vpop.permute.xlu0 %8128
  %8138 = vrot.lane.b32.xlu0 %v7766, 64
  %v8139 = vpop.permute.xlu0 %8138
  %8140 = vrot.lane.b32.xlu0 %v7767, 64
  %v8141 = vpop.permute.xlu0 %8140
  %8142 = vrot.lane.b32.xlu0 %v7768, 64
  %v8143 = vpop.permute.xlu0 %8142
  %8144 = vrot.lane.b32.xlu0 %v7769, 64
  %v8145 = vpop.permute.xlu0 %8144
  %8154 = vrot.lane.b32.xlu0 %v7770, 80
  %v8155 = vpop.permute.xlu0 %8154
  %8156 = vrot.lane.b32.xlu0 %v7771, 80
  %v8157 = vpop.permute.xlu0 %8156
  %8158 = vrot.lane.b32.xlu0 %v7772, 80
  %v8159 = vpop.permute.xlu0 %8158
  %8160 = vrot.lane.b32.xlu0 %v7773, 80
  %v8161 = vpop.permute.xlu0 %8160
  %8170 = vrot.lane.b32.xlu0 %v7774, 96
  %v8171 = vpop.permute.xlu0 %8170
  %8172 = vrot.lane.b32.xlu0 %v7775, 96
  %v8173 = vpop.permute.xlu0 %8172
  %8174 = vrot.lane.b32.xlu0 %v7776, 96
  %v8175 = vpop.permute.xlu0 %8174
  %8176 = vrot.lane.b32.xlu0 %v7777, 96
  %v8177 = vpop.permute.xlu0 %8176
  %8186 = vrot.lane.b32.xlu0 %v7778, 112
  %v8187 = vpop.permute.xlu0 %8186
  %8188 = vrot.lane.b32.xlu0 %v7779, 112
  %v8189 = vpop.permute.xlu0 %8188
  %8190 = vrot.lane.b32.xlu0 %v7780, 112
  %v8191 = vpop.permute.xlu0 %8190
  %8192 = vrot.lane.b32.xlu0 %v7781, 112
  %v8193 = vpop.permute.xlu0 %8192
  %v8198 = vsel %vm123, %v7718, %v7979
  %v8199 = vsel %vm123, %v7719, %v7981
  %v8200 = vsel %vm123, %v7720, %v7983
  %v8201 = vsel %vm123, %v7721, %v7985
  %v8202 = vsel %vm5344, %v8198, %v7995
  %v8203 = vsel %vm5344, %v8199, %v7997
  %v8204 = vsel %vm5344, %v8200, %v7999
  %v8205 = vsel %vm5344, %v8201, %v8001
  %vm8206 = vcmask 392192
  %v8207 = vsel %vm8206, %v8202, %v8011
  %v8208 = vsel %vm8206, %v8203, %v8013
  %v8209 = vsel %vm8206, %v8204, %v8015
  %v8210 = vsel %vm8206, %v8205, %v8017
  %vm8211 = vcmask 523264
  %v8212 = vsel %vm8211, %v8207, %v8027
  %v8213 = vsel %vm8211, %v8208, %v8029
  %v8214 = vsel %vm8211, %v8209, %v8031
  %v8215 = vsel %vm8211, %v8210, %v8033
  %vm8216 = vcmask 654336
  %v8217 = vsel %vm8216, %v8212, %v8043
  %v8218 = vsel %vm8216, %v8213, %v8045
  %v8219 = vsel %vm8216, %v8214, %v8047
  %v8220 = vsel %vm8216, %v8215, %v8049
  %vm8221 = vcmask 785408
  %v8222 = vsel %vm8221, %v8217, %v8059
  %v8223 = vsel %vm8221, %v8218, %v8061
  %v8224 = vsel %vm8221, %v8219, %v8063
  %v8225 = vsel %vm8221, %v8220, %v8065
  %vm8226 = vcmask 916480
  %v8227 = vsel %vm8226, %v8222, %v8075
  %v8228 = vsel %vm8226, %v8223, %v8077
  %v8229 = vsel %vm8226, %v8224, %v8079
  %v8230 = vsel %vm8226, %v8225, %v8081
  %v8231 = vsel %vm123, %v7750, %v8091
  %v8232 = vsel %vm123, %v7751, %v8093
  %v8233 = vsel %vm123, %v7752, %v8095
  %v8234 = vsel %vm123, %v7753, %v8097
  %v8235 = vsel %vm5344, %v8231, %v8107
  %v8236 = vsel %vm5344, %v8232, %v8109
  %v8237 = vsel %vm5344, %v8233, %v8111
  %v8238 = vsel %vm5344, %v8234, %v8113
  %v8239 = vsel %vm8206, %v8235, %v8123
  %v8240 = vsel %vm8206, %v8236, %v8125
  %v8241 = vsel %vm8206, %v8237, %v8127
  %v8242 = vsel %vm8206, %v8238, %v8129
  %v8243 = vsel %vm8211, %v8239, %v8139
  %v8244 = vsel %vm8211, %v8240, %v8141
  %v8245 = vsel %vm8211, %v8241, %v8143
  %v8246 = vsel %vm8211, %v8242, %v8145
  %v8247 = vsel %vm8216, %v8243, %v8155
  %v8248 = vsel %vm8216, %v8244, %v8157
  %v8249 = vsel %vm8216, %v8245, %v8159
  %v8250 = vsel %vm8216, %v8246, %v8161
  %v8251 = vsel %vm8221, %v8247, %v8171
  %v8252 = vsel %vm8221, %v8248, %v8173
  %v8253 = vsel %vm8221, %v8249, %v8175
  %v8254 = vsel %vm8221, %v8250, %v8177
  %v8255 = vsel %vm8226, %v8251, %v8187
  %v8256 = vsel %vm8226, %v8252, %v8189
  %v8257 = vsel %vm8226, %v8253, %v8191
  %v8258 = vsel %vm8226, %v8254, %v8193
  %8263 = vrot.lane.b32.xlu0 %v7786, 16
  %v8264 = vpop.permute.xlu0 %8263
  %8265 = vrot.lane.b32.xlu0 %v7787, 16
  %v8266 = vpop.permute.xlu0 %8265
  %8267 = vrot.lane.b32.xlu0 %v7788, 16
  %v8268 = vpop.permute.xlu0 %8267
  %8269 = vrot.lane.b32.xlu0 %v7789, 16
  %v8270 = vpop.permute.xlu0 %8269
  %8279 = vrot.lane.b32.xlu0 %v7790, 32
  %v8280 = vpop.permute.xlu0 %8279
  %8281 = vrot.lane.b32.xlu0 %v7791, 32
  %v8282 = vpop.permute.xlu0 %8281
  %8283 = vrot.lane.b32.xlu0 %v7792, 32
  %v8284 = vpop.permute.xlu0 %8283
  %8285 = vrot.lane.b32.xlu0 %v7793, 32
  %v8286 = vpop.permute.xlu0 %8285
  %8295 = vrot.lane.b32.xlu0 %v7794, 48
  %v8296 = vpop.permute.xlu0 %8295
  %8297 = vrot.lane.b32.xlu0 %v7795, 48
  %v8298 = vpop.permute.xlu0 %8297
  %8299 = vrot.lane.b32.xlu0 %v7796, 48
  %v8300 = vpop.permute.xlu0 %8299
  %8301 = vrot.lane.b32.xlu0 %v7797, 48
  %v8302 = vpop.permute.xlu0 %8301
  %8311 = vrot.lane.b32.xlu0 %v7798, 64
  %v8312 = vpop.permute.xlu0 %8311
  %8313 = vrot.lane.b32.xlu0 %v7799, 64
  %v8314 = vpop.permute.xlu0 %8313
  %8315 = vrot.lane.b32.xlu0 %v7800, 64
  %v8316 = vpop.permute.xlu0 %8315
  %8317 = vrot.lane.b32.xlu0 %v7801, 64
  %v8318 = vpop.permute.xlu0 %8317
  %8327 = vrot.lane.b32.xlu0 %v7802, 80
  %v8328 = vpop.permute.xlu0 %8327
  %8329 = vrot.lane.b32.xlu0 %v7803, 80
  %v8330 = vpop.permute.xlu0 %8329
  %8331 = vrot.lane.b32.xlu0 %v7804, 80
  %v8332 = vpop.permute.xlu0 %8331
  %8333 = vrot.lane.b32.xlu0 %v7805, 80
  %v8334 = vpop.permute.xlu0 %8333
  %8343 = vrot.lane.b32.xlu0 %v7806, 96
  %v8344 = vpop.permute.xlu0 %8343
  %8345 = vrot.lane.b32.xlu0 %v7807, 96
  %v8346 = vpop.permute.xlu0 %8345
  %8347 = vrot.lane.b32.xlu0 %v7808, 96
  %v8348 = vpop.permute.xlu0 %8347
  %8349 = vrot.lane.b32.xlu0 %v7809, 96
  %v8350 = vpop.permute.xlu0 %8349
  %8359 = vrot.lane.b32.xlu0 %v7810, 112
  %v8360 = vpop.permute.xlu0 %8359
  %8361 = vrot.lane.b32.xlu0 %v7811, 112
  %v8362 = vpop.permute.xlu0 %8361
  %8363 = vrot.lane.b32.xlu0 %v7812, 112
  %v8364 = vpop.permute.xlu0 %8363
  %8365 = vrot.lane.b32.xlu0 %v7813, 112
  %v8366 = vpop.permute.xlu0 %8365
  %8375 = vrot.lane.b32.xlu0 %v7818, 16
  %v8376 = vpop.permute.xlu0 %8375
  %8377 = vrot.lane.b32.xlu0 %v7819, 16
  %v8378 = vpop.permute.xlu0 %8377
  %8379 = vrot.lane.b32.xlu0 %v7820, 16
  %v8380 = vpop.permute.xlu0 %8379
  %8381 = vrot.lane.b32.xlu0 %v7821, 16
  %v8382 = vpop.permute.xlu0 %8381
  %8391 = vrot.lane.b32.xlu0 %v7822, 32
  %v8392 = vpop.permute.xlu0 %8391
  %8393 = vrot.lane.b32.xlu0 %v7823, 32
  %v8394 = vpop.permute.xlu0 %8393
  %8395 = vrot.lane.b32.xlu0 %v7824, 32
  %v8396 = vpop.permute.xlu0 %8395
  %8397 = vrot.lane.b32.xlu0 %v7825, 32
  %v8398 = vpop.permute.xlu0 %8397
  %8407 = vrot.lane.b32.xlu0 %v7826, 48
  %v8408 = vpop.permute.xlu0 %8407
  %8409 = vrot.lane.b32.xlu0 %v7827, 48
  %v8410 = vpop.permute.xlu0 %8409
  %8411 = vrot.lane.b32.xlu0 %v7828, 48
  %v8412 = vpop.permute.xlu0 %8411
  %8413 = vrot.lane.b32.xlu0 %v7829, 48
  %v8414 = vpop.permute.xlu0 %8413
  %8423 = vrot.lane.b32.xlu0 %v7830, 64
  %v8424 = vpop.permute.xlu0 %8423
  %8425 = vrot.lane.b32.xlu0 %v7831, 64
  %v8426 = vpop.permute.xlu0 %8425
  %8427 = vrot.lane.b32.xlu0 %v7832, 64
  %v8428 = vpop.permute.xlu0 %8427
  %8429 = vrot.lane.b32.xlu0 %v7833, 64
  %v8430 = vpop.permute.xlu0 %8429
  %8439 = vrot.lane.b32.xlu0 %v7834, 80
  %v8440 = vpop.permute.xlu0 %8439
  %8441 = vrot.lane.b32.xlu0 %v7835, 80
  %v8442 = vpop.permute.xlu0 %8441
  %8443 = vrot.lane.b32.xlu0 %v7836, 80
  %v8444 = vpop.permute.xlu0 %8443
  %8445 = vrot.lane.b32.xlu0 %v7837, 80
  %v8446 = vpop.permute.xlu0 %8445
  %8455 = vrot.lane.b32.xlu0 %v7838, 96
  %v8456 = vpop.permute.xlu0 %8455
  %8457 = vrot.lane.b32.xlu0 %v7839, 96
  %v8458 = vpop.permute.xlu0 %8457
  %8459 = vrot.lane.b32.xlu0 %v7840, 96
  %v8460 = vpop.permute.xlu0 %8459
  %8461 = vrot.lane.b32.xlu0 %v7841, 96
  %v8462 = vpop.permute.xlu0 %8461
  %8471 = vrot.lane.b32.xlu0 %v7842, 112
  %v8472 = vpop.permute.xlu0 %8471
  %8473 = vrot.lane.b32.xlu0 %v7843, 112
  %v8474 = vpop.permute.xlu0 %8473
  %8475 = vrot.lane.b32.xlu0 %v7844, 112
  %v8476 = vpop.permute.xlu0 %8475
  %8477 = vrot.lane.b32.xlu0 %v7845, 112
  %v8478 = vpop.permute.xlu0 %8477
  %v8483 = vsel %vm123, %v7782, %v8264
  %v8484 = vsel %vm123, %v7783, %v8266
  %v8485 = vsel %vm123, %v7784, %v8268
  %v8486 = vsel %vm123, %v7785, %v8270
  %v8487 = vsel %vm5344, %v8483, %v8280
  %v8488 = vsel %vm5344, %v8484, %v8282
  %v8489 = vsel %vm5344, %v8485, %v8284
  %v8490 = vsel %vm5344, %v8486, %v8286
  %v8491 = vsel %vm8206, %v8487, %v8296
  %v8492 = vsel %vm8206, %v8488, %v8298
  %v8493 = vsel %vm8206, %v8489, %v8300
  %v8494 = vsel %vm8206, %v8490, %v8302
  %v8495 = vsel %vm8211, %v8491, %v8312
  %v8496 = vsel %vm8211, %v8492, %v8314
  %v8497 = vsel %vm8211, %v8493, %v8316
  %v8498 = vsel %vm8211, %v8494, %v8318
  %v8499 = vsel %vm8216, %v8495, %v8328
  %v8500 = vsel %vm8216, %v8496, %v8330
  %v8501 = vsel %vm8216, %v8497, %v8332
  %v8502 = vsel %vm8216, %v8498, %v8334
  %v8503 = vsel %vm8221, %v8499, %v8344
  %v8504 = vsel %vm8221, %v8500, %v8346
  %v8505 = vsel %vm8221, %v8501, %v8348
  %v8506 = vsel %vm8221, %v8502, %v8350
  %v8507 = vsel %vm8226, %v8503, %v8360
  %v8508 = vsel %vm8226, %v8504, %v8362
  %v8509 = vsel %vm8226, %v8505, %v8364
  %v8510 = vsel %vm8226, %v8506, %v8366
  %v8511 = vsel %vm123, %v7814, %v8376
  %v8512 = vsel %vm123, %v7815, %v8378
  %v8513 = vsel %vm123, %v7816, %v8380
  %v8514 = vsel %vm123, %v7817, %v8382
  %v8515 = vsel %vm5344, %v8511, %v8392
  %v8516 = vsel %vm5344, %v8512, %v8394
  %v8517 = vsel %vm5344, %v8513, %v8396
  %v8518 = vsel %vm5344, %v8514, %v8398
  %v8519 = vsel %vm8206, %v8515, %v8408
  %v8520 = vsel %vm8206, %v8516, %v8410
  %v8521 = vsel %vm8206, %v8517, %v8412
  %v8522 = vsel %vm8206, %v8518, %v8414
  %v8523 = vsel %vm8211, %v8519, %v8424
  %v8524 = vsel %vm8211, %v8520, %v8426
  %v8525 = vsel %vm8211, %v8521, %v8428
  %v8526 = vsel %vm8211, %v8522, %v8430
  %v8527 = vsel %vm8216, %v8523, %v8440
  %v8528 = vsel %vm8216, %v8524, %v8442
  %v8529 = vsel %vm8216, %v8525, %v8444
  %v8530 = vsel %vm8216, %v8526, %v8446
  %v8531 = vsel %vm8221, %v8527, %v8456
  %v8532 = vsel %vm8221, %v8528, %v8458
  %v8533 = vsel %vm8221, %v8529, %v8460
  %v8534 = vsel %vm8221, %v8530, %v8462
  %v8535 = vsel %vm8226, %v8531, %v8472
  %v8536 = vsel %vm8226, %v8532, %v8474
  %v8537 = vsel %vm8226, %v8533, %v8476
  %v8538 = vsel %vm8226, %v8534, %v8478
  %8543 = vrot.lane.b32.xlu0 %v7850, 16
  %v8544 = vpop.permute.xlu0 %8543
  %8545 = vrot.lane.b32.xlu0 %v7851, 16
  %v8546 = vpop.permute.xlu0 %8545
  %8547 = vrot.lane.b32.xlu0 %v7852, 16
  %v8548 = vpop.permute.xlu0 %8547
  %8549 = vrot.lane.b32.xlu0 %v7853, 16
  %v8550 = vpop.permute.xlu0 %8549
  %8559 = vrot.lane.b32.xlu0 %v7854, 32
  %v8560 = vpop.permute.xlu0 %8559
  %8561 = vrot.lane.b32.xlu0 %v7855, 32
  %v8562 = vpop.permute.xlu0 %8561
  %8563 = vrot.lane.b32.xlu0 %v7856, 32
  %v8564 = vpop.permute.xlu0 %8563
  %8565 = vrot.lane.b32.xlu0 %v7857, 32
  %v8566 = vpop.permute.xlu0 %8565
  %8575 = vrot.lane.b32.xlu0 %v7858, 48
  %v8576 = vpop.permute.xlu0 %8575
  %8577 = vrot.lane.b32.xlu0 %v7859, 48
  %v8578 = vpop.permute.xlu0 %8577
  %8579 = vrot.lane.b32.xlu0 %v7860, 48
  %v8580 = vpop.permute.xlu0 %8579
  %8581 = vrot.lane.b32.xlu0 %v7861, 48
  %v8582 = vpop.permute.xlu0 %8581
  %8591 = vrot.lane.b32.xlu0 %v7862, 64
  %v8592 = vpop.permute.xlu0 %8591
  %8593 = vrot.lane.b32.xlu0 %v7863, 64
  %v8594 = vpop.permute.xlu0 %8593
  %8595 = vrot.lane.b32.xlu0 %v7864, 64
  %v8596 = vpop.permute.xlu0 %8595
  %8597 = vrot.lane.b32.xlu0 %v7865, 64
  %v8598 = vpop.permute.xlu0 %8597
  %8607 = vrot.lane.b32.xlu0 %v7866, 80
  %v8608 = vpop.permute.xlu0 %8607
  %8609 = vrot.lane.b32.xlu0 %v7867, 80
  %v8610 = vpop.permute.xlu0 %8609
  %8611 = vrot.lane.b32.xlu0 %v7868, 80
  %v8612 = vpop.permute.xlu0 %8611
  %8613 = vrot.lane.b32.xlu0 %v7869, 80
  %v8614 = vpop.permute.xlu0 %8613
  %8623 = vrot.lane.b32.xlu0 %v7870, 96
  %v8624 = vpop.permute.xlu0 %8623
  %8625 = vrot.lane.b32.xlu0 %v7871, 96
  %v8626 = vpop.permute.xlu0 %8625
  %8627 = vrot.lane.b32.xlu0 %v7872, 96
  %v8628 = vpop.permute.xlu0 %8627
  %8629 = vrot.lane.b32.xlu0 %v7873, 96
  %v8630 = vpop.permute.xlu0 %8629
  %8639 = vrot.lane.b32.xlu0 %v7874, 112
  %v8640 = vpop.permute.xlu0 %8639
  %8641 = vrot.lane.b32.xlu0 %v7875, 112
  %v8642 = vpop.permute.xlu0 %8641
  %8643 = vrot.lane.b32.xlu0 %v7876, 112
  %v8644 = vpop.permute.xlu0 %8643
  %8645 = vrot.lane.b32.xlu0 %v7877, 112
  %v8646 = vpop.permute.xlu0 %8645
  %8655 = vrot.lane.b32.xlu0 %v7882, 16
  %v8656 = vpop.permute.xlu0 %8655
  %8657 = vrot.lane.b32.xlu0 %v7883, 16
  %v8658 = vpop.permute.xlu0 %8657
  %8659 = vrot.lane.b32.xlu0 %v7884, 16
  %v8660 = vpop.permute.xlu0 %8659
  %8661 = vrot.lane.b32.xlu0 %v7885, 16
  %v8662 = vpop.permute.xlu0 %8661
  %8671 = vrot.lane.b32.xlu0 %v7886, 32
  %v8672 = vpop.permute.xlu0 %8671
  %8673 = vrot.lane.b32.xlu0 %v7887, 32
  %v8674 = vpop.permute.xlu0 %8673
  %8675 = vrot.lane.b32.xlu0 %v7888, 32
  %v8676 = vpop.permute.xlu0 %8675
  %8677 = vrot.lane.b32.xlu0 %v7889, 32
  %v8678 = vpop.permute.xlu0 %8677
  %8687 = vrot.lane.b32.xlu0 %v7890, 48
  %v8688 = vpop.permute.xlu0 %8687
  %8689 = vrot.lane.b32.xlu0 %v7891, 48
  %v8690 = vpop.permute.xlu0 %8689
  %8691 = vrot.lane.b32.xlu0 %v7892, 48
  %v8692 = vpop.permute.xlu0 %8691
  %8693 = vrot.lane.b32.xlu0 %v7893, 48
  %v8694 = vpop.permute.xlu0 %8693
  %8703 = vrot.lane.b32.xlu0 %v7894, 64
  %v8704 = vpop.permute.xlu0 %8703
  %8705 = vrot.lane.b32.xlu0 %v7895, 64
  %v8706 = vpop.permute.xlu0 %8705
  %8707 = vrot.lane.b32.xlu0 %v7896, 64
  %v8708 = vpop.permute.xlu0 %8707
  %8709 = vrot.lane.b32.xlu0 %v7897, 64
  %v8710 = vpop.permute.xlu0 %8709
  %8719 = vrot.lane.b32.xlu0 %v7898, 80
  %v8720 = vpop.permute.xlu0 %8719
  %8721 = vrot.lane.b32.xlu0 %v7899, 80
  %v8722 = vpop.permute.xlu0 %8721
  %8723 = vrot.lane.b32.xlu0 %v7900, 80
  %v8724 = vpop.permute.xlu0 %8723
  %8725 = vrot.lane.b32.xlu0 %v7901, 80
  %v8726 = vpop.permute.xlu0 %8725
  %8735 = vrot.lane.b32.xlu0 %v7902, 96
  %v8736 = vpop.permute.xlu0 %8735
  %8737 = vrot.lane.b32.xlu0 %v7903, 96
  %v8738 = vpop.permute.xlu0 %8737
  %8739 = vrot.lane.b32.xlu0 %v7904, 96
  %v8740 = vpop.permute.xlu0 %8739
  %8741 = vrot.lane.b32.xlu0 %v7905, 96
  %v8742 = vpop.permute.xlu0 %8741
  %8751 = vrot.lane.b32.xlu0 %v7906, 112
  %v8752 = vpop.permute.xlu0 %8751
  %8753 = vrot.lane.b32.xlu0 %v7907, 112
  %v8754 = vpop.permute.xlu0 %8753
  %8755 = vrot.lane.b32.xlu0 %v7908, 112
  %v8756 = vpop.permute.xlu0 %8755
  %8757 = vrot.lane.b32.xlu0 %v7909, 112
  %v8758 = vpop.permute.xlu0 %8757
  %v8763 = vsel %vm123, %v7846, %v8544
  %v8764 = vsel %vm123, %v7847, %v8546
  %v8765 = vsel %vm123, %v7848, %v8548
  %v8766 = vsel %vm123, %v7849, %v8550
  %v8767 = vsel %vm5344, %v8763, %v8560
  %v8768 = vsel %vm5344, %v8764, %v8562
  %v8769 = vsel %vm5344, %v8765, %v8564
  %v8770 = vsel %vm5344, %v8766, %v8566
  %v8771 = vsel %vm8206, %v8767, %v8576
  %v8772 = vsel %vm8206, %v8768, %v8578
  %v8773 = vsel %vm8206, %v8769, %v8580
  %v8774 = vsel %vm8206, %v8770, %v8582
  %v8775 = vsel %vm8211, %v8771, %v8592
  %v8776 = vsel %vm8211, %v8772, %v8594
  %v8777 = vsel %vm8211, %v8773, %v8596
  %v8778 = vsel %vm8211, %v8774, %v8598
  %v8779 = vsel %vm8216, %v8775, %v8608
  %v8780 = vsel %vm8216, %v8776, %v8610
  %v8781 = vsel %vm8216, %v8777, %v8612
  %v8782 = vsel %vm8216, %v8778, %v8614
  %v8783 = vsel %vm8221, %v8779, %v8624
  %v8784 = vsel %vm8221, %v8780, %v8626
  %v8785 = vsel %vm8221, %v8781, %v8628
  %v8786 = vsel %vm8221, %v8782, %v8630
  %v8787 = vsel %vm8226, %v8783, %v8640
  %v8788 = vsel %vm8226, %v8784, %v8642
  %v8789 = vsel %vm8226, %v8785, %v8644
  %v8790 = vsel %vm8226, %v8786, %v8646
  %v8791 = vsel %vm123, %v7878, %v8656
  %v8792 = vsel %vm123, %v7879, %v8658
  %v8793 = vsel %vm123, %v7880, %v8660
  %v8794 = vsel %vm123, %v7881, %v8662
  %v8795 = vsel %vm5344, %v8791, %v8672
  %v8796 = vsel %vm5344, %v8792, %v8674
  %v8797 = vsel %vm5344, %v8793, %v8676
  %v8798 = vsel %vm5344, %v8794, %v8678
  %v8799 = vsel %vm8206, %v8795, %v8688
  %v8800 = vsel %vm8206, %v8796, %v8690
  %v8801 = vsel %vm8206, %v8797, %v8692
  %v8802 = vsel %vm8206, %v8798, %v8694
  %v8803 = vsel %vm8211, %v8799, %v8704
  %v8804 = vsel %vm8211, %v8800, %v8706
  %v8805 = vsel %vm8211, %v8801, %v8708
  %v8806 = vsel %vm8211, %v8802, %v8710
  %v8807 = vsel %vm8216, %v8803, %v8720
  %v8808 = vsel %vm8216, %v8804, %v8722
  %v8809 = vsel %vm8216, %v8805, %v8724
  %v8810 = vsel %vm8216, %v8806, %v8726
  %v8811 = vsel %vm8221, %v8807, %v8736
  %v8812 = vsel %vm8221, %v8808, %v8738
  %v8813 = vsel %vm8221, %v8809, %v8740
  %v8814 = vsel %vm8221, %v8810, %v8742
  %v8815 = vsel %vm8226, %v8811, %v8752
  %v8816 = vsel %vm8226, %v8812, %v8754
  %v8817 = vsel %vm8226, %v8813, %v8756
  %v8818 = vsel %vm8226, %v8814, %v8758
  %8823 = vrot.lane.b32.xlu0 %v7914, 16
  %v8824 = vpop.permute.xlu0 %8823
  %8825 = vrot.lane.b32.xlu0 %v7915, 16
  %v8826 = vpop.permute.xlu0 %8825
  %8827 = vrot.lane.b32.xlu0 %v7916, 16
  %v8828 = vpop.permute.xlu0 %8827
  %8829 = vrot.lane.b32.xlu0 %v7917, 16
  %v8830 = vpop.permute.xlu0 %8829
  %8839 = vrot.lane.b32.xlu0 %v7918, 32
  %v8840 = vpop.permute.xlu0 %8839
  %8841 = vrot.lane.b32.xlu0 %v7919, 32
  %v8842 = vpop.permute.xlu0 %8841
  %8843 = vrot.lane.b32.xlu0 %v7920, 32
  %v8844 = vpop.permute.xlu0 %8843
  %8845 = vrot.lane.b32.xlu0 %v7921, 32
  %v8846 = vpop.permute.xlu0 %8845
  %8855 = vrot.lane.b32.xlu0 %v7922, 48
  %v8856 = vpop.permute.xlu0 %8855
  %8857 = vrot.lane.b32.xlu0 %v7923, 48
  %v8858 = vpop.permute.xlu0 %8857
  %8859 = vrot.lane.b32.xlu0 %v7924, 48
  %v8860 = vpop.permute.xlu0 %8859
  %8861 = vrot.lane.b32.xlu0 %v7925, 48
  %v8862 = vpop.permute.xlu0 %8861
  %8871 = vrot.lane.b32.xlu0 %v7926, 64
  %v8872 = vpop.permute.xlu0 %8871
  %8873 = vrot.lane.b32.xlu0 %v7927, 64
  %v8874 = vpop.permute.xlu0 %8873
  %8875 = vrot.lane.b32.xlu0 %v7928, 64
  %v8876 = vpop.permute.xlu0 %8875
  %8877 = vrot.lane.b32.xlu0 %v7929, 64
  %v8878 = vpop.permute.xlu0 %8877
  %8887 = vrot.lane.b32.xlu0 %v7930, 80
  %v8888 = vpop.permute.xlu0 %8887
  %8889 = vrot.lane.b32.xlu0 %v7931, 80
  %v8890 = vpop.permute.xlu0 %8889
  %8891 = vrot.lane.b32.xlu0 %v7932, 80
  %v8892 = vpop.permute.xlu0 %8891
  %8893 = vrot.lane.b32.xlu0 %v7933, 80
  %v8894 = vpop.permute.xlu0 %8893
  %8903 = vrot.lane.b32.xlu0 %v7934, 96
  %v8904 = vpop.permute.xlu0 %8903
  %8905 = vrot.lane.b32.xlu0 %v7935, 96
  %v8906 = vpop.permute.xlu0 %8905
  %8907 = vrot.lane.b32.xlu0 %v7936, 96
  %v8908 = vpop.permute.xlu0 %8907
  %8909 = vrot.lane.b32.xlu0 %v7937, 96
  %v8910 = vpop.permute.xlu0 %8909
  %8919 = vrot.lane.b32.xlu0 %v7938, 112
  %v8920 = vpop.permute.xlu0 %8919
  %8921 = vrot.lane.b32.xlu0 %v7939, 112
  %v8922 = vpop.permute.xlu0 %8921
  %8923 = vrot.lane.b32.xlu0 %v7940, 112
  %v8924 = vpop.permute.xlu0 %8923
  %8925 = vrot.lane.b32.xlu0 %v7941, 112
  %v8926 = vpop.permute.xlu0 %8925
  %8935 = vrot.lane.b32.xlu0 %v7946, 16
  %v8936 = vpop.permute.xlu0 %8935
  %8937 = vrot.lane.b32.xlu0 %v7947, 16
  %v8938 = vpop.permute.xlu0 %8937
  %8939 = vrot.lane.b32.xlu0 %v7948, 16
  %v8940 = vpop.permute.xlu0 %8939
  %8941 = vrot.lane.b32.xlu0 %v7949, 16
  %v8942 = vpop.permute.xlu0 %8941
  %8951 = vrot.lane.b32.xlu0 %v7950, 32
  %v8952 = vpop.permute.xlu0 %8951
  %8953 = vrot.lane.b32.xlu0 %v7951, 32
  %v8954 = vpop.permute.xlu0 %8953
  %8955 = vrot.lane.b32.xlu0 %v7952, 32
  %v8956 = vpop.permute.xlu0 %8955
  %8957 = vrot.lane.b32.xlu0 %v7953, 32
  %v8958 = vpop.permute.xlu0 %8957
  %8967 = vrot.lane.b32.xlu0 %v7954, 48
  %v8968 = vpop.permute.xlu0 %8967
  %8969 = vrot.lane.b32.xlu0 %v7955, 48
  %v8970 = vpop.permute.xlu0 %8969
  %8971 = vrot.lane.b32.xlu0 %v7956, 48
  %v8972 = vpop.permute.xlu0 %8971
  %8973 = vrot.lane.b32.xlu0 %v7957, 48
  %v8974 = vpop.permute.xlu0 %8973
  %8983 = vrot.lane.b32.xlu0 %v7958, 64
  %v8984 = vpop.permute.xlu0 %8983
  %8985 = vrot.lane.b32.xlu0 %v7959, 64
  %v8986 = vpop.permute.xlu0 %8985
  %8987 = vrot.lane.b32.xlu0 %v7960, 64
  %v8988 = vpop.permute.xlu0 %8987
  %8989 = vrot.lane.b32.xlu0 %v7961, 64
  %v8990 = vpop.permute.xlu0 %8989
  %8999 = vrot.lane.b32.xlu0 %v7962, 80
  %v9000 = vpop.permute.xlu0 %8999
  %9001 = vrot.lane.b32.xlu0 %v7963, 80
  %v9002 = vpop.permute.xlu0 %9001
  %9003 = vrot.lane.b32.xlu0 %v7964, 80
  %v9004 = vpop.permute.xlu0 %9003
  %9005 = vrot.lane.b32.xlu0 %v7965, 80
  %v9006 = vpop.permute.xlu0 %9005
  %9015 = vrot.lane.b32.xlu0 %v7966, 96
  %v9016 = vpop.permute.xlu0 %9015
  %9017 = vrot.lane.b32.xlu0 %v7967, 96
  %v9018 = vpop.permute.xlu0 %9017
  %9019 = vrot.lane.b32.xlu0 %v7968, 96
  %v9020 = vpop.permute.xlu0 %9019
  %9021 = vrot.lane.b32.xlu0 %v7969, 96
  %v9022 = vpop.permute.xlu0 %9021
  %9031 = vrot.lane.b32.xlu0 %v7970, 112
  %v9032 = vpop.permute.xlu0 %9031
  %9033 = vrot.lane.b32.xlu0 %v7971, 112
  %v9034 = vpop.permute.xlu0 %9033
  %9035 = vrot.lane.b32.xlu0 %v7972, 112
  %v9036 = vpop.permute.xlu0 %9035
  %9037 = vrot.lane.b32.xlu0 %v7973, 112
  %v9038 = vpop.permute.xlu0 %9037
  %v9043 = vsel %vm123, %v7910, %v8824
  %v9044 = vsel %vm123, %v7911, %v8826
  %v9045 = vsel %vm123, %v7912, %v8828
  %v9046 = vsel %vm123, %v7913, %v8830
  %v9047 = vsel %vm5344, %v9043, %v8840
  %v9048 = vsel %vm5344, %v9044, %v8842
  %v9049 = vsel %vm5344, %v9045, %v8844
  %v9050 = vsel %vm5344, %v9046, %v8846
  %v9051 = vsel %vm8206, %v9047, %v8856
  %v9052 = vsel %vm8206, %v9048, %v8858
  %v9053 = vsel %vm8206, %v9049, %v8860
  %v9054 = vsel %vm8206, %v9050, %v8862
  %v9055 = vsel %vm8211, %v9051, %v8872
  %v9056 = vsel %vm8211, %v9052, %v8874
  %v9057 = vsel %vm8211, %v9053, %v8876
  %v9058 = vsel %vm8211, %v9054, %v8878
  %v9059 = vsel %vm8216, %v9055, %v8888
  %v9060 = vsel %vm8216, %v9056, %v8890
  %v9061 = vsel %vm8216, %v9057, %v8892
  %v9062 = vsel %vm8216, %v9058, %v8894
  %v9063 = vsel %vm8221, %v9059, %v8904
  %v9064 = vsel %vm8221, %v9060, %v8906
  %v9065 = vsel %vm8221, %v9061, %v8908
  %v9066 = vsel %vm8221, %v9062, %v8910
  %v9067 = vsel %vm8226, %v9063, %v8920
  %v9068 = vsel %vm8226, %v9064, %v8922
  %v9069 = vsel %vm8226, %v9065, %v8924
  %v9070 = vsel %vm8226, %v9066, %v8926
  %v9071 = vsel %vm123, %v7942, %v8936
  %v9072 = vsel %vm123, %v7943, %v8938
  %v9073 = vsel %vm123, %v7944, %v8940
  %v9074 = vsel %vm123, %v7945, %v8942
  %v9075 = vsel %vm5344, %v9071, %v8952
  %v9076 = vsel %vm5344, %v9072, %v8954
  %v9077 = vsel %vm5344, %v9073, %v8956
  %v9078 = vsel %vm5344, %v9074, %v8958
  %v9079 = vsel %vm8206, %v9075, %v8968
  %v9080 = vsel %vm8206, %v9076, %v8970
  %v9081 = vsel %vm8206, %v9077, %v8972
  %v9082 = vsel %vm8206, %v9078, %v8974
  %v9083 = vsel %vm8211, %v9079, %v8984
  %v9084 = vsel %vm8211, %v9080, %v8986
  %v9085 = vsel %vm8211, %v9081, %v8988
  %v9086 = vsel %vm8211, %v9082, %v8990
  %v9087 = vsel %vm8216, %v9083, %v9000
  %v9088 = vsel %vm8216, %v9084, %v9002
  %v9089 = vsel %vm8216, %v9085, %v9004
  %v9090 = vsel %vm8216, %v9086, %v9006
  %v9091 = vsel %vm8221, %v9087, %v9016
  %v9092 = vsel %vm8221, %v9088, %v9018
  %v9093 = vsel %vm8221, %v9089, %v9020
  %v9094 = vsel %vm8221, %v9090, %v9022
  %v9095 = vsel %vm8226, %v9091, %v9032
  %v9096 = vsel %vm8226, %v9092, %v9034
  %v9097 = vsel %vm8226, %v9093, %v9036
  %v9098 = vsel %vm8226, %v9094, %v9038
  %v9099 = vld [vmem:[%s5] sm:$0xf]
  %v9100 = vld [vmem:[%s5 + $0x4] sm:$0xf]
  %v9101 = vadd.f32 %v8227, %v8787
  %v9102 = vadd.f32 %v8255, %v8815
  %v9103 = vadd.f32 %v8507, %v9067
  %v9104 = vadd.f32 %v8535, %v9095
  %v9105 = vadd.f32 %v8228, %v8788
  %v9106 = vadd.f32 %v8256, %v8816
  %v9107 = vadd.f32 %v8508, %v9068
  %v9108 = vadd.f32 %v8536, %v9096
  %v9109 = vadd.f32 %v8229, %v8789
  %v9110 = vadd.f32 %v8257, %v8817
  %v9111 = vadd.f32 %v8509, %v9069
  %v9112 = vadd.f32 %v8537, %v9097
  %v9113 = vadd.f32 %v8230, %v8790
  %v9114 = vadd.f32 %v8258, %v8818
  %v9115 = vadd.f32 %v8510, %v9070
  %v9116 = vadd.f32 %v8538, %v9098
  %v9117 = vpack.c.bf16 %v9105, %v9101
  %v9118 = vpack.c.bf16 %v9106, %v9102
  %v9119 = vpack.c.bf16 %v9107, %v9103
  %v9120 = vpack.c.bf16 %v9108, %v9104
  %v9121 = vpack.c.bf16 %v9113, %v9109
  %v9122 = vpack.c.bf16 %v9114, %v9110
  %v9123 = vpack.c.bf16 %v9115, %v9111
  %v9124 = vpack.c.bf16 %v9116, %v9112
  %v9127 = vunpack.c.l.b16 %v9099
  %v9128 = vunpack.c.l.b16 %v9100
  %v9129 = vpack.c.b16 %v9128, %v9127
  %v9131 = vsel %vm5344, %v9129, 0
  %9133 = vmatprep.subr.bf16.mxu0 %v9118
  %9134 = vmatpush1.bf16.msra.mxu0 %v9117
  %9135 = vmatprep.subr.bf16.mxu0 %v9122
  %9136 = vmatpush1.bf16.msra.mxu0 %v9121
  %9137 = vmatprep.subr.bf16.mxu0 0
  %9138 = vmatpush1.bf16.msra.mxu0 0
  %9139 = vmatprep.subr.bf16.mxu0 0
  %9140 = vmatpush1.bf16.msra.mxu0 0
  %9141 = vmatprep.subr.bf16.mxu0 0
  %9142 = vmatpush1.bf16.msra.mxu0 0
  %9143 = vmatprep.subr.bf16.mxu0 0
  %9144 = vmatpush1.bf16.msra.mxu0 0
  %9145 = vmatprep.subr.bf16.mxu0 0
  %9146 = vmatpush1.bf16.msra.mxu0 0
  %9147 = vmatprep.subr.bf16.mxu0 0
  %9148 = vmatpush1.bf16.msra.mxu0 0
  %9149 = vmatprep.subr.bf16.mxu0 0
  %9150 = vmatpush1.bf16.msra.mxu0 0
  %9151 = vmatprep.subr.bf16.mxu0 0
  %9152 = vmatpush1.bf16.msra.mxu0 0
  %9153 = vmatprep.subr.bf16.mxu0 0
  %9154 = vmatpush1.bf16.msra.mxu0 0
  %9155 = vmatprep.subr.bf16.mxu0 0
  %9156 = vmatpush1.bf16.msra.mxu0 0
  %9157 = vmatprep.subr.bf16.mxu0 0
  %9158 = vmatpush1.bf16.msra.mxu0 0
  %9159 = vmatprep.subr.bf16.mxu0 0
  %9160 = vmatpush1.bf16.msra.mxu0 0
  %9161 = vmatprep.subr.bf16.mxu0 0
  %9162 = vmatpush1.bf16.msra.mxu0 0
  %9163 = vmatprep.subr.bf16.mxu0 0
  %9164 = vmatpush1.bf16.msra.mxu0 0
  %9165 = vmatprep.mubr.bf16.mxu0 0
  %9166 = vmatmul.mubr.bf16.gmra.mrb[0].mxu0 %v9131
  %v9167 = vpop.f32.mrb[0].mxu0
  %v9168 = vadd.f32 0.0, %v9167
  %v9169 = vpop.f32.mrb[0].mxu0
  %v9170 = vadd.f32 0.0, %v9169
  %v9171 = vpop.f32.mrb[0].mxu0
  %v9172 = vadd.f32 0.0, %v9171
  %v9173 = vpop.f32.mrb[0].mxu0
  %v9174 = vadd.f32 0.0, %v9173
  %9175 = vdwg.mxu0
  %9176 = vmatprep.subr.bf16.mxu0 %v9120
  %9177 = vmatpush1.bf16.msra.mxu0 %v9119
  %9178 = vmatprep.subr.bf16.mxu0 %v9124
  %9179 = vmatpush1.bf16.msra.mxu0 %v9123
  %9180 = vmatprep.subr.bf16.mxu0 0
  %9181 = vmatpush1.bf16.msra.mxu0 0
  %9182 = vmatprep.subr.bf16.mxu0 0
  %9183 = vmatpush1.bf16.msra.mxu0 0
  %9184 = vmatprep.subr.bf16.mxu0 0
  %9185 = vmatpush1.bf16.msra.mxu0 0
  %9186 = vmatprep.subr.bf16.mxu0 0
  %9187 = vmatpush1.bf16.msra.mxu0 0
  %9188 = vmatprep.subr.bf16.mxu0 0
  %9189 = vmatpush1.bf16.msra.mxu0 0
  %9190 = vmatprep.subr.bf16.mxu0 0
  %9191 = vmatpush1.bf16.msra.mxu0 0
  %9192 = vmatprep.subr.bf16.mxu0 0
  %9193 = vmatpush1.bf16.msra.mxu0 0
  %9194 = vmatprep.subr.bf16.mxu0 0
  %9195 = vmatpush1.bf16.msra.mxu0 0
  %9196 = vmatprep.subr.bf16.mxu0 0
  %9197 = vmatpush1.bf16.msra.mxu0 0
  %9198 = vmatprep.subr.bf16.mxu0 0
  %9199 = vmatpush1.bf16.msra.mxu0 0
  %9200 = vmatprep.subr.bf16.mxu0 0
  %9201 = vmatpush1.bf16.msra.mxu0 0
  %9202 = vmatprep.subr.bf16.mxu0 0
  %9203 = vmatpush1.bf16.msra.mxu0 0
  %9204 = vmatprep.subr.bf16.mxu0 0
  %9205 = vmatpush1.bf16.msra.mxu0 0
  %9206 = vmatprep.subr.bf16.mxu0 0
  %9207 = vmatpush1.bf16.msra.mxu0 0
  %9208 = vmatprep.mubr.bf16.mxu0 0
  %9209 = vmatmul.mubr.bf16.gmra.mrb[0].mxu0 %v9131
  %v9210 = vpop.f32.mrb[0].mxu0
  %v9211 = vadd.f32 0.0, %v9210
  %v9212 = vpop.f32.mrb[0].mxu0
  %v9213 = vadd.f32 0.0, %v9212
  %v9214 = vpop.f32.mrb[0].mxu0
  %v9215 = vadd.f32 0.0, %v9214
  %v9216 = vpop.f32.mrb[0].mxu0
  %v9217 = vadd.f32 0.0, %v9216
  %9218 = vdwg.mxu0
  %s9219 = scalar_lea.vmem %s5, 8
  %v9220 = vld [vmem:[%s9219] sm:$0xf]
  %v9221 = vld [vmem:[%s9219 + $0x4] sm:$0xf]
  %v9222 = vpack.c.bf16 %v8228, %v8227
  %v9223 = vpack.c.bf16 %v8256, %v8255
  %v9224 = vpack.c.bf16 %v8508, %v8507
  %v9225 = vpack.c.bf16 %v8536, %v8535
  %v9226 = vpack.c.bf16 %v8230, %v8229
  %v9227 = vpack.c.bf16 %v8258, %v8257
  %v9228 = vpack.c.bf16 %v8510, %v8509
  %v9229 = vpack.c.bf16 %v8538, %v8537
  %v9232 = vunpack.c.l.b16 %v9220
  %v9233 = vunpack.c.l.b16 %v9221
  %v9234 = vpack.c.b16 %v9233, %v9232
  %v9236 = vsel %vm5344, %v9234, 0
  %9238 = vmatprep.subr.bf16.mxu0 %v9223
  %9239 = vmatpush1.bf16.msra.mxu0 %v9222
  %9240 = vmatprep.subr.bf16.mxu0 %v9227
  %9241 = vmatpush1.bf16.msra.mxu0 %v9226
  %9242 = vmatprep.subr.bf16.mxu0 0
  %9243 = vmatpush1.bf16.msra.mxu0 0
  %9244 = vmatprep.subr.bf16.mxu0 0
  %9245 = vmatpush1.bf16.msra.mxu0 0
  %9246 = vmatprep.subr.bf16.mxu0 0
  %9247 = vmatpush1.bf16.msra.mxu0 0
  %9248 = vmatprep.subr.bf16.mxu0 0
  %9249 = vmatpush1.bf16.msra.mxu0 0
  %9250 = vmatprep.subr.bf16.mxu0 0
  %9251 = vmatpush1.bf16.msra.mxu0 0
  %9252 = vmatprep.subr.bf16.mxu0 0
  %9253 = vmatpush1.bf16.msra.mxu0 0
  %9254 = vmatprep.subr.bf16.mxu0 0
  %9255 = vmatpush1.bf16.msra.mxu0 0
  %9256 = vmatprep.subr.bf16.mxu0 0
  %9257 = vmatpush1.bf16.msra.mxu0 0
  %9258 = vmatprep.subr.bf16.mxu0 0
  %9259 = vmatpush1.bf16.msra.mxu0 0
  %9260 = vmatprep.subr.bf16.mxu0 0
  %9261 = vmatpush1.bf16.msra.mxu0 0
  %9262 = vmatprep.subr.bf16.mxu0 0
  %9263 = vmatpush1.bf16.msra.mxu0 0
  %9264 = vmatprep.subr.bf16.mxu0 0
  %9265 = vmatpush1.bf16.msra.mxu0 0
  %9266 = vmatprep.subr.bf16.mxu0 0
  %9267 = vmatpush1.bf16.msra.mxu0 0
  %9268 = vmatprep.subr.bf16.mxu0 0
  %9269 = vmatpush1.bf16.msra.mxu0 0
  %9270 = vmatprep.mubr.bf16.mxu0 0
  %9271 = vmatmul.mubr.bf16.gmra.mrb[0].mxu0 %v9236
  %v9272 = vpop.f32.mrb[0].mxu0
  %v9273 = vadd.f32 0.0, %v9272
  %v9274 = vpop.f32.mrb[0].mxu0
  %v9275 = vadd.f32 0.0, %v9274
  %v9276 = vpop.f32.mrb[0].mxu0
  %v9277 = vadd.f32 0.0, %v9276
  %v9278 = vpop.f32.mrb[0].mxu0
  %v9279 = vadd.f32 0.0, %v9278
  %9280 = vdwg.mxu0
  %9281 = vmatprep.subr.bf16.mxu0 %v9225
  %9282 = vmatpush1.bf16.msra.mxu0 %v9224
  %9283 = vmatprep.subr.bf16.mxu0 %v9229
  %9284 = vmatpush1.bf16.msra.mxu0 %v9228
  %9285 = vmatprep.subr.bf16.mxu0 0
  %9286 = vmatpush1.bf16.msra.mxu0 0
  %9287 = vmatprep.subr.bf16.mxu0 0
  %9288 = vmatpush1.bf16.msra.mxu0 0
  %9289 = vmatprep.subr.bf16.mxu0 0
  %9290 = vmatpush1.bf16.msra.mxu0 0
  %9291 = vmatprep.subr.bf16.mxu0 0
  %9292 = vmatpush1.bf16.msra.mxu0 0
  %9293 = vmatprep.subr.bf16.mxu0 0
  %9294 = vmatpush1.bf16.msra.mxu0 0
  %9295 = vmatprep.subr.bf16.mxu0 0
  %9296 = vmatpush1.bf16.msra.mxu0 0
  %9297 = vmatprep.subr.bf16.mxu0 0
  %9298 = vmatpush1.bf16.msra.mxu0 0
  %9299 = vmatprep.subr.bf16.mxu0 0
  %9300 = vmatpush1.bf16.msra.mxu0 0
  %9301 = vmatprep.subr.bf16.mxu0 0
  %9302 = vmatpush1.bf16.msra.mxu0 0
  %9303 = vmatprep.subr.bf16.mxu0 0
  %9304 = vmatpush1.bf16.msra.mxu0 0
  %9305 = vmatprep.subr.bf16.mxu0 0
  %9306 = vmatpush1.bf16.msra.mxu0 0
  %9307 = vmatprep.subr.bf16.mxu0 0
  %9308 = vmatpush1.bf16.msra.mxu0 0
  %9309 = vmatprep.subr.bf16.mxu0 0
  %9310 = vmatpush1.bf16.msra.mxu0 0
  %9311 = vmatprep.subr.bf16.mxu0 0
  %9312 = vmatpush1.bf16.msra.mxu0 0
  %9313 = vmatprep.mubr.bf16.mxu0 0
  %9314 = vmatmul.mubr.bf16.gmra.mrb[0].mxu0 %v9236
  %v9315 = vpop.f32.mrb[0].mxu0
  %v9316 = vadd.f32 0.0, %v9315
  %v9317 = vpop.f32.mrb[0].mxu0
  %v9318 = vadd.f32 0.0, %v9317
  %v9319 = vpop.f32.mrb[0].mxu0
  %v9320 = vadd.f32 0.0, %v9319
  %v9321 = vpop.f32.mrb[0].mxu0
  %v9322 = vadd.f32 0.0, %v9321
  %9323 = vdwg.mxu0
  %s9324 = scalar_lea.vmem %s5, 16
  %v9325 = vld [vmem:[%s9324] sm:$0xf]
  %v9326 = vld [vmem:[%s9324 + $0x4] sm:$0xf]
  %v9327 = vpack.c.bf16 %v8788, %v8787
  %v9328 = vpack.c.bf16 %v8816, %v8815
  %v9329 = vpack.c.bf16 %v9068, %v9067
  %v9330 = vpack.c.bf16 %v9096, %v9095
  %v9331 = vpack.c.bf16 %v8790, %v8789
  %v9332 = vpack.c.bf16 %v8818, %v8817
  %v9333 = vpack.c.bf16 %v9070, %v9069
  %v9334 = vpack.c.bf16 %v9098, %v9097
  %v9337 = vunpack.c.l.b16 %v9325
  %v9338 = vunpack.c.l.b16 %v9326
  %v9339 = vpack.c.b16 %v9338, %v9337
  %v9341 = vsel %vm5344, %v9339, 0
  %9343 = vmatprep.subr.bf16.mxu0 %v9328
  %9344 = vmatpush1.bf16.msra.mxu0 %v9327
  %9345 = vmatprep.subr.bf16.mxu0 %v9332
  %9346 = vmatpush1.bf16.msra.mxu0 %v9331
  %9347 = vmatprep.subr.bf16.mxu0 0
  %9348 = vmatpush1.bf16.msra.mxu0 0
  %9349 = vmatprep.subr.bf16.mxu0 0
  %9350 = vmatpush1.bf16.msra.mxu0 0
  %9351 = vmatprep.subr.bf16.mxu0 0
  %9352 = vmatpush1.bf16.msra.mxu0 0
  %9353 = vmatprep.subr.bf16.mxu0 0
  %9354 = vmatpush1.bf16.msra.mxu0 0
  %9355 = vmatprep.subr.bf16.mxu0 0
  %9356 = vmatpush1.bf16.msra.mxu0 0
  %9357 = vmatprep.subr.bf16.mxu0 0
  %9358 = vmatpush1.bf16.msra.mxu0 0
  %9359 = vmatprep.subr.bf16.mxu0 0
  %9360 = vmatpush1.bf16.msra.mxu0 0
  %9361 = vmatprep.subr.bf16.mxu0 0
  %9362 = vmatpush1.bf16.msra.mxu0 0
  %9363 = vmatprep.subr.bf16.mxu0 0
  %9364 = vmatpush1.bf16.msra.mxu0 0
  %9365 = vmatprep.subr.bf16.mxu0 0
  %9366 = vmatpush1.bf16.msra.mxu0 0
  %9367 = vmatprep.subr.bf16.mxu0 0
  %9368 = vmatpush1.bf16.msra.mxu0 0
  %9369 = vmatprep.subr.bf16.mxu0 0
  %9370 = vmatpush1.bf16.msra.mxu0 0
  %9371 = vmatprep.subr.bf16.mxu0 0
  %9372 = vmatpush1.bf16.msra.mxu0 0
  %9373 = vmatprep.subr.bf16.mxu0 0
  %9374 = vmatpush1.bf16.msra.mxu0 0
  %9375 = vmatprep.mubr.bf16.mxu0 0
  %9376 = vmatmul.mubr.bf16.gmra.mrb[0].mxu0 %v9341
  %v9377 = vpop.f32.mrb[0].mxu0
  %v9378 = vadd.f32 0.0, %v9377
  %v9379 = vpop.f32.mrb[0].mxu0
  %v9380 = vadd.f32 0.0, %v9379
  %v9381 = vpop.f32.mrb[0].mxu0
  %v9382 = vadd.f32 0.0, %v9381
  %v9383 = vpop.f32.mrb[0].mxu0
  %v9384 = vadd.f32 0.0, %v9383
  %9385 = vdwg.mxu0
  %9386 = vmatprep.subr.bf16.mxu0 %v9330
  %9387 = vmatpush1.bf16.msra.mxu0 %v9329
  %9388 = vmatprep.subr.bf16.mxu0 %v9334
  %9389 = vmatpush1.bf16.msra.mxu0 %v9333
  %9390 = vmatprep.subr.bf16.mxu0 0
  %9391 = vmatpush1.bf16.msra.mxu0 0
  %9392 = vmatprep.subr.bf16.mxu0 0
  %9393 = vmatpush1.bf16.msra.mxu0 0
  %9394 = vmatprep.subr.bf16.mxu0 0
  %9395 = vmatpush1.bf16.msra.mxu0 0
  %9396 = vmatprep.subr.bf16.mxu0 0
  %9397 = vmatpush1.bf16.msra.mxu0 0
  %9398 = vmatprep.subr.bf16.mxu0 0
  %9399 = vmatpush1.bf16.msra.mxu0 0
  %9400 = vmatprep.subr.bf16.mxu0 0
  %9401 = vmatpush1.bf16.msra.mxu0 0
  %9402 = vmatprep.subr.bf16.mxu0 0
  %9403 = vmatpush1.bf16.msra.mxu0 0
  %9404 = vmatprep.subr.bf16.mxu0 0
  %9405 = vmatpush1.bf16.msra.mxu0 0
  %9406 = vmatprep.subr.bf16.mxu0 0
  %9407 = vmatpush1.bf16.msra.mxu0 0
  %9408 = vmatprep.subr.bf16.mxu0 0
  %9409 = vmatpush1.bf16.msra.mxu0 0
  %9410 = vmatprep.subr.bf16.mxu0 0
  %9411 = vmatpush1.bf16.msra.mxu0 0
  %9412 = vmatprep.subr.bf16.mxu0 0
  %9413 = vmatpush1.bf16.msra.mxu0 0
  %9414 = vmatprep.subr.bf16.mxu0 0
  %9415 = vmatpush1.bf16.msra.mxu0 0
  %9416 = vmatprep.subr.bf16.mxu0 0
  %9417 = vmatpush1.bf16.msra.mxu0 0
  %9418 = vmatprep.mubr.bf16.mxu0 0
  %9419 = vmatmul.mubr.bf16.gmra.mrb[0].mxu0 %v9341
  %v9420 = vpop.f32.mrb[0].mxu0
  %v9421 = vadd.f32 0.0, %v9420
  %v9422 = vpop.f32.mrb[0].mxu0
  %v9423 = vadd.f32 0.0, %v9422
  %v9424 = vpop.f32.mrb[0].mxu0
  %v9425 = vadd.f32 0.0, %v9424
  %v9426 = vpop.f32.mrb[0].mxu0
  %v9427 = vadd.f32 0.0, %v9426
  %9428 = vdwg.mxu0
  %v9429 = vsub.f32 %v9168, %v9378
  %v9430 = vsub.f32 %v9170, %v9380
  %v9431 = vsub.f32 %v9211, %v9421
  %v9432 = vsub.f32 %v9213, %v9423
  %v9433 = vsub.f32 %v9172, %v9382
  %v9434 = vsub.f32 %v9174, %v9384
  %v9435 = vsub.f32 %v9215, %v9425
  %v9436 = vsub.f32 %v9217, %v9427
  %v9437 = vadd.f32 %v9168, %v9273
  %v9438 = vadd.f32 %v9170, %v9275
  %v9439 = vadd.f32 %v9211, %v9316
  %v9440 = vadd.f32 %v9213, %v9318
  %v9441 = vadd.f32 %v9172, %v9277
  %v9442 = vadd.f32 %v9174, %v9279
  %v9443 = vadd.f32 %v9215, %v9320
  %v9444 = vadd.f32 %v9217, %v9322
  %v9445 = vmul.f32 %v32, %v9429
  %v9446 = vmul.f32 %v33, %v9430
  %v9447 = vmul.f32 %v34, %v9431
  %v9448 = vmul.f32 %v35, %v9432
  %v9449 = vmul.f32 %v36, %v9433
  %v9450 = vmul.f32 %v37, %v9434
  %v9451 = vmul.f32 %v38, %v9435
  %v9452 = vmul.f32 %v39, %v9436
  %v9453 = vmul.f32 %v41, %v9437
  %v9454 = vmul.f32 %v42, %v9438
  %v9455 = vmul.f32 %v43, %v9439
  %v9456 = vmul.f32 %v44, %v9440
  %v9457 = vmul.f32 %v45, %v9441
  %v9458 = vmul.f32 %v46, %v9442
  %v9459 = vmul.f32 %v47, %v9443
  %v9460 = vmul.f32 %v48, %v9444
  %v9461 = vadd.f32 %v9445, %v9453
  %v9462 = vadd.f32 %v9446, %v9454
  %v9463 = vadd.f32 %v9447, %v9455
  %v9464 = vadd.f32 %v9448, %v9456
  %v9465 = vadd.f32 %v9449, %v9457
  %v9466 = vadd.f32 %v9450, %v9458
  %v9467 = vadd.f32 %v9451, %v9459
  %v9468 = vadd.f32 %v9452, %v9460
  %v9469 = vmul.f32 %v32, %v9437
  %v9470 = vmul.f32 %v33, %v9438
  %v9471 = vmul.f32 %v34, %v9439
  %v9472 = vmul.f32 %v35, %v9440
  %v9473 = vmul.f32 %v36, %v9441
  %v9474 = vmul.f32 %v37, %v9442
  %v9475 = vmul.f32 %v38, %v9443
  %v9476 = vmul.f32 %v39, %v9444
  %v9477 = vmul.f32 %v41, %v9429
  %v9478 = vmul.f32 %v42, %v9430
  %v9479 = vmul.f32 %v43, %v9431
  %v9480 = vmul.f32 %v44, %v9432
  %v9481 = vmul.f32 %v45, %v9433
  %v9482 = vmul.f32 %v46, %v9434
  %v9483 = vmul.f32 %v47, %v9435
  %v9484 = vmul.f32 %v48, %v9436
  %v9485 = vsub.f32 %v9469, %v9477
  %v9486 = vsub.f32 %v9470, %v9478
  %v9487 = vsub.f32 %v9471, %v9479
  %v9488 = vsub.f32 %v9472, %v9480
  %v9489 = vsub.f32 %v9473, %v9481
  %v9490 = vsub.f32 %v9474, %v9482
  %v9491 = vsub.f32 %v9475, %v9483
  %v9492 = vsub.f32 %v9476, %v9484
  %v9493 = vadd.f32 %v9461, %v9462
  %v9494 = vadd.f32 %v9465, %v9466
  %v9495 = vadd.f32 %v9485, %v9486
  %v9496 = vadd.f32 %v9489, %v9490
  %v9497 = vadd.f32 %v9493, %v9463
  %v9498 = vadd.f32 %v9494, %v9467
  %v9499 = vadd.f32 %v9495, %v9487
  %v9500 = vadd.f32 %v9496, %v9491
  %v9501 = vadd.f32 %v9497, %v9464
  %v9502 = vadd.f32 %v9498, %v9468
  %v9503 = vadd.f32 %v9499, %v9488
  %v9504 = vadd.f32 %v9500, %v9492
  %9505 = vst [vmem:[%s7] sm:$0xff] %v9501
  %9506 = vst [vmem:[%s7 + $0x8] sm:$0xff] %v9502
  %s9507 = scalar_lea.vmem %s7, 16
  %9508 = vst [vmem:[%s9507] sm:$0xff] %v9503
  %9509 = vst [vmem:[%s9507 + $0x8] sm:$0xff] %v9504
  // Predicated region
  $region30: #{_run.1} parent=0 // pred_check
    _
  $region31: #{_run.1} parent=0 // pred_check_branch
    %9511 = sbr.rel (0) target = $region33
  $region32: #{_run.1} parent=0 // pred_region
    _
  $region33: #{_run.1} parent=0 // pred_fallthru
    _
  // Predicated region
  $region34: #{_run.1} parent=0 // pred_check
    _
  $region35: #{_run.1} parent=0 // pred_check_branch
    %9513 = sbr.rel (0) target = $region37
  $region36: #{_run.1} parent=0 // pred_region
    _
  $region37: #{_run.1} parent=0 // pred_fallthru
    _

</llo_original>
